<compile_context>
chip_gen: v6e
topology: v6e:2x2x1
jax: 0.10.0
libtpu: 0.0.40
codegen_flags: <defaults>
</compile_context>

<pallas_src>
import jax
import jax.numpy as jnp
from jax.experimental import pallas as pl
from jax.experimental.pallas import tpu as pltpu


def sccnet_forward(x, params, *, eps=1e-5):
    """Pallas TPU forward pass of SCCNet.  x: (N, 1, 22, T) float32 -> (N, 4)."""
    f32 = jnp.float32
    N, _, C_in, T = x.shape
    assert x.shape[1] == 1 and C_in == 22

    PAD, KT = 6, 12                   # conv2 temporal padding / kernel width
    C1, C2, N_CLS = 22, 20, 4
    Tpad = T + 2 * PAD                # padded time length seen by conv2
    T2 = Tpad - KT + 1                # conv2 output length (= T + 1)
    POOL_W, POOL_S = 62, 12
    P_OUT = (T2 - POOL_W) // POOL_S + 1
    assert C2 * P_OUT == params["fc_w"].shape[1], "classifier expects 20*P_OUT features"

    # ---- Fold BatchNorm (inference) into the conv weights / biases -------------
    s1 = params["bn1_gamma"] / jnp.sqrt(params["bn1_var"] + eps)
    w1 = params["conv1_w"].reshape(C1, C_in) * s1[:, None]                 # (22, 22)
    b1 = (params["conv1_b"] - params["bn1_mean"]) * s1 + params["bn1_beta"]
    s2 = params["bn2_gamma"] / jnp.sqrt(params["bn2_var"] + eps)
    w2 = params["conv2_w"].reshape(C2, C1, KT) * s2[:, None, None]         # (20, 22, 12)
    b2 = (params["conv2_b"] - params["bn2_mean"]) * s2 + params["bn2_beta"]

    # ---- Kernel-side layouts (time-major) ---------------------------------------
    w1t = w1.T.astype(f32)                                   # (22 in, 22 out)
    b1r = b1.reshape(1, C1).astype(f32)
    w2t = jnp.transpose(w2, (2, 1, 0)).astype(f32)           # (12, 22 in, 20 out)
    b2r = b2.reshape(1, C2).astype(f32)
    wc3 = jnp.transpose(params["fc_w"].reshape(N_CLS, C2, P_OUT), (2, 1, 0)).astype(f32)
    bcr = params["fc_b"].reshape(1, N_CLS).astype(f32)       # (1, 4)

    # AvgPool2d((1,62), stride (1,12)) as a constant matmul:  pmat[p, t] = 1/62 in window p
    t_idx = jnp.arange(T2)[None, :]
    p_idx = jnp.arange(P_OUT)[:, None]
    pmat = (((t_idx >= p_idx * POOL_S) & (t_idx < p_idx * POOL_S + POOL_W))
            .astype(f32) / POOL_W)                           # (42, 563)

    # Input: (N,1,22,T) -> time-major + zero-pad on time (tiny one-time layout prep,
    # ~100 KB; every heavy intermediate stays inside the fused kernel).
    xt = jnp.transpose(x.reshape(N, C_in, T), (0, 2, 1))
    xp = jnp.pad(xt, ((0, 0), (PAD, PAD), (0, 0))).astype(f32)   # (N, Tpad, 22)

    def kernel(x_ref, w1_ref, b1_ref, w2_ref, b2_ref, p_ref, wc_ref, bc_ref, o_ref):
        xb = x_ref[...]                                              # (Tpad, 22)

        # conv1 (spatial 22x1 filter == matmul over channels) + folded BN1.
        # Mask the bias off the zero-pad rows so conv2 sees true zero padding.
        row = jax.lax.broadcasted_iota(jnp.int32, (Tpad, C1), 0)
        valid = jnp.logical_and(row >= PAD, row < PAD + T).astype(f32)
        h1 = jnp.dot(xb, w1_ref[...], preferred_element_type=f32) + b1_ref[...] * valid

        # conv2 (temporal 1x12, pad 6) + folded BN2: 12 shifted sublane-slice matmuls.
        acc = jnp.dot(h1[0:T2, :], w2_ref[0], preferred_element_type=f32)
        for k in range(1, KT):
            acc = acc + jnp.dot(h1[k:k + T2, :], w2_ref[k], preferred_element_type=f32)
        h2 = acc + b2_ref[...]                                       # (T2, 20)

        # square activation; Dropout(0.5) is identity in inference.
        h2 = h2 * h2

        # AvgPool as a single MXU matmul, then log (matches torch.log).
        pooled = jnp.dot(p_ref[...], h2, preferred_element_type=f32)  # (42, 20)
        feat = jnp.log(pooled)

        # classifier: logits[c] = sum_{t,o} feat[t,o] * Wc[c, o*P_OUT + t] + bc[c]
        tmp = jnp.sum(wc_ref[...] * feat[:, :, None], axis=0)         # (20, 4)
        logits = jnp.sum(tmp, axis=0, keepdims=True)                  # (1, 4)
        o_ref[...] = logits + bc_ref[...]

    out = pl.pallas_call(
        kernel,
        out_shape=jax.ShapeDtypeStruct((N, 1, N_CLS), f32),
        grid_spec=pltpu.PrefetchScalarGridSpec(
            num_scalar_prefetch=0,
            grid=(N,),
            in_specs=[
                pl.BlockSpec((None, Tpad, C_in), lambda n: (n, 0, 0)),   # x (per sample)
                pl.BlockSpec((C_in, C1), lambda n: (0, 0)),              # w1t
                pl.BlockSpec((1, C1), lambda n: (0, 0)),                 # b1
                pl.BlockSpec((KT, C1, C2), lambda n: (0, 0, 0)),         # w2t
                pl.BlockSpec((1, C2), lambda n: (0, 0)),                 # b2
                pl.BlockSpec((P_OUT, T2), lambda n: (0, 0)),             # pool matrix
                pl.BlockSpec((P_OUT, C2, N_CLS), lambda n: (0, 0, 0)),   # fc weight
                pl.BlockSpec((1, N_CLS), lambda n: (0, 0)),              # fc bias
            ],
            out_specs=pl.BlockSpec((None, 1, N_CLS), lambda n: (n, 0, 0)),
        ),
        compiler_params=pltpu.CompilerParams(
            dimension_semantics=("parallel",),   # batch axis -> v7x megacore sharding
        ),
    )(xp, w1t, b1r, w2t, b2r, pmat, wc3, bcr)

    return out.reshape(N, N_CLS)


def sccnet_reference(x, params, *, eps=1e-5):
    """Pure-JAX reference (inference-mode BN, Dropout = identity)."""
    hp = jax.lax.Precision.HIGHEST
    y = jax.lax.conv_general_dilated(
        x, params["conv1_w"], window_strides=(1, 1), padding="VALID",
        dimension_numbers=("NCHW", "OIHW", "NCHW"), precision=hp)
    y = y + params["conv1_b"][None, :, None, None]
    y = ((y - params["bn1_mean"][None, :, None, None])
         / jnp.sqrt(params["bn1_var"][None, :, None, None] + eps)
         * params["bn1_gamma"][None, :, None, None]
         + params["bn1_beta"][None, :, None, None])
    y = jax.lax.conv_general_dilated(
        y, params["conv2_w"], window_strides=(1, 1), padding=((0, 0), (6, 6)),
        dimension_numbers=("NCHW", "OIHW", "NCHW"), precision=hp)
    y = y + params["conv2_b"][None, :, None, None]
    y = ((y - params["bn2_mean"][None, :, None, None])
         / jnp.sqrt(params["bn2_var"][None, :, None, None] + eps)
         * params["bn2_gamma"][None, :, None, None]
         + params["bn2_beta"][None, :, None, None])
    y = y * y                                   # square; dropout identity (eval)
    T2 = y.shape[-1]
    p_out = (T2 - 62) // 12 + 1
    y = jnp.stack([jnp.mean(y[..., p * 12:p * 12 + 62], axis=-1)
                   for p in range(p_out)], axis=-1)          # (N, 20, 1, p_out)
    y = jnp.log(y)
    y = y.reshape(y.shape[0], -1)                            # (N, 840)
    return jnp.dot(y, params["fc_w"].T, precision=hp) + params["fc_b"]


if __name__ == "__main__":
    key = jax.random.PRNGKey(0)
    keys = jax.random.split(key, 16)

    # Shapes implied by the module: 22 EEG channels, T such that the pooled width
    # is 42 (-> 20*42 = 840 classifier features).  T = 562 is the canonical SCCNet size.
    N, T = 2, 562
    x = jax.random.normal(keys[0], (N, 1, 22, T), dtype=jnp.float32)

    params = {
        "conv1_w": 0.1 * jax.random.normal(keys[1], (22, 1, 22, 1), jnp.float32),
        "conv1_b": 0.1 * jax.random.normal(keys[2], (22,), jnp.float32),
        "bn1_gamma": jax.random.uniform(keys[3], (22,), jnp.float32, 0.5, 1.5),
        "bn1_beta": 0.1 * jax.random.normal(keys[4], (22,), jnp.float32),
        "bn1_mean": 0.1 * jax.random.normal(keys[5], (22,), jnp.float32),
        "bn1_var": jax.random.uniform(keys[6], (22,), jnp.float32, 0.5, 1.5),
        "conv2_w": 0.1 * jax.random.normal(keys[7], (20, 22, 1, 12), jnp.float32),
        "conv2_b": 0.1 * jax.random.normal(keys[8], (20,), jnp.float32),
        "bn2_gamma": jax.random.uniform(keys[9], (20,), jnp.float32, 0.5, 1.5),
        "bn2_beta": 0.1 * jax.random.normal(keys[10], (20,), jnp.float32),
        "bn2_mean": 0.1 * jax.random.normal(keys[11], (20,), jnp.float32),
        "bn2_var": jax.random.uniform(keys[12], (20,), jnp.float32, 0.5, 1.5),
        "fc_w": 0.05 * jax.random.normal(keys[13], (4, 840), jnp.float32),
        "fc_b": 0.05 * jax.random.normal(keys[14], (4,), jnp.float32),
    }

    fwd = jax.jit(sccnet_forward)
    y = fwd(x, params)
    jax.block_until_ready(y)

    ref = sccnet_reference(x, params)
    assert y.shape == (N, 4) and y.dtype == jnp.float32
    assert bool(jnp.all(jnp.isfinite(y)))
    assert jnp.allclose(y, ref, atol=5e-2, rtol=5e-2), (y, ref)

    print("KERNEL_OK")
</pallas_src>

<mosaic_0001>
module attributes {stable_mosaic.version = 11 : i64} {
  func.func @kernel(%arg0: i32, %arg1: memref<1x574x22xf32, #tpu.memory_space<vmem>>, %arg2: memref<22x22xf32, #tpu.memory_space<vmem>>, %arg3: memref<1x22xf32, #tpu.memory_space<vmem>>, %arg4: memref<12x22x20xf32, #tpu.memory_space<vmem>>, %arg5: memref<1x20xf32, #tpu.memory_space<vmem>>, %arg6: memref<42x563xf32, #tpu.memory_space<vmem>>, %arg7: memref<42x20x4xf32, #tpu.memory_space<vmem>>, %arg8: memref<1x4xf32, #tpu.memory_space<vmem>>, %arg9: memref<1x1x4xf32, #tpu.memory_space<vmem>>) attributes {dimension_semantics = [#tpu.dimension_semantics<parallel>], iteration_bounds = array<i64: 2>, scalar_prefetch = 0 : i64, scratch_operands = 0 : i64, tpu.core_type = #tpu.core_type<tc>, window_params = [{transform_indices = @transform_0, window_bounds = array<i64: 1, 574, 22>}, {pipeline_mode = #tpu.pipeline_mode<synchronous>, transform_indices = @transform_1, window_bounds = array<i64: 22, 22>}, {pipeline_mode = #tpu.pipeline_mode<synchronous>, transform_indices = @transform_2, window_bounds = array<i64: 1, 22>}, {pipeline_mode = #tpu.pipeline_mode<synchronous>, transform_indices = @transform_3, window_bounds = array<i64: 12, 22, 20>}, {pipeline_mode = #tpu.pipeline_mode<synchronous>, transform_indices = @transform_4, window_bounds = array<i64: 1, 20>}, {pipeline_mode = #tpu.pipeline_mode<synchronous>, transform_indices = @transform_5, window_bounds = array<i64: 42, 563>}, {pipeline_mode = #tpu.pipeline_mode<synchronous>, transform_indices = @transform_6, window_bounds = array<i64: 42, 20, 4>}, {pipeline_mode = #tpu.pipeline_mode<synchronous>, transform_indices = @transform_7, window_bounds = array<i64: 1, 4>}, {transform_indices = @transform_8, window_bounds = array<i64: 1, 1, 4>}]} {
    %c0 = arith.constant 0 : index
    %c0_0 = arith.constant 0 : index
    %c0_1 = arith.constant 0 : index
    %0 = vector.load %arg1[%c0, %c0_0, %c0_1] : memref<1x574x22xf32, #tpu.memory_space<vmem>>, vector<1x574x22xf32>
    %1 = vector.shape_cast %0 : vector<1x574x22xf32> to vector<574x22xf32>
    %2 = tpu.iota {dimensions = array<i32: 0>} : vector<574x22xi32>
    %c6_i32 = arith.constant 6 : i32
    %3 = vector.broadcast %c6_i32 : i32 to vector<574x22xi32>
    %4 = arith.cmpi sge, %2, %3 : vector<574x22xi32>
    %c568_i32 = arith.constant 568 : i32
    %5 = vector.broadcast %c568_i32 : i32 to vector<574x22xi32>
    %6 = arith.cmpi slt, %2, %5 : vector<574x22xi32>
    %7 = arith.andi %4, %6 : vector<574x22xi1>
    %8 = arith.extui %7 : vector<574x22xi1> to vector<574x22xi32>
    %9 = arith.sitofp %8 : vector<574x22xi32> to vector<574x22xf32>
    %c0_2 = arith.constant 0 : index
    %c0_3 = arith.constant 0 : index
    %10 = vector.load %arg2[%c0_2, %c0_3] : memref<22x22xf32, #tpu.memory_space<vmem>>, vector<22x22xf32>
    %cst = arith.constant dense<0.000000e+00> : vector<574x22xf32>
    %11 = tpu.matmul %1, %10, %cst {dimension_numbers = #tpu.dot_dimension_numbers<[1], [0], [0], [1], [0, 0, 1, 1], [], []>} : vector<574x22xf32>, vector<22x22xf32>, vector<574x22xf32> -> vector<574x22xf32>
    %c0_4 = arith.constant 0 : index
    %c0_5 = arith.constant 0 : index
    %12 = vector.load %arg3[%c0_4, %c0_5] : memref<1x22xf32, #tpu.memory_space<vmem>>, vector<1x22xf32>
    %13 = vector.broadcast %12 : vector<1x22xf32> to vector<574x22xf32>
    %14 = arith.mulf %13, %9 : vector<574x22xf32>
    %15 = arith.addf %11, %14 : vector<574x22xf32>
    %16 = vector.extract_strided_slice %15 {offsets = [0, 0], sizes = [563, 22], strides = [1, 1]} : vector<574x22xf32> to vector<563x22xf32>
    %c0_6 = arith.constant 0 : index
    %c0_7 = arith.constant 0 : index
    %c0_8 = arith.constant 0 : index
    %17 = vector.load %arg4[%c0_6, %c0_7, %c0_8] : memref<12x22x20xf32, #tpu.memory_space<vmem>>, vector<1x22x20xf32>
    %18 = vector.shape_cast %17 : vector<1x22x20xf32> to vector<22x20xf32>
    %cst_9 = arith.constant dense<0.000000e+00> : vector<563x20xf32>
    %19 = tpu.matmul %16, %18, %cst_9 {dimension_numbers = #tpu.dot_dimension_numbers<[1], [0], [0], [1], [0, 0, 1, 1], [], []>} : vector<563x22xf32>, vector<22x20xf32>, vector<563x20xf32> -> vector<563x20xf32>
    %20 = vector.extract_strided_slice %15 {offsets = [1, 0], sizes = [563, 22], strides = [1, 1]} : vector<574x22xf32> to vector<563x22xf32>
    %c1 = arith.constant 1 : index
    %c0_10 = arith.constant 0 : index
    %c0_11 = arith.constant 0 : index
    %21 = vector.load %arg4[%c1, %c0_10, %c0_11] : memref<12x22x20xf32, #tpu.memory_space<vmem>>, vector<1x22x20xf32>
    %22 = vector.shape_cast %21 : vector<1x22x20xf32> to vector<22x20xf32>
    %cst_12 = arith.constant dense<0.000000e+00> : vector<563x20xf32>
    %23 = tpu.matmul %20, %22, %cst_12 {dimension_numbers = #tpu.dot_dimension_numbers<[1], [0], [0], [1], [0, 0, 1, 1], [], []>} : vector<563x22xf32>, vector<22x20xf32>, vector<563x20xf32> -> vector<563x20xf32>
    %24 = arith.addf %19, %23 : vector<563x20xf32>
    %25 = vector.extract_strided_slice %15 {offsets = [2, 0], sizes = [563, 22], strides = [1, 1]} : vector<574x22xf32> to vector<563x22xf32>
    %c2 = arith.constant 2 : index
    %c0_13 = arith.constant 0 : index
    %c0_14 = arith.constant 0 : index
    %26 = vector.load %arg4[%c2, %c0_13, %c0_14] : memref<12x22x20xf32, #tpu.memory_space<vmem>>, vector<1x22x20xf32>
    %27 = vector.shape_cast %26 : vector<1x22x20xf32> to vector<22x20xf32>
    %cst_15 = arith.constant dense<0.000000e+00> : vector<563x20xf32>
    %28 = tpu.matmul %25, %27, %cst_15 {dimension_numbers = #tpu.dot_dimension_numbers<[1], [0], [0], [1], [0, 0, 1, 1], [], []>} : vector<563x22xf32>, vector<22x20xf32>, vector<563x20xf32> -> vector<563x20xf32>
    %29 = arith.addf %24, %28 : vector<563x20xf32>
    %30 = vector.extract_strided_slice %15 {offsets = [3, 0], sizes = [563, 22], strides = [1, 1]} : vector<574x22xf32> to vector<563x22xf32>
    %c3 = arith.constant 3 : index
    %c0_16 = arith.constant 0 : index
    %c0_17 = arith.constant 0 : index
    %31 = vector.load %arg4[%c3, %c0_16, %c0_17] : memref<12x22x20xf32, #tpu.memory_space<vmem>>, vector<1x22x20xf32>
    %32 = vector.shape_cast %31 : vector<1x22x20xf32> to vector<22x20xf32>
    %cst_18 = arith.constant dense<0.000000e+00> : vector<563x20xf32>
    %33 = tpu.matmul %30, %32, %cst_18 {dimension_numbers = #tpu.dot_dimension_numbers<[1], [0], [0], [1], [0, 0, 1, 1], [], []>} : vector<563x22xf32>, vector<22x20xf32>, vector<563x20xf32> -> vector<563x20xf32>
    %34 = arith.addf %29, %33 : vector<563x20xf32>
    %35 = vector.extract_strided_slice %15 {offsets = [4, 0], sizes = [563, 22], strides = [1, 1]} : vector<574x22xf32> to vector<563x22xf32>
    %c4 = arith.constant 4 : index
    %c0_19 = arith.constant 0 : index
    %c0_20 = arith.constant 0 : index
    %36 = vector.load %arg4[%c4, %c0_19, %c0_20] : memref<12x22x20xf32, #tpu.memory_space<vmem>>, vector<1x22x20xf32>
    %37 = vector.shape_cast %36 : vector<1x22x20xf32> to vector<22x20xf32>
    %cst_21 = arith.constant dense<0.000000e+00> : vector<563x20xf32>
    %38 = tpu.matmul %35, %37, %cst_21 {dimension_numbers = #tpu.dot_dimension_numbers<[1], [0], [0], [1], [0, 0, 1, 1], [], []>} : vector<563x22xf32>, vector<22x20xf32>, vector<563x20xf32> -> vector<563x20xf32>
    %39 = arith.addf %34, %38 : vector<563x20xf32>
    %40 = vector.extract_strided_slice %15 {offsets = [5, 0], sizes = [563, 22], strides = [1, 1]} : vector<574x22xf32> to vector<563x22xf32>
    %c5 = arith.constant 5 : index
    %c0_22 = arith.constant 0 : index
    %c0_23 = arith.constant 0 : index
    %41 = vector.load %arg4[%c5, %c0_22, %c0_23] : memref<12x22x20xf32, #tpu.memory_space<vmem>>, vector<1x22x20xf32>
    %42 = vector.shape_cast %41 : vector<1x22x20xf32> to vector<22x20xf32>
    %cst_24 = arith.constant dense<0.000000e+00> : vector<563x20xf32>
    %43 = tpu.matmul %40, %42, %cst_24 {dimension_numbers = #tpu.dot_dimension_numbers<[1], [0], [0], [1], [0, 0, 1, 1], [], []>} : vector<563x22xf32>, vector<22x20xf32>, vector<563x20xf32> -> vector<563x20xf32>
    %44 = arith.addf %39, %43 : vector<563x20xf32>
    %45 = vector.extract_strided_slice %15 {offsets = [6, 0], sizes = [563, 22], strides = [1, 1]} : vector<574x22xf32> to vector<563x22xf32>
    %c6 = arith.constant 6 : index
    %c0_25 = arith.constant 0 : index
    %c0_26 = arith.constant 0 : index
    %46 = vector.load %arg4[%c6, %c0_25, %c0_26] : memref<12x22x20xf32, #tpu.memory_space<vmem>>, vector<1x22x20xf32>
    %47 = vector.shape_cast %46 : vector<1x22x20xf32> to vector<22x20xf32>
    %cst_27 = arith.constant dense<0.000000e+00> : vector<563x20xf32>
    %48 = tpu.matmul %45, %47, %cst_27 {dimension_numbers = #tpu.dot_dimension_numbers<[1], [0], [0], [1], [0, 0, 1, 1], [], []>} : vector<563x22xf32>, vector<22x20xf32>, vector<563x20xf32> -> vector<563x20xf32>
    %49 = arith.addf %44, %48 : vector<563x20xf32>
    %50 = vector.extract_strided_slice %15 {offsets = [7, 0], sizes = [563, 22], strides = [1, 1]} : vector<574x22xf32> to vector<563x22xf32>
    %c7 = arith.constant 7 : index
    %c0_28 = arith.constant 0 : index
    %c0_29 = arith.constant 0 : index
    %51 = vector.load %arg4[%c7, %c0_28, %c0_29] : memref<12x22x20xf32, #tpu.memory_space<vmem>>, vector<1x22x20xf32>
    %52 = vector.shape_cast %51 : vector<1x22x20xf32> to vector<22x20xf32>
    %cst_30 = arith.constant dense<0.000000e+00> : vector<563x20xf32>
    %53 = tpu.matmul %50, %52, %cst_30 {dimension_numbers = #tpu.dot_dimension_numbers<[1], [0], [0], [1], [0, 0, 1, 1], [], []>} : vector<563x22xf32>, vector<22x20xf32>, vector<563x20xf32> -> vector<563x20xf32>
    %54 = arith.addf %49, %53 : vector<563x20xf32>
    %55 = vector.extract_strided_slice %15 {offsets = [8, 0], sizes = [563, 22], strides = [1, 1]} : vector<574x22xf32> to vector<563x22xf32>
    %c8 = arith.constant 8 : index
    %c0_31 = arith.constant 0 : index
    %c0_32 = arith.constant 0 : index
    %56 = vector.load %arg4[%c8, %c0_31, %c0_32] : memref<12x22x20xf32, #tpu.memory_space<vmem>>, vector<1x22x20xf32>
    %57 = vector.shape_cast %56 : vector<1x22x20xf32> to vector<22x20xf32>
    %cst_33 = arith.constant dense<0.000000e+00> : vector<563x20xf32>
    %58 = tpu.matmul %55, %57, %cst_33 {dimension_numbers = #tpu.dot_dimension_numbers<[1], [0], [0], [1], [0, 0, 1, 1], [], []>} : vector<563x22xf32>, vector<22x20xf32>, vector<563x20xf32> -> vector<563x20xf32>
    %59 = arith.addf %54, %58 : vector<563x20xf32>
    %60 = vector.extract_strided_slice %15 {offsets = [9, 0], sizes = [563, 22], strides = [1, 1]} : vector<574x22xf32> to vector<563x22xf32>
    %c9 = arith.constant 9 : index
    %c0_34 = arith.constant 0 : index
    %c0_35 = arith.constant 0 : index
    %61 = vector.load %arg4[%c9, %c0_34, %c0_35] : memref<12x22x20xf32, #tpu.memory_space<vmem>>, vector<1x22x20xf32>
    %62 = vector.shape_cast %61 : vector<1x22x20xf32> to vector<22x20xf32>
    %cst_36 = arith.constant dense<0.000000e+00> : vector<563x20xf32>
    %63 = tpu.matmul %60, %62, %cst_36 {dimension_numbers = #tpu.dot_dimension_numbers<[1], [0], [0], [1], [0, 0, 1, 1], [], []>} : vector<563x22xf32>, vector<22x20xf32>, vector<563x20xf32> -> vector<563x20xf32>
    %64 = arith.addf %59, %63 : vector<563x20xf32>
    %65 = vector.extract_strided_slice %15 {offsets = [10, 0], sizes = [563, 22], strides = [1, 1]} : vector<574x22xf32> to vector<563x22xf32>
    %c10 = arith.constant 10 : index
    %c0_37 = arith.constant 0 : index
    %c0_38 = arith.constant 0 : index
    %66 = vector.load %arg4[%c10, %c0_37, %c0_38] : memref<12x22x20xf32, #tpu.memory_space<vmem>>, vector<1x22x20xf32>
    %67 = vector.shape_cast %66 : vector<1x22x20xf32> to vector<22x20xf32>
    %cst_39 = arith.constant dense<0.000000e+00> : vector<563x20xf32>
    %68 = tpu.matmul %65, %67, %cst_39 {dimension_numbers = #tpu.dot_dimension_numbers<[1], [0], [0], [1], [0, 0, 1, 1], [], []>} : vector<563x22xf32>, vector<22x20xf32>, vector<563x20xf32> -> vector<563x20xf32>
    %69 = arith.addf %64, %68 : vector<563x20xf32>
    %70 = vector.extract_strided_slice %15 {offsets = [11, 0], sizes = [563, 22], strides = [1, 1]} : vector<574x22xf32> to vector<563x22xf32>
    %c11 = arith.constant 11 : index
    %c0_40 = arith.constant 0 : index
    %c0_41 = arith.constant 0 : index
    %71 = vector.load %arg4[%c11, %c0_40, %c0_41] : memref<12x22x20xf32, #tpu.memory_space<vmem>>, vector<1x22x20xf32>
    %72 = vector.shape_cast %71 : vector<1x22x20xf32> to vector<22x20xf32>
    %cst_42 = arith.constant dense<0.000000e+00> : vector<563x20xf32>
    %73 = tpu.matmul %70, %72, %cst_42 {dimension_numbers = #tpu.dot_dimension_numbers<[1], [0], [0], [1], [0, 0, 1, 1], [], []>} : vector<563x22xf32>, vector<22x20xf32>, vector<563x20xf32> -> vector<563x20xf32>
    %74 = arith.addf %69, %73 : vector<563x20xf32>
    %c0_43 = arith.constant 0 : index
    %c0_44 = arith.constant 0 : index
    %75 = vector.load %arg5[%c0_43, %c0_44] : memref<1x20xf32, #tpu.memory_space<vmem>>, vector<1x20xf32>
    %76 = vector.broadcast %75 : vector<1x20xf32> to vector<563x20xf32>
    %77 = arith.addf %74, %76 : vector<563x20xf32>
    %78 = arith.mulf %77, %77 : vector<563x20xf32>
    %c0_45 = arith.constant 0 : index
    %c0_46 = arith.constant 0 : index
    %79 = vector.load %arg6[%c0_45, %c0_46] : memref<42x563xf32, #tpu.memory_space<vmem>>, vector<42x563xf32>
    %cst_47 = arith.constant dense<0.000000e+00> : vector<42x20xf32>
    %80 = tpu.matmul %79, %78, %cst_47 {dimension_numbers = #tpu.dot_dimension_numbers<[1], [0], [0], [1], [0, 0, 1, 1], [], []>} : vector<42x563xf32>, vector<563x20xf32>, vector<42x20xf32> -> vector<42x20xf32>
    %81 = math.log %80 : vector<42x20xf32>
    %c0_48 = arith.constant 0 : index
    %c0_49 = arith.constant 0 : index
    %c0_50 = arith.constant 0 : index
    %82 = vector.load %arg7[%c0_48, %c0_49, %c0_50] : memref<42x20x4xf32, #tpu.memory_space<vmem>>, vector<42x20x4xf32>
    %83 = vector.shape_cast %81 : vector<42x20xf32> to vector<42x20x1xf32>
    %84 = vector.broadcast %83 : vector<42x20x1xf32> to vector<42x20x4xf32>
    %85 = arith.mulf %82, %84 : vector<42x20x4xf32>
    %cst_51 = arith.constant dense<0.000000e+00> : vector<20x4xf32>
    %86 = vector.multi_reduction <add>, %85, %cst_51 [0] : vector<42x20x4xf32> to vector<20x4xf32>
    %cst_52 = arith.constant dense<0.000000e+00> : vector<4xf32>
    %87 = vector.multi_reduction <add>, %86, %cst_52 [0] : vector<20x4xf32> to vector<4xf32>
    %88 = vector.shape_cast %87 : vector<4xf32> to vector<1x4xf32>
    %c0_53 = arith.constant 0 : index
    %c0_54 = arith.constant 0 : index
    %89 = vector.load %arg8[%c0_53, %c0_54] : memref<1x4xf32, #tpu.memory_space<vmem>>, vector<1x4xf32>
    %90 = arith.addf %88, %89 : vector<1x4xf32>
    %c0_55 = arith.constant 0 : index
    %c0_56 = arith.constant 0 : index
    %c0_57 = arith.constant 0 : index
    %91 = vector.load %arg9[%c0_55, %c0_56, %c0_57] : memref<1x1x4xf32, #tpu.memory_space<vmem>>, vector<1x1x4xf32>
    %92 = vector.shape_cast %91 : vector<1x1x4xf32> to vector<1x4xf32>
    %93 = vector.shape_cast %90 : vector<1x4xf32> to vector<1x1x4xf32>
    tpu.vector_store %arg9[%c0_55, %c0_56, %c0_57], %93 {strides = array<i32>} : memref<1x1x4xf32, #tpu.memory_space<vmem>>, vector<1x1x4xf32>,
    return
  }
  func.func @transform_0(%arg0: i32) -> (i32, i32, i32) {
    %c0_i32 = arith.constant 0 : i32
    %c0_i32_0 = arith.constant 0 : i32
    %c0_i32_1 = arith.constant 0 : i32
    return %arg0, %c0_i32, %c0_i32_0 : i32, i32, i32
  }
  func.func @transform_1(%arg0: i32) -> (i32, i32) {
    %c0_i32 = arith.constant 0 : i32
    %c0_i32_0 = arith.constant 0 : i32
    %c0_i32_1 = arith.constant 0 : i32
    return %c0_i32, %c0_i32_0 : i32, i32
  }
  func.func @transform_2(%arg0: i32) -> (i32, i32) {
    %c0_i32 = arith.constant 0 : i32
    %c0_i32_0 = arith.constant 0 : i32
    %c0_i32_1 = arith.constant 0 : i32
    return %c0_i32, %c0_i32_0 : i32, i32
  }
  func.func @transform_3(%arg0: i32) -> (i32, i32, i32) {
    %c0_i32 = arith.constant 0 : i32
    %c0_i32_0 = arith.constant 0 : i32
    %c0_i32_1 = arith.constant 0 : i32
    %c0_i32_2 = arith.constant 0 : i32
    return %c0_i32, %c0_i32_0, %c0_i32_1 : i32, i32, i32
  }
  func.func @transform_4(%arg0: i32) -> (i32, i32) {
    %c0_i32 = arith.constant 0 : i32
    %c0_i32_0 = arith.constant 0 : i32
    %c0_i32_1 = arith.constant 0 : i32
    return %c0_i32, %c0_i32_0 : i32, i32
  }
  func.func @transform_5(%arg0: i32) -> (i32, i32) {
    %c0_i32 = arith.constant 0 : i32
    %c0_i32_0 = arith.constant 0 : i32
    %c0_i32_1 = arith.constant 0 : i32
    return %c0_i32, %c0_i32_0 : i32, i32
  }
  func.func @transform_6(%arg0: i32) -> (i32, i32, i32) {
    %c0_i32 = arith.constant 0 : i32
    %c0_i32_0 = arith.constant 0 : i32
    %c0_i32_1 = arith.constant 0 : i32
    %c0_i32_2 = arith.constant 0 : i32
    return %c0_i32, %c0_i32_0, %c0_i32_1 : i32, i32, i32
  }
  func.func @transform_7(%arg0: i32) -> (i32, i32) {
    %c0_i32 = arith.constant 0 : i32
    %c0_i32_0 = arith.constant 0 : i32
    %c0_i32_1 = arith.constant 0 : i32
    return %c0_i32, %c0_i32_0 : i32, i32
  }
  func.func @transform_8(%arg0: i32) -> (i32, i32, i32) {
    %c0_i32 = arith.constant 0 : i32
    %c0_i32_0 = arith.constant 0 : i32
    %c0_i32_1 = arith.constant 0 : i32
    return %arg0, %c0_i32, %c0_i32_0 : i32, i32, i32
  }
}

</mosaic_0001>

<llo_original>
// kernel: sccnet_forward.1
$region0: #{sccnet_forward.1}
  #allocation0 [shape = 'u32[]', space=smem, size = 0x4, offset = 0x4, fixed_abs, tag = 'smem constant byte address 0x4 - core index']
  #allocation1 [shape = 'u32[144,128]{1,0:T(1,128)}', space=vmem, size = 0x12000, scoped, tag = 'internal scratch']
  %s0 = inlined_call_operand.vmem [shape: f32[2,574,22], index: 0, kind: input, shape index: {}]
  %s1 = inlined_call_operand.vmem [shape: f32[22,22], index: 1, kind: input, shape index: {}]
  %s2 = inlined_call_operand.vmem [shape: f32[1,22], index: 2, kind: input, shape index: {}]
  %s3 = inlined_call_operand.vmem [shape: f32[12,22,20], index: 3, kind: input, shape index: {}]
  %s4 = inlined_call_operand.vmem [shape: f32[1,20], index: 4, kind: input, shape index: {}]
  %s5 = inlined_call_operand.vmem [shape: f32[42,563], index: 5, kind: input, shape index: {}]
  %s6 = inlined_call_operand.vmem [shape: f32[42,20,4], index: 6, kind: input, shape index: {}]
  %s7 = inlined_call_operand.vmem [shape: f32[1,4], index: 7, kind: input, shape index: {}]
  %s8 = inlined_call_operand.hbm [shape: f32[2,1,4], index: 8, kind: output, shape index: {}]
  %s9 = sld [smem:[#allocation0]]
  $region65: #{sccnet_forward.1} parent=0
    _
  %s11 = ssub.s32 1, %s9
  %s12 = scalar_select 0, %s11, %s9
  $region1: #{sccnet_forward.1} parent=0
    #allocation2 [shape = 'u8[1024]{0}', space=vmem, size = 0x400, scoped, tag = 'output window, operand 0']
    #allocation3 [shape = 's32[2]{0}', space=sflag, size = 0x8, scoped, tag = 'scoped memory for sccnet_forward.1']
    %13 = vsyncpa [#allocation3], 0
    %s14 = scalar_lea.sflag [#allocation3], 1
    %15 = vsyncpa %s14, 0
    loop: start=0, step=1, limit=4
    $region2: #{sccnet_forward.1} parent=1 // loop_pre_header
      _
    $region3: #{sccnet_forward.1} parent=1 // loop_header
      %s17 = sphi 0, %s21
      %p18 = scmp.ge.s32.totalorder %s17, 4
      %s27 = sphi 0, %s29
      %s30 = sphi 0, %s27
      %s31 = sphi 0, %s30
      %s47 = sphi 0, %s31
      %s51 = sphi 0, %s51
      %s53 = sphi 0, %s51
      %s54 = sphi 0, %s53
      %s68 = sphi 0, %s54
      %s72 = sphi 0, %s72
      %s74 = sphi 0, %s72
      %s75 = sphi 0, %s74
      %s89 = sphi 0, %s75
      %s93 = sphi 0, %s93
      %s95 = sphi 0, %s93
      %s96 = sphi 0, %s95
      %s110 = sphi 0, %s96
      %s114 = sphi 0, %s114
      %s116 = sphi 0, %s114
      %s117 = sphi 0, %s116
      %s131 = sphi 0, %s117
      %s135 = sphi 0, %s135
      %s137 = sphi 0, %s135
      %s138 = sphi 0, %s137
      %s152 = sphi 0, %s138
      %s156 = sphi 0, %s156
      %s158 = sphi 0, %s156
      %s159 = sphi 0, %s158
      %s173 = sphi 0, %s159
      %s177 = sphi 0, %s177
      %s179 = sphi 0, %s177
      %s180 = sphi 0, %s179
      %s194 = sphi 0, %s180
      %s200 = sphi 0, %s202
      %s203 = sphi 0, %s200
      %s204 = sphi 0, %s203
      %s220 = sphi 0, %s204
    $region4: #{sccnet_forward.1} parent=1 // loop_header_branch
      %20 = sbr.rel (%p18) target = $region8
    $region5: #{sccnet_forward.1} parent=1 // loop_body
      %s22 = ssub.s32 %s17, 1
      %s23 = ssub.s32 %s17, 2
      %s24 = sadd.s32 %s17, 1
      %s25 = ssub.s32 %s17, %s24
      %p26 = scmp.eq.s32.totalorder %s25, 0
      %s28 = sadd.s32 %s27, 1
      %s29 = scalar_select %p26, %s27, %s28
      %p32 = pneg %p26
      %p33 = scmp.eq.s32.totalorder %s17, 1
      %p34 = por %p32, %p33
      %p35 = scmp.ne.s32.totalorder %s27, %s30
      %p36 = scmp.eq.s32.totalorder %s17, 0
      %p37 = por %p35, %p36
      %p38 = scmp.ne.s32.totalorder %s27, %s30
      %p39 = scmp.eq.s32.totalorder %s22, 1
      %p40 = por %p38, %p39
      %p41 = scmp.ne.s32.totalorder %s30, %s31
      %p42 = scmp.eq.s32.totalorder %s22, 0
      %p43 = por %p41, %p42
      %p44 = scmp.ne.s32.totalorder %s30, %s31
      %p45 = scmp.eq.s32.totalorder %s23, 1
      %p46 = por %p44, %p45
      %p48 = scmp.ne.s32.totalorder %s31, %s47
      %p49 = scmp.eq.s32.totalorder %s23, 0
      %p50 = por %p48, %p49
      %s52 = sadd.s32 %s51, 1
      %p55 = scmp.eq.s32.totalorder %s17, 1
      %p56 = scmp.ne.s32.totalorder %s51, %s53
      %p57 = scmp.eq.s32.totalorder %s17, 0
      %p58 = por %p56, %p57
      %p59 = scmp.ne.s32.totalorder %s51, %s53
      %p60 = scmp.eq.s32.totalorder %s22, 1
      %p61 = por %p59, %p60
      %p62 = scmp.ne.s32.totalorder %s53, %s54
      %p63 = scmp.eq.s32.totalorder %s22, 0
      %p64 = por %p62, %p63
      %p65 = scmp.ne.s32.totalorder %s53, %s54
      %p66 = scmp.eq.s32.totalorder %s23, 1
      %p67 = por %p65, %p66
      %p69 = scmp.ne.s32.totalorder %s54, %s68
      %p70 = scmp.eq.s32.totalorder %s23, 0
      %p71 = por %p69, %p70
      %s73 = sadd.s32 %s72, 1
      %p76 = scmp.eq.s32.totalorder %s17, 1
      %p77 = scmp.ne.s32.totalorder %s72, %s74
      %p78 = scmp.eq.s32.totalorder %s17, 0
      %p79 = por %p77, %p78
      %p80 = scmp.ne.s32.totalorder %s72, %s74
      %p81 = scmp.eq.s32.totalorder %s22, 1
      %p82 = por %p80, %p81
      %p83 = scmp.ne.s32.totalorder %s74, %s75
      %p84 = scmp.eq.s32.totalorder %s22, 0
      %p85 = por %p83, %p84
      %p86 = scmp.ne.s32.totalorder %s74, %s75
      %p87 = scmp.eq.s32.totalorder %s23, 1
      %p88 = por %p86, %p87
      %p90 = scmp.ne.s32.totalorder %s75, %s89
      %p91 = scmp.eq.s32.totalorder %s23, 0
      %p92 = por %p90, %p91
      %s94 = sadd.s32 %s93, 1
      %p97 = scmp.eq.s32.totalorder %s17, 1
      %p98 = scmp.ne.s32.totalorder %s93, %s95
      %p99 = scmp.eq.s32.totalorder %s17, 0
      %p100 = por %p98, %p99
      %p101 = scmp.ne.s32.totalorder %s93, %s95
      %p102 = scmp.eq.s32.totalorder %s22, 1
      %p103 = por %p101, %p102
      %p104 = scmp.ne.s32.totalorder %s95, %s96
      %p105 = scmp.eq.s32.totalorder %s22, 0
      %p106 = por %p104, %p105
      %p107 = scmp.ne.s32.totalorder %s95, %s96
      %p108 = scmp.eq.s32.totalorder %s23, 1
      %p109 = por %p107, %p108
      %p111 = scmp.ne.s32.totalorder %s96, %s110
      %p112 = scmp.eq.s32.totalorder %s23, 0
      %p113 = por %p111, %p112
      %s115 = sadd.s32 %s114, 1
      %p118 = scmp.eq.s32.totalorder %s17, 1
      %p119 = scmp.ne.s32.totalorder %s114, %s116
      %p120 = scmp.eq.s32.totalorder %s17, 0
      %p121 = por %p119, %p120
      %p122 = scmp.ne.s32.totalorder %s114, %s116
      %p123 = scmp.eq.s32.totalorder %s22, 1
      %p124 = por %p122, %p123
      %p125 = scmp.ne.s32.totalorder %s116, %s117
      %p126 = scmp.eq.s32.totalorder %s22, 0
      %p127 = por %p125, %p126
      %p128 = scmp.ne.s32.totalorder %s116, %s117
      %p129 = scmp.eq.s32.totalorder %s23, 1
      %p130 = por %p128, %p129
      %p132 = scmp.ne.s32.totalorder %s117, %s131
      %p133 = scmp.eq.s32.totalorder %s23, 0
      %p134 = por %p132, %p133
      %s136 = sadd.s32 %s135, 1
      %p139 = scmp.eq.s32.totalorder %s17, 1
      %p140 = scmp.ne.s32.totalorder %s135, %s137
      %p141 = scmp.eq.s32.totalorder %s17, 0
      %p142 = por %p140, %p141
      %p143 = scmp.ne.s32.totalorder %s135, %s137
      %p144 = scmp.eq.s32.totalorder %s22, 1
      %p145 = por %p143, %p144
      %p146 = scmp.ne.s32.totalorder %s137, %s138
      %p147 = scmp.eq.s32.totalorder %s22, 0
      %p148 = por %p146, %p147
      %p149 = scmp.ne.s32.totalorder %s137, %s138
      %p150 = scmp.eq.s32.totalorder %s23, 1
      %p151 = por %p149, %p150
      %p153 = scmp.ne.s32.totalorder %s138, %s152
      %p154 = scmp.eq.s32.totalorder %s23, 0
      %p155 = por %p153, %p154
      %s157 = sadd.s32 %s156, 1
      %p160 = scmp.eq.s32.totalorder %s17, 1
      %p161 = scmp.ne.s32.totalorder %s156, %s158
      %p162 = scmp.eq.s32.totalorder %s17, 0
      %p163 = por %p161, %p162
      %p164 = scmp.ne.s32.totalorder %s156, %s158
      %p165 = scmp.eq.s32.totalorder %s22, 1
      %p166 = por %p164, %p165
      %p167 = scmp.ne.s32.totalorder %s158, %s159
      %p168 = scmp.eq.s32.totalorder %s22, 0
      %p169 = por %p167, %p168
      %p170 = scmp.ne.s32.totalorder %s158, %s159
      %p171 = scmp.eq.s32.totalorder %s23, 1
      %p172 = por %p170, %p171
      %p174 = scmp.ne.s32.totalorder %s159, %s173
      %p175 = scmp.eq.s32.totalorder %s23, 0
      %p176 = por %p174, %p175
      %s178 = sadd.s32 %s177, 1
      %p181 = scmp.eq.s32.totalorder %s17, 1
      %p182 = scmp.ne.s32.totalorder %s177, %s179
      %p183 = scmp.eq.s32.totalorder %s17, 0
      %p184 = por %p182, %p183
      %p185 = scmp.ne.s32.totalorder %s177, %s179
      %p186 = scmp.eq.s32.totalorder %s22, 1
      %p187 = por %p185, %p186
      %p188 = scmp.ne.s32.totalorder %s179, %s180
      %p189 = scmp.eq.s32.totalorder %s22, 0
      %p190 = por %p188, %p189
      %p191 = scmp.ne.s32.totalorder %s179, %s180
      %p192 = scmp.eq.s32.totalorder %s23, 1
      %p193 = por %p191, %p192
      %p195 = scmp.ne.s32.totalorder %s180, %s194
      %p196 = scmp.eq.s32.totalorder %s23, 0
      %p197 = por %p195, %p196
      %s198 = ssub.s32 %s17, %s24
      %p199 = scmp.eq.s32.totalorder %s198, 0
      %s201 = sadd.s32 %s200, 1
      %s202 = scalar_select %p199, %s200, %s201
      %p205 = pneg %p199
      %p206 = scmp.eq.s32.totalorder %s17, 1
      %p207 = por %p205, %p206
      %p208 = scmp.ne.s32.totalorder %s200, %s203
      %p209 = scmp.eq.s32.totalorder %s17, 0
      %p210 = por %p208, %p209
      %p211 = scmp.ne.s32.totalorder %s200, %s203
      %p212 = scmp.eq.s32.totalorder %s22, 1
      %p213 = por %p211, %p212
      %p214 = scmp.ne.s32.totalorder %s203, %s204
      %p215 = scmp.eq.s32.totalorder %s22, 0
      %p216 = por %p214, %p215
      %p217 = scmp.ne.s32.totalorder %s203, %s204
      %p218 = scmp.eq.s32.totalorder %s23, 1
      %p219 = por %p217, %p218
      %p221 = scmp.ne.s32.totalorder %s204, %s220
      %p222 = scmp.eq.s32.totalorder %s23, 0
      %p223 = por %p221, %p222
      %p224 = scmp.le.s32.totalorder 1, %s17
      %p225 = scmp.lt.s32.totalorder %s17, 3
      %p226 = pnand %p224, %p225
      %p227 = pneg %p226
      // Predicated region
      $region9: #{sccnet_forward.1} parent=5 // pred_check
        _
      $region10: #{sccnet_forward.1} parent=5 // pred_check_branch
        %229 = sbr.rel (%p226) target = $region12
      $region11: #{sccnet_forward.1} parent=5 // pred_region
        %s230 = ssub.s32 %s17, 1
        // Predicated region
        $region13: #{sccnet_forward.1} parent=11 // pred_check
          %p231 = pneg %p64
        $region14: #{sccnet_forward.1} parent=11 // pred_check_branch
          %233 = sbr.rel (%p231) target = $region16
        $region15: #{sccnet_forward.1} parent=11 // pred_region
          _
        $region16: #{sccnet_forward.1} parent=11 // pred_fallthru
          _
        // Predicated region
        $region17: #{sccnet_forward.1} parent=11 // pred_check
          %p234 = pneg %p85
        $region18: #{sccnet_forward.1} parent=11 // pred_check_branch
          %236 = sbr.rel (%p234) target = $region20
        $region19: #{sccnet_forward.1} parent=11 // pred_region
          _
        $region20: #{sccnet_forward.1} parent=11 // pred_fallthru
          _
        // Predicated region
        $region21: #{sccnet_forward.1} parent=11 // pred_check
          %p237 = pneg %p106
        $region22: #{sccnet_forward.1} parent=11 // pred_check_branch
          %239 = sbr.rel (%p237) target = $region24
        $region23: #{sccnet_forward.1} parent=11 // pred_region
          _
        $region24: #{sccnet_forward.1} parent=11 // pred_fallthru
          _
        // Predicated region
        $region25: #{sccnet_forward.1} parent=11 // pred_check
          %p240 = pneg %p127
        $region26: #{sccnet_forward.1} parent=11 // pred_check_branch
          %242 = sbr.rel (%p240) target = $region28
        $region27: #{sccnet_forward.1} parent=11 // pred_region
          _
        $region28: #{sccnet_forward.1} parent=11 // pred_fallthru
          _
        // Predicated region
        $region29: #{sccnet_forward.1} parent=11 // pred_check
          %p243 = pneg %p148
        $region30: #{sccnet_forward.1} parent=11 // pred_check_branch
          %245 = sbr.rel (%p243) target = $region32
        $region31: #{sccnet_forward.1} parent=11 // pred_region
          _
        $region32: #{sccnet_forward.1} parent=11 // pred_fallthru
          _
        // Predicated region
        $region33: #{sccnet_forward.1} parent=11 // pred_check
          %p246 = pneg %p169
        $region34: #{sccnet_forward.1} parent=11 // pred_check_branch
          %248 = sbr.rel (%p246) target = $region36
        $region35: #{sccnet_forward.1} parent=11 // pred_region
          _
        $region36: #{sccnet_forward.1} parent=11 // pred_fallthru
          _
        // Predicated region
        $region37: #{sccnet_forward.1} parent=11 // pred_check
          %p249 = pneg %p190
        $region38: #{sccnet_forward.1} parent=11 // pred_check_branch
          %251 = sbr.rel (%p249) target = $region40
        $region39: #{sccnet_forward.1} parent=11 // pred_region
          _
        $region40: #{sccnet_forward.1} parent=11 // pred_fallthru
          _
      $region12: #{sccnet_forward.1} parent=5 // pred_fallthru
        _
      %p252 = scmp.lt.s32.totalorder %s17, 2
      // Predicated region
      $region41: #{sccnet_forward.1} parent=5 // pred_check
        %p253 = pneg %p252
      $region42: #{sccnet_forward.1} parent=5 // pred_check_branch
        %255 = sbr.rel (%p253) target = $region44
      $region43: #{sccnet_forward.1} parent=5 // pred_region
        // Predicated region
        $region45: #{sccnet_forward.1} parent=43 // pred_check
          %p256 = pneg %p37
        $region46: #{sccnet_forward.1} parent=43 // pred_check_branch
          %258 = sbr.rel (%p256) target = $region48
        $region47: #{sccnet_forward.1} parent=43 // pred_region
          %p259 = scmp.lt.s32.totalorder %s17, 1
          %s260 = scalar_select %p259, %s17, 1
          %s261 = smul.addr %s260, 72
          %s262 = smul.addr %s261, 8
          %s263 = scalar_lea.vmem %s0, %s262
        $region48: #{sccnet_forward.1} parent=43 // pred_fallthru
          _
      $region44: #{sccnet_forward.1} parent=5 // pred_fallthru
        _
      %p264 = scmp.le.s32.totalorder 1, %s17
      %p265 = scmp.lt.s32.totalorder %s17, 3
      %p266 = pnand %p264, %p265
      %p267 = pneg %p266
      // Predicated region
      $region49: #{sccnet_forward.1} parent=5 // pred_check
        _
      $region50: #{sccnet_forward.1} parent=5 // pred_check_branch
        %269 = sbr.rel (%p266) target = $region52
      $region51: #{sccnet_forward.1} parent=5 // pred_region
        %s270 = ssub.s32 %s17, 1
        %p271 = scmp.lt.s32.totalorder %s22, 1
        %s272 = scalar_select %p271, %s22, 1
        %s273 = smul.addr %s272, 72
        %s274 = smul.addr %s273, 8
        %s275 = scalar_lea.vmem %s0, %s274
        %p276 = pneg %p43
        %p277 = pneg %p40
        %p278 = pneg %p64
        %p279 = pneg %p61
        %p280 = pneg %p85
        %p281 = pneg %p82
        %p282 = pneg %p106
        %p283 = pneg %p103
        %p284 = pneg %p127
        %p285 = pneg %p124
        %p286 = pneg %p148
        %p287 = pneg %p145
        %p288 = pneg %p169
        %p289 = pneg %p166
        %p290 = pneg %p190
        %p291 = pneg %p187
        %p292 = pneg %p216
        %p293 = pneg %p213
        %s294 = sand.u32 %s203, 1
        %s295 = scalar_lea.sflag [#allocation3], %s294
        %s296 = sand.u32 %s203, 1
        %s297 = scalar_lea.vmem [#allocation2], %s296
        %p298 = scmp.lt.s32.totalorder %s22, 1
        %s299 = scalar_select %p298, %s22, 1
        %s300 = smul.addr %s299, 72
        %s301 = smul.addr %s300, 8
        %s302 = scalar_lea.vmem %s0, %s301
        %v303 = vld [vmem:[%s302] sm:$0xff]
        %v304 = vld [vmem:[%s302 + $0x8] sm:$0xff]
        %v305 = vld [vmem:[%s302 + $0x10] sm:$0xff]
        %v306 = vld [vmem:[%s302 + $0x18] sm:$0xff]
        %v307 = vld [vmem:[%s302 + $0x20] sm:$0xff]
        %v308 = vld [vmem:[%s302 + $0x28] sm:$0xff]
        %v309 = vld [vmem:[%s302 + $0x30] sm:$0xff]
        %v310 = vld [vmem:[%s302 + $0x38] sm:$0xff]
        %v311 = vld [vmem:[%s302 + $0x40] sm:$0xff]
        %v312 = vld [vmem:[%s302 + $0x48] sm:$0xff]
        %v313 = vld [vmem:[%s302 + $0x50] sm:$0xff]
        %v314 = vld [vmem:[%s302 + $0x58] sm:$0xff]
        %v315 = vld [vmem:[%s302 + $0x60] sm:$0xff]
        %v316 = vld [vmem:[%s302 + $0x68] sm:$0xff]
        %v317 = vld [vmem:[%s302 + $0x70] sm:$0xff]
        %v318 = vld [vmem:[%s302 + $0x78] sm:$0xff]
        %v319 = vld [vmem:[%s302 + $0x80] sm:$0xff]
        %v320 = vld [vmem:[%s302 + $0x88] sm:$0xff]
        %v321 = vld [vmem:[%s302 + $0x90] sm:$0xff]
        %v322 = vld [vmem:[%s302 + $0x98] sm:$0xff]
        %v323 = vld [vmem:[%s302 + $0xa0] sm:$0xff]
        %v324 = vld [vmem:[%s302 + $0xa8] sm:$0xff]
        %v325 = vld [vmem:[%s302 + $0xb0] sm:$0xff]
        %v326 = vld [vmem:[%s302 + $0xb8] sm:$0xff]
        %v327 = vld [vmem:[%s302 + $0xc0] sm:$0xff]
        %v328 = vld [vmem:[%s302 + $0xc8] sm:$0xff]
        %v329 = vld [vmem:[%s302 + $0xd0] sm:$0xff]
        %v330 = vld [vmem:[%s302 + $0xd8] sm:$0xff]
        %v331 = vld [vmem:[%s302 + $0xe0] sm:$0xff]
        %v332 = vld [vmem:[%s302 + $0xe8] sm:$0xff]
        %v333 = vld [vmem:[%s302 + $0xf0] sm:$0xff]
        %v334 = vld [vmem:[%s302 + $0xf8] sm:$0xff]
        %v335 = vld [vmem:[%s302 + $0x100] sm:$0xff]
        %v336 = vld [vmem:[%s302 + $0x108] sm:$0xff]
        %v337 = vld [vmem:[%s302 + $0x110] sm:$0xff]
        %v338 = vld [vmem:[%s302 + $0x118] sm:$0xff]
        %v339 = vld [vmem:[%s302 + $0x120] sm:$0xff]
        %v340 = vld [vmem:[%s302 + $0x128] sm:$0xff]
        %v341 = vld [vmem:[%s302 + $0x130] sm:$0xff]
        %v342 = vld [vmem:[%s302 + $0x138] sm:$0xff]
        %v343 = vld [vmem:[%s302 + $0x140] sm:$0xff]
        %v344 = vld [vmem:[%s302 + $0x148] sm:$0xff]
        %v345 = vld [vmem:[%s302 + $0x150] sm:$0xff]
        %v346 = vld [vmem:[%s302 + $0x158] sm:$0xff]
        %v347 = vld [vmem:[%s302 + $0x160] sm:$0xff]
        %v348 = vld [vmem:[%s302 + $0x168] sm:$0xff]
        %v349 = vld [vmem:[%s302 + $0x170] sm:$0xff]
        %v350 = vld [vmem:[%s302 + $0x178] sm:$0xff]
        %v351 = vld [vmem:[%s302 + $0x180] sm:$0xff]
        %v352 = vld [vmem:[%s302 + $0x188] sm:$0xff]
        %v353 = vld [vmem:[%s302 + $0x190] sm:$0xff]
        %v354 = vld [vmem:[%s302 + $0x198] sm:$0xff]
        %v355 = vld [vmem:[%s302 + $0x1a0] sm:$0xff]
        %v356 = vld [vmem:[%s302 + $0x1a8] sm:$0xff]
        %v357 = vld [vmem:[%s302 + $0x1b0] sm:$0xff]
        %v358 = vld [vmem:[%s302 + $0x1b8] sm:$0xff]
        %v359 = vld [vmem:[%s302 + $0x1c0] sm:$0xff]
        %v360 = vld [vmem:[%s302 + $0x1c8] sm:$0xff]
        %v361 = vld [vmem:[%s302 + $0x1d0] sm:$0xff]
        %v362 = vld [vmem:[%s302 + $0x1d8] sm:$0xff]
        %v363 = vld [vmem:[%s302 + $0x1e0] sm:$0xff]
        %v364 = vld [vmem:[%s302 + $0x1e8] sm:$0xff]
        %v365 = vld [vmem:[%s302 + $0x1f0] sm:$0xff]
        %v366 = vld [vmem:[%s302 + $0x1f8] sm:$0xff]
        %v367 = vld [vmem:[%s302 + $0x200] sm:$0xff]
        %v368 = vld [vmem:[%s302 + $0x208] sm:$0xff]
        %v369 = vld [vmem:[%s302 + $0x210] sm:$0xff]
        %v370 = vld [vmem:[%s302 + $0x218] sm:$0xff]
        %v371 = vld [vmem:[%s302 + $0x220] sm:$0xff]
        %v372 = vld [vmem:[%s302 + $0x228] sm:$0xff]
        %v373 = vld [vmem:[%s302 + $0x230] sm:$0xff]
        %v374 = vld [vmem:[%s302 + $0x238] sm:$0x3f]
        %v375 = vlaneseq
        %v376 = vshrl.u32 %v375, 7
        %v377 = vadd.s32 %v376, 8
        %v378 = vadd.s32 %v376, 16
        %v379 = vadd.s32 %v376, 24
        %v380 = vadd.s32 %v376, 32
        %v381 = vadd.s32 %v376, 40
        %v382 = vadd.s32 %v376, 48
        %v383 = vadd.s32 %v376, 56
        %v384 = vadd.s32 %v376, 64
        %v385 = vadd.s32 %v376, 72
        %v386 = vadd.s32 %v376, 80
        %v387 = vadd.s32 %v376, 88
        %v388 = vadd.s32 %v376, 96
        %v389 = vadd.s32 %v376, 104
        %v390 = vadd.s32 %v376, 112
        %v391 = vadd.s32 %v376, 120
        %v392 = vadd.s32 %v376, 128
        %v393 = vadd.s32 %v376, 136
        %v394 = vadd.s32 %v376, 144
        %v395 = vadd.s32 %v376, 152
        %v396 = vadd.s32 %v376, 160
        %v397 = vadd.s32 %v376, 168
        %v398 = vadd.s32 %v376, 176
        %v399 = vadd.s32 %v376, 184
        %v400 = vadd.s32 %v376, 192
        %v401 = vadd.s32 %v376, 200
        %v402 = vadd.s32 %v376, 208
        %v403 = vadd.s32 %v376, 216
        %v404 = vadd.s32 %v376, 224
        %v405 = vadd.s32 %v376, 232
        %v406 = vadd.s32 %v376, 240
        %v407 = vadd.s32 %v376, 248
        %v408 = vadd.s32 %v376, 256
        %v409 = vadd.s32 %v376, 264
        %v410 = vadd.s32 %v376, 272
        %v411 = vadd.s32 %v376, 280
        %v412 = vadd.s32 %v376, 288
        %v413 = vadd.s32 %v376, 296
        %v414 = vadd.s32 %v376, 304
        %v415 = vadd.s32 %v376, 312
        %v416 = vadd.s32 %v376, 320
        %v417 = vadd.s32 %v376, 328
        %v418 = vadd.s32 %v376, 336
        %v419 = vadd.s32 %v376, 344
        %v420 = vadd.s32 %v376, 352
        %v421 = vadd.s32 %v376, 360
        %v422 = vadd.s32 %v376, 368
        %v423 = vadd.s32 %v376, 376
        %v424 = vadd.s32 %v376, 384
        %v425 = vadd.s32 %v376, 392
        %v426 = vadd.s32 %v376, 400
        %v427 = vadd.s32 %v376, 408
        %v428 = vadd.s32 %v376, 416
        %v429 = vadd.s32 %v376, 424
        %v430 = vadd.s32 %v376, 432
        %v431 = vadd.s32 %v376, 440
        %v432 = vadd.s32 %v376, 448
        %v433 = vadd.s32 %v376, 456
        %v434 = vadd.s32 %v376, 464
        %v435 = vadd.s32 %v376, 472
        %v436 = vadd.s32 %v376, 480
        %v437 = vadd.s32 %v376, 488
        %v438 = vadd.s32 %v376, 496
        %v439 = vadd.s32 %v376, 504
        %v440 = vadd.s32 %v376, 512
        %v441 = vadd.s32 %v376, 520
        %v442 = vadd.s32 %v376, 528
        %v443 = vadd.s32 %v376, 536
        %v444 = vadd.s32 %v376, 544
        %v445 = vadd.s32 %v376, 552
        %v446 = vadd.s32 %v376, 560
        %v447 = vadd.s32 %v376, 568
        %vm448 = vcmp.ge.s32.totalorder %v376, 6
        %vm449 = vcmp.ge.s32.totalorder %v377, 6
        %vm450 = vcmp.ge.s32.totalorder %v378, 6
        %vm451 = vcmp.ge.s32.totalorder %v379, 6
        %vm452 = vcmp.ge.s32.totalorder %v380, 6
        %vm453 = vcmp.ge.s32.totalorder %v381, 6
        %vm454 = vcmp.ge.s32.totalorder %v382, 6
        %vm455 = vcmp.ge.s32.totalorder %v383, 6
        %vm456 = vcmp.ge.s32.totalorder %v384, 6
        %vm457 = vcmp.ge.s32.totalorder %v385, 6
        %vm458 = vcmp.ge.s32.totalorder %v386, 6
        %vm459 = vcmp.ge.s32.totalorder %v387, 6
        %vm460 = vcmp.ge.s32.totalorder %v388, 6
        %vm461 = vcmp.ge.s32.totalorder %v389, 6
        %vm462 = vcmp.ge.s32.totalorder %v390, 6
        %vm463 = vcmp.ge.s32.totalorder %v391, 6
        %vm464 = vcmp.ge.s32.totalorder %v392, 6
        %vm465 = vcmp.ge.s32.totalorder %v393, 6
        %vm466 = vcmp.ge.s32.totalorder %v394, 6
        %vm467 = vcmp.ge.s32.totalorder %v395, 6
        %vm468 = vcmp.ge.s32.totalorder %v396, 6
        %vm469 = vcmp.ge.s32.totalorder %v397, 6
        %vm470 = vcmp.ge.s32.totalorder %v398, 6
        %vm471 = vcmp.ge.s32.totalorder %v399, 6
        %vm472 = vcmp.ge.s32.totalorder %v400, 6
        %vm473 = vcmp.ge.s32.totalorder %v401, 6
        %vm474 = vcmp.ge.s32.totalorder %v402, 6
        %vm475 = vcmp.ge.s32.totalorder %v403, 6
        %vm476 = vcmp.ge.s32.totalorder %v404, 6
        %vm477 = vcmp.ge.s32.totalorder %v405, 6
        %vm478 = vcmp.ge.s32.totalorder %v406, 6
        %vm479 = vcmp.ge.s32.totalorder %v407, 6
        %vm480 = vcmp.ge.s32.totalorder %v408, 6
        %vm481 = vcmp.ge.s32.totalorder %v409, 6
        %vm482 = vcmp.ge.s32.totalorder %v410, 6
        %vm483 = vcmp.ge.s32.totalorder %v411, 6
        %vm484 = vcmp.ge.s32.totalorder %v412, 6
        %vm485 = vcmp.ge.s32.totalorder %v413, 6
        %vm486 = vcmp.ge.s32.totalorder %v414, 6
        %vm487 = vcmp.ge.s32.totalorder %v415, 6
        %vm488 = vcmp.ge.s32.totalorder %v416, 6
        %vm489 = vcmp.ge.s32.totalorder %v417, 6
        %vm490 = vcmp.ge.s32.totalorder %v418, 6
        %vm491 = vcmp.ge.s32.totalorder %v419, 6
        %vm492 = vcmp.ge.s32.totalorder %v420, 6
        %vm493 = vcmp.ge.s32.totalorder %v421, 6
        %vm494 = vcmp.ge.s32.totalorder %v422, 6
        %vm495 = vcmp.ge.s32.totalorder %v423, 6
        %vm496 = vcmp.ge.s32.totalorder %v424, 6
        %vm497 = vcmp.ge.s32.totalorder %v425, 6
        %vm498 = vcmp.ge.s32.totalorder %v426, 6
        %vm499 = vcmp.ge.s32.totalorder %v427, 6
        %vm500 = vcmp.ge.s32.totalorder %v428, 6
        %vm501 = vcmp.ge.s32.totalorder %v429, 6
        %vm502 = vcmp.ge.s32.totalorder %v430, 6
        %vm503 = vcmp.ge.s32.totalorder %v431, 6
        %vm504 = vcmp.ge.s32.totalorder %v432, 6
        %vm505 = vcmp.ge.s32.totalorder %v433, 6
        %vm506 = vcmp.ge.s32.totalorder %v434, 6
        %vm507 = vcmp.ge.s32.totalorder %v435, 6
        %vm508 = vcmp.ge.s32.totalorder %v436, 6
        %vm509 = vcmp.ge.s32.totalorder %v437, 6
        %vm510 = vcmp.ge.s32.totalorder %v438, 6
        %vm511 = vcmp.ge.s32.totalorder %v439, 6
        %vm512 = vcmp.ge.s32.totalorder %v440, 6
        %vm513 = vcmp.ge.s32.totalorder %v441, 6
        %vm514 = vcmp.ge.s32.totalorder %v442, 6
        %vm515 = vcmp.ge.s32.totalorder %v443, 6
        %vm516 = vcmp.ge.s32.totalorder %v444, 6
        %vm517 = vcmp.ge.s32.totalorder %v445, 6
        %vm518 = vcmp.ge.s32.totalorder %v446, 6
        %vm519 = vcmp.ge.s32.totalorder %v447, 6
        %vm520 = vcmp.lt.s32.totalorder %v376, 568
        %vm521 = vcmp.lt.s32.totalorder %v377, 568
        %vm522 = vcmp.lt.s32.totalorder %v378, 568
        %vm523 = vcmp.lt.s32.totalorder %v379, 568
        %vm524 = vcmp.lt.s32.totalorder %v380, 568
        %vm525 = vcmp.lt.s32.totalorder %v381, 568
        %vm526 = vcmp.lt.s32.totalorder %v382, 568
        %vm527 = vcmp.lt.s32.totalorder %v383, 568
        %vm528 = vcmp.lt.s32.totalorder %v384, 568
        %vm529 = vcmp.lt.s32.totalorder %v385, 568
        %vm530 = vcmp.lt.s32.totalorder %v386, 568
        %vm531 = vcmp.lt.s32.totalorder %v387, 568
        %vm532 = vcmp.lt.s32.totalorder %v388, 568
        %vm533 = vcmp.lt.s32.totalorder %v389, 568
        %vm534 = vcmp.lt.s32.totalorder %v390, 568
        %vm535 = vcmp.lt.s32.totalorder %v391, 568
        %vm536 = vcmp.lt.s32.totalorder %v392, 568
        %vm537 = vcmp.lt.s32.totalorder %v393, 568
        %vm538 = vcmp.lt.s32.totalorder %v394, 568
        %vm539 = vcmp.lt.s32.totalorder %v395, 568
        %vm540 = vcmp.lt.s32.totalorder %v396, 568
        %vm541 = vcmp.lt.s32.totalorder %v397, 568
        %vm542 = vcmp.lt.s32.totalorder %v398, 568
        %vm543 = vcmp.lt.s32.totalorder %v399, 568
        %vm544 = vcmp.lt.s32.totalorder %v400, 568
        %vm545 = vcmp.lt.s32.totalorder %v401, 568
        %vm546 = vcmp.lt.s32.totalorder %v402, 568
        %vm547 = vcmp.lt.s32.totalorder %v403, 568
        %vm548 = vcmp.lt.s32.totalorder %v404, 568
        %vm549 = vcmp.lt.s32.totalorder %v405, 568
        %vm550 = vcmp.lt.s32.totalorder %v406, 568
        %vm551 = vcmp.lt.s32.totalorder %v407, 568
        %vm552 = vcmp.lt.s32.totalorder %v408, 568
        %vm553 = vcmp.lt.s32.totalorder %v409, 568
        %vm554 = vcmp.lt.s32.totalorder %v410, 568
        %vm555 = vcmp.lt.s32.totalorder %v411, 568
        %vm556 = vcmp.lt.s32.totalorder %v412, 568
        %vm557 = vcmp.lt.s32.totalorder %v413, 568
        %vm558 = vcmp.lt.s32.totalorder %v414, 568
        %vm559 = vcmp.lt.s32.totalorder %v415, 568
        %vm560 = vcmp.lt.s32.totalorder %v416, 568
        %vm561 = vcmp.lt.s32.totalorder %v417, 568
        %vm562 = vcmp.lt.s32.totalorder %v418, 568
        %vm563 = vcmp.lt.s32.totalorder %v419, 568
        %vm564 = vcmp.lt.s32.totalorder %v420, 568
        %vm565 = vcmp.lt.s32.totalorder %v421, 568
        %vm566 = vcmp.lt.s32.totalorder %v422, 568
        %vm567 = vcmp.lt.s32.totalorder %v423, 568
        %vm568 = vcmp.lt.s32.totalorder %v424, 568
        %vm569 = vcmp.lt.s32.totalorder %v425, 568
        %vm570 = vcmp.lt.s32.totalorder %v426, 568
        %vm571 = vcmp.lt.s32.totalorder %v427, 568
        %vm572 = vcmp.lt.s32.totalorder %v428, 568
        %vm573 = vcmp.lt.s32.totalorder %v429, 568
        %vm574 = vcmp.lt.s32.totalorder %v430, 568
        %vm575 = vcmp.lt.s32.totalorder %v431, 568
        %vm576 = vcmp.lt.s32.totalorder %v432, 568
        %vm577 = vcmp.lt.s32.totalorder %v433, 568
        %vm578 = vcmp.lt.s32.totalorder %v434, 568
        %vm579 = vcmp.lt.s32.totalorder %v435, 568
        %vm580 = vcmp.lt.s32.totalorder %v436, 568
        %vm581 = vcmp.lt.s32.totalorder %v437, 568
        %vm582 = vcmp.lt.s32.totalorder %v438, 568
        %vm583 = vcmp.lt.s32.totalorder %v439, 568
        %vm584 = vcmp.lt.s32.totalorder %v440, 568
        %vm585 = vcmp.lt.s32.totalorder %v441, 568
        %vm586 = vcmp.lt.s32.totalorder %v442, 568
        %vm587 = vcmp.lt.s32.totalorder %v443, 568
        %vm588 = vcmp.lt.s32.totalorder %v444, 568
        %vm589 = vcmp.lt.s32.totalorder %v445, 568
        %vm590 = vcmp.lt.s32.totalorder %v446, 568
        %vm591 = vcmp.lt.s32.totalorder %v447, 568
        %vm592 = vmand %vm448, %vm520
        %vm593 = vmand %vm449, %vm521
        %vm594 = vmand %vm450, %vm522
        %vm595 = vmand %vm451, %vm523
        %vm596 = vmand %vm452, %vm524
        %vm597 = vmand %vm453, %vm525
        %vm598 = vmand %vm454, %vm526
        %vm599 = vmand %vm455, %vm527
        %vm600 = vmand %vm456, %vm528
        %vm601 = vmand %vm457, %vm529
        %vm602 = vmand %vm458, %vm530
        %vm603 = vmand %vm459, %vm531
        %vm604 = vmand %vm460, %vm532
        %vm605 = vmand %vm461, %vm533
        %vm606 = vmand %vm462, %vm534
        %vm607 = vmand %vm463, %vm535
        %vm608 = vmand %vm464, %vm536
        %vm609 = vmand %vm465, %vm537
        %vm610 = vmand %vm466, %vm538
        %vm611 = vmand %vm467, %vm539
        %vm612 = vmand %vm468, %vm540
        %vm613 = vmand %vm469, %vm541
        %vm614 = vmand %vm470, %vm542
        %vm615 = vmand %vm471, %vm543
        %vm616 = vmand %vm472, %vm544
        %vm617 = vmand %vm473, %vm545
        %vm618 = vmand %vm474, %vm546
        %vm619 = vmand %vm475, %vm547
        %vm620 = vmand %vm476, %vm548
        %vm621 = vmand %vm477, %vm549
        %vm622 = vmand %vm478, %vm550
        %vm623 = vmand %vm479, %vm551
        %vm624 = vmand %vm480, %vm552
        %vm625 = vmand %vm481, %vm553
        %vm626 = vmand %vm482, %vm554
        %vm627 = vmand %vm483, %vm555
        %vm628 = vmand %vm484, %vm556
        %vm629 = vmand %vm485, %vm557
        %vm630 = vmand %vm486, %vm558
        %vm631 = vmand %vm487, %vm559
        %vm632 = vmand %vm488, %vm560
        %vm633 = vmand %vm489, %vm561
        %vm634 = vmand %vm490, %vm562
        %vm635 = vmand %vm491, %vm563
        %vm636 = vmand %vm492, %vm564
        %vm637 = vmand %vm493, %vm565
        %vm638 = vmand %vm494, %vm566
        %vm639 = vmand %vm495, %vm567
        %vm640 = vmand %vm496, %vm568
        %vm641 = vmand %vm497, %vm569
        %vm642 = vmand %vm498, %vm570
        %vm643 = vmand %vm499, %vm571
        %vm644 = vmand %vm500, %vm572
        %vm645 = vmand %vm501, %vm573
        %vm646 = vmand %vm502, %vm574
        %vm647 = vmand %vm503, %vm575
        %vm648 = vmand %vm504, %vm576
        %vm649 = vmand %vm505, %vm577
        %vm650 = vmand %vm506, %vm578
        %vm651 = vmand %vm507, %vm579
        %vm652 = vmand %vm508, %vm580
        %vm653 = vmand %vm509, %vm581
        %vm654 = vmand %vm510, %vm582
        %vm655 = vmand %vm511, %vm583
        %vm656 = vmand %vm512, %vm584
        %vm657 = vmand %vm513, %vm585
        %vm658 = vmand %vm514, %vm586
        %vm659 = vmand %vm515, %vm587
        %vm660 = vmand %vm516, %vm588
        %vm661 = vmand %vm517, %vm589
        %vm662 = vmand %vm518, %vm590
        %vm663 = vmand %vm519, %vm591
        %v664 = vsel %vm592, 1, 0
        %v665 = vsel %vm593, 1, 0
        %v666 = vsel %vm594, 1, 0
        %v667 = vsel %vm595, 1, 0
        %v668 = vsel %vm596, 1, 0
        %v669 = vsel %vm597, 1, 0
        %v670 = vsel %vm598, 1, 0
        %v671 = vsel %vm599, 1, 0
        %v672 = vsel %vm600, 1, 0
        %v673 = vsel %vm601, 1, 0
        %v674 = vsel %vm602, 1, 0
        %v675 = vsel %vm603, 1, 0
        %v676 = vsel %vm604, 1, 0
        %v677 = vsel %vm605, 1, 0
        %v678 = vsel %vm606, 1, 0
        %v679 = vsel %vm607, 1, 0
        %v680 = vsel %vm608, 1, 0
        %v681 = vsel %vm609, 1, 0
        %v682 = vsel %vm610, 1, 0
        %v683 = vsel %vm611, 1, 0
        %v684 = vsel %vm612, 1, 0
        %v685 = vsel %vm613, 1, 0
        %v686 = vsel %vm614, 1, 0
        %v687 = vsel %vm615, 1, 0
        %v688 = vsel %vm616, 1, 0
        %v689 = vsel %vm617, 1, 0
        %v690 = vsel %vm618, 1, 0
        %v691 = vsel %vm619, 1, 0
        %v692 = vsel %vm620, 1, 0
        %v693 = vsel %vm621, 1, 0
        %v694 = vsel %vm622, 1, 0
        %v695 = vsel %vm623, 1, 0
        %v696 = vsel %vm624, 1, 0
        %v697 = vsel %vm625, 1, 0
        %v698 = vsel %vm626, 1, 0
        %v699 = vsel %vm627, 1, 0
        %v700 = vsel %vm628, 1, 0
        %v701 = vsel %vm629, 1, 0
        %v702 = vsel %vm630, 1, 0
        %v703 = vsel %vm631, 1, 0
        %v704 = vsel %vm632, 1, 0
        %v705 = vsel %vm633, 1, 0
        %v706 = vsel %vm634, 1, 0
        %v707 = vsel %vm635, 1, 0
        %v708 = vsel %vm636, 1, 0
        %v709 = vsel %vm637, 1, 0
        %v710 = vsel %vm638, 1, 0
        %v711 = vsel %vm639, 1, 0
        %v712 = vsel %vm640, 1, 0
        %v713 = vsel %vm641, 1, 0
        %v714 = vsel %vm642, 1, 0
        %v715 = vsel %vm643, 1, 0
        %v716 = vsel %vm644, 1, 0
        %v717 = vsel %vm645, 1, 0
        %v718 = vsel %vm646, 1, 0
        %v719 = vsel %vm647, 1, 0
        %v720 = vsel %vm648, 1, 0
        %v721 = vsel %vm649, 1, 0
        %v722 = vsel %vm650, 1, 0
        %v723 = vsel %vm651, 1, 0
        %v724 = vsel %vm652, 1, 0
        %v725 = vsel %vm653, 1, 0
        %v726 = vsel %vm654, 1, 0
        %v727 = vsel %vm655, 1, 0
        %v728 = vsel %vm656, 1, 0
        %v729 = vsel %vm657, 1, 0
        %v730 = vsel %vm658, 1, 0
        %v731 = vsel %vm659, 1, 0
        %v732 = vsel %vm660, 1, 0
        %v733 = vsel %vm661, 1, 0
        %v734 = vsel %vm662, 1, 0
        %v735 = vsel %vm663, 1, 0
        %v736 = vcvt.s32.f32 %v664
        %v737 = vcvt.s32.f32 %v665
        %v738 = vcvt.s32.f32 %v666
        %v739 = vcvt.s32.f32 %v667
        %v740 = vcvt.s32.f32 %v668
        %v741 = vcvt.s32.f32 %v669
        %v742 = vcvt.s32.f32 %v670
        %v743 = vcvt.s32.f32 %v671
        %v744 = vcvt.s32.f32 %v672
        %v745 = vcvt.s32.f32 %v673
        %v746 = vcvt.s32.f32 %v674
        %v747 = vcvt.s32.f32 %v675
        %v748 = vcvt.s32.f32 %v676
        %v749 = vcvt.s32.f32 %v677
        %v750 = vcvt.s32.f32 %v678
        %v751 = vcvt.s32.f32 %v679
        %v752 = vcvt.s32.f32 %v680
        %v753 = vcvt.s32.f32 %v681
        %v754 = vcvt.s32.f32 %v682
        %v755 = vcvt.s32.f32 %v683
        %v756 = vcvt.s32.f32 %v684
        %v757 = vcvt.s32.f32 %v685
        %v758 = vcvt.s32.f32 %v686
        %v759 = vcvt.s32.f32 %v687
        %v760 = vcvt.s32.f32 %v688
        %v761 = vcvt.s32.f32 %v689
        %v762 = vcvt.s32.f32 %v690
        %v763 = vcvt.s32.f32 %v691
        %v764 = vcvt.s32.f32 %v692
        %v765 = vcvt.s32.f32 %v693
        %v766 = vcvt.s32.f32 %v694
        %v767 = vcvt.s32.f32 %v695
        %v768 = vcvt.s32.f32 %v696
        %v769 = vcvt.s32.f32 %v697
        %v770 = vcvt.s32.f32 %v698
        %v771 = vcvt.s32.f32 %v699
        %v772 = vcvt.s32.f32 %v700
        %v773 = vcvt.s32.f32 %v701
        %v774 = vcvt.s32.f32 %v702
        %v775 = vcvt.s32.f32 %v703
        %v776 = vcvt.s32.f32 %v704
        %v777 = vcvt.s32.f32 %v705
        %v778 = vcvt.s32.f32 %v706
        %v779 = vcvt.s32.f32 %v707
        %v780 = vcvt.s32.f32 %v708
        %v781 = vcvt.s32.f32 %v709
        %v782 = vcvt.s32.f32 %v710
        %v783 = vcvt.s32.f32 %v711
        %v784 = vcvt.s32.f32 %v712
        %v785 = vcvt.s32.f32 %v713
        %v786 = vcvt.s32.f32 %v714
        %v787 = vcvt.s32.f32 %v715
        %v788 = vcvt.s32.f32 %v716
        %v789 = vcvt.s32.f32 %v717
        %v790 = vcvt.s32.f32 %v718
        %v791 = vcvt.s32.f32 %v719
        %v792 = vcvt.s32.f32 %v720
        %v793 = vcvt.s32.f32 %v721
        %v794 = vcvt.s32.f32 %v722
        %v795 = vcvt.s32.f32 %v723
        %v796 = vcvt.s32.f32 %v724
        %v797 = vcvt.s32.f32 %v725
        %v798 = vcvt.s32.f32 %v726
        %v799 = vcvt.s32.f32 %v727
        %v800 = vcvt.s32.f32 %v728
        %v801 = vcvt.s32.f32 %v729
        %v802 = vcvt.s32.f32 %v730
        %v803 = vcvt.s32.f32 %v731
        %v804 = vcvt.s32.f32 %v732
        %v805 = vcvt.s32.f32 %v733
        %v806 = vcvt.s32.f32 %v734
        %v807 = vcvt.s32.f32 %v735
        %v808 = vld [vmem:[%s1] sm:$0xff]
        %v809 = vld [vmem:[%s1 + $0x8] sm:$0xff]
        %v810 = vld [vmem:[%s1 + $0x10] sm:$0x3f]
        %v811 = vld [vmem:[%s2] sm:$0x1]
        %v813 = vlaneseq
        %v814 = vshrl.u32 %v813, 7
        %v815 = vsub.s32 0, %v814
        %v816 = vrot.slane %v811, %v815
        %v818 = vmul.f32 %v816, %v736
        %v819 = vmul.f32 %v816, %v737
        %v820 = vmul.f32 %v816, %v738
        %v821 = vmul.f32 %v816, %v739
        %v822 = vmul.f32 %v816, %v740
        %v823 = vmul.f32 %v816, %v741
        %v824 = vmul.f32 %v816, %v742
        %v825 = vmul.f32 %v816, %v743
        %v826 = vmul.f32 %v816, %v744
        %v827 = vmul.f32 %v816, %v745
        %v828 = vmul.f32 %v816, %v746
        %v829 = vmul.f32 %v816, %v747
        %v830 = vmul.f32 %v816, %v748
        %v831 = vmul.f32 %v816, %v749
        %v832 = vmul.f32 %v816, %v750
        %v833 = vmul.f32 %v816, %v751
        %v834 = vmul.f32 %v816, %v752
        %v835 = vmul.f32 %v816, %v753
        %v836 = vmul.f32 %v816, %v754
        %v837 = vmul.f32 %v816, %v755
        %v838 = vmul.f32 %v816, %v756
        %v839 = vmul.f32 %v816, %v757
        %v840 = vmul.f32 %v816, %v758
        %v841 = vmul.f32 %v816, %v759
        %v842 = vmul.f32 %v816, %v760
        %v843 = vmul.f32 %v816, %v761
        %v844 = vmul.f32 %v816, %v762
        %v845 = vmul.f32 %v816, %v763
        %v846 = vmul.f32 %v816, %v764
        %v847 = vmul.f32 %v816, %v765
        %v848 = vmul.f32 %v816, %v766
        %v849 = vmul.f32 %v816, %v767
        %v850 = vmul.f32 %v816, %v768
        %v851 = vmul.f32 %v816, %v769
        %v852 = vmul.f32 %v816, %v770
        %v853 = vmul.f32 %v816, %v771
        %v854 = vmul.f32 %v816, %v772
        %v855 = vmul.f32 %v816, %v773
        %v856 = vmul.f32 %v816, %v774
        %v857 = vmul.f32 %v816, %v775
        %v858 = vmul.f32 %v816, %v776
        %v859 = vmul.f32 %v816, %v777
        %v860 = vmul.f32 %v816, %v778
        %v861 = vmul.f32 %v816, %v779
        %v862 = vmul.f32 %v816, %v780
        %v863 = vmul.f32 %v816, %v781
        %v864 = vmul.f32 %v816, %v782
        %v865 = vmul.f32 %v816, %v783
        %v866 = vmul.f32 %v816, %v784
        %v867 = vmul.f32 %v816, %v785
        %v868 = vmul.f32 %v816, %v786
        %v869 = vmul.f32 %v816, %v787
        %v870 = vmul.f32 %v816, %v788
        %v871 = vmul.f32 %v816, %v789
        %v872 = vmul.f32 %v816, %v790
        %v873 = vmul.f32 %v816, %v791
        %v874 = vmul.f32 %v816, %v792
        %v875 = vmul.f32 %v816, %v793
        %v876 = vmul.f32 %v816, %v794
        %v877 = vmul.f32 %v816, %v795
        %v878 = vmul.f32 %v816, %v796
        %v879 = vmul.f32 %v816, %v797
        %v880 = vmul.f32 %v816, %v798
        %v881 = vmul.f32 %v816, %v799
        %v882 = vmul.f32 %v816, %v800
        %v883 = vmul.f32 %v816, %v801
        %v884 = vmul.f32 %v816, %v802
        %v885 = vmul.f32 %v816, %v803
        %v886 = vmul.f32 %v816, %v804
        %v887 = vmul.f32 %v816, %v805
        %v888 = vmul.f32 %v816, %v806
        %v889 = vmul.f32 %v816, %v807
        %vm890 = vcmask 179200
        %v892 = vsel %vm890, %v303, 0
        %v895 = vsel %vm890, %v304, 0
        %v898 = vsel %vm890, %v305, 0
        %v901 = vsel %vm890, %v306, 0
        %v904 = vsel %vm890, %v307, 0
        %v907 = vsel %vm890, %v308, 0
        %v910 = vsel %vm890, %v309, 0
        %v913 = vsel %vm890, %v310, 0
        %v916 = vsel %vm890, %v311, 0
        %v919 = vsel %vm890, %v312, 0
        %v922 = vsel %vm890, %v313, 0
        %v925 = vsel %vm890, %v314, 0
        %v928 = vsel %vm890, %v315, 0
        %v931 = vsel %vm890, %v316, 0
        %v934 = vsel %vm890, %v317, 0
        %v937 = vsel %vm890, %v318, 0
        %v940 = vsel %vm890, %v319, 0
        %v943 = vsel %vm890, %v320, 0
        %v946 = vsel %vm890, %v321, 0
        %v949 = vsel %vm890, %v322, 0
        %v952 = vsel %vm890, %v323, 0
        %v955 = vsel %vm890, %v324, 0
        %v958 = vsel %vm890, %v325, 0
        %v961 = vsel %vm890, %v326, 0
        %v964 = vsel %vm890, %v327, 0
        %v967 = vsel %vm890, %v328, 0
        %v970 = vsel %vm890, %v329, 0
        %v973 = vsel %vm890, %v330, 0
        %v976 = vsel %vm890, %v331, 0
        %v979 = vsel %vm890, %v332, 0
        %v982 = vsel %vm890, %v333, 0
        %v985 = vsel %vm890, %v334, 0
        %v988 = vsel %vm890, %v335, 0
        %v991 = vsel %vm890, %v336, 0
        %v994 = vsel %vm890, %v337, 0
        %v997 = vsel %vm890, %v338, 0
        %v1000 = vsel %vm890, %v339, 0
        %v1003 = vsel %vm890, %v340, 0
        %v1006 = vsel %vm890, %v341, 0
        %v1009 = vsel %vm890, %v342, 0
        %v1012 = vsel %vm890, %v343, 0
        %v1015 = vsel %vm890, %v344, 0
        %v1018 = vsel %vm890, %v345, 0
        %v1021 = vsel %vm890, %v346, 0
        %v1024 = vsel %vm890, %v347, 0
        %v1027 = vsel %vm890, %v348, 0
        %v1030 = vsel %vm890, %v349, 0
        %v1033 = vsel %vm890, %v350, 0
        %v1036 = vsel %vm890, %v351, 0
        %v1039 = vsel %vm890, %v352, 0
        %v1042 = vsel %vm890, %v353, 0
        %v1045 = vsel %vm890, %v354, 0
        %v1048 = vsel %vm890, %v355, 0
        %v1051 = vsel %vm890, %v356, 0
        %v1054 = vsel %vm890, %v357, 0
        %v1057 = vsel %vm890, %v358, 0
        %v1060 = vsel %vm890, %v359, 0
        %v1063 = vsel %vm890, %v360, 0
        %v1066 = vsel %vm890, %v361, 0
        %v1069 = vsel %vm890, %v362, 0
        %v1072 = vsel %vm890, %v363, 0
        %v1075 = vsel %vm890, %v364, 0
        %v1078 = vsel %vm890, %v365, 0
        %v1081 = vsel %vm890, %v366, 0
        %v1084 = vsel %vm890, %v367, 0
        %v1087 = vsel %vm890, %v368, 0
        %v1090 = vsel %vm890, %v369, 0
        %v1093 = vsel %vm890, %v370, 0
        %v1096 = vsel %vm890, %v371, 0
        %v1099 = vsel %vm890, %v372, 0
        %v1102 = vsel %vm890, %v373, 0
        %v1105 = vsel %vm890, %v374, 0
        %vm1107 = vcmask 1045504
        %v1109 = vsel %vm1107, %v810, 0
        %1111 = vmatprep.subr.mxu0 0.0
        %1112 = vmatpush1.msra.mxu0 0.0
        %1113 = vmatprep.subr.mxu0 0.0
        %1114 = vmatpush1.msra.mxu0 0.0
        %1115 = vmatprep.subr.mxu0 0.0
        %1116 = vmatpush1.msra.mxu0 0.0
        %1117 = vmatprep.subr.mxu0 0.0
        %1118 = vmatpush1.msra.mxu0 0.0
        %1119 = vmatprep.subr.mxu0 0.0
        %1120 = vmatpush1.msra.mxu0 0.0
        %1121 = vmatprep.subr.mxu0 0.0
        %1122 = vmatpush1.msra.mxu0 0.0
        %1123 = vmatprep.subr.mxu0 0.0
        %1124 = vmatpush1.msra.mxu0 0.0
        %1125 = vmatprep.subr.mxu0 0.0
        %1126 = vmatpush1.msra.mxu0 0.0
        %1127 = vmatprep.subr.mxu0 0.0
        %1128 = vmatpush1.msra.mxu0 0.0
        %1129 = vmatprep.subr.mxu0 0.0
        %1130 = vmatpush1.msra.mxu0 0.0
        %1131 = vmatprep.subr.mxu0 0.0
        %1132 = vmatpush1.msra.mxu0 0.0
        %1133 = vmatprep.subr.mxu0 0.0
        %1134 = vmatpush1.msra.mxu0 0.0
        %1135 = vmatprep.subr.mxu0 0.0
        %1136 = vmatpush1.msra.mxu0 0.0
        %1137 = vmatprep.subr.mxu0 0.0
        %1138 = vmatpush1.msra.mxu0 %v1109
        %1139 = vmatprep.subr.mxu0 0.0
        %1140 = vmatpush1.msra.mxu0 %v809
        %1141 = vmatprep.subr.mxu0 0.0
        %1142 = vmatpush1.msra.mxu0 %v808
        %1143 = vmatprep.subr.mxu0 0.0
        %1144 = vmatpush2.msra.mxu0 0.0
        %1145 = vmatprep.subr.mxu0 0.0
        %1146 = vmatpush2.msra.mxu0 0.0
        %1147 = vmatprep.subr.mxu0 0.0
        %1148 = vmatpush2.msra.mxu0 0.0
        %1149 = vmatprep.subr.mxu0 0.0
        %1150 = vmatpush2.msra.mxu0 0.0
        %1151 = vmatprep.subr.mxu0 0.0
        %1152 = vmatpush2.msra.mxu0 0.0
        %1153 = vmatprep.subr.mxu0 0.0
        %1154 = vmatpush2.msra.mxu0 0.0
        %1155 = vmatprep.subr.mxu0 0.0
        %1156 = vmatpush2.msra.mxu0 0.0
        %1157 = vmatprep.subr.mxu0 0.0
        %1158 = vmatpush2.msra.mxu0 0.0
        %1159 = vmatprep.subr.mxu0 0.0
        %1160 = vmatpush2.msra.mxu0 0.0
        %1161 = vmatprep.subr.mxu0 0.0
        %1162 = vmatpush2.msra.mxu0 0.0
        %1163 = vmatprep.subr.mxu0 0.0
        %1164 = vmatpush2.msra.mxu0 0.0
        %1165 = vmatprep.subr.mxu0 0.0
        %1166 = vmatpush2.msra.mxu0 0.0
        %1167 = vmatprep.subr.mxu0 0.0
        %1168 = vmatpush2.msra.mxu0 0.0
        %1169 = vmatprep.subr.mxu0 0.0
        %1170 = vmatpush2.msra.mxu0 0.0
        %1171 = vmatprep.subr.mxu0 0.0
        %1172 = vmatpush2.msra.mxu0 0.0
        %1173 = vmatprep.subr.mxu0 0.0
        %1174 = vmatpush2.msra.mxu0 0.0
        %1175 = vmatprep.mubr.f32.mxu0 0.0
        %1176 = vmatmul.mubr.f32.gmra.mxu0 %v892
        %v1177 = vpop.f32.mrf.mxu0
        %v1178 = vadd.f32 %v818, %v1177
        %v1179 = vpop.f32.mrf.mxu0
        %1180 = vmatprep.mubr.f32.mxu0 0.0
        %1181 = vmatmul.mubr.f32.gmra.mxu0 %v895
        %v1182 = vpop.f32.mrf.mxu0
        %v1183 = vadd.f32 %v819, %v1182
        %v1184 = vpop.f32.mrf.mxu0
        %1185 = vmatprep.mubr.f32.mxu0 0.0
        %1186 = vmatmul.mubr.f32.gmra.mxu0 %v898
        %v1187 = vpop.f32.mrf.mxu0
        %v1188 = vadd.f32 %v820, %v1187
        %v1189 = vpop.f32.mrf.mxu0
        %1190 = vmatprep.mubr.f32.mxu0 0.0
        %1191 = vmatmul.mubr.f32.gmra.mxu0 %v901
        %v1192 = vpop.f32.mrf.mxu0
        %v1193 = vadd.f32 %v821, %v1192
        %v1194 = vpop.f32.mrf.mxu0
        %1195 = vmatprep.mubr.f32.mxu0 0.0
        %1196 = vmatmul.mubr.f32.gmra.mxu0 %v904
        %v1197 = vpop.f32.mrf.mxu0
        %v1198 = vadd.f32 %v822, %v1197
        %v1199 = vpop.f32.mrf.mxu0
        %1200 = vmatprep.mubr.f32.mxu0 0.0
        %1201 = vmatmul.mubr.f32.gmra.mxu0 %v907
        %v1202 = vpop.f32.mrf.mxu0
        %v1203 = vadd.f32 %v823, %v1202
        %v1204 = vpop.f32.mrf.mxu0
        %1205 = vmatprep.mubr.f32.mxu0 0.0
        %1206 = vmatmul.mubr.f32.gmra.mxu0 %v910
        %v1207 = vpop.f32.mrf.mxu0
        %v1208 = vadd.f32 %v824, %v1207
        %v1209 = vpop.f32.mrf.mxu0
        %1210 = vmatprep.mubr.f32.mxu0 0.0
        %1211 = vmatmul.mubr.f32.gmra.mxu0 %v913
        %v1212 = vpop.f32.mrf.mxu0
        %v1213 = vadd.f32 %v825, %v1212
        %v1214 = vpop.f32.mrf.mxu0
        %1215 = vmatprep.mubr.f32.mxu0 0.0
        %1216 = vmatmul.mubr.f32.gmra.mxu0 %v916
        %v1217 = vpop.f32.mrf.mxu0
        %v1218 = vadd.f32 %v826, %v1217
        %v1219 = vpop.f32.mrf.mxu0
        %1220 = vmatprep.mubr.f32.mxu0 0.0
        %1221 = vmatmul.mubr.f32.gmra.mxu0 %v919
        %v1222 = vpop.f32.mrf.mxu0
        %v1223 = vadd.f32 %v827, %v1222
        %v1224 = vpop.f32.mrf.mxu0
        %1225 = vmatprep.mubr.f32.mxu0 0.0
        %1226 = vmatmul.mubr.f32.gmra.mxu0 %v922
        %v1227 = vpop.f32.mrf.mxu0
        %v1228 = vadd.f32 %v828, %v1227
        %v1229 = vpop.f32.mrf.mxu0
        %1230 = vmatprep.mubr.f32.mxu0 0.0
        %1231 = vmatmul.mubr.f32.gmra.mxu0 %v925
        %v1232 = vpop.f32.mrf.mxu0
        %v1233 = vadd.f32 %v829, %v1232
        %v1234 = vpop.f32.mrf.mxu0
        %1235 = vmatprep.mubr.f32.mxu0 0.0
        %1236 = vmatmul.mubr.f32.gmra.mxu0 %v928
        %v1237 = vpop.f32.mrf.mxu0
        %v1238 = vadd.f32 %v830, %v1237
        %v1239 = vpop.f32.mrf.mxu0
        %1240 = vmatprep.mubr.f32.mxu0 0.0
        %1241 = vmatmul.mubr.f32.gmra.mxu0 %v931
        %v1242 = vpop.f32.mrf.mxu0
        %v1243 = vadd.f32 %v831, %v1242
        %v1244 = vpop.f32.mrf.mxu0
        %1245 = vmatprep.mubr.f32.mxu0 0.0
        %1246 = vmatmul.mubr.f32.gmra.mxu0 %v934
        %v1247 = vpop.f32.mrf.mxu0
        %v1248 = vadd.f32 %v832, %v1247
        %v1249 = vpop.f32.mrf.mxu0
        %1250 = vmatprep.mubr.f32.mxu0 0.0
        %1251 = vmatmul.mubr.f32.gmra.mxu0 %v937
        %v1252 = vpop.f32.mrf.mxu0
        %v1253 = vadd.f32 %v833, %v1252
        %v1254 = vpop.f32.mrf.mxu0
        %1255 = vmatprep.mubr.f32.mxu0 0.0
        %1256 = vmatmul.mubr.f32.gmra.mxu0 %v940
        %v1257 = vpop.f32.mrf.mxu0
        %v1258 = vadd.f32 %v834, %v1257
        %v1259 = vpop.f32.mrf.mxu0
        %1260 = vmatprep.mubr.f32.mxu0 0.0
        %1261 = vmatmul.mubr.f32.gmra.mxu0 %v943
        %v1262 = vpop.f32.mrf.mxu0
        %v1263 = vadd.f32 %v835, %v1262
        %v1264 = vpop.f32.mrf.mxu0
        %1265 = vmatprep.mubr.f32.mxu0 0.0
        %1266 = vmatmul.mubr.f32.gmra.mxu0 %v946
        %v1267 = vpop.f32.mrf.mxu0
        %v1268 = vadd.f32 %v836, %v1267
        %v1269 = vpop.f32.mrf.mxu0
        %1270 = vmatprep.mubr.f32.mxu0 0.0
        %1271 = vmatmul.mubr.f32.gmra.mxu0 %v949
        %v1272 = vpop.f32.mrf.mxu0
        %v1273 = vadd.f32 %v837, %v1272
        %v1274 = vpop.f32.mrf.mxu0
        %1275 = vmatprep.mubr.f32.mxu0 0.0
        %1276 = vmatmul.mubr.f32.gmra.mxu0 %v952
        %v1277 = vpop.f32.mrf.mxu0
        %v1278 = vadd.f32 %v838, %v1277
        %v1279 = vpop.f32.mrf.mxu0
        %1280 = vmatprep.mubr.f32.mxu0 0.0
        %1281 = vmatmul.mubr.f32.gmra.mxu0 %v955
        %v1282 = vpop.f32.mrf.mxu0
        %v1283 = vadd.f32 %v839, %v1282
        %v1284 = vpop.f32.mrf.mxu0
        %1285 = vmatprep.mubr.f32.mxu0 0.0
        %1286 = vmatmul.mubr.f32.gmra.mxu0 %v958
        %v1287 = vpop.f32.mrf.mxu0
        %v1288 = vadd.f32 %v840, %v1287
        %v1289 = vpop.f32.mrf.mxu0
        %1290 = vmatprep.mubr.f32.mxu0 0.0
        %1291 = vmatmul.mubr.f32.gmra.mxu0 %v961
        %v1292 = vpop.f32.mrf.mxu0
        %v1293 = vadd.f32 %v841, %v1292
        %v1294 = vpop.f32.mrf.mxu0
        %1295 = vmatprep.mubr.f32.mxu0 0.0
        %1296 = vmatmul.mubr.f32.gmra.mxu0 %v964
        %v1297 = vpop.f32.mrf.mxu0
        %v1298 = vadd.f32 %v842, %v1297
        %v1299 = vpop.f32.mrf.mxu0
        %1300 = vmatprep.mubr.f32.mxu0 0.0
        %1301 = vmatmul.mubr.f32.gmra.mxu0 %v967
        %v1302 = vpop.f32.mrf.mxu0
        %v1303 = vadd.f32 %v843, %v1302
        %v1304 = vpop.f32.mrf.mxu0
        %1305 = vmatprep.mubr.f32.mxu0 0.0
        %1306 = vmatmul.mubr.f32.gmra.mxu0 %v970
        %v1307 = vpop.f32.mrf.mxu0
        %v1308 = vadd.f32 %v844, %v1307
        %v1309 = vpop.f32.mrf.mxu0
        %1310 = vmatprep.mubr.f32.mxu0 0.0
        %1311 = vmatmul.mubr.f32.gmra.mxu0 %v973
        %v1312 = vpop.f32.mrf.mxu0
        %v1313 = vadd.f32 %v845, %v1312
        %v1314 = vpop.f32.mrf.mxu0
        %1315 = vmatprep.mubr.f32.mxu0 0.0
        %1316 = vmatmul.mubr.f32.gmra.mxu0 %v976
        %v1317 = vpop.f32.mrf.mxu0
        %v1318 = vadd.f32 %v846, %v1317
        %v1319 = vpop.f32.mrf.mxu0
        %1320 = vmatprep.mubr.f32.mxu0 0.0
        %1321 = vmatmul.mubr.f32.gmra.mxu0 %v979
        %v1322 = vpop.f32.mrf.mxu0
        %v1323 = vadd.f32 %v847, %v1322
        %v1324 = vpop.f32.mrf.mxu0
        %1325 = vmatprep.mubr.f32.mxu0 0.0
        %1326 = vmatmul.mubr.f32.gmra.mxu0 %v982
        %v1327 = vpop.f32.mrf.mxu0
        %v1328 = vadd.f32 %v848, %v1327
        %v1329 = vpop.f32.mrf.mxu0
        %1330 = vmatprep.mubr.f32.mxu0 0.0
        %1331 = vmatmul.mubr.f32.gmra.mxu0 %v985
        %v1332 = vpop.f32.mrf.mxu0
        %v1333 = vadd.f32 %v849, %v1332
        %v1334 = vpop.f32.mrf.mxu0
        %1335 = vmatprep.mubr.f32.mxu0 0.0
        %1336 = vmatmul.mubr.f32.gmra.mxu0 %v988
        %v1337 = vpop.f32.mrf.mxu0
        %v1338 = vadd.f32 %v850, %v1337
        %v1339 = vpop.f32.mrf.mxu0
        %1340 = vmatprep.mubr.f32.mxu0 0.0
        %1341 = vmatmul.mubr.f32.gmra.mxu0 %v991
        %v1342 = vpop.f32.mrf.mxu0
        %v1343 = vadd.f32 %v851, %v1342
        %v1344 = vpop.f32.mrf.mxu0
        %1345 = vmatprep.mubr.f32.mxu0 0.0
        %1346 = vmatmul.mubr.f32.gmra.mxu0 %v994
        %v1347 = vpop.f32.mrf.mxu0
        %v1348 = vadd.f32 %v852, %v1347
        %v1349 = vpop.f32.mrf.mxu0
        %1350 = vmatprep.mubr.f32.mxu0 0.0
        %1351 = vmatmul.mubr.f32.gmra.mxu0 %v997
        %v1352 = vpop.f32.mrf.mxu0
        %v1353 = vadd.f32 %v853, %v1352
        %v1354 = vpop.f32.mrf.mxu0
        %1355 = vmatprep.mubr.f32.mxu0 0.0
        %1356 = vmatmul.mubr.f32.gmra.mxu0 %v1000
        %v1357 = vpop.f32.mrf.mxu0
        %v1358 = vadd.f32 %v854, %v1357
        %v1359 = vpop.f32.mrf.mxu0
        %1360 = vmatprep.mubr.f32.mxu0 0.0
        %1361 = vmatmul.mubr.f32.gmra.mxu0 %v1003
        %v1362 = vpop.f32.mrf.mxu0
        %v1363 = vadd.f32 %v855, %v1362
        %v1364 = vpop.f32.mrf.mxu0
        %1365 = vmatprep.mubr.f32.mxu0 0.0
        %1366 = vmatmul.mubr.f32.gmra.mxu0 %v1006
        %v1367 = vpop.f32.mrf.mxu0
        %v1368 = vadd.f32 %v856, %v1367
        %v1369 = vpop.f32.mrf.mxu0
        %1370 = vmatprep.mubr.f32.mxu0 0.0
        %1371 = vmatmul.mubr.f32.gmra.mxu0 %v1009
        %v1372 = vpop.f32.mrf.mxu0
        %v1373 = vadd.f32 %v857, %v1372
        %v1374 = vpop.f32.mrf.mxu0
        %1375 = vmatprep.mubr.f32.mxu0 0.0
        %1376 = vmatmul.mubr.f32.gmra.mxu0 %v1012
        %v1377 = vpop.f32.mrf.mxu0
        %v1378 = vadd.f32 %v858, %v1377
        %v1379 = vpop.f32.mrf.mxu0
        %1380 = vmatprep.mubr.f32.mxu0 0.0
        %1381 = vmatmul.mubr.f32.gmra.mxu0 %v1015
        %v1382 = vpop.f32.mrf.mxu0
        %v1383 = vadd.f32 %v859, %v1382
        %v1384 = vpop.f32.mrf.mxu0
        %1385 = vmatprep.mubr.f32.mxu0 0.0
        %1386 = vmatmul.mubr.f32.gmra.mxu0 %v1018
        %v1387 = vpop.f32.mrf.mxu0
        %v1388 = vadd.f32 %v860, %v1387
        %v1389 = vpop.f32.mrf.mxu0
        %1390 = vmatprep.mubr.f32.mxu0 0.0
        %1391 = vmatmul.mubr.f32.gmra.mxu0 %v1021
        %v1392 = vpop.f32.mrf.mxu0
        %v1393 = vadd.f32 %v861, %v1392
        %v1394 = vpop.f32.mrf.mxu0
        %1395 = vmatprep.mubr.f32.mxu0 0.0
        %1396 = vmatmul.mubr.f32.gmra.mxu0 %v1024
        %v1397 = vpop.f32.mrf.mxu0
        %v1398 = vadd.f32 %v862, %v1397
        %v1399 = vpop.f32.mrf.mxu0
        %1400 = vmatprep.mubr.f32.mxu0 0.0
        %1401 = vmatmul.mubr.f32.gmra.mxu0 %v1027
        %v1402 = vpop.f32.mrf.mxu0
        %v1403 = vadd.f32 %v863, %v1402
        %v1404 = vpop.f32.mrf.mxu0
        %1405 = vmatprep.mubr.f32.mxu0 0.0
        %1406 = vmatmul.mubr.f32.gmra.mxu0 %v1030
        %v1407 = vpop.f32.mrf.mxu0
        %v1408 = vadd.f32 %v864, %v1407
        %v1409 = vpop.f32.mrf.mxu0
        %1410 = vmatprep.mubr.f32.mxu0 0.0
        %1411 = vmatmul.mubr.f32.gmra.mxu0 %v1033
        %v1412 = vpop.f32.mrf.mxu0
        %v1413 = vadd.f32 %v865, %v1412
        %v1414 = vpop.f32.mrf.mxu0
        %1415 = vmatprep.mubr.f32.mxu0 0.0
        %1416 = vmatmul.mubr.f32.gmra.mxu0 %v1036
        %v1417 = vpop.f32.mrf.mxu0
        %v1418 = vadd.f32 %v866, %v1417
        %v1419 = vpop.f32.mrf.mxu0
        %1420 = vmatprep.mubr.f32.mxu0 0.0
        %1421 = vmatmul.mubr.f32.gmra.mxu0 %v1039
        %v1422 = vpop.f32.mrf.mxu0
        %v1423 = vadd.f32 %v867, %v1422
        %v1424 = vpop.f32.mrf.mxu0
        %1425 = vmatprep.mubr.f32.mxu0 0.0
        %1426 = vmatmul.mubr.f32.gmra.mxu0 %v1042
        %v1427 = vpop.f32.mrf.mxu0
        %v1428 = vadd.f32 %v868, %v1427
        %v1429 = vpop.f32.mrf.mxu0
        %1430 = vmatprep.mubr.f32.mxu0 0.0
        %1431 = vmatmul.mubr.f32.gmra.mxu0 %v1045
        %v1432 = vpop.f32.mrf.mxu0
        %v1433 = vadd.f32 %v869, %v1432
        %v1434 = vpop.f32.mrf.mxu0
        %1435 = vmatprep.mubr.f32.mxu0 0.0
        %1436 = vmatmul.mubr.f32.gmra.mxu0 %v1048
        %v1437 = vpop.f32.mrf.mxu0
        %v1438 = vadd.f32 %v870, %v1437
        %v1439 = vpop.f32.mrf.mxu0
        %1440 = vmatprep.mubr.f32.mxu0 0.0
        %1441 = vmatmul.mubr.f32.gmra.mxu0 %v1051
        %v1442 = vpop.f32.mrf.mxu0
        %v1443 = vadd.f32 %v871, %v1442
        %v1444 = vpop.f32.mrf.mxu0
        %1445 = vmatprep.mubr.f32.mxu0 0.0
        %1446 = vmatmul.mubr.f32.gmra.mxu0 %v1054
        %v1447 = vpop.f32.mrf.mxu0
        %v1448 = vadd.f32 %v872, %v1447
        %v1449 = vpop.f32.mrf.mxu0
        %1450 = vmatprep.mubr.f32.mxu0 0.0
        %1451 = vmatmul.mubr.f32.gmra.mxu0 %v1057
        %v1452 = vpop.f32.mrf.mxu0
        %v1453 = vadd.f32 %v873, %v1452
        %v1454 = vpop.f32.mrf.mxu0
        %1455 = vmatprep.mubr.f32.mxu0 0.0
        %1456 = vmatmul.mubr.f32.gmra.mxu0 %v1060
        %v1457 = vpop.f32.mrf.mxu0
        %v1458 = vadd.f32 %v874, %v1457
        %v1459 = vpop.f32.mrf.mxu0
        %1460 = vmatprep.mubr.f32.mxu0 0.0
        %1461 = vmatmul.mubr.f32.gmra.mxu0 %v1063
        %v1462 = vpop.f32.mrf.mxu0
        %v1463 = vadd.f32 %v875, %v1462
        %v1464 = vpop.f32.mrf.mxu0
        %1465 = vmatprep.mubr.f32.mxu0 0.0
        %1466 = vmatmul.mubr.f32.gmra.mxu0 %v1066
        %v1467 = vpop.f32.mrf.mxu0
        %v1468 = vadd.f32 %v876, %v1467
        %v1469 = vpop.f32.mrf.mxu0
        %1470 = vmatprep.mubr.f32.mxu0 0.0
        %1471 = vmatmul.mubr.f32.gmra.mxu0 %v1069
        %v1472 = vpop.f32.mrf.mxu0
        %v1473 = vadd.f32 %v877, %v1472
        %v1474 = vpop.f32.mrf.mxu0
        %1475 = vmatprep.mubr.f32.mxu0 0.0
        %1476 = vmatmul.mubr.f32.gmra.mxu0 %v1072
        %v1477 = vpop.f32.mrf.mxu0
        %v1478 = vadd.f32 %v878, %v1477
        %v1479 = vpop.f32.mrf.mxu0
        %1480 = vmatprep.mubr.f32.mxu0 0.0
        %1481 = vmatmul.mubr.f32.gmra.mxu0 %v1075
        %v1482 = vpop.f32.mrf.mxu0
        %v1483 = vadd.f32 %v879, %v1482
        %v1484 = vpop.f32.mrf.mxu0
        %1485 = vmatprep.mubr.f32.mxu0 0.0
        %1486 = vmatmul.mubr.f32.gmra.mxu0 %v1078
        %v1487 = vpop.f32.mrf.mxu0
        %v1488 = vadd.f32 %v880, %v1487
        %v1489 = vpop.f32.mrf.mxu0
        %1490 = vmatprep.mubr.f32.mxu0 0.0
        %1491 = vmatmul.mubr.f32.gmra.mxu0 %v1081
        %v1492 = vpop.f32.mrf.mxu0
        %v1493 = vadd.f32 %v881, %v1492
        %v1494 = vpop.f32.mrf.mxu0
        %1495 = vmatprep.mubr.f32.mxu0 0.0
        %1496 = vmatmul.mubr.f32.gmra.mxu0 %v1084
        %v1497 = vpop.f32.mrf.mxu0
        %v1498 = vadd.f32 %v882, %v1497
        %v1499 = vpop.f32.mrf.mxu0
        %1500 = vmatprep.mubr.f32.mxu0 0.0
        %1501 = vmatmul.mubr.f32.gmra.mxu0 %v1087
        %v1502 = vpop.f32.mrf.mxu0
        %v1503 = vadd.f32 %v883, %v1502
        %v1504 = vpop.f32.mrf.mxu0
        %1505 = vmatprep.mubr.f32.mxu0 0.0
        %1506 = vmatmul.mubr.f32.gmra.mxu0 %v1090
        %v1507 = vpop.f32.mrf.mxu0
        %v1508 = vadd.f32 %v884, %v1507
        %v1509 = vpop.f32.mrf.mxu0
        %1510 = vmatprep.mubr.f32.mxu0 0.0
        %1511 = vmatmul.mubr.f32.gmra.mxu0 %v1093
        %v1512 = vpop.f32.mrf.mxu0
        %v1513 = vadd.f32 %v885, %v1512
        %v1514 = vpop.f32.mrf.mxu0
        %1515 = vmatprep.mubr.f32.mxu0 0.0
        %1516 = vmatmul.mubr.f32.gmra.mxu0 %v1096
        %v1517 = vpop.f32.mrf.mxu0
        %v1518 = vadd.f32 %v886, %v1517
        %v1519 = vpop.f32.mrf.mxu0
        %1520 = vmatprep.mubr.f32.mxu0 0.0
        %1521 = vmatmul.mubr.f32.gmra.mxu0 %v1099
        %v1522 = vpop.f32.mrf.mxu0
        %v1523 = vadd.f32 %v887, %v1522
        %v1524 = vpop.f32.mrf.mxu0
        %1525 = vmatprep.mubr.f32.mxu0 0.0
        %1526 = vmatmul.mubr.f32.gmra.mxu0 %v1102
        %v1527 = vpop.f32.mrf.mxu0
        %v1528 = vadd.f32 %v888, %v1527
        %v1529 = vpop.f32.mrf.mxu0
        %1530 = vmatprep.mubr.f32.mxu0 0.0
        %1531 = vmatmul.mubr.f32.gmra.mxu0 %v1105
        %v1532 = vpop.f32.mrf.mxu0
        %v1533 = vadd.f32 %v889, %v1532
        %v1534 = vpop.f32.mrf.mxu0
        %1535 = vdwg.mxu0
        %v1536 = vld [vmem:[%s3] sm:$0xff]
        %v1537 = vld [vmem:[%s3 + $0x8] sm:$0xff]
        %v1538 = vld [vmem:[%s3 + $0x10] sm:$0x3f]
        %s1539 = scalar_lea.vmem %s3, 24
        %v1540 = vld [vmem:[%s1539] sm:$0xff]
        %v1541 = vld [vmem:[%s1539 + $0x8] sm:$0xff]
        %v1542 = vld [vmem:[%s1539 + $0x10] sm:$0x3f]
        %vm1614 = vcmask 1046528
        %v1615 = vrot.slane %v1178, 1
        %v1616 = vrot.slane %v1183, 1
        %v1617 = vsel %vm1614, %v1615, %v1616
        %v1618 = vrot.slane %v1188, 1
        %v1619 = vsel %vm1614, %v1616, %v1618
        %v1620 = vrot.slane %v1193, 1
        %v1621 = vsel %vm1614, %v1618, %v1620
        %v1622 = vrot.slane %v1198, 1
        %v1623 = vsel %vm1614, %v1620, %v1622
        %v1624 = vrot.slane %v1203, 1
        %v1625 = vsel %vm1614, %v1622, %v1624
        %v1626 = vrot.slane %v1208, 1
        %v1627 = vsel %vm1614, %v1624, %v1626
        %v1628 = vrot.slane %v1213, 1
        %v1629 = vsel %vm1614, %v1626, %v1628
        %v1630 = vrot.slane %v1218, 1
        %v1631 = vsel %vm1614, %v1628, %v1630
        %v1632 = vrot.slane %v1223, 1
        %v1633 = vsel %vm1614, %v1630, %v1632
        %v1634 = vrot.slane %v1228, 1
        %v1635 = vsel %vm1614, %v1632, %v1634
        %v1636 = vrot.slane %v1233, 1
        %v1637 = vsel %vm1614, %v1634, %v1636
        %v1638 = vrot.slane %v1238, 1
        %v1639 = vsel %vm1614, %v1636, %v1638
        %v1640 = vrot.slane %v1243, 1
        %v1641 = vsel %vm1614, %v1638, %v1640
        %v1642 = vrot.slane %v1248, 1
        %v1643 = vsel %vm1614, %v1640, %v1642
        %v1644 = vrot.slane %v1253, 1
        %v1645 = vsel %vm1614, %v1642, %v1644
        %v1646 = vrot.slane %v1258, 1
        %v1647 = vsel %vm1614, %v1644, %v1646
        %v1648 = vrot.slane %v1263, 1
        %v1649 = vsel %vm1614, %v1646, %v1648
        %v1650 = vrot.slane %v1268, 1
        %v1651 = vsel %vm1614, %v1648, %v1650
        %v1652 = vrot.slane %v1273, 1
        %v1653 = vsel %vm1614, %v1650, %v1652
        %v1654 = vrot.slane %v1278, 1
        %v1655 = vsel %vm1614, %v1652, %v1654
        %v1656 = vrot.slane %v1283, 1
        %v1657 = vsel %vm1614, %v1654, %v1656
        %v1658 = vrot.slane %v1288, 1
        %v1659 = vsel %vm1614, %v1656, %v1658
        %v1660 = vrot.slane %v1293, 1
        %v1661 = vsel %vm1614, %v1658, %v1660
        %v1662 = vrot.slane %v1298, 1
        %v1663 = vsel %vm1614, %v1660, %v1662
        %v1664 = vrot.slane %v1303, 1
        %v1665 = vsel %vm1614, %v1662, %v1664
        %v1666 = vrot.slane %v1308, 1
        %v1667 = vsel %vm1614, %v1664, %v1666
        %v1668 = vrot.slane %v1313, 1
        %v1669 = vsel %vm1614, %v1666, %v1668
        %v1670 = vrot.slane %v1318, 1
        %v1671 = vsel %vm1614, %v1668, %v1670
        %v1672 = vrot.slane %v1323, 1
        %v1673 = vsel %vm1614, %v1670, %v1672
        %v1674 = vrot.slane %v1328, 1
        %v1675 = vsel %vm1614, %v1672, %v1674
        %v1676 = vrot.slane %v1333, 1
        %v1677 = vsel %vm1614, %v1674, %v1676
        %v1678 = vrot.slane %v1338, 1
        %v1679 = vsel %vm1614, %v1676, %v1678
        %v1680 = vrot.slane %v1343, 1
        %v1681 = vsel %vm1614, %v1678, %v1680
        %v1682 = vrot.slane %v1348, 1
        %v1683 = vsel %vm1614, %v1680, %v1682
        %v1684 = vrot.slane %v1353, 1
        %v1685 = vsel %vm1614, %v1682, %v1684
        %v1686 = vrot.slane %v1358, 1
        %v1687 = vsel %vm1614, %v1684, %v1686
        %v1688 = vrot.slane %v1363, 1
        %v1689 = vsel %vm1614, %v1686, %v1688
        %v1690 = vrot.slane %v1368, 1
        %v1691 = vsel %vm1614, %v1688, %v1690
        %v1692 = vrot.slane %v1373, 1
        %v1693 = vsel %vm1614, %v1690, %v1692
        %v1694 = vrot.slane %v1378, 1
        %v1695 = vsel %vm1614, %v1692, %v1694
        %v1696 = vrot.slane %v1383, 1
        %v1697 = vsel %vm1614, %v1694, %v1696
        %v1698 = vrot.slane %v1388, 1
        %v1699 = vsel %vm1614, %v1696, %v1698
        %v1700 = vrot.slane %v1393, 1
        %v1701 = vsel %vm1614, %v1698, %v1700
        %v1702 = vrot.slane %v1398, 1
        %v1703 = vsel %vm1614, %v1700, %v1702
        %v1704 = vrot.slane %v1403, 1
        %v1705 = vsel %vm1614, %v1702, %v1704
        %v1706 = vrot.slane %v1408, 1
        %v1707 = vsel %vm1614, %v1704, %v1706
        %v1708 = vrot.slane %v1413, 1
        %v1709 = vsel %vm1614, %v1706, %v1708
        %v1710 = vrot.slane %v1418, 1
        %v1711 = vsel %vm1614, %v1708, %v1710
        %v1712 = vrot.slane %v1423, 1
        %v1713 = vsel %vm1614, %v1710, %v1712
        %v1714 = vrot.slane %v1428, 1
        %v1715 = vsel %vm1614, %v1712, %v1714
        %v1716 = vrot.slane %v1433, 1
        %v1717 = vsel %vm1614, %v1714, %v1716
        %v1718 = vrot.slane %v1438, 1
        %v1719 = vsel %vm1614, %v1716, %v1718
        %v1720 = vrot.slane %v1443, 1
        %v1721 = vsel %vm1614, %v1718, %v1720
        %v1722 = vrot.slane %v1448, 1
        %v1723 = vsel %vm1614, %v1720, %v1722
        %v1724 = vrot.slane %v1453, 1
        %v1725 = vsel %vm1614, %v1722, %v1724
        %v1726 = vrot.slane %v1458, 1
        %v1727 = vsel %vm1614, %v1724, %v1726
        %v1728 = vrot.slane %v1463, 1
        %v1729 = vsel %vm1614, %v1726, %v1728
        %v1730 = vrot.slane %v1468, 1
        %v1731 = vsel %vm1614, %v1728, %v1730
        %v1732 = vrot.slane %v1473, 1
        %v1733 = vsel %vm1614, %v1730, %v1732
        %v1734 = vrot.slane %v1478, 1
        %v1735 = vsel %vm1614, %v1732, %v1734
        %v1736 = vrot.slane %v1483, 1
        %v1737 = vsel %vm1614, %v1734, %v1736
        %v1738 = vrot.slane %v1488, 1
        %v1739 = vsel %vm1614, %v1736, %v1738
        %v1740 = vrot.slane %v1493, 1
        %v1741 = vsel %vm1614, %v1738, %v1740
        %v1742 = vrot.slane %v1498, 1
        %v1743 = vsel %vm1614, %v1740, %v1742
        %v1744 = vrot.slane %v1503, 1
        %v1745 = vsel %vm1614, %v1742, %v1744
        %v1746 = vrot.slane %v1508, 1
        %v1747 = vsel %vm1614, %v1744, %v1746
        %v1748 = vrot.slane %v1513, 1
        %v1749 = vsel %vm1614, %v1746, %v1748
        %v1750 = vrot.slane %v1518, 1
        %v1751 = vsel %vm1614, %v1748, %v1750
        %v1752 = vrot.slane %v1523, 1
        %v1753 = vsel %vm1614, %v1750, %v1752
        %v1754 = vrot.slane %v1528, 1
        %v1755 = vsel %vm1614, %v1752, %v1754
        %v1756 = vsel %vm890, %v1617, 0
        %v1758 = vsel %vm890, %v1619, 0
        %v1760 = vsel %vm890, %v1621, 0
        %v1762 = vsel %vm890, %v1623, 0
        %v1764 = vsel %vm890, %v1625, 0
        %v1766 = vsel %vm890, %v1627, 0
        %v1768 = vsel %vm890, %v1629, 0
        %v1770 = vsel %vm890, %v1631, 0
        %v1772 = vsel %vm890, %v1633, 0
        %v1774 = vsel %vm890, %v1635, 0
        %v1776 = vsel %vm890, %v1637, 0
        %v1778 = vsel %vm890, %v1639, 0
        %v1780 = vsel %vm890, %v1641, 0
        %v1782 = vsel %vm890, %v1643, 0
        %v1784 = vsel %vm890, %v1645, 0
        %v1786 = vsel %vm890, %v1647, 0
        %v1788 = vsel %vm890, %v1649, 0
        %v1790 = vsel %vm890, %v1651, 0
        %v1792 = vsel %vm890, %v1653, 0
        %v1794 = vsel %vm890, %v1655, 0
        %v1796 = vsel %vm890, %v1657, 0
        %v1798 = vsel %vm890, %v1659, 0
        %v1800 = vsel %vm890, %v1661, 0
        %v1802 = vsel %vm890, %v1663, 0
        %v1804 = vsel %vm890, %v1665, 0
        %v1806 = vsel %vm890, %v1667, 0
        %v1808 = vsel %vm890, %v1669, 0
        %v1810 = vsel %vm890, %v1671, 0
        %v1812 = vsel %vm890, %v1673, 0
        %v1814 = vsel %vm890, %v1675, 0
        %v1816 = vsel %vm890, %v1677, 0
        %v1818 = vsel %vm890, %v1679, 0
        %v1820 = vsel %vm890, %v1681, 0
        %v1822 = vsel %vm890, %v1683, 0
        %v1824 = vsel %vm890, %v1685, 0
        %v1826 = vsel %vm890, %v1687, 0
        %v1828 = vsel %vm890, %v1689, 0
        %v1830 = vsel %vm890, %v1691, 0
        %v1832 = vsel %vm890, %v1693, 0
        %v1834 = vsel %vm890, %v1695, 0
        %v1836 = vsel %vm890, %v1697, 0
        %v1838 = vsel %vm890, %v1699, 0
        %v1840 = vsel %vm890, %v1701, 0
        %v1842 = vsel %vm890, %v1703, 0
        %v1844 = vsel %vm890, %v1705, 0
        %v1846 = vsel %vm890, %v1707, 0
        %v1848 = vsel %vm890, %v1709, 0
        %v1850 = vsel %vm890, %v1711, 0
        %v1852 = vsel %vm890, %v1713, 0
        %v1854 = vsel %vm890, %v1715, 0
        %v1856 = vsel %vm890, %v1717, 0
        %v1858 = vsel %vm890, %v1719, 0
        %v1860 = vsel %vm890, %v1721, 0
        %v1862 = vsel %vm890, %v1723, 0
        %v1864 = vsel %vm890, %v1725, 0
        %v1866 = vsel %vm890, %v1727, 0
        %v1868 = vsel %vm890, %v1729, 0
        %v1870 = vsel %vm890, %v1731, 0
        %v1872 = vsel %vm890, %v1733, 0
        %v1874 = vsel %vm890, %v1735, 0
        %v1876 = vsel %vm890, %v1737, 0
        %v1878 = vsel %vm890, %v1739, 0
        %v1880 = vsel %vm890, %v1741, 0
        %v1882 = vsel %vm890, %v1743, 0
        %v1884 = vsel %vm890, %v1745, 0
        %v1886 = vsel %vm890, %v1747, 0
        %v1888 = vsel %vm890, %v1749, 0
        %v1890 = vsel %vm890, %v1751, 0
        %v1892 = vsel %vm890, %v1753, 0
        %v1894 = vsel %vm890, %v1755, 0
        %v1896 = vsel %vm890, %v1754, 0
        %v1899 = vsel %vm1107, %v1542, 0
        %1901 = vmatprep.subr.mxu0 0.0
        %1902 = vmatpush1.msra.mxu0 0.0
        %1903 = vmatprep.subr.mxu0 0.0
        %1904 = vmatpush1.msra.mxu0 0.0
        %1905 = vmatprep.subr.mxu0 0.0
        %1906 = vmatpush1.msra.mxu0 0.0
        %1907 = vmatprep.subr.mxu0 0.0
        %1908 = vmatpush1.msra.mxu0 0.0
        %1909 = vmatprep.subr.mxu0 0.0
        %1910 = vmatpush1.msra.mxu0 0.0
        %1911 = vmatprep.subr.mxu0 0.0
        %1912 = vmatpush1.msra.mxu0 0.0
        %1913 = vmatprep.subr.mxu0 0.0
        %1914 = vmatpush1.msra.mxu0 0.0
        %1915 = vmatprep.subr.mxu0 0.0
        %1916 = vmatpush1.msra.mxu0 0.0
        %1917 = vmatprep.subr.mxu0 0.0
        %1918 = vmatpush1.msra.mxu0 0.0
        %1919 = vmatprep.subr.mxu0 0.0
        %1920 = vmatpush1.msra.mxu0 0.0
        %1921 = vmatprep.subr.mxu0 0.0
        %1922 = vmatpush1.msra.mxu0 0.0
        %1923 = vmatprep.subr.mxu0 0.0
        %1924 = vmatpush1.msra.mxu0 0.0
        %1925 = vmatprep.subr.mxu0 0.0
        %1926 = vmatpush1.msra.mxu0 0.0
        %1927 = vmatprep.subr.mxu0 0.0
        %1928 = vmatpush1.msra.mxu0 %v1899
        %1929 = vmatprep.subr.mxu0 0.0
        %1930 = vmatpush1.msra.mxu0 %v1541
        %1931 = vmatprep.subr.mxu0 0.0
        %1932 = vmatpush1.msra.mxu0 %v1540
        %1933 = vmatprep.subr.mxu0 0.0
        %1934 = vmatpush2.msra.mxu0 0.0
        %1935 = vmatprep.subr.mxu0 0.0
        %1936 = vmatpush2.msra.mxu0 0.0
        %1937 = vmatprep.subr.mxu0 0.0
        %1938 = vmatpush2.msra.mxu0 0.0
        %1939 = vmatprep.subr.mxu0 0.0
        %1940 = vmatpush2.msra.mxu0 0.0
        %1941 = vmatprep.subr.mxu0 0.0
        %1942 = vmatpush2.msra.mxu0 0.0
        %1943 = vmatprep.subr.mxu0 0.0
        %1944 = vmatpush2.msra.mxu0 0.0
        %1945 = vmatprep.subr.mxu0 0.0
        %1946 = vmatpush2.msra.mxu0 0.0
        %1947 = vmatprep.subr.mxu0 0.0
        %1948 = vmatpush2.msra.mxu0 0.0
        %1949 = vmatprep.subr.mxu0 0.0
        %1950 = vmatpush2.msra.mxu0 0.0
        %1951 = vmatprep.subr.mxu0 0.0
        %1952 = vmatpush2.msra.mxu0 0.0
        %1953 = vmatprep.subr.mxu0 0.0
        %1954 = vmatpush2.msra.mxu0 0.0
        %1955 = vmatprep.subr.mxu0 0.0
        %1956 = vmatpush2.msra.mxu0 0.0
        %1957 = vmatprep.subr.mxu0 0.0
        %1958 = vmatpush2.msra.mxu0 0.0
        %1959 = vmatprep.subr.mxu0 0.0
        %1960 = vmatpush2.msra.mxu0 0.0
        %1961 = vmatprep.subr.mxu0 0.0
        %1962 = vmatpush2.msra.mxu0 0.0
        %1963 = vmatprep.subr.mxu0 0.0
        %1964 = vmatpush2.msra.mxu0 0.0
        %1965 = vmatprep.mubr.f32.mxu0 0.0
        %1966 = vmatmul.mubr.f32.gmra.mxu0 %v1756
        %v1967 = vpop.f32.mrf.mxu0
        %v1968 = vadd.f32 0.0, %v1967
        %v1969 = vpop.f32.mrf.mxu0
        %1970 = vmatprep.mubr.f32.mxu0 0.0
        %1971 = vmatmul.mubr.f32.gmra.mxu0 %v1758
        %v1972 = vpop.f32.mrf.mxu0
        %v1973 = vadd.f32 0.0, %v1972
        %v1974 = vpop.f32.mrf.mxu0
        %1975 = vmatprep.mubr.f32.mxu0 0.0
        %1976 = vmatmul.mubr.f32.gmra.mxu0 %v1760
        %v1977 = vpop.f32.mrf.mxu0
        %v1978 = vadd.f32 0.0, %v1977
        %v1979 = vpop.f32.mrf.mxu0
        %1980 = vmatprep.mubr.f32.mxu0 0.0
        %1981 = vmatmul.mubr.f32.gmra.mxu0 %v1762
        %v1982 = vpop.f32.mrf.mxu0
        %v1983 = vadd.f32 0.0, %v1982
        %v1984 = vpop.f32.mrf.mxu0
        %1985 = vmatprep.mubr.f32.mxu0 0.0
        %1986 = vmatmul.mubr.f32.gmra.mxu0 %v1764
        %v1987 = vpop.f32.mrf.mxu0
        %v1988 = vadd.f32 0.0, %v1987
        %v1989 = vpop.f32.mrf.mxu0
        %1990 = vmatprep.mubr.f32.mxu0 0.0
        %1991 = vmatmul.mubr.f32.gmra.mxu0 %v1766
        %v1992 = vpop.f32.mrf.mxu0
        %v1993 = vadd.f32 0.0, %v1992
        %v1994 = vpop.f32.mrf.mxu0
        %1995 = vmatprep.mubr.f32.mxu0 0.0
        %1996 = vmatmul.mubr.f32.gmra.mxu0 %v1768
        %v1997 = vpop.f32.mrf.mxu0
        %v1998 = vadd.f32 0.0, %v1997
        %v1999 = vpop.f32.mrf.mxu0
        %2000 = vmatprep.mubr.f32.mxu0 0.0
        %2001 = vmatmul.mubr.f32.gmra.mxu0 %v1770
        %v2002 = vpop.f32.mrf.mxu0
        %v2003 = vadd.f32 0.0, %v2002
        %v2004 = vpop.f32.mrf.mxu0
        %2005 = vmatprep.mubr.f32.mxu0 0.0
        %2006 = vmatmul.mubr.f32.gmra.mxu0 %v1772
        %v2007 = vpop.f32.mrf.mxu0
        %v2008 = vadd.f32 0.0, %v2007
        %v2009 = vpop.f32.mrf.mxu0
        %2010 = vmatprep.mubr.f32.mxu0 0.0
        %2011 = vmatmul.mubr.f32.gmra.mxu0 %v1774
        %v2012 = vpop.f32.mrf.mxu0
        %v2013 = vadd.f32 0.0, %v2012
        %v2014 = vpop.f32.mrf.mxu0
        %2015 = vmatprep.mubr.f32.mxu0 0.0
        %2016 = vmatmul.mubr.f32.gmra.mxu0 %v1776
        %v2017 = vpop.f32.mrf.mxu0
        %v2018 = vadd.f32 0.0, %v2017
        %v2019 = vpop.f32.mrf.mxu0
        %2020 = vmatprep.mubr.f32.mxu0 0.0
        %2021 = vmatmul.mubr.f32.gmra.mxu0 %v1778
        %v2022 = vpop.f32.mrf.mxu0
        %v2023 = vadd.f32 0.0, %v2022
        %v2024 = vpop.f32.mrf.mxu0
        %2025 = vmatprep.mubr.f32.mxu0 0.0
        %2026 = vmatmul.mubr.f32.gmra.mxu0 %v1780
        %v2027 = vpop.f32.mrf.mxu0
        %v2028 = vadd.f32 0.0, %v2027
        %v2029 = vpop.f32.mrf.mxu0
        %2030 = vmatprep.mubr.f32.mxu0 0.0
        %2031 = vmatmul.mubr.f32.gmra.mxu0 %v1782
        %v2032 = vpop.f32.mrf.mxu0
        %v2033 = vadd.f32 0.0, %v2032
        %v2034 = vpop.f32.mrf.mxu0
        %2035 = vmatprep.mubr.f32.mxu0 0.0
        %2036 = vmatmul.mubr.f32.gmra.mxu0 %v1784
        %v2037 = vpop.f32.mrf.mxu0
        %v2038 = vadd.f32 0.0, %v2037
        %v2039 = vpop.f32.mrf.mxu0
        %2040 = vmatprep.mubr.f32.mxu0 0.0
        %2041 = vmatmul.mubr.f32.gmra.mxu0 %v1786
        %v2042 = vpop.f32.mrf.mxu0
        %v2043 = vadd.f32 0.0, %v2042
        %v2044 = vpop.f32.mrf.mxu0
        %2045 = vmatprep.mubr.f32.mxu0 0.0
        %2046 = vmatmul.mubr.f32.gmra.mxu0 %v1788
        %v2047 = vpop.f32.mrf.mxu0
        %v2048 = vadd.f32 0.0, %v2047
        %v2049 = vpop.f32.mrf.mxu0
        %2050 = vmatprep.mubr.f32.mxu0 0.0
        %2051 = vmatmul.mubr.f32.gmra.mxu0 %v1790
        %v2052 = vpop.f32.mrf.mxu0
        %v2053 = vadd.f32 0.0, %v2052
        %v2054 = vpop.f32.mrf.mxu0
        %2055 = vmatprep.mubr.f32.mxu0 0.0
        %2056 = vmatmul.mubr.f32.gmra.mxu0 %v1792
        %v2057 = vpop.f32.mrf.mxu0
        %v2058 = vadd.f32 0.0, %v2057
        %v2059 = vpop.f32.mrf.mxu0
        %2060 = vmatprep.mubr.f32.mxu0 0.0
        %2061 = vmatmul.mubr.f32.gmra.mxu0 %v1794
        %v2062 = vpop.f32.mrf.mxu0
        %v2063 = vadd.f32 0.0, %v2062
        %v2064 = vpop.f32.mrf.mxu0
        %2065 = vmatprep.mubr.f32.mxu0 0.0
        %2066 = vmatmul.mubr.f32.gmra.mxu0 %v1796
        %v2067 = vpop.f32.mrf.mxu0
        %v2068 = vadd.f32 0.0, %v2067
        %v2069 = vpop.f32.mrf.mxu0
        %2070 = vmatprep.mubr.f32.mxu0 0.0
        %2071 = vmatmul.mubr.f32.gmra.mxu0 %v1798
        %v2072 = vpop.f32.mrf.mxu0
        %v2073 = vadd.f32 0.0, %v2072
        %v2074 = vpop.f32.mrf.mxu0
        %2075 = vmatprep.mubr.f32.mxu0 0.0
        %2076 = vmatmul.mubr.f32.gmra.mxu0 %v1800
        %v2077 = vpop.f32.mrf.mxu0
        %v2078 = vadd.f32 0.0, %v2077
        %v2079 = vpop.f32.mrf.mxu0
        %2080 = vmatprep.mubr.f32.mxu0 0.0
        %2081 = vmatmul.mubr.f32.gmra.mxu0 %v1802
        %v2082 = vpop.f32.mrf.mxu0
        %v2083 = vadd.f32 0.0, %v2082
        %v2084 = vpop.f32.mrf.mxu0
        %2085 = vmatprep.mubr.f32.mxu0 0.0
        %2086 = vmatmul.mubr.f32.gmra.mxu0 %v1804
        %v2087 = vpop.f32.mrf.mxu0
        %v2088 = vadd.f32 0.0, %v2087
        %v2089 = vpop.f32.mrf.mxu0
        %2090 = vmatprep.mubr.f32.mxu0 0.0
        %2091 = vmatmul.mubr.f32.gmra.mxu0 %v1806
        %v2092 = vpop.f32.mrf.mxu0
        %v2093 = vadd.f32 0.0, %v2092
        %v2094 = vpop.f32.mrf.mxu0
        %2095 = vmatprep.mubr.f32.mxu0 0.0
        %2096 = vmatmul.mubr.f32.gmra.mxu0 %v1808
        %v2097 = vpop.f32.mrf.mxu0
        %v2098 = vadd.f32 0.0, %v2097
        %v2099 = vpop.f32.mrf.mxu0
        %2100 = vmatprep.mubr.f32.mxu0 0.0
        %2101 = vmatmul.mubr.f32.gmra.mxu0 %v1810
        %v2102 = vpop.f32.mrf.mxu0
        %v2103 = vadd.f32 0.0, %v2102
        %v2104 = vpop.f32.mrf.mxu0
        %2105 = vmatprep.mubr.f32.mxu0 0.0
        %2106 = vmatmul.mubr.f32.gmra.mxu0 %v1812
        %v2107 = vpop.f32.mrf.mxu0
        %v2108 = vadd.f32 0.0, %v2107
        %v2109 = vpop.f32.mrf.mxu0
        %2110 = vmatprep.mubr.f32.mxu0 0.0
        %2111 = vmatmul.mubr.f32.gmra.mxu0 %v1814
        %v2112 = vpop.f32.mrf.mxu0
        %v2113 = vadd.f32 0.0, %v2112
        %v2114 = vpop.f32.mrf.mxu0
        %2115 = vmatprep.mubr.f32.mxu0 0.0
        %2116 = vmatmul.mubr.f32.gmra.mxu0 %v1816
        %v2117 = vpop.f32.mrf.mxu0
        %v2118 = vadd.f32 0.0, %v2117
        %v2119 = vpop.f32.mrf.mxu0
        %2120 = vmatprep.mubr.f32.mxu0 0.0
        %2121 = vmatmul.mubr.f32.gmra.mxu0 %v1818
        %v2122 = vpop.f32.mrf.mxu0
        %v2123 = vadd.f32 0.0, %v2122
        %v2124 = vpop.f32.mrf.mxu0
        %2125 = vmatprep.mubr.f32.mxu0 0.0
        %2126 = vmatmul.mubr.f32.gmra.mxu0 %v1820
        %v2127 = vpop.f32.mrf.mxu0
        %v2128 = vadd.f32 0.0, %v2127
        %v2129 = vpop.f32.mrf.mxu0
        %2130 = vmatprep.mubr.f32.mxu0 0.0
        %2131 = vmatmul.mubr.f32.gmra.mxu0 %v1822
        %v2132 = vpop.f32.mrf.mxu0
        %v2133 = vadd.f32 0.0, %v2132
        %v2134 = vpop.f32.mrf.mxu0
        %2135 = vmatprep.mubr.f32.mxu0 0.0
        %2136 = vmatmul.mubr.f32.gmra.mxu0 %v1824
        %v2137 = vpop.f32.mrf.mxu0
        %v2138 = vadd.f32 0.0, %v2137
        %v2139 = vpop.f32.mrf.mxu0
        %2140 = vmatprep.mubr.f32.mxu0 0.0
        %2141 = vmatmul.mubr.f32.gmra.mxu0 %v1826
        %v2142 = vpop.f32.mrf.mxu0
        %v2143 = vadd.f32 0.0, %v2142
        %v2144 = vpop.f32.mrf.mxu0
        %2145 = vmatprep.mubr.f32.mxu0 0.0
        %2146 = vmatmul.mubr.f32.gmra.mxu0 %v1828
        %v2147 = vpop.f32.mrf.mxu0
        %v2148 = vadd.f32 0.0, %v2147
        %v2149 = vpop.f32.mrf.mxu0
        %2150 = vmatprep.mubr.f32.mxu0 0.0
        %2151 = vmatmul.mubr.f32.gmra.mxu0 %v1830
        %v2152 = vpop.f32.mrf.mxu0
        %v2153 = vadd.f32 0.0, %v2152
        %v2154 = vpop.f32.mrf.mxu0
        %2155 = vmatprep.mubr.f32.mxu0 0.0
        %2156 = vmatmul.mubr.f32.gmra.mxu0 %v1832
        %v2157 = vpop.f32.mrf.mxu0
        %v2158 = vadd.f32 0.0, %v2157
        %v2159 = vpop.f32.mrf.mxu0
        %2160 = vmatprep.mubr.f32.mxu0 0.0
        %2161 = vmatmul.mubr.f32.gmra.mxu0 %v1834
        %v2162 = vpop.f32.mrf.mxu0
        %v2163 = vadd.f32 0.0, %v2162
        %v2164 = vpop.f32.mrf.mxu0
        %2165 = vmatprep.mubr.f32.mxu0 0.0
        %2166 = vmatmul.mubr.f32.gmra.mxu0 %v1836
        %v2167 = vpop.f32.mrf.mxu0
        %v2168 = vadd.f32 0.0, %v2167
        %v2169 = vpop.f32.mrf.mxu0
        %2170 = vmatprep.mubr.f32.mxu0 0.0
        %2171 = vmatmul.mubr.f32.gmra.mxu0 %v1838
        %v2172 = vpop.f32.mrf.mxu0
        %v2173 = vadd.f32 0.0, %v2172
        %v2174 = vpop.f32.mrf.mxu0
        %2175 = vmatprep.mubr.f32.mxu0 0.0
        %2176 = vmatmul.mubr.f32.gmra.mxu0 %v1840
        %v2177 = vpop.f32.mrf.mxu0
        %v2178 = vadd.f32 0.0, %v2177
        %v2179 = vpop.f32.mrf.mxu0
        %2180 = vmatprep.mubr.f32.mxu0 0.0
        %2181 = vmatmul.mubr.f32.gmra.mxu0 %v1842
        %v2182 = vpop.f32.mrf.mxu0
        %v2183 = vadd.f32 0.0, %v2182
        %v2184 = vpop.f32.mrf.mxu0
        %2185 = vmatprep.mubr.f32.mxu0 0.0
        %2186 = vmatmul.mubr.f32.gmra.mxu0 %v1844
        %v2187 = vpop.f32.mrf.mxu0
        %v2188 = vadd.f32 0.0, %v2187
        %v2189 = vpop.f32.mrf.mxu0
        %2190 = vmatprep.mubr.f32.mxu0 0.0
        %2191 = vmatmul.mubr.f32.gmra.mxu0 %v1846
        %v2192 = vpop.f32.mrf.mxu0
        %v2193 = vadd.f32 0.0, %v2192
        %v2194 = vpop.f32.mrf.mxu0
        %2195 = vmatprep.mubr.f32.mxu0 0.0
        %2196 = vmatmul.mubr.f32.gmra.mxu0 %v1848
        %v2197 = vpop.f32.mrf.mxu0
        %v2198 = vadd.f32 0.0, %v2197
        %v2199 = vpop.f32.mrf.mxu0
        %2200 = vmatprep.mubr.f32.mxu0 0.0
        %2201 = vmatmul.mubr.f32.gmra.mxu0 %v1850
        %v2202 = vpop.f32.mrf.mxu0
        %v2203 = vadd.f32 0.0, %v2202
        %v2204 = vpop.f32.mrf.mxu0
        %2205 = vmatprep.mubr.f32.mxu0 0.0
        %2206 = vmatmul.mubr.f32.gmra.mxu0 %v1852
        %v2207 = vpop.f32.mrf.mxu0
        %v2208 = vadd.f32 0.0, %v2207
        %v2209 = vpop.f32.mrf.mxu0
        %2210 = vmatprep.mubr.f32.mxu0 0.0
        %2211 = vmatmul.mubr.f32.gmra.mxu0 %v1854
        %v2212 = vpop.f32.mrf.mxu0
        %v2213 = vadd.f32 0.0, %v2212
        %v2214 = vpop.f32.mrf.mxu0
        %2215 = vmatprep.mubr.f32.mxu0 0.0
        %2216 = vmatmul.mubr.f32.gmra.mxu0 %v1856
        %v2217 = vpop.f32.mrf.mxu0
        %v2218 = vadd.f32 0.0, %v2217
        %v2219 = vpop.f32.mrf.mxu0
        %2220 = vmatprep.mubr.f32.mxu0 0.0
        %2221 = vmatmul.mubr.f32.gmra.mxu0 %v1858
        %v2222 = vpop.f32.mrf.mxu0
        %v2223 = vadd.f32 0.0, %v2222
        %v2224 = vpop.f32.mrf.mxu0
        %2225 = vmatprep.mubr.f32.mxu0 0.0
        %2226 = vmatmul.mubr.f32.gmra.mxu0 %v1860
        %v2227 = vpop.f32.mrf.mxu0
        %v2228 = vadd.f32 0.0, %v2227
        %v2229 = vpop.f32.mrf.mxu0
        %2230 = vmatprep.mubr.f32.mxu0 0.0
        %2231 = vmatmul.mubr.f32.gmra.mxu0 %v1862
        %v2232 = vpop.f32.mrf.mxu0
        %v2233 = vadd.f32 0.0, %v2232
        %v2234 = vpop.f32.mrf.mxu0
        %2235 = vmatprep.mubr.f32.mxu0 0.0
        %2236 = vmatmul.mubr.f32.gmra.mxu0 %v1864
        %v2237 = vpop.f32.mrf.mxu0
        %v2238 = vadd.f32 0.0, %v2237
        %v2239 = vpop.f32.mrf.mxu0
        %2240 = vmatprep.mubr.f32.mxu0 0.0
        %2241 = vmatmul.mubr.f32.gmra.mxu0 %v1866
        %v2242 = vpop.f32.mrf.mxu0
        %v2243 = vadd.f32 0.0, %v2242
        %v2244 = vpop.f32.mrf.mxu0
        %2245 = vmatprep.mubr.f32.mxu0 0.0
        %2246 = vmatmul.mubr.f32.gmra.mxu0 %v1868
        %v2247 = vpop.f32.mrf.mxu0
        %v2248 = vadd.f32 0.0, %v2247
        %v2249 = vpop.f32.mrf.mxu0
        %2250 = vmatprep.mubr.f32.mxu0 0.0
        %2251 = vmatmul.mubr.f32.gmra.mxu0 %v1870
        %v2252 = vpop.f32.mrf.mxu0
        %v2253 = vadd.f32 0.0, %v2252
        %v2254 = vpop.f32.mrf.mxu0
        %2255 = vmatprep.mubr.f32.mxu0 0.0
        %2256 = vmatmul.mubr.f32.gmra.mxu0 %v1872
        %v2257 = vpop.f32.mrf.mxu0
        %v2258 = vadd.f32 0.0, %v2257
        %v2259 = vpop.f32.mrf.mxu0
        %2260 = vmatprep.mubr.f32.mxu0 0.0
        %2261 = vmatmul.mubr.f32.gmra.mxu0 %v1874
        %v2262 = vpop.f32.mrf.mxu0
        %v2263 = vadd.f32 0.0, %v2262
        %v2264 = vpop.f32.mrf.mxu0
        %2265 = vmatprep.mubr.f32.mxu0 0.0
        %2266 = vmatmul.mubr.f32.gmra.mxu0 %v1876
        %v2267 = vpop.f32.mrf.mxu0
        %v2268 = vadd.f32 0.0, %v2267
        %v2269 = vpop.f32.mrf.mxu0
        %2270 = vmatprep.mubr.f32.mxu0 0.0
        %2271 = vmatmul.mubr.f32.gmra.mxu0 %v1878
        %v2272 = vpop.f32.mrf.mxu0
        %v2273 = vadd.f32 0.0, %v2272
        %v2274 = vpop.f32.mrf.mxu0
        %2275 = vmatprep.mubr.f32.mxu0 0.0
        %2276 = vmatmul.mubr.f32.gmra.mxu0 %v1880
        %v2277 = vpop.f32.mrf.mxu0
        %v2278 = vadd.f32 0.0, %v2277
        %v2279 = vpop.f32.mrf.mxu0
        %2280 = vmatprep.mubr.f32.mxu0 0.0
        %2281 = vmatmul.mubr.f32.gmra.mxu0 %v1882
        %v2282 = vpop.f32.mrf.mxu0
        %v2283 = vadd.f32 0.0, %v2282
        %v2284 = vpop.f32.mrf.mxu0
        %2285 = vmatprep.mubr.f32.mxu0 0.0
        %2286 = vmatmul.mubr.f32.gmra.mxu0 %v1884
        %v2287 = vpop.f32.mrf.mxu0
        %v2288 = vadd.f32 0.0, %v2287
        %v2289 = vpop.f32.mrf.mxu0
        %2290 = vmatprep.mubr.f32.mxu0 0.0
        %2291 = vmatmul.mubr.f32.gmra.mxu0 %v1886
        %v2292 = vpop.f32.mrf.mxu0
        %v2293 = vadd.f32 0.0, %v2292
        %v2294 = vpop.f32.mrf.mxu0
        %2295 = vmatprep.mubr.f32.mxu0 0.0
        %2296 = vmatmul.mubr.f32.gmra.mxu0 %v1888
        %v2297 = vpop.f32.mrf.mxu0
        %v2298 = vadd.f32 0.0, %v2297
        %v2299 = vpop.f32.mrf.mxu0
        %2300 = vmatprep.mubr.f32.mxu0 0.0
        %2301 = vmatmul.mubr.f32.gmra.mxu0 %v1890
        %v2302 = vpop.f32.mrf.mxu0
        %v2303 = vadd.f32 0.0, %v2302
        %v2304 = vpop.f32.mrf.mxu0
        %2305 = vmatprep.mubr.f32.mxu0 0.0
        %2306 = vmatmul.mubr.f32.gmra.mxu0 %v1892
        %v2307 = vpop.f32.mrf.mxu0
        %v2308 = vadd.f32 0.0, %v2307
        %v2309 = vpop.f32.mrf.mxu0
        %2310 = vmatprep.mubr.f32.mxu0 0.0
        %2311 = vmatmul.mubr.f32.gmra.mxu0 %v1894
        %v2312 = vpop.f32.mrf.mxu0
        %v2313 = vadd.f32 0.0, %v2312
        %v2314 = vpop.f32.mrf.mxu0
        %2315 = vmatprep.mubr.f32.mxu0 0.0
        %2316 = vmatmul.mubr.f32.gmra.mxu0 %v1896
        %v2317 = vpop.f32.mrf.mxu0
        %v2318 = vadd.f32 0.0, %v2317
        %v2319 = vpop.f32.mrf.mxu0
        %2320 = vdwg.mxu0
        %v2321 = vsel %vm890, %v1178, 0
        %v2323 = vsel %vm890, %v1183, 0
        %v2325 = vsel %vm890, %v1188, 0
        %v2327 = vsel %vm890, %v1193, 0
        %v2329 = vsel %vm890, %v1198, 0
        %v2331 = vsel %vm890, %v1203, 0
        %v2333 = vsel %vm890, %v1208, 0
        %v2335 = vsel %vm890, %v1213, 0
        %v2337 = vsel %vm890, %v1218, 0
        %v2339 = vsel %vm890, %v1223, 0
        %v2341 = vsel %vm890, %v1228, 0
        %v2343 = vsel %vm890, %v1233, 0
        %v2345 = vsel %vm890, %v1238, 0
        %v2347 = vsel %vm890, %v1243, 0
        %v2349 = vsel %vm890, %v1248, 0
        %v2351 = vsel %vm890, %v1253, 0
        %v2353 = vsel %vm890, %v1258, 0
        %v2355 = vsel %vm890, %v1263, 0
        %v2357 = vsel %vm890, %v1268, 0
        %v2359 = vsel %vm890, %v1273, 0
        %v2361 = vsel %vm890, %v1278, 0
        %v2363 = vsel %vm890, %v1283, 0
        %v2365 = vsel %vm890, %v1288, 0
        %v2367 = vsel %vm890, %v1293, 0
        %v2369 = vsel %vm890, %v1298, 0
        %v2371 = vsel %vm890, %v1303, 0
        %v2373 = vsel %vm890, %v1308, 0
        %v2375 = vsel %vm890, %v1313, 0
        %v2377 = vsel %vm890, %v1318, 0
        %v2379 = vsel %vm890, %v1323, 0
        %v2381 = vsel %vm890, %v1328, 0
        %v2383 = vsel %vm890, %v1333, 0
        %v2385 = vsel %vm890, %v1338, 0
        %v2387 = vsel %vm890, %v1343, 0
        %v2389 = vsel %vm890, %v1348, 0
        %v2391 = vsel %vm890, %v1353, 0
        %v2393 = vsel %vm890, %v1358, 0
        %v2395 = vsel %vm890, %v1363, 0
        %v2397 = vsel %vm890, %v1368, 0
        %v2399 = vsel %vm890, %v1373, 0
        %v2401 = vsel %vm890, %v1378, 0
        %v2403 = vsel %vm890, %v1383, 0
        %v2405 = vsel %vm890, %v1388, 0
        %v2407 = vsel %vm890, %v1393, 0
        %v2409 = vsel %vm890, %v1398, 0
        %v2411 = vsel %vm890, %v1403, 0
        %v2413 = vsel %vm890, %v1408, 0
        %v2415 = vsel %vm890, %v1413, 0
        %v2417 = vsel %vm890, %v1418, 0
        %v2419 = vsel %vm890, %v1423, 0
        %v2421 = vsel %vm890, %v1428, 0
        %v2423 = vsel %vm890, %v1433, 0
        %v2425 = vsel %vm890, %v1438, 0
        %v2427 = vsel %vm890, %v1443, 0
        %v2429 = vsel %vm890, %v1448, 0
        %v2431 = vsel %vm890, %v1453, 0
        %v2433 = vsel %vm890, %v1458, 0
        %v2435 = vsel %vm890, %v1463, 0
        %v2437 = vsel %vm890, %v1468, 0
        %v2439 = vsel %vm890, %v1473, 0
        %v2441 = vsel %vm890, %v1478, 0
        %v2443 = vsel %vm890, %v1483, 0
        %v2445 = vsel %vm890, %v1488, 0
        %v2447 = vsel %vm890, %v1493, 0
        %v2449 = vsel %vm890, %v1498, 0
        %v2451 = vsel %vm890, %v1503, 0
        %v2453 = vsel %vm890, %v1508, 0
        %v2455 = vsel %vm890, %v1513, 0
        %v2457 = vsel %vm890, %v1518, 0
        %v2459 = vsel %vm890, %v1523, 0
        %v2461 = vsel %vm890, %v1528, 0
        %v2464 = vsel %vm1107, %v1538, 0
        %2466 = vmatprep.subr.mxu0 0.0
        %2467 = vmatpush1.msra.mxu0 0.0
        %2468 = vmatprep.subr.mxu0 0.0
        %2469 = vmatpush1.msra.mxu0 0.0
        %2470 = vmatprep.subr.mxu0 0.0
        %2471 = vmatpush1.msra.mxu0 0.0
        %2472 = vmatprep.subr.mxu0 0.0
        %2473 = vmatpush1.msra.mxu0 0.0
        %2474 = vmatprep.subr.mxu0 0.0
        %2475 = vmatpush1.msra.mxu0 0.0
        %2476 = vmatprep.subr.mxu0 0.0
        %2477 = vmatpush1.msra.mxu0 0.0
        %2478 = vmatprep.subr.mxu0 0.0
        %2479 = vmatpush1.msra.mxu0 0.0
        %2480 = vmatprep.subr.mxu0 0.0
        %2481 = vmatpush1.msra.mxu0 0.0
        %2482 = vmatprep.subr.mxu0 0.0
        %2483 = vmatpush1.msra.mxu0 0.0
        %2484 = vmatprep.subr.mxu0 0.0
        %2485 = vmatpush1.msra.mxu0 0.0
        %2486 = vmatprep.subr.mxu0 0.0
        %2487 = vmatpush1.msra.mxu0 0.0
        %2488 = vmatprep.subr.mxu0 0.0
        %2489 = vmatpush1.msra.mxu0 0.0
        %2490 = vmatprep.subr.mxu0 0.0
        %2491 = vmatpush1.msra.mxu0 0.0
        %2492 = vmatprep.subr.mxu0 0.0
        %2493 = vmatpush1.msra.mxu0 %v2464
        %2494 = vmatprep.subr.mxu0 0.0
        %2495 = vmatpush1.msra.mxu0 %v1537
        %2496 = vmatprep.subr.mxu0 0.0
        %2497 = vmatpush1.msra.mxu0 %v1536
        %2498 = vmatprep.subr.mxu0 0.0
        %2499 = vmatpush2.msra.mxu0 0.0
        %2500 = vmatprep.subr.mxu0 0.0
        %2501 = vmatpush2.msra.mxu0 0.0
        %2502 = vmatprep.subr.mxu0 0.0
        %2503 = vmatpush2.msra.mxu0 0.0
        %2504 = vmatprep.subr.mxu0 0.0
        %2505 = vmatpush2.msra.mxu0 0.0
        %2506 = vmatprep.subr.mxu0 0.0
        %2507 = vmatpush2.msra.mxu0 0.0
        %2508 = vmatprep.subr.mxu0 0.0
        %2509 = vmatpush2.msra.mxu0 0.0
        %2510 = vmatprep.subr.mxu0 0.0
        %2511 = vmatpush2.msra.mxu0 0.0
        %2512 = vmatprep.subr.mxu0 0.0
        %2513 = vmatpush2.msra.mxu0 0.0
        %2514 = vmatprep.subr.mxu0 0.0
        %2515 = vmatpush2.msra.mxu0 0.0
        %2516 = vmatprep.subr.mxu0 0.0
        %2517 = vmatpush2.msra.mxu0 0.0
        %2518 = vmatprep.subr.mxu0 0.0
        %2519 = vmatpush2.msra.mxu0 0.0
        %2520 = vmatprep.subr.mxu0 0.0
        %2521 = vmatpush2.msra.mxu0 0.0
        %2522 = vmatprep.subr.mxu0 0.0
        %2523 = vmatpush2.msra.mxu0 0.0
        %2524 = vmatprep.subr.mxu0 0.0
        %2525 = vmatpush2.msra.mxu0 0.0
        %2526 = vmatprep.subr.mxu0 0.0
        %2527 = vmatpush2.msra.mxu0 0.0
        %2528 = vmatprep.subr.mxu0 0.0
        %2529 = vmatpush2.msra.mxu0 0.0
        %2530 = vmatprep.mubr.f32.mxu0 0.0
        %2531 = vmatmul.mubr.f32.gmra.mxu0 %v2321
        %v2532 = vpop.f32.mrf.mxu0
        %v2533 = vadd.f32 %v1968, %v2532
        %v2534 = vpop.f32.mrf.mxu0
        %2535 = vmatprep.mubr.f32.mxu0 0.0
        %2536 = vmatmul.mubr.f32.gmra.mxu0 %v2323
        %v2537 = vpop.f32.mrf.mxu0
        %v2538 = vadd.f32 %v1973, %v2537
        %v2539 = vpop.f32.mrf.mxu0
        %2540 = vmatprep.mubr.f32.mxu0 0.0
        %2541 = vmatmul.mubr.f32.gmra.mxu0 %v2325
        %v2542 = vpop.f32.mrf.mxu0
        %v2543 = vadd.f32 %v1978, %v2542
        %v2544 = vpop.f32.mrf.mxu0
        %2545 = vmatprep.mubr.f32.mxu0 0.0
        %2546 = vmatmul.mubr.f32.gmra.mxu0 %v2327
        %v2547 = vpop.f32.mrf.mxu0
        %v2548 = vadd.f32 %v1983, %v2547
        %v2549 = vpop.f32.mrf.mxu0
        %2550 = vmatprep.mubr.f32.mxu0 0.0
        %2551 = vmatmul.mubr.f32.gmra.mxu0 %v2329
        %v2552 = vpop.f32.mrf.mxu0
        %v2553 = vadd.f32 %v1988, %v2552
        %v2554 = vpop.f32.mrf.mxu0
        %2555 = vmatprep.mubr.f32.mxu0 0.0
        %2556 = vmatmul.mubr.f32.gmra.mxu0 %v2331
        %v2557 = vpop.f32.mrf.mxu0
        %v2558 = vadd.f32 %v1993, %v2557
        %v2559 = vpop.f32.mrf.mxu0
        %2560 = vmatprep.mubr.f32.mxu0 0.0
        %2561 = vmatmul.mubr.f32.gmra.mxu0 %v2333
        %v2562 = vpop.f32.mrf.mxu0
        %v2563 = vadd.f32 %v1998, %v2562
        %v2564 = vpop.f32.mrf.mxu0
        %2565 = vmatprep.mubr.f32.mxu0 0.0
        %2566 = vmatmul.mubr.f32.gmra.mxu0 %v2335
        %v2567 = vpop.f32.mrf.mxu0
        %v2568 = vadd.f32 %v2003, %v2567
        %v2569 = vpop.f32.mrf.mxu0
        %2570 = vmatprep.mubr.f32.mxu0 0.0
        %2571 = vmatmul.mubr.f32.gmra.mxu0 %v2337
        %v2572 = vpop.f32.mrf.mxu0
        %v2573 = vadd.f32 %v2008, %v2572
        %v2574 = vpop.f32.mrf.mxu0
        %2575 = vmatprep.mubr.f32.mxu0 0.0
        %2576 = vmatmul.mubr.f32.gmra.mxu0 %v2339
        %v2577 = vpop.f32.mrf.mxu0
        %v2578 = vadd.f32 %v2013, %v2577
        %v2579 = vpop.f32.mrf.mxu0
        %2580 = vmatprep.mubr.f32.mxu0 0.0
        %2581 = vmatmul.mubr.f32.gmra.mxu0 %v2341
        %v2582 = vpop.f32.mrf.mxu0
        %v2583 = vadd.f32 %v2018, %v2582
        %v2584 = vpop.f32.mrf.mxu0
        %2585 = vmatprep.mubr.f32.mxu0 0.0
        %2586 = vmatmul.mubr.f32.gmra.mxu0 %v2343
        %v2587 = vpop.f32.mrf.mxu0
        %v2588 = vadd.f32 %v2023, %v2587
        %v2589 = vpop.f32.mrf.mxu0
        %2590 = vmatprep.mubr.f32.mxu0 0.0
        %2591 = vmatmul.mubr.f32.gmra.mxu0 %v2345
        %v2592 = vpop.f32.mrf.mxu0
        %v2593 = vadd.f32 %v2028, %v2592
        %v2594 = vpop.f32.mrf.mxu0
        %2595 = vmatprep.mubr.f32.mxu0 0.0
        %2596 = vmatmul.mubr.f32.gmra.mxu0 %v2347
        %v2597 = vpop.f32.mrf.mxu0
        %v2598 = vadd.f32 %v2033, %v2597
        %v2599 = vpop.f32.mrf.mxu0
        %2600 = vmatprep.mubr.f32.mxu0 0.0
        %2601 = vmatmul.mubr.f32.gmra.mxu0 %v2349
        %v2602 = vpop.f32.mrf.mxu0
        %v2603 = vadd.f32 %v2038, %v2602
        %v2604 = vpop.f32.mrf.mxu0
        %2605 = vmatprep.mubr.f32.mxu0 0.0
        %2606 = vmatmul.mubr.f32.gmra.mxu0 %v2351
        %v2607 = vpop.f32.mrf.mxu0
        %v2608 = vadd.f32 %v2043, %v2607
        %v2609 = vpop.f32.mrf.mxu0
        %2610 = vmatprep.mubr.f32.mxu0 0.0
        %2611 = vmatmul.mubr.f32.gmra.mxu0 %v2353
        %v2612 = vpop.f32.mrf.mxu0
        %v2613 = vadd.f32 %v2048, %v2612
        %v2614 = vpop.f32.mrf.mxu0
        %2615 = vmatprep.mubr.f32.mxu0 0.0
        %2616 = vmatmul.mubr.f32.gmra.mxu0 %v2355
        %v2617 = vpop.f32.mrf.mxu0
        %v2618 = vadd.f32 %v2053, %v2617
        %v2619 = vpop.f32.mrf.mxu0
        %2620 = vmatprep.mubr.f32.mxu0 0.0
        %2621 = vmatmul.mubr.f32.gmra.mxu0 %v2357
        %v2622 = vpop.f32.mrf.mxu0
        %v2623 = vadd.f32 %v2058, %v2622
        %v2624 = vpop.f32.mrf.mxu0
        %2625 = vmatprep.mubr.f32.mxu0 0.0
        %2626 = vmatmul.mubr.f32.gmra.mxu0 %v2359
        %v2627 = vpop.f32.mrf.mxu0
        %v2628 = vadd.f32 %v2063, %v2627
        %v2629 = vpop.f32.mrf.mxu0
        %2630 = vmatprep.mubr.f32.mxu0 0.0
        %2631 = vmatmul.mubr.f32.gmra.mxu0 %v2361
        %v2632 = vpop.f32.mrf.mxu0
        %v2633 = vadd.f32 %v2068, %v2632
        %v2634 = vpop.f32.mrf.mxu0
        %2635 = vmatprep.mubr.f32.mxu0 0.0
        %2636 = vmatmul.mubr.f32.gmra.mxu0 %v2363
        %v2637 = vpop.f32.mrf.mxu0
        %v2638 = vadd.f32 %v2073, %v2637
        %v2639 = vpop.f32.mrf.mxu0
        %2640 = vmatprep.mubr.f32.mxu0 0.0
        %2641 = vmatmul.mubr.f32.gmra.mxu0 %v2365
        %v2642 = vpop.f32.mrf.mxu0
        %v2643 = vadd.f32 %v2078, %v2642
        %v2644 = vpop.f32.mrf.mxu0
        %2645 = vmatprep.mubr.f32.mxu0 0.0
        %2646 = vmatmul.mubr.f32.gmra.mxu0 %v2367
        %v2647 = vpop.f32.mrf.mxu0
        %v2648 = vadd.f32 %v2083, %v2647
        %v2649 = vpop.f32.mrf.mxu0
        %2650 = vmatprep.mubr.f32.mxu0 0.0
        %2651 = vmatmul.mubr.f32.gmra.mxu0 %v2369
        %v2652 = vpop.f32.mrf.mxu0
        %v2653 = vadd.f32 %v2088, %v2652
        %v2654 = vpop.f32.mrf.mxu0
        %2655 = vmatprep.mubr.f32.mxu0 0.0
        %2656 = vmatmul.mubr.f32.gmra.mxu0 %v2371
        %v2657 = vpop.f32.mrf.mxu0
        %v2658 = vadd.f32 %v2093, %v2657
        %v2659 = vpop.f32.mrf.mxu0
        %2660 = vmatprep.mubr.f32.mxu0 0.0
        %2661 = vmatmul.mubr.f32.gmra.mxu0 %v2373
        %v2662 = vpop.f32.mrf.mxu0
        %v2663 = vadd.f32 %v2098, %v2662
        %v2664 = vpop.f32.mrf.mxu0
        %2665 = vmatprep.mubr.f32.mxu0 0.0
        %2666 = vmatmul.mubr.f32.gmra.mxu0 %v2375
        %v2667 = vpop.f32.mrf.mxu0
        %v2668 = vadd.f32 %v2103, %v2667
        %v2669 = vpop.f32.mrf.mxu0
        %2670 = vmatprep.mubr.f32.mxu0 0.0
        %2671 = vmatmul.mubr.f32.gmra.mxu0 %v2377
        %v2672 = vpop.f32.mrf.mxu0
        %v2673 = vadd.f32 %v2108, %v2672
        %v2674 = vpop.f32.mrf.mxu0
        %2675 = vmatprep.mubr.f32.mxu0 0.0
        %2676 = vmatmul.mubr.f32.gmra.mxu0 %v2379
        %v2677 = vpop.f32.mrf.mxu0
        %v2678 = vadd.f32 %v2113, %v2677
        %v2679 = vpop.f32.mrf.mxu0
        %2680 = vmatprep.mubr.f32.mxu0 0.0
        %2681 = vmatmul.mubr.f32.gmra.mxu0 %v2381
        %v2682 = vpop.f32.mrf.mxu0
        %v2683 = vadd.f32 %v2118, %v2682
        %v2684 = vpop.f32.mrf.mxu0
        %2685 = vmatprep.mubr.f32.mxu0 0.0
        %2686 = vmatmul.mubr.f32.gmra.mxu0 %v2383
        %v2687 = vpop.f32.mrf.mxu0
        %v2688 = vadd.f32 %v2123, %v2687
        %v2689 = vpop.f32.mrf.mxu0
        %2690 = vmatprep.mubr.f32.mxu0 0.0
        %2691 = vmatmul.mubr.f32.gmra.mxu0 %v2385
        %v2692 = vpop.f32.mrf.mxu0
        %v2693 = vadd.f32 %v2128, %v2692
        %v2694 = vpop.f32.mrf.mxu0
        %2695 = vmatprep.mubr.f32.mxu0 0.0
        %2696 = vmatmul.mubr.f32.gmra.mxu0 %v2387
        %v2697 = vpop.f32.mrf.mxu0
        %v2698 = vadd.f32 %v2133, %v2697
        %v2699 = vpop.f32.mrf.mxu0
        %2700 = vmatprep.mubr.f32.mxu0 0.0
        %2701 = vmatmul.mubr.f32.gmra.mxu0 %v2389
        %v2702 = vpop.f32.mrf.mxu0
        %v2703 = vadd.f32 %v2138, %v2702
        %v2704 = vpop.f32.mrf.mxu0
        %2705 = vmatprep.mubr.f32.mxu0 0.0
        %2706 = vmatmul.mubr.f32.gmra.mxu0 %v2391
        %v2707 = vpop.f32.mrf.mxu0
        %v2708 = vadd.f32 %v2143, %v2707
        %v2709 = vpop.f32.mrf.mxu0
        %2710 = vmatprep.mubr.f32.mxu0 0.0
        %2711 = vmatmul.mubr.f32.gmra.mxu0 %v2393
        %v2712 = vpop.f32.mrf.mxu0
        %v2713 = vadd.f32 %v2148, %v2712
        %v2714 = vpop.f32.mrf.mxu0
        %2715 = vmatprep.mubr.f32.mxu0 0.0
        %2716 = vmatmul.mubr.f32.gmra.mxu0 %v2395
        %v2717 = vpop.f32.mrf.mxu0
        %v2718 = vadd.f32 %v2153, %v2717
        %v2719 = vpop.f32.mrf.mxu0
        %2720 = vmatprep.mubr.f32.mxu0 0.0
        %2721 = vmatmul.mubr.f32.gmra.mxu0 %v2397
        %v2722 = vpop.f32.mrf.mxu0
        %v2723 = vadd.f32 %v2158, %v2722
        %v2724 = vpop.f32.mrf.mxu0
        %2725 = vmatprep.mubr.f32.mxu0 0.0
        %2726 = vmatmul.mubr.f32.gmra.mxu0 %v2399
        %v2727 = vpop.f32.mrf.mxu0
        %v2728 = vadd.f32 %v2163, %v2727
        %v2729 = vpop.f32.mrf.mxu0
        %2730 = vmatprep.mubr.f32.mxu0 0.0
        %2731 = vmatmul.mubr.f32.gmra.mxu0 %v2401
        %v2732 = vpop.f32.mrf.mxu0
        %v2733 = vadd.f32 %v2168, %v2732
        %v2734 = vpop.f32.mrf.mxu0
        %2735 = vmatprep.mubr.f32.mxu0 0.0
        %2736 = vmatmul.mubr.f32.gmra.mxu0 %v2403
        %v2737 = vpop.f32.mrf.mxu0
        %v2738 = vadd.f32 %v2173, %v2737
        %v2739 = vpop.f32.mrf.mxu0
        %2740 = vmatprep.mubr.f32.mxu0 0.0
        %2741 = vmatmul.mubr.f32.gmra.mxu0 %v2405
        %v2742 = vpop.f32.mrf.mxu0
        %v2743 = vadd.f32 %v2178, %v2742
        %v2744 = vpop.f32.mrf.mxu0
        %2745 = vmatprep.mubr.f32.mxu0 0.0
        %2746 = vmatmul.mubr.f32.gmra.mxu0 %v2407
        %v2747 = vpop.f32.mrf.mxu0
        %v2748 = vadd.f32 %v2183, %v2747
        %v2749 = vpop.f32.mrf.mxu0
        %2750 = vmatprep.mubr.f32.mxu0 0.0
        %2751 = vmatmul.mubr.f32.gmra.mxu0 %v2409
        %v2752 = vpop.f32.mrf.mxu0
        %v2753 = vadd.f32 %v2188, %v2752
        %v2754 = vpop.f32.mrf.mxu0
        %2755 = vmatprep.mubr.f32.mxu0 0.0
        %2756 = vmatmul.mubr.f32.gmra.mxu0 %v2411
        %v2757 = vpop.f32.mrf.mxu0
        %v2758 = vadd.f32 %v2193, %v2757
        %v2759 = vpop.f32.mrf.mxu0
        %2760 = vmatprep.mubr.f32.mxu0 0.0
        %2761 = vmatmul.mubr.f32.gmra.mxu0 %v2413
        %v2762 = vpop.f32.mrf.mxu0
        %v2763 = vadd.f32 %v2198, %v2762
        %v2764 = vpop.f32.mrf.mxu0
        %2765 = vmatprep.mubr.f32.mxu0 0.0
        %2766 = vmatmul.mubr.f32.gmra.mxu0 %v2415
        %v2767 = vpop.f32.mrf.mxu0
        %v2768 = vadd.f32 %v2203, %v2767
        %v2769 = vpop.f32.mrf.mxu0
        %2770 = vmatprep.mubr.f32.mxu0 0.0
        %2771 = vmatmul.mubr.f32.gmra.mxu0 %v2417
        %v2772 = vpop.f32.mrf.mxu0
        %v2773 = vadd.f32 %v2208, %v2772
        %v2774 = vpop.f32.mrf.mxu0
        %2775 = vmatprep.mubr.f32.mxu0 0.0
        %2776 = vmatmul.mubr.f32.gmra.mxu0 %v2419
        %v2777 = vpop.f32.mrf.mxu0
        %v2778 = vadd.f32 %v2213, %v2777
        %v2779 = vpop.f32.mrf.mxu0
        %2780 = vmatprep.mubr.f32.mxu0 0.0
        %2781 = vmatmul.mubr.f32.gmra.mxu0 %v2421
        %v2782 = vpop.f32.mrf.mxu0
        %v2783 = vadd.f32 %v2218, %v2782
        %v2784 = vpop.f32.mrf.mxu0
        %2785 = vmatprep.mubr.f32.mxu0 0.0
        %2786 = vmatmul.mubr.f32.gmra.mxu0 %v2423
        %v2787 = vpop.f32.mrf.mxu0
        %v2788 = vadd.f32 %v2223, %v2787
        %v2789 = vpop.f32.mrf.mxu0
        %2790 = vmatprep.mubr.f32.mxu0 0.0
        %2791 = vmatmul.mubr.f32.gmra.mxu0 %v2425
        %v2792 = vpop.f32.mrf.mxu0
        %v2793 = vadd.f32 %v2228, %v2792
        %v2794 = vpop.f32.mrf.mxu0
        %2795 = vmatprep.mubr.f32.mxu0 0.0
        %2796 = vmatmul.mubr.f32.gmra.mxu0 %v2427
        %v2797 = vpop.f32.mrf.mxu0
        %v2798 = vadd.f32 %v2233, %v2797
        %v2799 = vpop.f32.mrf.mxu0
        %2800 = vmatprep.mubr.f32.mxu0 0.0
        %2801 = vmatmul.mubr.f32.gmra.mxu0 %v2429
        %v2802 = vpop.f32.mrf.mxu0
        %v2803 = vadd.f32 %v2238, %v2802
        %v2804 = vpop.f32.mrf.mxu0
        %2805 = vmatprep.mubr.f32.mxu0 0.0
        %2806 = vmatmul.mubr.f32.gmra.mxu0 %v2431
        %v2807 = vpop.f32.mrf.mxu0
        %v2808 = vadd.f32 %v2243, %v2807
        %v2809 = vpop.f32.mrf.mxu0
        %2810 = vmatprep.mubr.f32.mxu0 0.0
        %2811 = vmatmul.mubr.f32.gmra.mxu0 %v2433
        %v2812 = vpop.f32.mrf.mxu0
        %v2813 = vadd.f32 %v2248, %v2812
        %v2814 = vpop.f32.mrf.mxu0
        %2815 = vmatprep.mubr.f32.mxu0 0.0
        %2816 = vmatmul.mubr.f32.gmra.mxu0 %v2435
        %v2817 = vpop.f32.mrf.mxu0
        %v2818 = vadd.f32 %v2253, %v2817
        %v2819 = vpop.f32.mrf.mxu0
        %2820 = vmatprep.mubr.f32.mxu0 0.0
        %2821 = vmatmul.mubr.f32.gmra.mxu0 %v2437
        %v2822 = vpop.f32.mrf.mxu0
        %v2823 = vadd.f32 %v2258, %v2822
        %v2824 = vpop.f32.mrf.mxu0
        %2825 = vmatprep.mubr.f32.mxu0 0.0
        %2826 = vmatmul.mubr.f32.gmra.mxu0 %v2439
        %v2827 = vpop.f32.mrf.mxu0
        %v2828 = vadd.f32 %v2263, %v2827
        %v2829 = vpop.f32.mrf.mxu0
        %2830 = vmatprep.mubr.f32.mxu0 0.0
        %2831 = vmatmul.mubr.f32.gmra.mxu0 %v2441
        %v2832 = vpop.f32.mrf.mxu0
        %v2833 = vadd.f32 %v2268, %v2832
        %v2834 = vpop.f32.mrf.mxu0
        %2835 = vmatprep.mubr.f32.mxu0 0.0
        %2836 = vmatmul.mubr.f32.gmra.mxu0 %v2443
        %v2837 = vpop.f32.mrf.mxu0
        %v2838 = vadd.f32 %v2273, %v2837
        %v2839 = vpop.f32.mrf.mxu0
        %2840 = vmatprep.mubr.f32.mxu0 0.0
        %2841 = vmatmul.mubr.f32.gmra.mxu0 %v2445
        %v2842 = vpop.f32.mrf.mxu0
        %v2843 = vadd.f32 %v2278, %v2842
        %v2844 = vpop.f32.mrf.mxu0
        %2845 = vmatprep.mubr.f32.mxu0 0.0
        %2846 = vmatmul.mubr.f32.gmra.mxu0 %v2447
        %v2847 = vpop.f32.mrf.mxu0
        %v2848 = vadd.f32 %v2283, %v2847
        %v2849 = vpop.f32.mrf.mxu0
        %2850 = vmatprep.mubr.f32.mxu0 0.0
        %2851 = vmatmul.mubr.f32.gmra.mxu0 %v2449
        %v2852 = vpop.f32.mrf.mxu0
        %v2853 = vadd.f32 %v2288, %v2852
        %v2854 = vpop.f32.mrf.mxu0
        %2855 = vmatprep.mubr.f32.mxu0 0.0
        %2856 = vmatmul.mubr.f32.gmra.mxu0 %v2451
        %v2857 = vpop.f32.mrf.mxu0
        %v2858 = vadd.f32 %v2293, %v2857
        %v2859 = vpop.f32.mrf.mxu0
        %2860 = vmatprep.mubr.f32.mxu0 0.0
        %2861 = vmatmul.mubr.f32.gmra.mxu0 %v2453
        %v2862 = vpop.f32.mrf.mxu0
        %v2863 = vadd.f32 %v2298, %v2862
        %v2864 = vpop.f32.mrf.mxu0
        %2865 = vmatprep.mubr.f32.mxu0 0.0
        %2866 = vmatmul.mubr.f32.gmra.mxu0 %v2455
        %v2867 = vpop.f32.mrf.mxu0
        %v2868 = vadd.f32 %v2303, %v2867
        %v2869 = vpop.f32.mrf.mxu0
        %2870 = vmatprep.mubr.f32.mxu0 0.0
        %2871 = vmatmul.mubr.f32.gmra.mxu0 %v2457
        %v2872 = vpop.f32.mrf.mxu0
        %v2873 = vadd.f32 %v2308, %v2872
        %v2874 = vpop.f32.mrf.mxu0
        %2875 = vmatprep.mubr.f32.mxu0 0.0
        %2876 = vmatmul.mubr.f32.gmra.mxu0 %v2459
        %v2877 = vpop.f32.mrf.mxu0
        %v2878 = vadd.f32 %v2313, %v2877
        %v2879 = vpop.f32.mrf.mxu0
        %2880 = vmatprep.mubr.f32.mxu0 0.0
        %2881 = vmatmul.mubr.f32.gmra.mxu0 %v2461
        %v2882 = vpop.f32.mrf.mxu0
        %v2883 = vadd.f32 %v2318, %v2882
        %v2884 = vpop.f32.mrf.mxu0
        %2885 = vdwg.mxu0
        %s2886 = scalar_lea.vmem %s3, 48
        %v2887 = vld [vmem:[%s2886] sm:$0xff]
        %v2888 = vld [vmem:[%s2886 + $0x8] sm:$0xff]
        %v2889 = vld [vmem:[%s2886 + $0x10] sm:$0x3f]
        %v2890 = vrot.slane %v1178, 2
        %v2891 = vrot.slane %v1183, 2
        %v2892 = vsel %vm1107, %v2890, %v2891
        %v2893 = vrot.slane %v1188, 2
        %v2894 = vsel %vm1107, %v2891, %v2893
        %v2895 = vrot.slane %v1193, 2
        %v2896 = vsel %vm1107, %v2893, %v2895
        %v2897 = vrot.slane %v1198, 2
        %v2898 = vsel %vm1107, %v2895, %v2897
        %v2899 = vrot.slane %v1203, 2
        %v2900 = vsel %vm1107, %v2897, %v2899
        %v2901 = vrot.slane %v1208, 2
        %v2902 = vsel %vm1107, %v2899, %v2901
        %v2903 = vrot.slane %v1213, 2
        %v2904 = vsel %vm1107, %v2901, %v2903
        %v2905 = vrot.slane %v1218, 2
        %v2906 = vsel %vm1107, %v2903, %v2905
        %v2907 = vrot.slane %v1223, 2
        %v2908 = vsel %vm1107, %v2905, %v2907
        %v2909 = vrot.slane %v1228, 2
        %v2910 = vsel %vm1107, %v2907, %v2909
        %v2911 = vrot.slane %v1233, 2
        %v2912 = vsel %vm1107, %v2909, %v2911
        %v2913 = vrot.slane %v1238, 2
        %v2914 = vsel %vm1107, %v2911, %v2913
        %v2915 = vrot.slane %v1243, 2
        %v2916 = vsel %vm1107, %v2913, %v2915
        %v2917 = vrot.slane %v1248, 2
        %v2918 = vsel %vm1107, %v2915, %v2917
        %v2919 = vrot.slane %v1253, 2
        %v2920 = vsel %vm1107, %v2917, %v2919
        %v2921 = vrot.slane %v1258, 2
        %v2922 = vsel %vm1107, %v2919, %v2921
        %v2923 = vrot.slane %v1263, 2
        %v2924 = vsel %vm1107, %v2921, %v2923
        %v2925 = vrot.slane %v1268, 2
        %v2926 = vsel %vm1107, %v2923, %v2925
        %v2927 = vrot.slane %v1273, 2
        %v2928 = vsel %vm1107, %v2925, %v2927
        %v2929 = vrot.slane %v1278, 2
        %v2930 = vsel %vm1107, %v2927, %v2929
        %v2931 = vrot.slane %v1283, 2
        %v2932 = vsel %vm1107, %v2929, %v2931
        %v2933 = vrot.slane %v1288, 2
        %v2934 = vsel %vm1107, %v2931, %v2933
        %v2935 = vrot.slane %v1293, 2
        %v2936 = vsel %vm1107, %v2933, %v2935
        %v2937 = vrot.slane %v1298, 2
        %v2938 = vsel %vm1107, %v2935, %v2937
        %v2939 = vrot.slane %v1303, 2
        %v2940 = vsel %vm1107, %v2937, %v2939
        %v2941 = vrot.slane %v1308, 2
        %v2942 = vsel %vm1107, %v2939, %v2941
        %v2943 = vrot.slane %v1313, 2
        %v2944 = vsel %vm1107, %v2941, %v2943
        %v2945 = vrot.slane %v1318, 2
        %v2946 = vsel %vm1107, %v2943, %v2945
        %v2947 = vrot.slane %v1323, 2
        %v2948 = vsel %vm1107, %v2945, %v2947
        %v2949 = vrot.slane %v1328, 2
        %v2950 = vsel %vm1107, %v2947, %v2949
        %v2951 = vrot.slane %v1333, 2
        %v2952 = vsel %vm1107, %v2949, %v2951
        %v2953 = vrot.slane %v1338, 2
        %v2954 = vsel %vm1107, %v2951, %v2953
        %v2955 = vrot.slane %v1343, 2
        %v2956 = vsel %vm1107, %v2953, %v2955
        %v2957 = vrot.slane %v1348, 2
        %v2958 = vsel %vm1107, %v2955, %v2957
        %v2959 = vrot.slane %v1353, 2
        %v2960 = vsel %vm1107, %v2957, %v2959
        %v2961 = vrot.slane %v1358, 2
        %v2962 = vsel %vm1107, %v2959, %v2961
        %v2963 = vrot.slane %v1363, 2
        %v2964 = vsel %vm1107, %v2961, %v2963
        %v2965 = vrot.slane %v1368, 2
        %v2966 = vsel %vm1107, %v2963, %v2965
        %v2967 = vrot.slane %v1373, 2
        %v2968 = vsel %vm1107, %v2965, %v2967
        %v2969 = vrot.slane %v1378, 2
        %v2970 = vsel %vm1107, %v2967, %v2969
        %v2971 = vrot.slane %v1383, 2
        %v2972 = vsel %vm1107, %v2969, %v2971
        %v2973 = vrot.slane %v1388, 2
        %v2974 = vsel %vm1107, %v2971, %v2973
        %v2975 = vrot.slane %v1393, 2
        %v2976 = vsel %vm1107, %v2973, %v2975
        %v2977 = vrot.slane %v1398, 2
        %v2978 = vsel %vm1107, %v2975, %v2977
        %v2979 = vrot.slane %v1403, 2
        %v2980 = vsel %vm1107, %v2977, %v2979
        %v2981 = vrot.slane %v1408, 2
        %v2982 = vsel %vm1107, %v2979, %v2981
        %v2983 = vrot.slane %v1413, 2
        %v2984 = vsel %vm1107, %v2981, %v2983
        %v2985 = vrot.slane %v1418, 2
        %v2986 = vsel %vm1107, %v2983, %v2985
        %v2987 = vrot.slane %v1423, 2
        %v2988 = vsel %vm1107, %v2985, %v2987
        %v2989 = vrot.slane %v1428, 2
        %v2990 = vsel %vm1107, %v2987, %v2989
        %v2991 = vrot.slane %v1433, 2
        %v2992 = vsel %vm1107, %v2989, %v2991
        %v2993 = vrot.slane %v1438, 2
        %v2994 = vsel %vm1107, %v2991, %v2993
        %v2995 = vrot.slane %v1443, 2
        %v2996 = vsel %vm1107, %v2993, %v2995
        %v2997 = vrot.slane %v1448, 2
        %v2998 = vsel %vm1107, %v2995, %v2997
        %v2999 = vrot.slane %v1453, 2
        %v3000 = vsel %vm1107, %v2997, %v2999
        %v3001 = vrot.slane %v1458, 2
        %v3002 = vsel %vm1107, %v2999, %v3001
        %v3003 = vrot.slane %v1463, 2
        %v3004 = vsel %vm1107, %v3001, %v3003
        %v3005 = vrot.slane %v1468, 2
        %v3006 = vsel %vm1107, %v3003, %v3005
        %v3007 = vrot.slane %v1473, 2
        %v3008 = vsel %vm1107, %v3005, %v3007
        %v3009 = vrot.slane %v1478, 2
        %v3010 = vsel %vm1107, %v3007, %v3009
        %v3011 = vrot.slane %v1483, 2
        %v3012 = vsel %vm1107, %v3009, %v3011
        %v3013 = vrot.slane %v1488, 2
        %v3014 = vsel %vm1107, %v3011, %v3013
        %v3015 = vrot.slane %v1493, 2
        %v3016 = vsel %vm1107, %v3013, %v3015
        %v3017 = vrot.slane %v1498, 2
        %v3018 = vsel %vm1107, %v3015, %v3017
        %v3019 = vrot.slane %v1503, 2
        %v3020 = vsel %vm1107, %v3017, %v3019
        %v3021 = vrot.slane %v1508, 2
        %v3022 = vsel %vm1107, %v3019, %v3021
        %v3023 = vrot.slane %v1513, 2
        %v3024 = vsel %vm1107, %v3021, %v3023
        %v3025 = vrot.slane %v1518, 2
        %v3026 = vsel %vm1107, %v3023, %v3025
        %v3027 = vrot.slane %v1523, 2
        %v3028 = vsel %vm1107, %v3025, %v3027
        %v3029 = vrot.slane %v1528, 2
        %v3030 = vsel %vm1107, %v3027, %v3029
        %v3031 = vsel %vm890, %v2892, 0
        %v3033 = vsel %vm890, %v2894, 0
        %v3035 = vsel %vm890, %v2896, 0
        %v3037 = vsel %vm890, %v2898, 0
        %v3039 = vsel %vm890, %v2900, 0
        %v3041 = vsel %vm890, %v2902, 0
        %v3043 = vsel %vm890, %v2904, 0
        %v3045 = vsel %vm890, %v2906, 0
        %v3047 = vsel %vm890, %v2908, 0
        %v3049 = vsel %vm890, %v2910, 0
        %v3051 = vsel %vm890, %v2912, 0
        %v3053 = vsel %vm890, %v2914, 0
        %v3055 = vsel %vm890, %v2916, 0
        %v3057 = vsel %vm890, %v2918, 0
        %v3059 = vsel %vm890, %v2920, 0
        %v3061 = vsel %vm890, %v2922, 0
        %v3063 = vsel %vm890, %v2924, 0
        %v3065 = vsel %vm890, %v2926, 0
        %v3067 = vsel %vm890, %v2928, 0
        %v3069 = vsel %vm890, %v2930, 0
        %v3071 = vsel %vm890, %v2932, 0
        %v3073 = vsel %vm890, %v2934, 0
        %v3075 = vsel %vm890, %v2936, 0
        %v3077 = vsel %vm890, %v2938, 0
        %v3079 = vsel %vm890, %v2940, 0
        %v3081 = vsel %vm890, %v2942, 0
        %v3083 = vsel %vm890, %v2944, 0
        %v3085 = vsel %vm890, %v2946, 0
        %v3087 = vsel %vm890, %v2948, 0
        %v3089 = vsel %vm890, %v2950, 0
        %v3091 = vsel %vm890, %v2952, 0
        %v3093 = vsel %vm890, %v2954, 0
        %v3095 = vsel %vm890, %v2956, 0
        %v3097 = vsel %vm890, %v2958, 0
        %v3099 = vsel %vm890, %v2960, 0
        %v3101 = vsel %vm890, %v2962, 0
        %v3103 = vsel %vm890, %v2964, 0
        %v3105 = vsel %vm890, %v2966, 0
        %v3107 = vsel %vm890, %v2968, 0
        %v3109 = vsel %vm890, %v2970, 0
        %v3111 = vsel %vm890, %v2972, 0
        %v3113 = vsel %vm890, %v2974, 0
        %v3115 = vsel %vm890, %v2976, 0
        %v3117 = vsel %vm890, %v2978, 0
        %v3119 = vsel %vm890, %v2980, 0
        %v3121 = vsel %vm890, %v2982, 0
        %v3123 = vsel %vm890, %v2984, 0
        %v3125 = vsel %vm890, %v2986, 0
        %v3127 = vsel %vm890, %v2988, 0
        %v3129 = vsel %vm890, %v2990, 0
        %v3131 = vsel %vm890, %v2992, 0
        %v3133 = vsel %vm890, %v2994, 0
        %v3135 = vsel %vm890, %v2996, 0
        %v3137 = vsel %vm890, %v2998, 0
        %v3139 = vsel %vm890, %v3000, 0
        %v3141 = vsel %vm890, %v3002, 0
        %v3143 = vsel %vm890, %v3004, 0
        %v3145 = vsel %vm890, %v3006, 0
        %v3147 = vsel %vm890, %v3008, 0
        %v3149 = vsel %vm890, %v3010, 0
        %v3151 = vsel %vm890, %v3012, 0
        %v3153 = vsel %vm890, %v3014, 0
        %v3155 = vsel %vm890, %v3016, 0
        %v3157 = vsel %vm890, %v3018, 0
        %v3159 = vsel %vm890, %v3020, 0
        %v3161 = vsel %vm890, %v3022, 0
        %v3163 = vsel %vm890, %v3024, 0
        %v3165 = vsel %vm890, %v3026, 0
        %v3167 = vsel %vm890, %v3028, 0
        %v3169 = vsel %vm890, %v3030, 0
        %v3171 = vsel %vm890, %v3029, 0
        %v3174 = vsel %vm1107, %v2889, 0
        %3176 = vmatprep.subr.mxu0 0.0
        %3177 = vmatpush1.msra.mxu0 0.0
        %3178 = vmatprep.subr.mxu0 0.0
        %3179 = vmatpush1.msra.mxu0 0.0
        %3180 = vmatprep.subr.mxu0 0.0
        %3181 = vmatpush1.msra.mxu0 0.0
        %3182 = vmatprep.subr.mxu0 0.0
        %3183 = vmatpush1.msra.mxu0 0.0
        %3184 = vmatprep.subr.mxu0 0.0
        %3185 = vmatpush1.msra.mxu0 0.0
        %3186 = vmatprep.subr.mxu0 0.0
        %3187 = vmatpush1.msra.mxu0 0.0
        %3188 = vmatprep.subr.mxu0 0.0
        %3189 = vmatpush1.msra.mxu0 0.0
        %3190 = vmatprep.subr.mxu0 0.0
        %3191 = vmatpush1.msra.mxu0 0.0
        %3192 = vmatprep.subr.mxu0 0.0
        %3193 = vmatpush1.msra.mxu0 0.0
        %3194 = vmatprep.subr.mxu0 0.0
        %3195 = vmatpush1.msra.mxu0 0.0
        %3196 = vmatprep.subr.mxu0 0.0
        %3197 = vmatpush1.msra.mxu0 0.0
        %3198 = vmatprep.subr.mxu0 0.0
        %3199 = vmatpush1.msra.mxu0 0.0
        %3200 = vmatprep.subr.mxu0 0.0
        %3201 = vmatpush1.msra.mxu0 0.0
        %3202 = vmatprep.subr.mxu0 0.0
        %3203 = vmatpush1.msra.mxu0 %v3174
        %3204 = vmatprep.subr.mxu0 0.0
        %3205 = vmatpush1.msra.mxu0 %v2888
        %3206 = vmatprep.subr.mxu0 0.0
        %3207 = vmatpush1.msra.mxu0 %v2887
        %3208 = vmatprep.subr.mxu0 0.0
        %3209 = vmatpush2.msra.mxu0 0.0
        %3210 = vmatprep.subr.mxu0 0.0
        %3211 = vmatpush2.msra.mxu0 0.0
        %3212 = vmatprep.subr.mxu0 0.0
        %3213 = vmatpush2.msra.mxu0 0.0
        %3214 = vmatprep.subr.mxu0 0.0
        %3215 = vmatpush2.msra.mxu0 0.0
        %3216 = vmatprep.subr.mxu0 0.0
        %3217 = vmatpush2.msra.mxu0 0.0
        %3218 = vmatprep.subr.mxu0 0.0
        %3219 = vmatpush2.msra.mxu0 0.0
        %3220 = vmatprep.subr.mxu0 0.0
        %3221 = vmatpush2.msra.mxu0 0.0
        %3222 = vmatprep.subr.mxu0 0.0
        %3223 = vmatpush2.msra.mxu0 0.0
        %3224 = vmatprep.subr.mxu0 0.0
        %3225 = vmatpush2.msra.mxu0 0.0
        %3226 = vmatprep.subr.mxu0 0.0
        %3227 = vmatpush2.msra.mxu0 0.0
        %3228 = vmatprep.subr.mxu0 0.0
        %3229 = vmatpush2.msra.mxu0 0.0
        %3230 = vmatprep.subr.mxu0 0.0
        %3231 = vmatpush2.msra.mxu0 0.0
        %3232 = vmatprep.subr.mxu0 0.0
        %3233 = vmatpush2.msra.mxu0 0.0
        %3234 = vmatprep.subr.mxu0 0.0
        %3235 = vmatpush2.msra.mxu0 0.0
        %3236 = vmatprep.subr.mxu0 0.0
        %3237 = vmatpush2.msra.mxu0 0.0
        %3238 = vmatprep.subr.mxu0 0.0
        %3239 = vmatpush2.msra.mxu0 0.0
        %3240 = vmatprep.mubr.f32.mxu0 0.0
        %3241 = vmatmul.mubr.f32.gmra.mxu0 %v3031
        %v3242 = vpop.f32.mrf.mxu0
        %v3243 = vadd.f32 0.0, %v3242
        %v3244 = vpop.f32.mrf.mxu0
        %3245 = vmatprep.mubr.f32.mxu0 0.0
        %3246 = vmatmul.mubr.f32.gmra.mxu0 %v3033
        %v3247 = vpop.f32.mrf.mxu0
        %v3248 = vadd.f32 0.0, %v3247
        %v3249 = vpop.f32.mrf.mxu0
        %3250 = vmatprep.mubr.f32.mxu0 0.0
        %3251 = vmatmul.mubr.f32.gmra.mxu0 %v3035
        %v3252 = vpop.f32.mrf.mxu0
        %v3253 = vadd.f32 0.0, %v3252
        %v3254 = vpop.f32.mrf.mxu0
        %3255 = vmatprep.mubr.f32.mxu0 0.0
        %3256 = vmatmul.mubr.f32.gmra.mxu0 %v3037
        %v3257 = vpop.f32.mrf.mxu0
        %v3258 = vadd.f32 0.0, %v3257
        %v3259 = vpop.f32.mrf.mxu0
        %3260 = vmatprep.mubr.f32.mxu0 0.0
        %3261 = vmatmul.mubr.f32.gmra.mxu0 %v3039
        %v3262 = vpop.f32.mrf.mxu0
        %v3263 = vadd.f32 0.0, %v3262
        %v3264 = vpop.f32.mrf.mxu0
        %3265 = vmatprep.mubr.f32.mxu0 0.0
        %3266 = vmatmul.mubr.f32.gmra.mxu0 %v3041
        %v3267 = vpop.f32.mrf.mxu0
        %v3268 = vadd.f32 0.0, %v3267
        %v3269 = vpop.f32.mrf.mxu0
        %3270 = vmatprep.mubr.f32.mxu0 0.0
        %3271 = vmatmul.mubr.f32.gmra.mxu0 %v3043
        %v3272 = vpop.f32.mrf.mxu0
        %v3273 = vadd.f32 0.0, %v3272
        %v3274 = vpop.f32.mrf.mxu0
        %3275 = vmatprep.mubr.f32.mxu0 0.0
        %3276 = vmatmul.mubr.f32.gmra.mxu0 %v3045
        %v3277 = vpop.f32.mrf.mxu0
        %v3278 = vadd.f32 0.0, %v3277
        %v3279 = vpop.f32.mrf.mxu0
        %3280 = vmatprep.mubr.f32.mxu0 0.0
        %3281 = vmatmul.mubr.f32.gmra.mxu0 %v3047
        %v3282 = vpop.f32.mrf.mxu0
        %v3283 = vadd.f32 0.0, %v3282
        %v3284 = vpop.f32.mrf.mxu0
        %3285 = vmatprep.mubr.f32.mxu0 0.0
        %3286 = vmatmul.mubr.f32.gmra.mxu0 %v3049
        %v3287 = vpop.f32.mrf.mxu0
        %v3288 = vadd.f32 0.0, %v3287
        %v3289 = vpop.f32.mrf.mxu0
        %3290 = vmatprep.mubr.f32.mxu0 0.0
        %3291 = vmatmul.mubr.f32.gmra.mxu0 %v3051
        %v3292 = vpop.f32.mrf.mxu0
        %v3293 = vadd.f32 0.0, %v3292
        %v3294 = vpop.f32.mrf.mxu0
        %3295 = vmatprep.mubr.f32.mxu0 0.0
        %3296 = vmatmul.mubr.f32.gmra.mxu0 %v3053
        %v3297 = vpop.f32.mrf.mxu0
        %v3298 = vadd.f32 0.0, %v3297
        %v3299 = vpop.f32.mrf.mxu0
        %3300 = vmatprep.mubr.f32.mxu0 0.0
        %3301 = vmatmul.mubr.f32.gmra.mxu0 %v3055
        %v3302 = vpop.f32.mrf.mxu0
        %v3303 = vadd.f32 0.0, %v3302
        %v3304 = vpop.f32.mrf.mxu0
        %3305 = vmatprep.mubr.f32.mxu0 0.0
        %3306 = vmatmul.mubr.f32.gmra.mxu0 %v3057
        %v3307 = vpop.f32.mrf.mxu0
        %v3308 = vadd.f32 0.0, %v3307
        %v3309 = vpop.f32.mrf.mxu0
        %3310 = vmatprep.mubr.f32.mxu0 0.0
        %3311 = vmatmul.mubr.f32.gmra.mxu0 %v3059
        %v3312 = vpop.f32.mrf.mxu0
        %v3313 = vadd.f32 0.0, %v3312
        %v3314 = vpop.f32.mrf.mxu0
        %3315 = vmatprep.mubr.f32.mxu0 0.0
        %3316 = vmatmul.mubr.f32.gmra.mxu0 %v3061
        %v3317 = vpop.f32.mrf.mxu0
        %v3318 = vadd.f32 0.0, %v3317
        %v3319 = vpop.f32.mrf.mxu0
        %3320 = vmatprep.mubr.f32.mxu0 0.0
        %3321 = vmatmul.mubr.f32.gmra.mxu0 %v3063
        %v3322 = vpop.f32.mrf.mxu0
        %v3323 = vadd.f32 0.0, %v3322
        %v3324 = vpop.f32.mrf.mxu0
        %3325 = vmatprep.mubr.f32.mxu0 0.0
        %3326 = vmatmul.mubr.f32.gmra.mxu0 %v3065
        %v3327 = vpop.f32.mrf.mxu0
        %v3328 = vadd.f32 0.0, %v3327
        %v3329 = vpop.f32.mrf.mxu0
        %3330 = vmatprep.mubr.f32.mxu0 0.0
        %3331 = vmatmul.mubr.f32.gmra.mxu0 %v3067
        %v3332 = vpop.f32.mrf.mxu0
        %v3333 = vadd.f32 0.0, %v3332
        %v3334 = vpop.f32.mrf.mxu0
        %3335 = vmatprep.mubr.f32.mxu0 0.0
        %3336 = vmatmul.mubr.f32.gmra.mxu0 %v3069
        %v3337 = vpop.f32.mrf.mxu0
        %v3338 = vadd.f32 0.0, %v3337
        %v3339 = vpop.f32.mrf.mxu0
        %3340 = vmatprep.mubr.f32.mxu0 0.0
        %3341 = vmatmul.mubr.f32.gmra.mxu0 %v3071
        %v3342 = vpop.f32.mrf.mxu0
        %v3343 = vadd.f32 0.0, %v3342
        %v3344 = vpop.f32.mrf.mxu0
        %3345 = vmatprep.mubr.f32.mxu0 0.0
        %3346 = vmatmul.mubr.f32.gmra.mxu0 %v3073
        %v3347 = vpop.f32.mrf.mxu0
        %v3348 = vadd.f32 0.0, %v3347
        %v3349 = vpop.f32.mrf.mxu0
        %3350 = vmatprep.mubr.f32.mxu0 0.0
        %3351 = vmatmul.mubr.f32.gmra.mxu0 %v3075
        %v3352 = vpop.f32.mrf.mxu0
        %v3353 = vadd.f32 0.0, %v3352
        %v3354 = vpop.f32.mrf.mxu0
        %3355 = vmatprep.mubr.f32.mxu0 0.0
        %3356 = vmatmul.mubr.f32.gmra.mxu0 %v3077
        %v3357 = vpop.f32.mrf.mxu0
        %v3358 = vadd.f32 0.0, %v3357
        %v3359 = vpop.f32.mrf.mxu0
        %3360 = vmatprep.mubr.f32.mxu0 0.0
        %3361 = vmatmul.mubr.f32.gmra.mxu0 %v3079
        %v3362 = vpop.f32.mrf.mxu0
        %v3363 = vadd.f32 0.0, %v3362
        %v3364 = vpop.f32.mrf.mxu0
        %3365 = vmatprep.mubr.f32.mxu0 0.0
        %3366 = vmatmul.mubr.f32.gmra.mxu0 %v3081
        %v3367 = vpop.f32.mrf.mxu0
        %v3368 = vadd.f32 0.0, %v3367
        %v3369 = vpop.f32.mrf.mxu0
        %3370 = vmatprep.mubr.f32.mxu0 0.0
        %3371 = vmatmul.mubr.f32.gmra.mxu0 %v3083
        %v3372 = vpop.f32.mrf.mxu0
        %v3373 = vadd.f32 0.0, %v3372
        %v3374 = vpop.f32.mrf.mxu0
        %3375 = vmatprep.mubr.f32.mxu0 0.0
        %3376 = vmatmul.mubr.f32.gmra.mxu0 %v3085
        %v3377 = vpop.f32.mrf.mxu0
        %v3378 = vadd.f32 0.0, %v3377
        %v3379 = vpop.f32.mrf.mxu0
        %3380 = vmatprep.mubr.f32.mxu0 0.0
        %3381 = vmatmul.mubr.f32.gmra.mxu0 %v3087
        %v3382 = vpop.f32.mrf.mxu0
        %v3383 = vadd.f32 0.0, %v3382
        %v3384 = vpop.f32.mrf.mxu0
        %3385 = vmatprep.mubr.f32.mxu0 0.0
        %3386 = vmatmul.mubr.f32.gmra.mxu0 %v3089
        %v3387 = vpop.f32.mrf.mxu0
        %v3388 = vadd.f32 0.0, %v3387
        %v3389 = vpop.f32.mrf.mxu0
        %3390 = vmatprep.mubr.f32.mxu0 0.0
        %3391 = vmatmul.mubr.f32.gmra.mxu0 %v3091
        %v3392 = vpop.f32.mrf.mxu0
        %v3393 = vadd.f32 0.0, %v3392
        %v3394 = vpop.f32.mrf.mxu0
        %3395 = vmatprep.mubr.f32.mxu0 0.0
        %3396 = vmatmul.mubr.f32.gmra.mxu0 %v3093
        %v3397 = vpop.f32.mrf.mxu0
        %v3398 = vadd.f32 0.0, %v3397
        %v3399 = vpop.f32.mrf.mxu0
        %3400 = vmatprep.mubr.f32.mxu0 0.0
        %3401 = vmatmul.mubr.f32.gmra.mxu0 %v3095
        %v3402 = vpop.f32.mrf.mxu0
        %v3403 = vadd.f32 0.0, %v3402
        %v3404 = vpop.f32.mrf.mxu0
        %3405 = vmatprep.mubr.f32.mxu0 0.0
        %3406 = vmatmul.mubr.f32.gmra.mxu0 %v3097
        %v3407 = vpop.f32.mrf.mxu0
        %v3408 = vadd.f32 0.0, %v3407
        %v3409 = vpop.f32.mrf.mxu0
        %3410 = vmatprep.mubr.f32.mxu0 0.0
        %3411 = vmatmul.mubr.f32.gmra.mxu0 %v3099
        %v3412 = vpop.f32.mrf.mxu0
        %v3413 = vadd.f32 0.0, %v3412
        %v3414 = vpop.f32.mrf.mxu0
        %3415 = vmatprep.mubr.f32.mxu0 0.0
        %3416 = vmatmul.mubr.f32.gmra.mxu0 %v3101
        %v3417 = vpop.f32.mrf.mxu0
        %v3418 = vadd.f32 0.0, %v3417
        %v3419 = vpop.f32.mrf.mxu0
        %3420 = vmatprep.mubr.f32.mxu0 0.0
        %3421 = vmatmul.mubr.f32.gmra.mxu0 %v3103
        %v3422 = vpop.f32.mrf.mxu0
        %v3423 = vadd.f32 0.0, %v3422
        %v3424 = vpop.f32.mrf.mxu0
        %3425 = vmatprep.mubr.f32.mxu0 0.0
        %3426 = vmatmul.mubr.f32.gmra.mxu0 %v3105
        %v3427 = vpop.f32.mrf.mxu0
        %v3428 = vadd.f32 0.0, %v3427
        %v3429 = vpop.f32.mrf.mxu0
        %3430 = vmatprep.mubr.f32.mxu0 0.0
        %3431 = vmatmul.mubr.f32.gmra.mxu0 %v3107
        %v3432 = vpop.f32.mrf.mxu0
        %v3433 = vadd.f32 0.0, %v3432
        %v3434 = vpop.f32.mrf.mxu0
        %3435 = vmatprep.mubr.f32.mxu0 0.0
        %3436 = vmatmul.mubr.f32.gmra.mxu0 %v3109
        %v3437 = vpop.f32.mrf.mxu0
        %v3438 = vadd.f32 0.0, %v3437
        %v3439 = vpop.f32.mrf.mxu0
        %3440 = vmatprep.mubr.f32.mxu0 0.0
        %3441 = vmatmul.mubr.f32.gmra.mxu0 %v3111
        %v3442 = vpop.f32.mrf.mxu0
        %v3443 = vadd.f32 0.0, %v3442
        %v3444 = vpop.f32.mrf.mxu0
        %3445 = vmatprep.mubr.f32.mxu0 0.0
        %3446 = vmatmul.mubr.f32.gmra.mxu0 %v3113
        %v3447 = vpop.f32.mrf.mxu0
        %v3448 = vadd.f32 0.0, %v3447
        %v3449 = vpop.f32.mrf.mxu0
        %3450 = vmatprep.mubr.f32.mxu0 0.0
        %3451 = vmatmul.mubr.f32.gmra.mxu0 %v3115
        %v3452 = vpop.f32.mrf.mxu0
        %v3453 = vadd.f32 0.0, %v3452
        %v3454 = vpop.f32.mrf.mxu0
        %3455 = vmatprep.mubr.f32.mxu0 0.0
        %3456 = vmatmul.mubr.f32.gmra.mxu0 %v3117
        %v3457 = vpop.f32.mrf.mxu0
        %v3458 = vadd.f32 0.0, %v3457
        %v3459 = vpop.f32.mrf.mxu0
        %3460 = vmatprep.mubr.f32.mxu0 0.0
        %3461 = vmatmul.mubr.f32.gmra.mxu0 %v3119
        %v3462 = vpop.f32.mrf.mxu0
        %v3463 = vadd.f32 0.0, %v3462
        %v3464 = vpop.f32.mrf.mxu0
        %3465 = vmatprep.mubr.f32.mxu0 0.0
        %3466 = vmatmul.mubr.f32.gmra.mxu0 %v3121
        %v3467 = vpop.f32.mrf.mxu0
        %v3468 = vadd.f32 0.0, %v3467
        %v3469 = vpop.f32.mrf.mxu0
        %3470 = vmatprep.mubr.f32.mxu0 0.0
        %3471 = vmatmul.mubr.f32.gmra.mxu0 %v3123
        %v3472 = vpop.f32.mrf.mxu0
        %v3473 = vadd.f32 0.0, %v3472
        %v3474 = vpop.f32.mrf.mxu0
        %3475 = vmatprep.mubr.f32.mxu0 0.0
        %3476 = vmatmul.mubr.f32.gmra.mxu0 %v3125
        %v3477 = vpop.f32.mrf.mxu0
        %v3478 = vadd.f32 0.0, %v3477
        %v3479 = vpop.f32.mrf.mxu0
        %3480 = vmatprep.mubr.f32.mxu0 0.0
        %3481 = vmatmul.mubr.f32.gmra.mxu0 %v3127
        %v3482 = vpop.f32.mrf.mxu0
        %v3483 = vadd.f32 0.0, %v3482
        %v3484 = vpop.f32.mrf.mxu0
        %3485 = vmatprep.mubr.f32.mxu0 0.0
        %3486 = vmatmul.mubr.f32.gmra.mxu0 %v3129
        %v3487 = vpop.f32.mrf.mxu0
        %v3488 = vadd.f32 0.0, %v3487
        %v3489 = vpop.f32.mrf.mxu0
        %3490 = vmatprep.mubr.f32.mxu0 0.0
        %3491 = vmatmul.mubr.f32.gmra.mxu0 %v3131
        %v3492 = vpop.f32.mrf.mxu0
        %v3493 = vadd.f32 0.0, %v3492
        %v3494 = vpop.f32.mrf.mxu0
        %3495 = vmatprep.mubr.f32.mxu0 0.0
        %3496 = vmatmul.mubr.f32.gmra.mxu0 %v3133
        %v3497 = vpop.f32.mrf.mxu0
        %v3498 = vadd.f32 0.0, %v3497
        %v3499 = vpop.f32.mrf.mxu0
        %3500 = vmatprep.mubr.f32.mxu0 0.0
        %3501 = vmatmul.mubr.f32.gmra.mxu0 %v3135
        %v3502 = vpop.f32.mrf.mxu0
        %v3503 = vadd.f32 0.0, %v3502
        %v3504 = vpop.f32.mrf.mxu0
        %3505 = vmatprep.mubr.f32.mxu0 0.0
        %3506 = vmatmul.mubr.f32.gmra.mxu0 %v3137
        %v3507 = vpop.f32.mrf.mxu0
        %v3508 = vadd.f32 0.0, %v3507
        %v3509 = vpop.f32.mrf.mxu0
        %3510 = vmatprep.mubr.f32.mxu0 0.0
        %3511 = vmatmul.mubr.f32.gmra.mxu0 %v3139
        %v3512 = vpop.f32.mrf.mxu0
        %v3513 = vadd.f32 0.0, %v3512
        %v3514 = vpop.f32.mrf.mxu0
        %3515 = vmatprep.mubr.f32.mxu0 0.0
        %3516 = vmatmul.mubr.f32.gmra.mxu0 %v3141
        %v3517 = vpop.f32.mrf.mxu0
        %v3518 = vadd.f32 0.0, %v3517
        %v3519 = vpop.f32.mrf.mxu0
        %3520 = vmatprep.mubr.f32.mxu0 0.0
        %3521 = vmatmul.mubr.f32.gmra.mxu0 %v3143
        %v3522 = vpop.f32.mrf.mxu0
        %v3523 = vadd.f32 0.0, %v3522
        %v3524 = vpop.f32.mrf.mxu0
        %3525 = vmatprep.mubr.f32.mxu0 0.0
        %3526 = vmatmul.mubr.f32.gmra.mxu0 %v3145
        %v3527 = vpop.f32.mrf.mxu0
        %v3528 = vadd.f32 0.0, %v3527
        %v3529 = vpop.f32.mrf.mxu0
        %3530 = vmatprep.mubr.f32.mxu0 0.0
        %3531 = vmatmul.mubr.f32.gmra.mxu0 %v3147
        %v3532 = vpop.f32.mrf.mxu0
        %v3533 = vadd.f32 0.0, %v3532
        %v3534 = vpop.f32.mrf.mxu0
        %3535 = vmatprep.mubr.f32.mxu0 0.0
        %3536 = vmatmul.mubr.f32.gmra.mxu0 %v3149
        %v3537 = vpop.f32.mrf.mxu0
        %v3538 = vadd.f32 0.0, %v3537
        %v3539 = vpop.f32.mrf.mxu0
        %3540 = vmatprep.mubr.f32.mxu0 0.0
        %3541 = vmatmul.mubr.f32.gmra.mxu0 %v3151
        %v3542 = vpop.f32.mrf.mxu0
        %v3543 = vadd.f32 0.0, %v3542
        %v3544 = vpop.f32.mrf.mxu0
        %3545 = vmatprep.mubr.f32.mxu0 0.0
        %3546 = vmatmul.mubr.f32.gmra.mxu0 %v3153
        %v3547 = vpop.f32.mrf.mxu0
        %v3548 = vadd.f32 0.0, %v3547
        %v3549 = vpop.f32.mrf.mxu0
        %3550 = vmatprep.mubr.f32.mxu0 0.0
        %3551 = vmatmul.mubr.f32.gmra.mxu0 %v3155
        %v3552 = vpop.f32.mrf.mxu0
        %v3553 = vadd.f32 0.0, %v3552
        %v3554 = vpop.f32.mrf.mxu0
        %3555 = vmatprep.mubr.f32.mxu0 0.0
        %3556 = vmatmul.mubr.f32.gmra.mxu0 %v3157
        %v3557 = vpop.f32.mrf.mxu0
        %v3558 = vadd.f32 0.0, %v3557
        %v3559 = vpop.f32.mrf.mxu0
        %3560 = vmatprep.mubr.f32.mxu0 0.0
        %3561 = vmatmul.mubr.f32.gmra.mxu0 %v3159
        %v3562 = vpop.f32.mrf.mxu0
        %v3563 = vadd.f32 0.0, %v3562
        %v3564 = vpop.f32.mrf.mxu0
        %3565 = vmatprep.mubr.f32.mxu0 0.0
        %3566 = vmatmul.mubr.f32.gmra.mxu0 %v3161
        %v3567 = vpop.f32.mrf.mxu0
        %v3568 = vadd.f32 0.0, %v3567
        %v3569 = vpop.f32.mrf.mxu0
        %3570 = vmatprep.mubr.f32.mxu0 0.0
        %3571 = vmatmul.mubr.f32.gmra.mxu0 %v3163
        %v3572 = vpop.f32.mrf.mxu0
        %v3573 = vadd.f32 0.0, %v3572
        %v3574 = vpop.f32.mrf.mxu0
        %3575 = vmatprep.mubr.f32.mxu0 0.0
        %3576 = vmatmul.mubr.f32.gmra.mxu0 %v3165
        %v3577 = vpop.f32.mrf.mxu0
        %v3578 = vadd.f32 0.0, %v3577
        %v3579 = vpop.f32.mrf.mxu0
        %3580 = vmatprep.mubr.f32.mxu0 0.0
        %3581 = vmatmul.mubr.f32.gmra.mxu0 %v3167
        %v3582 = vpop.f32.mrf.mxu0
        %v3583 = vadd.f32 0.0, %v3582
        %v3584 = vpop.f32.mrf.mxu0
        %3585 = vmatprep.mubr.f32.mxu0 0.0
        %3586 = vmatmul.mubr.f32.gmra.mxu0 %v3169
        %v3587 = vpop.f32.mrf.mxu0
        %v3588 = vadd.f32 0.0, %v3587
        %v3589 = vpop.f32.mrf.mxu0
        %3590 = vmatprep.mubr.f32.mxu0 0.0
        %3591 = vmatmul.mubr.f32.gmra.mxu0 %v3171
        %v3592 = vpop.f32.mrf.mxu0
        %v3593 = vadd.f32 0.0, %v3592
        %v3594 = vpop.f32.mrf.mxu0
        %3595 = vdwg.mxu0
        %v3596 = vadd.f32 %v2533, %v3243
        %v3597 = vadd.f32 %v2538, %v3248
        %v3598 = vadd.f32 %v2543, %v3253
        %v3599 = vadd.f32 %v2548, %v3258
        %v3600 = vadd.f32 %v2553, %v3263
        %v3601 = vadd.f32 %v2558, %v3268
        %v3602 = vadd.f32 %v2563, %v3273
        %v3603 = vadd.f32 %v2568, %v3278
        %v3604 = vadd.f32 %v2573, %v3283
        %v3605 = vadd.f32 %v2578, %v3288
        %v3606 = vadd.f32 %v2583, %v3293
        %v3607 = vadd.f32 %v2588, %v3298
        %v3608 = vadd.f32 %v2593, %v3303
        %v3609 = vadd.f32 %v2598, %v3308
        %v3610 = vadd.f32 %v2603, %v3313
        %v3611 = vadd.f32 %v2608, %v3318
        %v3612 = vadd.f32 %v2613, %v3323
        %v3613 = vadd.f32 %v2618, %v3328
        %v3614 = vadd.f32 %v2623, %v3333
        %v3615 = vadd.f32 %v2628, %v3338
        %v3616 = vadd.f32 %v2633, %v3343
        %v3617 = vadd.f32 %v2638, %v3348
        %v3618 = vadd.f32 %v2643, %v3353
        %v3619 = vadd.f32 %v2648, %v3358
        %v3620 = vadd.f32 %v2653, %v3363
        %v3621 = vadd.f32 %v2658, %v3368
        %v3622 = vadd.f32 %v2663, %v3373
        %v3623 = vadd.f32 %v2668, %v3378
        %v3624 = vadd.f32 %v2673, %v3383
        %v3625 = vadd.f32 %v2678, %v3388
        %v3626 = vadd.f32 %v2683, %v3393
        %v3627 = vadd.f32 %v2688, %v3398
        %v3628 = vadd.f32 %v2693, %v3403
        %v3629 = vadd.f32 %v2698, %v3408
        %v3630 = vadd.f32 %v2703, %v3413
        %v3631 = vadd.f32 %v2708, %v3418
        %v3632 = vadd.f32 %v2713, %v3423
        %v3633 = vadd.f32 %v2718, %v3428
        %v3634 = vadd.f32 %v2723, %v3433
        %v3635 = vadd.f32 %v2728, %v3438
        %v3636 = vadd.f32 %v2733, %v3443
        %v3637 = vadd.f32 %v2738, %v3448
        %v3638 = vadd.f32 %v2743, %v3453
        %v3639 = vadd.f32 %v2748, %v3458
        %v3640 = vadd.f32 %v2753, %v3463
        %v3641 = vadd.f32 %v2758, %v3468
        %v3642 = vadd.f32 %v2763, %v3473
        %v3643 = vadd.f32 %v2768, %v3478
        %v3644 = vadd.f32 %v2773, %v3483
        %v3645 = vadd.f32 %v2778, %v3488
        %v3646 = vadd.f32 %v2783, %v3493
        %v3647 = vadd.f32 %v2788, %v3498
        %v3648 = vadd.f32 %v2793, %v3503
        %v3649 = vadd.f32 %v2798, %v3508
        %v3650 = vadd.f32 %v2803, %v3513
        %v3651 = vadd.f32 %v2808, %v3518
        %v3652 = vadd.f32 %v2813, %v3523
        %v3653 = vadd.f32 %v2818, %v3528
        %v3654 = vadd.f32 %v2823, %v3533
        %v3655 = vadd.f32 %v2828, %v3538
        %v3656 = vadd.f32 %v2833, %v3543
        %v3657 = vadd.f32 %v2838, %v3548
        %v3658 = vadd.f32 %v2843, %v3553
        %v3659 = vadd.f32 %v2848, %v3558
        %v3660 = vadd.f32 %v2853, %v3563
        %v3661 = vadd.f32 %v2858, %v3568
        %v3662 = vadd.f32 %v2863, %v3573
        %v3663 = vadd.f32 %v2868, %v3578
        %v3664 = vadd.f32 %v2873, %v3583
        %v3665 = vadd.f32 %v2878, %v3588
        %v3666 = vadd.f32 %v2883, %v3593
        %s3667 = scalar_lea.vmem %s3, 72
        %v3668 = vld [vmem:[%s3667] sm:$0xff]
        %v3669 = vld [vmem:[%s3667 + $0x8] sm:$0xff]
        %v3670 = vld [vmem:[%s3667 + $0x10] sm:$0x3f]
        %vm3671 = vcmask 1044480
        %v3672 = vrot.slane %v1178, 3
        %v3673 = vrot.slane %v1183, 3
        %v3674 = vsel %vm3671, %v3672, %v3673
        %v3675 = vrot.slane %v1188, 3
        %v3676 = vsel %vm3671, %v3673, %v3675
        %v3677 = vrot.slane %v1193, 3
        %v3678 = vsel %vm3671, %v3675, %v3677
        %v3679 = vrot.slane %v1198, 3
        %v3680 = vsel %vm3671, %v3677, %v3679
        %v3681 = vrot.slane %v1203, 3
        %v3682 = vsel %vm3671, %v3679, %v3681
        %v3683 = vrot.slane %v1208, 3
        %v3684 = vsel %vm3671, %v3681, %v3683
        %v3685 = vrot.slane %v1213, 3
        %v3686 = vsel %vm3671, %v3683, %v3685
        %v3687 = vrot.slane %v1218, 3
        %v3688 = vsel %vm3671, %v3685, %v3687
        %v3689 = vrot.slane %v1223, 3
        %v3690 = vsel %vm3671, %v3687, %v3689
        %v3691 = vrot.slane %v1228, 3
        %v3692 = vsel %vm3671, %v3689, %v3691
        %v3693 = vrot.slane %v1233, 3
        %v3694 = vsel %vm3671, %v3691, %v3693
        %v3695 = vrot.slane %v1238, 3
        %v3696 = vsel %vm3671, %v3693, %v3695
        %v3697 = vrot.slane %v1243, 3
        %v3698 = vsel %vm3671, %v3695, %v3697
        %v3699 = vrot.slane %v1248, 3
        %v3700 = vsel %vm3671, %v3697, %v3699
        %v3701 = vrot.slane %v1253, 3
        %v3702 = vsel %vm3671, %v3699, %v3701
        %v3703 = vrot.slane %v1258, 3
        %v3704 = vsel %vm3671, %v3701, %v3703
        %v3705 = vrot.slane %v1263, 3
        %v3706 = vsel %vm3671, %v3703, %v3705
        %v3707 = vrot.slane %v1268, 3
        %v3708 = vsel %vm3671, %v3705, %v3707
        %v3709 = vrot.slane %v1273, 3
        %v3710 = vsel %vm3671, %v3707, %v3709
        %v3711 = vrot.slane %v1278, 3
        %v3712 = vsel %vm3671, %v3709, %v3711
        %v3713 = vrot.slane %v1283, 3
        %v3714 = vsel %vm3671, %v3711, %v3713
        %v3715 = vrot.slane %v1288, 3
        %v3716 = vsel %vm3671, %v3713, %v3715
        %v3717 = vrot.slane %v1293, 3
        %v3718 = vsel %vm3671, %v3715, %v3717
        %v3719 = vrot.slane %v1298, 3
        %v3720 = vsel %vm3671, %v3717, %v3719
        %v3721 = vrot.slane %v1303, 3
        %v3722 = vsel %vm3671, %v3719, %v3721
        %v3723 = vrot.slane %v1308, 3
        %v3724 = vsel %vm3671, %v3721, %v3723
        %v3725 = vrot.slane %v1313, 3
        %v3726 = vsel %vm3671, %v3723, %v3725
        %v3727 = vrot.slane %v1318, 3
        %v3728 = vsel %vm3671, %v3725, %v3727
        %v3729 = vrot.slane %v1323, 3
        %v3730 = vsel %vm3671, %v3727, %v3729
        %v3731 = vrot.slane %v1328, 3
        %v3732 = vsel %vm3671, %v3729, %v3731
        %v3733 = vrot.slane %v1333, 3
        %v3734 = vsel %vm3671, %v3731, %v3733
        %v3735 = vrot.slane %v1338, 3
        %v3736 = vsel %vm3671, %v3733, %v3735
        %v3737 = vrot.slane %v1343, 3
        %v3738 = vsel %vm3671, %v3735, %v3737
        %v3739 = vrot.slane %v1348, 3
        %v3740 = vsel %vm3671, %v3737, %v3739
        %v3741 = vrot.slane %v1353, 3
        %v3742 = vsel %vm3671, %v3739, %v3741
        %v3743 = vrot.slane %v1358, 3
        %v3744 = vsel %vm3671, %v3741, %v3743
        %v3745 = vrot.slane %v1363, 3
        %v3746 = vsel %vm3671, %v3743, %v3745
        %v3747 = vrot.slane %v1368, 3
        %v3748 = vsel %vm3671, %v3745, %v3747
        %v3749 = vrot.slane %v1373, 3
        %v3750 = vsel %vm3671, %v3747, %v3749
        %v3751 = vrot.slane %v1378, 3
        %v3752 = vsel %vm3671, %v3749, %v3751
        %v3753 = vrot.slane %v1383, 3
        %v3754 = vsel %vm3671, %v3751, %v3753
        %v3755 = vrot.slane %v1388, 3
        %v3756 = vsel %vm3671, %v3753, %v3755
        %v3757 = vrot.slane %v1393, 3
        %v3758 = vsel %vm3671, %v3755, %v3757
        %v3759 = vrot.slane %v1398, 3
        %v3760 = vsel %vm3671, %v3757, %v3759
        %v3761 = vrot.slane %v1403, 3
        %v3762 = vsel %vm3671, %v3759, %v3761
        %v3763 = vrot.slane %v1408, 3
        %v3764 = vsel %vm3671, %v3761, %v3763
        %v3765 = vrot.slane %v1413, 3
        %v3766 = vsel %vm3671, %v3763, %v3765
        %v3767 = vrot.slane %v1418, 3
        %v3768 = vsel %vm3671, %v3765, %v3767
        %v3769 = vrot.slane %v1423, 3
        %v3770 = vsel %vm3671, %v3767, %v3769
        %v3771 = vrot.slane %v1428, 3
        %v3772 = vsel %vm3671, %v3769, %v3771
        %v3773 = vrot.slane %v1433, 3
        %v3774 = vsel %vm3671, %v3771, %v3773
        %v3775 = vrot.slane %v1438, 3
        %v3776 = vsel %vm3671, %v3773, %v3775
        %v3777 = vrot.slane %v1443, 3
        %v3778 = vsel %vm3671, %v3775, %v3777
        %v3779 = vrot.slane %v1448, 3
        %v3780 = vsel %vm3671, %v3777, %v3779
        %v3781 = vrot.slane %v1453, 3
        %v3782 = vsel %vm3671, %v3779, %v3781
        %v3783 = vrot.slane %v1458, 3
        %v3784 = vsel %vm3671, %v3781, %v3783
        %v3785 = vrot.slane %v1463, 3
        %v3786 = vsel %vm3671, %v3783, %v3785
        %v3787 = vrot.slane %v1468, 3
        %v3788 = vsel %vm3671, %v3785, %v3787
        %v3789 = vrot.slane %v1473, 3
        %v3790 = vsel %vm3671, %v3787, %v3789
        %v3791 = vrot.slane %v1478, 3
        %v3792 = vsel %vm3671, %v3789, %v3791
        %v3793 = vrot.slane %v1483, 3
        %v3794 = vsel %vm3671, %v3791, %v3793
        %v3795 = vrot.slane %v1488, 3
        %v3796 = vsel %vm3671, %v3793, %v3795
        %v3797 = vrot.slane %v1493, 3
        %v3798 = vsel %vm3671, %v3795, %v3797
        %v3799 = vrot.slane %v1498, 3
        %v3800 = vsel %vm3671, %v3797, %v3799
        %v3801 = vrot.slane %v1503, 3
        %v3802 = vsel %vm3671, %v3799, %v3801
        %v3803 = vrot.slane %v1508, 3
        %v3804 = vsel %vm3671, %v3801, %v3803
        %v3805 = vrot.slane %v1513, 3
        %v3806 = vsel %vm3671, %v3803, %v3805
        %v3807 = vrot.slane %v1518, 3
        %v3808 = vsel %vm3671, %v3805, %v3807
        %v3809 = vrot.slane %v1523, 3
        %v3810 = vsel %vm3671, %v3807, %v3809
        %v3811 = vrot.slane %v1528, 3
        %v3812 = vsel %vm3671, %v3809, %v3811
        %v3813 = vsel %vm890, %v3674, 0
        %v3815 = vsel %vm890, %v3676, 0
        %v3817 = vsel %vm890, %v3678, 0
        %v3819 = vsel %vm890, %v3680, 0
        %v3821 = vsel %vm890, %v3682, 0
        %v3823 = vsel %vm890, %v3684, 0
        %v3825 = vsel %vm890, %v3686, 0
        %v3827 = vsel %vm890, %v3688, 0
        %v3829 = vsel %vm890, %v3690, 0
        %v3831 = vsel %vm890, %v3692, 0
        %v3833 = vsel %vm890, %v3694, 0
        %v3835 = vsel %vm890, %v3696, 0
        %v3837 = vsel %vm890, %v3698, 0
        %v3839 = vsel %vm890, %v3700, 0
        %v3841 = vsel %vm890, %v3702, 0
        %v3843 = vsel %vm890, %v3704, 0
        %v3845 = vsel %vm890, %v3706, 0
        %v3847 = vsel %vm890, %v3708, 0
        %v3849 = vsel %vm890, %v3710, 0
        %v3851 = vsel %vm890, %v3712, 0
        %v3853 = vsel %vm890, %v3714, 0
        %v3855 = vsel %vm890, %v3716, 0
        %v3857 = vsel %vm890, %v3718, 0
        %v3859 = vsel %vm890, %v3720, 0
        %v3861 = vsel %vm890, %v3722, 0
        %v3863 = vsel %vm890, %v3724, 0
        %v3865 = vsel %vm890, %v3726, 0
        %v3867 = vsel %vm890, %v3728, 0
        %v3869 = vsel %vm890, %v3730, 0
        %v3871 = vsel %vm890, %v3732, 0
        %v3873 = vsel %vm890, %v3734, 0
        %v3875 = vsel %vm890, %v3736, 0
        %v3877 = vsel %vm890, %v3738, 0
        %v3879 = vsel %vm890, %v3740, 0
        %v3881 = vsel %vm890, %v3742, 0
        %v3883 = vsel %vm890, %v3744, 0
        %v3885 = vsel %vm890, %v3746, 0
        %v3887 = vsel %vm890, %v3748, 0
        %v3889 = vsel %vm890, %v3750, 0
        %v3891 = vsel %vm890, %v3752, 0
        %v3893 = vsel %vm890, %v3754, 0
        %v3895 = vsel %vm890, %v3756, 0
        %v3897 = vsel %vm890, %v3758, 0
        %v3899 = vsel %vm890, %v3760, 0
        %v3901 = vsel %vm890, %v3762, 0
        %v3903 = vsel %vm890, %v3764, 0
        %v3905 = vsel %vm890, %v3766, 0
        %v3907 = vsel %vm890, %v3768, 0
        %v3909 = vsel %vm890, %v3770, 0
        %v3911 = vsel %vm890, %v3772, 0
        %v3913 = vsel %vm890, %v3774, 0
        %v3915 = vsel %vm890, %v3776, 0
        %v3917 = vsel %vm890, %v3778, 0
        %v3919 = vsel %vm890, %v3780, 0
        %v3921 = vsel %vm890, %v3782, 0
        %v3923 = vsel %vm890, %v3784, 0
        %v3925 = vsel %vm890, %v3786, 0
        %v3927 = vsel %vm890, %v3788, 0
        %v3929 = vsel %vm890, %v3790, 0
        %v3931 = vsel %vm890, %v3792, 0
        %v3933 = vsel %vm890, %v3794, 0
        %v3935 = vsel %vm890, %v3796, 0
        %v3937 = vsel %vm890, %v3798, 0
        %v3939 = vsel %vm890, %v3800, 0
        %v3941 = vsel %vm890, %v3802, 0
        %v3943 = vsel %vm890, %v3804, 0
        %v3945 = vsel %vm890, %v3806, 0
        %v3947 = vsel %vm890, %v3808, 0
        %v3949 = vsel %vm890, %v3810, 0
        %v3951 = vsel %vm890, %v3812, 0
        %v3953 = vsel %vm890, %v3811, 0
        %v3956 = vsel %vm1107, %v3670, 0
        %3958 = vmatprep.subr.mxu0 0.0
        %3959 = vmatpush1.msra.mxu0 0.0
        %3960 = vmatprep.subr.mxu0 0.0
        %3961 = vmatpush1.msra.mxu0 0.0
        %3962 = vmatprep.subr.mxu0 0.0
        %3963 = vmatpush1.msra.mxu0 0.0
        %3964 = vmatprep.subr.mxu0 0.0
        %3965 = vmatpush1.msra.mxu0 0.0
        %3966 = vmatprep.subr.mxu0 0.0
        %3967 = vmatpush1.msra.mxu0 0.0
        %3968 = vmatprep.subr.mxu0 0.0
        %3969 = vmatpush1.msra.mxu0 0.0
        %3970 = vmatprep.subr.mxu0 0.0
        %3971 = vmatpush1.msra.mxu0 0.0
        %3972 = vmatprep.subr.mxu0 0.0
        %3973 = vmatpush1.msra.mxu0 0.0
        %3974 = vmatprep.subr.mxu0 0.0
        %3975 = vmatpush1.msra.mxu0 0.0
        %3976 = vmatprep.subr.mxu0 0.0
        %3977 = vmatpush1.msra.mxu0 0.0
        %3978 = vmatprep.subr.mxu0 0.0
        %3979 = vmatpush1.msra.mxu0 0.0
        %3980 = vmatprep.subr.mxu0 0.0
        %3981 = vmatpush1.msra.mxu0 0.0
        %3982 = vmatprep.subr.mxu0 0.0
        %3983 = vmatpush1.msra.mxu0 0.0
        %3984 = vmatprep.subr.mxu0 0.0
        %3985 = vmatpush1.msra.mxu0 %v3956
        %3986 = vmatprep.subr.mxu0 0.0
        %3987 = vmatpush1.msra.mxu0 %v3669
        %3988 = vmatprep.subr.mxu0 0.0
        %3989 = vmatpush1.msra.mxu0 %v3668
        %3990 = vmatprep.subr.mxu0 0.0
        %3991 = vmatpush2.msra.mxu0 0.0
        %3992 = vmatprep.subr.mxu0 0.0
        %3993 = vmatpush2.msra.mxu0 0.0
        %3994 = vmatprep.subr.mxu0 0.0
        %3995 = vmatpush2.msra.mxu0 0.0
        %3996 = vmatprep.subr.mxu0 0.0
        %3997 = vmatpush2.msra.mxu0 0.0
        %3998 = vmatprep.subr.mxu0 0.0
        %3999 = vmatpush2.msra.mxu0 0.0
        %4000 = vmatprep.subr.mxu0 0.0
        %4001 = vmatpush2.msra.mxu0 0.0
        %4002 = vmatprep.subr.mxu0 0.0
        %4003 = vmatpush2.msra.mxu0 0.0
        %4004 = vmatprep.subr.mxu0 0.0
        %4005 = vmatpush2.msra.mxu0 0.0
        %4006 = vmatprep.subr.mxu0 0.0
        %4007 = vmatpush2.msra.mxu0 0.0
        %4008 = vmatprep.subr.mxu0 0.0
        %4009 = vmatpush2.msra.mxu0 0.0
        %4010 = vmatprep.subr.mxu0 0.0
        %4011 = vmatpush2.msra.mxu0 0.0
        %4012 = vmatprep.subr.mxu0 0.0
        %4013 = vmatpush2.msra.mxu0 0.0
        %4014 = vmatprep.subr.mxu0 0.0
        %4015 = vmatpush2.msra.mxu0 0.0
        %4016 = vmatprep.subr.mxu0 0.0
        %4017 = vmatpush2.msra.mxu0 0.0
        %4018 = vmatprep.subr.mxu0 0.0
        %4019 = vmatpush2.msra.mxu0 0.0
        %4020 = vmatprep.subr.mxu0 0.0
        %4021 = vmatpush2.msra.mxu0 0.0
        %4022 = vmatprep.mubr.f32.mxu0 0.0
        %4023 = vmatmul.mubr.f32.gmra.mxu0 %v3813
        %v4024 = vpop.f32.mrf.mxu0
        %v4025 = vadd.f32 0.0, %v4024
        %v4026 = vpop.f32.mrf.mxu0
        %4027 = vmatprep.mubr.f32.mxu0 0.0
        %4028 = vmatmul.mubr.f32.gmra.mxu0 %v3815
        %v4029 = vpop.f32.mrf.mxu0
        %v4030 = vadd.f32 0.0, %v4029
        %v4031 = vpop.f32.mrf.mxu0
        %4032 = vmatprep.mubr.f32.mxu0 0.0
        %4033 = vmatmul.mubr.f32.gmra.mxu0 %v3817
        %v4034 = vpop.f32.mrf.mxu0
        %v4035 = vadd.f32 0.0, %v4034
        %v4036 = vpop.f32.mrf.mxu0
        %4037 = vmatprep.mubr.f32.mxu0 0.0
        %4038 = vmatmul.mubr.f32.gmra.mxu0 %v3819
        %v4039 = vpop.f32.mrf.mxu0
        %v4040 = vadd.f32 0.0, %v4039
        %v4041 = vpop.f32.mrf.mxu0
        %4042 = vmatprep.mubr.f32.mxu0 0.0
        %4043 = vmatmul.mubr.f32.gmra.mxu0 %v3821
        %v4044 = vpop.f32.mrf.mxu0
        %v4045 = vadd.f32 0.0, %v4044
        %v4046 = vpop.f32.mrf.mxu0
        %4047 = vmatprep.mubr.f32.mxu0 0.0
        %4048 = vmatmul.mubr.f32.gmra.mxu0 %v3823
        %v4049 = vpop.f32.mrf.mxu0
        %v4050 = vadd.f32 0.0, %v4049
        %v4051 = vpop.f32.mrf.mxu0
        %4052 = vmatprep.mubr.f32.mxu0 0.0
        %4053 = vmatmul.mubr.f32.gmra.mxu0 %v3825
        %v4054 = vpop.f32.mrf.mxu0
        %v4055 = vadd.f32 0.0, %v4054
        %v4056 = vpop.f32.mrf.mxu0
        %4057 = vmatprep.mubr.f32.mxu0 0.0
        %4058 = vmatmul.mubr.f32.gmra.mxu0 %v3827
        %v4059 = vpop.f32.mrf.mxu0
        %v4060 = vadd.f32 0.0, %v4059
        %v4061 = vpop.f32.mrf.mxu0
        %4062 = vmatprep.mubr.f32.mxu0 0.0
        %4063 = vmatmul.mubr.f32.gmra.mxu0 %v3829
        %v4064 = vpop.f32.mrf.mxu0
        %v4065 = vadd.f32 0.0, %v4064
        %v4066 = vpop.f32.mrf.mxu0
        %4067 = vmatprep.mubr.f32.mxu0 0.0
        %4068 = vmatmul.mubr.f32.gmra.mxu0 %v3831
        %v4069 = vpop.f32.mrf.mxu0
        %v4070 = vadd.f32 0.0, %v4069
        %v4071 = vpop.f32.mrf.mxu0
        %4072 = vmatprep.mubr.f32.mxu0 0.0
        %4073 = vmatmul.mubr.f32.gmra.mxu0 %v3833
        %v4074 = vpop.f32.mrf.mxu0
        %v4075 = vadd.f32 0.0, %v4074
        %v4076 = vpop.f32.mrf.mxu0
        %4077 = vmatprep.mubr.f32.mxu0 0.0
        %4078 = vmatmul.mubr.f32.gmra.mxu0 %v3835
        %v4079 = vpop.f32.mrf.mxu0
        %v4080 = vadd.f32 0.0, %v4079
        %v4081 = vpop.f32.mrf.mxu0
        %4082 = vmatprep.mubr.f32.mxu0 0.0
        %4083 = vmatmul.mubr.f32.gmra.mxu0 %v3837
        %v4084 = vpop.f32.mrf.mxu0
        %v4085 = vadd.f32 0.0, %v4084
        %v4086 = vpop.f32.mrf.mxu0
        %4087 = vmatprep.mubr.f32.mxu0 0.0
        %4088 = vmatmul.mubr.f32.gmra.mxu0 %v3839
        %v4089 = vpop.f32.mrf.mxu0
        %v4090 = vadd.f32 0.0, %v4089
        %v4091 = vpop.f32.mrf.mxu0
        %4092 = vmatprep.mubr.f32.mxu0 0.0
        %4093 = vmatmul.mubr.f32.gmra.mxu0 %v3841
        %v4094 = vpop.f32.mrf.mxu0
        %v4095 = vadd.f32 0.0, %v4094
        %v4096 = vpop.f32.mrf.mxu0
        %4097 = vmatprep.mubr.f32.mxu0 0.0
        %4098 = vmatmul.mubr.f32.gmra.mxu0 %v3843
        %v4099 = vpop.f32.mrf.mxu0
        %v4100 = vadd.f32 0.0, %v4099
        %v4101 = vpop.f32.mrf.mxu0
        %4102 = vmatprep.mubr.f32.mxu0 0.0
        %4103 = vmatmul.mubr.f32.gmra.mxu0 %v3845
        %v4104 = vpop.f32.mrf.mxu0
        %v4105 = vadd.f32 0.0, %v4104
        %v4106 = vpop.f32.mrf.mxu0
        %4107 = vmatprep.mubr.f32.mxu0 0.0
        %4108 = vmatmul.mubr.f32.gmra.mxu0 %v3847
        %v4109 = vpop.f32.mrf.mxu0
        %v4110 = vadd.f32 0.0, %v4109
        %v4111 = vpop.f32.mrf.mxu0
        %4112 = vmatprep.mubr.f32.mxu0 0.0
        %4113 = vmatmul.mubr.f32.gmra.mxu0 %v3849
        %v4114 = vpop.f32.mrf.mxu0
        %v4115 = vadd.f32 0.0, %v4114
        %v4116 = vpop.f32.mrf.mxu0
        %4117 = vmatprep.mubr.f32.mxu0 0.0
        %4118 = vmatmul.mubr.f32.gmra.mxu0 %v3851
        %v4119 = vpop.f32.mrf.mxu0
        %v4120 = vadd.f32 0.0, %v4119
        %v4121 = vpop.f32.mrf.mxu0
        %4122 = vmatprep.mubr.f32.mxu0 0.0
        %4123 = vmatmul.mubr.f32.gmra.mxu0 %v3853
        %v4124 = vpop.f32.mrf.mxu0
        %v4125 = vadd.f32 0.0, %v4124
        %v4126 = vpop.f32.mrf.mxu0
        %4127 = vmatprep.mubr.f32.mxu0 0.0
        %4128 = vmatmul.mubr.f32.gmra.mxu0 %v3855
        %v4129 = vpop.f32.mrf.mxu0
        %v4130 = vadd.f32 0.0, %v4129
        %v4131 = vpop.f32.mrf.mxu0
        %4132 = vmatprep.mubr.f32.mxu0 0.0
        %4133 = vmatmul.mubr.f32.gmra.mxu0 %v3857
        %v4134 = vpop.f32.mrf.mxu0
        %v4135 = vadd.f32 0.0, %v4134
        %v4136 = vpop.f32.mrf.mxu0
        %4137 = vmatprep.mubr.f32.mxu0 0.0
        %4138 = vmatmul.mubr.f32.gmra.mxu0 %v3859
        %v4139 = vpop.f32.mrf.mxu0
        %v4140 = vadd.f32 0.0, %v4139
        %v4141 = vpop.f32.mrf.mxu0
        %4142 = vmatprep.mubr.f32.mxu0 0.0
        %4143 = vmatmul.mubr.f32.gmra.mxu0 %v3861
        %v4144 = vpop.f32.mrf.mxu0
        %v4145 = vadd.f32 0.0, %v4144
        %v4146 = vpop.f32.mrf.mxu0
        %4147 = vmatprep.mubr.f32.mxu0 0.0
        %4148 = vmatmul.mubr.f32.gmra.mxu0 %v3863
        %v4149 = vpop.f32.mrf.mxu0
        %v4150 = vadd.f32 0.0, %v4149
        %v4151 = vpop.f32.mrf.mxu0
        %4152 = vmatprep.mubr.f32.mxu0 0.0
        %4153 = vmatmul.mubr.f32.gmra.mxu0 %v3865
        %v4154 = vpop.f32.mrf.mxu0
        %v4155 = vadd.f32 0.0, %v4154
        %v4156 = vpop.f32.mrf.mxu0
        %4157 = vmatprep.mubr.f32.mxu0 0.0
        %4158 = vmatmul.mubr.f32.gmra.mxu0 %v3867
        %v4159 = vpop.f32.mrf.mxu0
        %v4160 = vadd.f32 0.0, %v4159
        %v4161 = vpop.f32.mrf.mxu0
        %4162 = vmatprep.mubr.f32.mxu0 0.0
        %4163 = vmatmul.mubr.f32.gmra.mxu0 %v3869
        %v4164 = vpop.f32.mrf.mxu0
        %v4165 = vadd.f32 0.0, %v4164
        %v4166 = vpop.f32.mrf.mxu0
        %4167 = vmatprep.mubr.f32.mxu0 0.0
        %4168 = vmatmul.mubr.f32.gmra.mxu0 %v3871
        %v4169 = vpop.f32.mrf.mxu0
        %v4170 = vadd.f32 0.0, %v4169
        %v4171 = vpop.f32.mrf.mxu0
        %4172 = vmatprep.mubr.f32.mxu0 0.0
        %4173 = vmatmul.mubr.f32.gmra.mxu0 %v3873
        %v4174 = vpop.f32.mrf.mxu0
        %v4175 = vadd.f32 0.0, %v4174
        %v4176 = vpop.f32.mrf.mxu0
        %4177 = vmatprep.mubr.f32.mxu0 0.0
        %4178 = vmatmul.mubr.f32.gmra.mxu0 %v3875
        %v4179 = vpop.f32.mrf.mxu0
        %v4180 = vadd.f32 0.0, %v4179
        %v4181 = vpop.f32.mrf.mxu0
        %4182 = vmatprep.mubr.f32.mxu0 0.0
        %4183 = vmatmul.mubr.f32.gmra.mxu0 %v3877
        %v4184 = vpop.f32.mrf.mxu0
        %v4185 = vadd.f32 0.0, %v4184
        %v4186 = vpop.f32.mrf.mxu0
        %4187 = vmatprep.mubr.f32.mxu0 0.0
        %4188 = vmatmul.mubr.f32.gmra.mxu0 %v3879
        %v4189 = vpop.f32.mrf.mxu0
        %v4190 = vadd.f32 0.0, %v4189
        %v4191 = vpop.f32.mrf.mxu0
        %4192 = vmatprep.mubr.f32.mxu0 0.0
        %4193 = vmatmul.mubr.f32.gmra.mxu0 %v3881
        %v4194 = vpop.f32.mrf.mxu0
        %v4195 = vadd.f32 0.0, %v4194
        %v4196 = vpop.f32.mrf.mxu0
        %4197 = vmatprep.mubr.f32.mxu0 0.0
        %4198 = vmatmul.mubr.f32.gmra.mxu0 %v3883
        %v4199 = vpop.f32.mrf.mxu0
        %v4200 = vadd.f32 0.0, %v4199
        %v4201 = vpop.f32.mrf.mxu0
        %4202 = vmatprep.mubr.f32.mxu0 0.0
        %4203 = vmatmul.mubr.f32.gmra.mxu0 %v3885
        %v4204 = vpop.f32.mrf.mxu0
        %v4205 = vadd.f32 0.0, %v4204
        %v4206 = vpop.f32.mrf.mxu0
        %4207 = vmatprep.mubr.f32.mxu0 0.0
        %4208 = vmatmul.mubr.f32.gmra.mxu0 %v3887
        %v4209 = vpop.f32.mrf.mxu0
        %v4210 = vadd.f32 0.0, %v4209
        %v4211 = vpop.f32.mrf.mxu0
        %4212 = vmatprep.mubr.f32.mxu0 0.0
        %4213 = vmatmul.mubr.f32.gmra.mxu0 %v3889
        %v4214 = vpop.f32.mrf.mxu0
        %v4215 = vadd.f32 0.0, %v4214
        %v4216 = vpop.f32.mrf.mxu0
        %4217 = vmatprep.mubr.f32.mxu0 0.0
        %4218 = vmatmul.mubr.f32.gmra.mxu0 %v3891
        %v4219 = vpop.f32.mrf.mxu0
        %v4220 = vadd.f32 0.0, %v4219
        %v4221 = vpop.f32.mrf.mxu0
        %4222 = vmatprep.mubr.f32.mxu0 0.0
        %4223 = vmatmul.mubr.f32.gmra.mxu0 %v3893
        %v4224 = vpop.f32.mrf.mxu0
        %v4225 = vadd.f32 0.0, %v4224
        %v4226 = vpop.f32.mrf.mxu0
        %4227 = vmatprep.mubr.f32.mxu0 0.0
        %4228 = vmatmul.mubr.f32.gmra.mxu0 %v3895
        %v4229 = vpop.f32.mrf.mxu0
        %v4230 = vadd.f32 0.0, %v4229
        %v4231 = vpop.f32.mrf.mxu0
        %4232 = vmatprep.mubr.f32.mxu0 0.0
        %4233 = vmatmul.mubr.f32.gmra.mxu0 %v3897
        %v4234 = vpop.f32.mrf.mxu0
        %v4235 = vadd.f32 0.0, %v4234
        %v4236 = vpop.f32.mrf.mxu0
        %4237 = vmatprep.mubr.f32.mxu0 0.0
        %4238 = vmatmul.mubr.f32.gmra.mxu0 %v3899
        %v4239 = vpop.f32.mrf.mxu0
        %v4240 = vadd.f32 0.0, %v4239
        %v4241 = vpop.f32.mrf.mxu0
        %4242 = vmatprep.mubr.f32.mxu0 0.0
        %4243 = vmatmul.mubr.f32.gmra.mxu0 %v3901
        %v4244 = vpop.f32.mrf.mxu0
        %v4245 = vadd.f32 0.0, %v4244
        %v4246 = vpop.f32.mrf.mxu0
        %4247 = vmatprep.mubr.f32.mxu0 0.0
        %4248 = vmatmul.mubr.f32.gmra.mxu0 %v3903
        %v4249 = vpop.f32.mrf.mxu0
        %v4250 = vadd.f32 0.0, %v4249
        %v4251 = vpop.f32.mrf.mxu0
        %4252 = vmatprep.mubr.f32.mxu0 0.0
        %4253 = vmatmul.mubr.f32.gmra.mxu0 %v3905
        %v4254 = vpop.f32.mrf.mxu0
        %v4255 = vadd.f32 0.0, %v4254
        %v4256 = vpop.f32.mrf.mxu0
        %4257 = vmatprep.mubr.f32.mxu0 0.0
        %4258 = vmatmul.mubr.f32.gmra.mxu0 %v3907
        %v4259 = vpop.f32.mrf.mxu0
        %v4260 = vadd.f32 0.0, %v4259
        %v4261 = vpop.f32.mrf.mxu0
        %4262 = vmatprep.mubr.f32.mxu0 0.0
        %4263 = vmatmul.mubr.f32.gmra.mxu0 %v3909
        %v4264 = vpop.f32.mrf.mxu0
        %v4265 = vadd.f32 0.0, %v4264
        %v4266 = vpop.f32.mrf.mxu0
        %4267 = vmatprep.mubr.f32.mxu0 0.0
        %4268 = vmatmul.mubr.f32.gmra.mxu0 %v3911
        %v4269 = vpop.f32.mrf.mxu0
        %v4270 = vadd.f32 0.0, %v4269
        %v4271 = vpop.f32.mrf.mxu0
        %4272 = vmatprep.mubr.f32.mxu0 0.0
        %4273 = vmatmul.mubr.f32.gmra.mxu0 %v3913
        %v4274 = vpop.f32.mrf.mxu0
        %v4275 = vadd.f32 0.0, %v4274
        %v4276 = vpop.f32.mrf.mxu0
        %4277 = vmatprep.mubr.f32.mxu0 0.0
        %4278 = vmatmul.mubr.f32.gmra.mxu0 %v3915
        %v4279 = vpop.f32.mrf.mxu0
        %v4280 = vadd.f32 0.0, %v4279
        %v4281 = vpop.f32.mrf.mxu0
        %4282 = vmatprep.mubr.f32.mxu0 0.0
        %4283 = vmatmul.mubr.f32.gmra.mxu0 %v3917
        %v4284 = vpop.f32.mrf.mxu0
        %v4285 = vadd.f32 0.0, %v4284
        %v4286 = vpop.f32.mrf.mxu0
        %4287 = vmatprep.mubr.f32.mxu0 0.0
        %4288 = vmatmul.mubr.f32.gmra.mxu0 %v3919
        %v4289 = vpop.f32.mrf.mxu0
        %v4290 = vadd.f32 0.0, %v4289
        %v4291 = vpop.f32.mrf.mxu0
        %4292 = vmatprep.mubr.f32.mxu0 0.0
        %4293 = vmatmul.mubr.f32.gmra.mxu0 %v3921
        %v4294 = vpop.f32.mrf.mxu0
        %v4295 = vadd.f32 0.0, %v4294
        %v4296 = vpop.f32.mrf.mxu0
        %4297 = vmatprep.mubr.f32.mxu0 0.0
        %4298 = vmatmul.mubr.f32.gmra.mxu0 %v3923
        %v4299 = vpop.f32.mrf.mxu0
        %v4300 = vadd.f32 0.0, %v4299
        %v4301 = vpop.f32.mrf.mxu0
        %4302 = vmatprep.mubr.f32.mxu0 0.0
        %4303 = vmatmul.mubr.f32.gmra.mxu0 %v3925
        %v4304 = vpop.f32.mrf.mxu0
        %v4305 = vadd.f32 0.0, %v4304
        %v4306 = vpop.f32.mrf.mxu0
        %4307 = vmatprep.mubr.f32.mxu0 0.0
        %4308 = vmatmul.mubr.f32.gmra.mxu0 %v3927
        %v4309 = vpop.f32.mrf.mxu0
        %v4310 = vadd.f32 0.0, %v4309
        %v4311 = vpop.f32.mrf.mxu0
        %4312 = vmatprep.mubr.f32.mxu0 0.0
        %4313 = vmatmul.mubr.f32.gmra.mxu0 %v3929
        %v4314 = vpop.f32.mrf.mxu0
        %v4315 = vadd.f32 0.0, %v4314
        %v4316 = vpop.f32.mrf.mxu0
        %4317 = vmatprep.mubr.f32.mxu0 0.0
        %4318 = vmatmul.mubr.f32.gmra.mxu0 %v3931
        %v4319 = vpop.f32.mrf.mxu0
        %v4320 = vadd.f32 0.0, %v4319
        %v4321 = vpop.f32.mrf.mxu0
        %4322 = vmatprep.mubr.f32.mxu0 0.0
        %4323 = vmatmul.mubr.f32.gmra.mxu0 %v3933
        %v4324 = vpop.f32.mrf.mxu0
        %v4325 = vadd.f32 0.0, %v4324
        %v4326 = vpop.f32.mrf.mxu0
        %4327 = vmatprep.mubr.f32.mxu0 0.0
        %4328 = vmatmul.mubr.f32.gmra.mxu0 %v3935
        %v4329 = vpop.f32.mrf.mxu0
        %v4330 = vadd.f32 0.0, %v4329
        %v4331 = vpop.f32.mrf.mxu0
        %4332 = vmatprep.mubr.f32.mxu0 0.0
        %4333 = vmatmul.mubr.f32.gmra.mxu0 %v3937
        %v4334 = vpop.f32.mrf.mxu0
        %v4335 = vadd.f32 0.0, %v4334
        %v4336 = vpop.f32.mrf.mxu0
        %4337 = vmatprep.mubr.f32.mxu0 0.0
        %4338 = vmatmul.mubr.f32.gmra.mxu0 %v3939
        %v4339 = vpop.f32.mrf.mxu0
        %v4340 = vadd.f32 0.0, %v4339
        %v4341 = vpop.f32.mrf.mxu0
        %4342 = vmatprep.mubr.f32.mxu0 0.0
        %4343 = vmatmul.mubr.f32.gmra.mxu0 %v3941
        %v4344 = vpop.f32.mrf.mxu0
        %v4345 = vadd.f32 0.0, %v4344
        %v4346 = vpop.f32.mrf.mxu0
        %4347 = vmatprep.mubr.f32.mxu0 0.0
        %4348 = vmatmul.mubr.f32.gmra.mxu0 %v3943
        %v4349 = vpop.f32.mrf.mxu0
        %v4350 = vadd.f32 0.0, %v4349
        %v4351 = vpop.f32.mrf.mxu0
        %4352 = vmatprep.mubr.f32.mxu0 0.0
        %4353 = vmatmul.mubr.f32.gmra.mxu0 %v3945
        %v4354 = vpop.f32.mrf.mxu0
        %v4355 = vadd.f32 0.0, %v4354
        %v4356 = vpop.f32.mrf.mxu0
        %4357 = vmatprep.mubr.f32.mxu0 0.0
        %4358 = vmatmul.mubr.f32.gmra.mxu0 %v3947
        %v4359 = vpop.f32.mrf.mxu0
        %v4360 = vadd.f32 0.0, %v4359
        %v4361 = vpop.f32.mrf.mxu0
        %4362 = vmatprep.mubr.f32.mxu0 0.0
        %4363 = vmatmul.mubr.f32.gmra.mxu0 %v3949
        %v4364 = vpop.f32.mrf.mxu0
        %v4365 = vadd.f32 0.0, %v4364
        %v4366 = vpop.f32.mrf.mxu0
        %4367 = vmatprep.mubr.f32.mxu0 0.0
        %4368 = vmatmul.mubr.f32.gmra.mxu0 %v3951
        %v4369 = vpop.f32.mrf.mxu0
        %v4370 = vadd.f32 0.0, %v4369
        %v4371 = vpop.f32.mrf.mxu0
        %4372 = vmatprep.mubr.f32.mxu0 0.0
        %4373 = vmatmul.mubr.f32.gmra.mxu0 %v3953
        %v4374 = vpop.f32.mrf.mxu0
        %v4375 = vadd.f32 0.0, %v4374
        %v4376 = vpop.f32.mrf.mxu0
        %4377 = vdwg.mxu0
        %v4378 = vadd.f32 %v3596, %v4025
        %v4379 = vadd.f32 %v3597, %v4030
        %v4380 = vadd.f32 %v3598, %v4035
        %v4381 = vadd.f32 %v3599, %v4040
        %v4382 = vadd.f32 %v3600, %v4045
        %v4383 = vadd.f32 %v3601, %v4050
        %v4384 = vadd.f32 %v3602, %v4055
        %v4385 = vadd.f32 %v3603, %v4060
        %v4386 = vadd.f32 %v3604, %v4065
        %v4387 = vadd.f32 %v3605, %v4070
        %v4388 = vadd.f32 %v3606, %v4075
        %v4389 = vadd.f32 %v3607, %v4080
        %v4390 = vadd.f32 %v3608, %v4085
        %v4391 = vadd.f32 %v3609, %v4090
        %v4392 = vadd.f32 %v3610, %v4095
        %v4393 = vadd.f32 %v3611, %v4100
        %v4394 = vadd.f32 %v3612, %v4105
        %v4395 = vadd.f32 %v3613, %v4110
        %v4396 = vadd.f32 %v3614, %v4115
        %v4397 = vadd.f32 %v3615, %v4120
        %v4398 = vadd.f32 %v3616, %v4125
        %v4399 = vadd.f32 %v3617, %v4130
        %v4400 = vadd.f32 %v3618, %v4135
        %v4401 = vadd.f32 %v3619, %v4140
        %v4402 = vadd.f32 %v3620, %v4145
        %v4403 = vadd.f32 %v3621, %v4150
        %v4404 = vadd.f32 %v3622, %v4155
        %v4405 = vadd.f32 %v3623, %v4160
        %v4406 = vadd.f32 %v3624, %v4165
        %v4407 = vadd.f32 %v3625, %v4170
        %v4408 = vadd.f32 %v3626, %v4175
        %v4409 = vadd.f32 %v3627, %v4180
        %v4410 = vadd.f32 %v3628, %v4185
        %v4411 = vadd.f32 %v3629, %v4190
        %v4412 = vadd.f32 %v3630, %v4195
        %v4413 = vadd.f32 %v3631, %v4200
        %v4414 = vadd.f32 %v3632, %v4205
        %v4415 = vadd.f32 %v3633, %v4210
        %v4416 = vadd.f32 %v3634, %v4215
        %v4417 = vadd.f32 %v3635, %v4220
        %v4418 = vadd.f32 %v3636, %v4225
        %v4419 = vadd.f32 %v3637, %v4230
        %v4420 = vadd.f32 %v3638, %v4235
        %v4421 = vadd.f32 %v3639, %v4240
        %v4422 = vadd.f32 %v3640, %v4245
        %v4423 = vadd.f32 %v3641, %v4250
        %v4424 = vadd.f32 %v3642, %v4255
        %v4425 = vadd.f32 %v3643, %v4260
        %v4426 = vadd.f32 %v3644, %v4265
        %v4427 = vadd.f32 %v3645, %v4270
        %v4428 = vadd.f32 %v3646, %v4275
        %v4429 = vadd.f32 %v3647, %v4280
        %v4430 = vadd.f32 %v3648, %v4285
        %v4431 = vadd.f32 %v3649, %v4290
        %v4432 = vadd.f32 %v3650, %v4295
        %v4433 = vadd.f32 %v3651, %v4300
        %v4434 = vadd.f32 %v3652, %v4305
        %v4435 = vadd.f32 %v3653, %v4310
        %v4436 = vadd.f32 %v3654, %v4315
        %v4437 = vadd.f32 %v3655, %v4320
        %v4438 = vadd.f32 %v3656, %v4325
        %v4439 = vadd.f32 %v3657, %v4330
        %v4440 = vadd.f32 %v3658, %v4335
        %v4441 = vadd.f32 %v3659, %v4340
        %v4442 = vadd.f32 %v3660, %v4345
        %v4443 = vadd.f32 %v3661, %v4350
        %v4444 = vadd.f32 %v3662, %v4355
        %v4445 = vadd.f32 %v3663, %v4360
        %v4446 = vadd.f32 %v3664, %v4365
        %v4447 = vadd.f32 %v3665, %v4370
        %v4448 = vadd.f32 %v3666, %v4375
        %s4449 = scalar_lea.vmem %s3, 96
        %v4450 = vld [vmem:[%s4449] sm:$0xff]
        %v4451 = vld [vmem:[%s4449 + $0x8] sm:$0xff]
        %v4452 = vld [vmem:[%s4449 + $0x10] sm:$0x3f]
        %vm4453 = vcmask 1043456
        %v4454 = vrot.slane %v1178, 4
        %v4455 = vrot.slane %v1183, 4
        %v4456 = vsel %vm4453, %v4454, %v4455
        %v4457 = vrot.slane %v1188, 4
        %v4458 = vsel %vm4453, %v4455, %v4457
        %v4459 = vrot.slane %v1193, 4
        %v4460 = vsel %vm4453, %v4457, %v4459
        %v4461 = vrot.slane %v1198, 4
        %v4462 = vsel %vm4453, %v4459, %v4461
        %v4463 = vrot.slane %v1203, 4
        %v4464 = vsel %vm4453, %v4461, %v4463
        %v4465 = vrot.slane %v1208, 4
        %v4466 = vsel %vm4453, %v4463, %v4465
        %v4467 = vrot.slane %v1213, 4
        %v4468 = vsel %vm4453, %v4465, %v4467
        %v4469 = vrot.slane %v1218, 4
        %v4470 = vsel %vm4453, %v4467, %v4469
        %v4471 = vrot.slane %v1223, 4
        %v4472 = vsel %vm4453, %v4469, %v4471
        %v4473 = vrot.slane %v1228, 4
        %v4474 = vsel %vm4453, %v4471, %v4473
        %v4475 = vrot.slane %v1233, 4
        %v4476 = vsel %vm4453, %v4473, %v4475
        %v4477 = vrot.slane %v1238, 4
        %v4478 = vsel %vm4453, %v4475, %v4477
        %v4479 = vrot.slane %v1243, 4
        %v4480 = vsel %vm4453, %v4477, %v4479
        %v4481 = vrot.slane %v1248, 4
        %v4482 = vsel %vm4453, %v4479, %v4481
        %v4483 = vrot.slane %v1253, 4
        %v4484 = vsel %vm4453, %v4481, %v4483
        %v4485 = vrot.slane %v1258, 4
        %v4486 = vsel %vm4453, %v4483, %v4485
        %v4487 = vrot.slane %v1263, 4
        %v4488 = vsel %vm4453, %v4485, %v4487
        %v4489 = vrot.slane %v1268, 4
        %v4490 = vsel %vm4453, %v4487, %v4489
        %v4491 = vrot.slane %v1273, 4
        %v4492 = vsel %vm4453, %v4489, %v4491
        %v4493 = vrot.slane %v1278, 4
        %v4494 = vsel %vm4453, %v4491, %v4493
        %v4495 = vrot.slane %v1283, 4
        %v4496 = vsel %vm4453, %v4493, %v4495
        %v4497 = vrot.slane %v1288, 4
        %v4498 = vsel %vm4453, %v4495, %v4497
        %v4499 = vrot.slane %v1293, 4
        %v4500 = vsel %vm4453, %v4497, %v4499
        %v4501 = vrot.slane %v1298, 4
        %v4502 = vsel %vm4453, %v4499, %v4501
        %v4503 = vrot.slane %v1303, 4
        %v4504 = vsel %vm4453, %v4501, %v4503
        %v4505 = vrot.slane %v1308, 4
        %v4506 = vsel %vm4453, %v4503, %v4505
        %v4507 = vrot.slane %v1313, 4
        %v4508 = vsel %vm4453, %v4505, %v4507
        %v4509 = vrot.slane %v1318, 4
        %v4510 = vsel %vm4453, %v4507, %v4509
        %v4511 = vrot.slane %v1323, 4
        %v4512 = vsel %vm4453, %v4509, %v4511
        %v4513 = vrot.slane %v1328, 4
        %v4514 = vsel %vm4453, %v4511, %v4513
        %v4515 = vrot.slane %v1333, 4
        %v4516 = vsel %vm4453, %v4513, %v4515
        %v4517 = vrot.slane %v1338, 4
        %v4518 = vsel %vm4453, %v4515, %v4517
        %v4519 = vrot.slane %v1343, 4
        %v4520 = vsel %vm4453, %v4517, %v4519
        %v4521 = vrot.slane %v1348, 4
        %v4522 = vsel %vm4453, %v4519, %v4521
        %v4523 = vrot.slane %v1353, 4
        %v4524 = vsel %vm4453, %v4521, %v4523
        %v4525 = vrot.slane %v1358, 4
        %v4526 = vsel %vm4453, %v4523, %v4525
        %v4527 = vrot.slane %v1363, 4
        %v4528 = vsel %vm4453, %v4525, %v4527
        %v4529 = vrot.slane %v1368, 4
        %v4530 = vsel %vm4453, %v4527, %v4529
        %v4531 = vrot.slane %v1373, 4
        %v4532 = vsel %vm4453, %v4529, %v4531
        %v4533 = vrot.slane %v1378, 4
        %v4534 = vsel %vm4453, %v4531, %v4533
        %v4535 = vrot.slane %v1383, 4
        %v4536 = vsel %vm4453, %v4533, %v4535
        %v4537 = vrot.slane %v1388, 4
        %v4538 = vsel %vm4453, %v4535, %v4537
        %v4539 = vrot.slane %v1393, 4
        %v4540 = vsel %vm4453, %v4537, %v4539
        %v4541 = vrot.slane %v1398, 4
        %v4542 = vsel %vm4453, %v4539, %v4541
        %v4543 = vrot.slane %v1403, 4
        %v4544 = vsel %vm4453, %v4541, %v4543
        %v4545 = vrot.slane %v1408, 4
        %v4546 = vsel %vm4453, %v4543, %v4545
        %v4547 = vrot.slane %v1413, 4
        %v4548 = vsel %vm4453, %v4545, %v4547
        %v4549 = vrot.slane %v1418, 4
        %v4550 = vsel %vm4453, %v4547, %v4549
        %v4551 = vrot.slane %v1423, 4
        %v4552 = vsel %vm4453, %v4549, %v4551
        %v4553 = vrot.slane %v1428, 4
        %v4554 = vsel %vm4453, %v4551, %v4553
        %v4555 = vrot.slane %v1433, 4
        %v4556 = vsel %vm4453, %v4553, %v4555
        %v4557 = vrot.slane %v1438, 4
        %v4558 = vsel %vm4453, %v4555, %v4557
        %v4559 = vrot.slane %v1443, 4
        %v4560 = vsel %vm4453, %v4557, %v4559
        %v4561 = vrot.slane %v1448, 4
        %v4562 = vsel %vm4453, %v4559, %v4561
        %v4563 = vrot.slane %v1453, 4
        %v4564 = vsel %vm4453, %v4561, %v4563
        %v4565 = vrot.slane %v1458, 4
        %v4566 = vsel %vm4453, %v4563, %v4565
        %v4567 = vrot.slane %v1463, 4
        %v4568 = vsel %vm4453, %v4565, %v4567
        %v4569 = vrot.slane %v1468, 4
        %v4570 = vsel %vm4453, %v4567, %v4569
        %v4571 = vrot.slane %v1473, 4
        %v4572 = vsel %vm4453, %v4569, %v4571
        %v4573 = vrot.slane %v1478, 4
        %v4574 = vsel %vm4453, %v4571, %v4573
        %v4575 = vrot.slane %v1483, 4
        %v4576 = vsel %vm4453, %v4573, %v4575
        %v4577 = vrot.slane %v1488, 4
        %v4578 = vsel %vm4453, %v4575, %v4577
        %v4579 = vrot.slane %v1493, 4
        %v4580 = vsel %vm4453, %v4577, %v4579
        %v4581 = vrot.slane %v1498, 4
        %v4582 = vsel %vm4453, %v4579, %v4581
        %v4583 = vrot.slane %v1503, 4
        %v4584 = vsel %vm4453, %v4581, %v4583
        %v4585 = vrot.slane %v1508, 4
        %v4586 = vsel %vm4453, %v4583, %v4585
        %v4587 = vrot.slane %v1513, 4
        %v4588 = vsel %vm4453, %v4585, %v4587
        %v4589 = vrot.slane %v1518, 4
        %v4590 = vsel %vm4453, %v4587, %v4589
        %v4591 = vrot.slane %v1523, 4
        %v4592 = vsel %vm4453, %v4589, %v4591
        %v4593 = vrot.slane %v1528, 4
        %v4594 = vsel %vm4453, %v4591, %v4593
        %v4595 = vsel %vm890, %v4456, 0
        %v4597 = vsel %vm890, %v4458, 0
        %v4599 = vsel %vm890, %v4460, 0
        %v4601 = vsel %vm890, %v4462, 0
        %v4603 = vsel %vm890, %v4464, 0
        %v4605 = vsel %vm890, %v4466, 0
        %v4607 = vsel %vm890, %v4468, 0
        %v4609 = vsel %vm890, %v4470, 0
        %v4611 = vsel %vm890, %v4472, 0
        %v4613 = vsel %vm890, %v4474, 0
        %v4615 = vsel %vm890, %v4476, 0
        %v4617 = vsel %vm890, %v4478, 0
        %v4619 = vsel %vm890, %v4480, 0
        %v4621 = vsel %vm890, %v4482, 0
        %v4623 = vsel %vm890, %v4484, 0
        %v4625 = vsel %vm890, %v4486, 0
        %v4627 = vsel %vm890, %v4488, 0
        %v4629 = vsel %vm890, %v4490, 0
        %v4631 = vsel %vm890, %v4492, 0
        %v4633 = vsel %vm890, %v4494, 0
        %v4635 = vsel %vm890, %v4496, 0
        %v4637 = vsel %vm890, %v4498, 0
        %v4639 = vsel %vm890, %v4500, 0
        %v4641 = vsel %vm890, %v4502, 0
        %v4643 = vsel %vm890, %v4504, 0
        %v4645 = vsel %vm890, %v4506, 0
        %v4647 = vsel %vm890, %v4508, 0
        %v4649 = vsel %vm890, %v4510, 0
        %v4651 = vsel %vm890, %v4512, 0
        %v4653 = vsel %vm890, %v4514, 0
        %v4655 = vsel %vm890, %v4516, 0
        %v4657 = vsel %vm890, %v4518, 0
        %v4659 = vsel %vm890, %v4520, 0
        %v4661 = vsel %vm890, %v4522, 0
        %v4663 = vsel %vm890, %v4524, 0
        %v4665 = vsel %vm890, %v4526, 0
        %v4667 = vsel %vm890, %v4528, 0
        %v4669 = vsel %vm890, %v4530, 0
        %v4671 = vsel %vm890, %v4532, 0
        %v4673 = vsel %vm890, %v4534, 0
        %v4675 = vsel %vm890, %v4536, 0
        %v4677 = vsel %vm890, %v4538, 0
        %v4679 = vsel %vm890, %v4540, 0
        %v4681 = vsel %vm890, %v4542, 0
        %v4683 = vsel %vm890, %v4544, 0
        %v4685 = vsel %vm890, %v4546, 0
        %v4687 = vsel %vm890, %v4548, 0
        %v4689 = vsel %vm890, %v4550, 0
        %v4691 = vsel %vm890, %v4552, 0
        %v4693 = vsel %vm890, %v4554, 0
        %v4695 = vsel %vm890, %v4556, 0
        %v4697 = vsel %vm890, %v4558, 0
        %v4699 = vsel %vm890, %v4560, 0
        %v4701 = vsel %vm890, %v4562, 0
        %v4703 = vsel %vm890, %v4564, 0
        %v4705 = vsel %vm890, %v4566, 0
        %v4707 = vsel %vm890, %v4568, 0
        %v4709 = vsel %vm890, %v4570, 0
        %v4711 = vsel %vm890, %v4572, 0
        %v4713 = vsel %vm890, %v4574, 0
        %v4715 = vsel %vm890, %v4576, 0
        %v4717 = vsel %vm890, %v4578, 0
        %v4719 = vsel %vm890, %v4580, 0
        %v4721 = vsel %vm890, %v4582, 0
        %v4723 = vsel %vm890, %v4584, 0
        %v4725 = vsel %vm890, %v4586, 0
        %v4727 = vsel %vm890, %v4588, 0
        %v4729 = vsel %vm890, %v4590, 0
        %v4731 = vsel %vm890, %v4592, 0
        %v4733 = vsel %vm890, %v4594, 0
        %v4735 = vsel %vm890, %v4593, 0
        %v4738 = vsel %vm1107, %v4452, 0
        %4740 = vmatprep.subr.mxu0 0.0
        %4741 = vmatpush1.msra.mxu0 0.0
        %4742 = vmatprep.subr.mxu0 0.0
        %4743 = vmatpush1.msra.mxu0 0.0
        %4744 = vmatprep.subr.mxu0 0.0
        %4745 = vmatpush1.msra.mxu0 0.0
        %4746 = vmatprep.subr.mxu0 0.0
        %4747 = vmatpush1.msra.mxu0 0.0
        %4748 = vmatprep.subr.mxu0 0.0
        %4749 = vmatpush1.msra.mxu0 0.0
        %4750 = vmatprep.subr.mxu0 0.0
        %4751 = vmatpush1.msra.mxu0 0.0
        %4752 = vmatprep.subr.mxu0 0.0
        %4753 = vmatpush1.msra.mxu0 0.0
        %4754 = vmatprep.subr.mxu0 0.0
        %4755 = vmatpush1.msra.mxu0 0.0
        %4756 = vmatprep.subr.mxu0 0.0
        %4757 = vmatpush1.msra.mxu0 0.0
        %4758 = vmatprep.subr.mxu0 0.0
        %4759 = vmatpush1.msra.mxu0 0.0
        %4760 = vmatprep.subr.mxu0 0.0
        %4761 = vmatpush1.msra.mxu0 0.0
        %4762 = vmatprep.subr.mxu0 0.0
        %4763 = vmatpush1.msra.mxu0 0.0
        %4764 = vmatprep.subr.mxu0 0.0
        %4765 = vmatpush1.msra.mxu0 0.0
        %4766 = vmatprep.subr.mxu0 0.0
        %4767 = vmatpush1.msra.mxu0 %v4738
        %4768 = vmatprep.subr.mxu0 0.0
        %4769 = vmatpush1.msra.mxu0 %v4451
        %4770 = vmatprep.subr.mxu0 0.0
        %4771 = vmatpush1.msra.mxu0 %v4450
        %4772 = vmatprep.subr.mxu0 0.0
        %4773 = vmatpush2.msra.mxu0 0.0
        %4774 = vmatprep.subr.mxu0 0.0
        %4775 = vmatpush2.msra.mxu0 0.0
        %4776 = vmatprep.subr.mxu0 0.0
        %4777 = vmatpush2.msra.mxu0 0.0
        %4778 = vmatprep.subr.mxu0 0.0
        %4779 = vmatpush2.msra.mxu0 0.0
        %4780 = vmatprep.subr.mxu0 0.0
        %4781 = vmatpush2.msra.mxu0 0.0
        %4782 = vmatprep.subr.mxu0 0.0
        %4783 = vmatpush2.msra.mxu0 0.0
        %4784 = vmatprep.subr.mxu0 0.0
        %4785 = vmatpush2.msra.mxu0 0.0
        %4786 = vmatprep.subr.mxu0 0.0
        %4787 = vmatpush2.msra.mxu0 0.0
        %4788 = vmatprep.subr.mxu0 0.0
        %4789 = vmatpush2.msra.mxu0 0.0
        %4790 = vmatprep.subr.mxu0 0.0
        %4791 = vmatpush2.msra.mxu0 0.0
        %4792 = vmatprep.subr.mxu0 0.0
        %4793 = vmatpush2.msra.mxu0 0.0
        %4794 = vmatprep.subr.mxu0 0.0
        %4795 = vmatpush2.msra.mxu0 0.0
        %4796 = vmatprep.subr.mxu0 0.0
        %4797 = vmatpush2.msra.mxu0 0.0
        %4798 = vmatprep.subr.mxu0 0.0
        %4799 = vmatpush2.msra.mxu0 0.0
        %4800 = vmatprep.subr.mxu0 0.0
        %4801 = vmatpush2.msra.mxu0 0.0
        %4802 = vmatprep.subr.mxu0 0.0
        %4803 = vmatpush2.msra.mxu0 0.0
        %4804 = vmatprep.mubr.f32.mxu0 0.0
        %4805 = vmatmul.mubr.f32.gmra.mxu0 %v4595
        %v4806 = vpop.f32.mrf.mxu0
        %v4807 = vadd.f32 0.0, %v4806
        %v4808 = vpop.f32.mrf.mxu0
        %4809 = vmatprep.mubr.f32.mxu0 0.0
        %4810 = vmatmul.mubr.f32.gmra.mxu0 %v4597
        %v4811 = vpop.f32.mrf.mxu0
        %v4812 = vadd.f32 0.0, %v4811
        %v4813 = vpop.f32.mrf.mxu0
        %4814 = vmatprep.mubr.f32.mxu0 0.0
        %4815 = vmatmul.mubr.f32.gmra.mxu0 %v4599
        %v4816 = vpop.f32.mrf.mxu0
        %v4817 = vadd.f32 0.0, %v4816
        %v4818 = vpop.f32.mrf.mxu0
        %4819 = vmatprep.mubr.f32.mxu0 0.0
        %4820 = vmatmul.mubr.f32.gmra.mxu0 %v4601
        %v4821 = vpop.f32.mrf.mxu0
        %v4822 = vadd.f32 0.0, %v4821
        %v4823 = vpop.f32.mrf.mxu0
        %4824 = vmatprep.mubr.f32.mxu0 0.0
        %4825 = vmatmul.mubr.f32.gmra.mxu0 %v4603
        %v4826 = vpop.f32.mrf.mxu0
        %v4827 = vadd.f32 0.0, %v4826
        %v4828 = vpop.f32.mrf.mxu0
        %4829 = vmatprep.mubr.f32.mxu0 0.0
        %4830 = vmatmul.mubr.f32.gmra.mxu0 %v4605
        %v4831 = vpop.f32.mrf.mxu0
        %v4832 = vadd.f32 0.0, %v4831
        %v4833 = vpop.f32.mrf.mxu0
        %4834 = vmatprep.mubr.f32.mxu0 0.0
        %4835 = vmatmul.mubr.f32.gmra.mxu0 %v4607
        %v4836 = vpop.f32.mrf.mxu0
        %v4837 = vadd.f32 0.0, %v4836
        %v4838 = vpop.f32.mrf.mxu0
        %4839 = vmatprep.mubr.f32.mxu0 0.0
        %4840 = vmatmul.mubr.f32.gmra.mxu0 %v4609
        %v4841 = vpop.f32.mrf.mxu0
        %v4842 = vadd.f32 0.0, %v4841
        %v4843 = vpop.f32.mrf.mxu0
        %4844 = vmatprep.mubr.f32.mxu0 0.0
        %4845 = vmatmul.mubr.f32.gmra.mxu0 %v4611
        %v4846 = vpop.f32.mrf.mxu0
        %v4847 = vadd.f32 0.0, %v4846
        %v4848 = vpop.f32.mrf.mxu0
        %4849 = vmatprep.mubr.f32.mxu0 0.0
        %4850 = vmatmul.mubr.f32.gmra.mxu0 %v4613
        %v4851 = vpop.f32.mrf.mxu0
        %v4852 = vadd.f32 0.0, %v4851
        %v4853 = vpop.f32.mrf.mxu0
        %4854 = vmatprep.mubr.f32.mxu0 0.0
        %4855 = vmatmul.mubr.f32.gmra.mxu0 %v4615
        %v4856 = vpop.f32.mrf.mxu0
        %v4857 = vadd.f32 0.0, %v4856
        %v4858 = vpop.f32.mrf.mxu0
        %4859 = vmatprep.mubr.f32.mxu0 0.0
        %4860 = vmatmul.mubr.f32.gmra.mxu0 %v4617
        %v4861 = vpop.f32.mrf.mxu0
        %v4862 = vadd.f32 0.0, %v4861
        %v4863 = vpop.f32.mrf.mxu0
        %4864 = vmatprep.mubr.f32.mxu0 0.0
        %4865 = vmatmul.mubr.f32.gmra.mxu0 %v4619
        %v4866 = vpop.f32.mrf.mxu0
        %v4867 = vadd.f32 0.0, %v4866
        %v4868 = vpop.f32.mrf.mxu0
        %4869 = vmatprep.mubr.f32.mxu0 0.0
        %4870 = vmatmul.mubr.f32.gmra.mxu0 %v4621
        %v4871 = vpop.f32.mrf.mxu0
        %v4872 = vadd.f32 0.0, %v4871
        %v4873 = vpop.f32.mrf.mxu0
        %4874 = vmatprep.mubr.f32.mxu0 0.0
        %4875 = vmatmul.mubr.f32.gmra.mxu0 %v4623
        %v4876 = vpop.f32.mrf.mxu0
        %v4877 = vadd.f32 0.0, %v4876
        %v4878 = vpop.f32.mrf.mxu0
        %4879 = vmatprep.mubr.f32.mxu0 0.0
        %4880 = vmatmul.mubr.f32.gmra.mxu0 %v4625
        %v4881 = vpop.f32.mrf.mxu0
        %v4882 = vadd.f32 0.0, %v4881
        %v4883 = vpop.f32.mrf.mxu0
        %4884 = vmatprep.mubr.f32.mxu0 0.0
        %4885 = vmatmul.mubr.f32.gmra.mxu0 %v4627
        %v4886 = vpop.f32.mrf.mxu0
        %v4887 = vadd.f32 0.0, %v4886
        %v4888 = vpop.f32.mrf.mxu0
        %4889 = vmatprep.mubr.f32.mxu0 0.0
        %4890 = vmatmul.mubr.f32.gmra.mxu0 %v4629
        %v4891 = vpop.f32.mrf.mxu0
        %v4892 = vadd.f32 0.0, %v4891
        %v4893 = vpop.f32.mrf.mxu0
        %4894 = vmatprep.mubr.f32.mxu0 0.0
        %4895 = vmatmul.mubr.f32.gmra.mxu0 %v4631
        %v4896 = vpop.f32.mrf.mxu0
        %v4897 = vadd.f32 0.0, %v4896
        %v4898 = vpop.f32.mrf.mxu0
        %4899 = vmatprep.mubr.f32.mxu0 0.0
        %4900 = vmatmul.mubr.f32.gmra.mxu0 %v4633
        %v4901 = vpop.f32.mrf.mxu0
        %v4902 = vadd.f32 0.0, %v4901
        %v4903 = vpop.f32.mrf.mxu0
        %4904 = vmatprep.mubr.f32.mxu0 0.0
        %4905 = vmatmul.mubr.f32.gmra.mxu0 %v4635
        %v4906 = vpop.f32.mrf.mxu0
        %v4907 = vadd.f32 0.0, %v4906
        %v4908 = vpop.f32.mrf.mxu0
        %4909 = vmatprep.mubr.f32.mxu0 0.0
        %4910 = vmatmul.mubr.f32.gmra.mxu0 %v4637
        %v4911 = vpop.f32.mrf.mxu0
        %v4912 = vadd.f32 0.0, %v4911
        %v4913 = vpop.f32.mrf.mxu0
        %4914 = vmatprep.mubr.f32.mxu0 0.0
        %4915 = vmatmul.mubr.f32.gmra.mxu0 %v4639
        %v4916 = vpop.f32.mrf.mxu0
        %v4917 = vadd.f32 0.0, %v4916
        %v4918 = vpop.f32.mrf.mxu0
        %4919 = vmatprep.mubr.f32.mxu0 0.0
        %4920 = vmatmul.mubr.f32.gmra.mxu0 %v4641
        %v4921 = vpop.f32.mrf.mxu0
        %v4922 = vadd.f32 0.0, %v4921
        %v4923 = vpop.f32.mrf.mxu0
        %4924 = vmatprep.mubr.f32.mxu0 0.0
        %4925 = vmatmul.mubr.f32.gmra.mxu0 %v4643
        %v4926 = vpop.f32.mrf.mxu0
        %v4927 = vadd.f32 0.0, %v4926
        %v4928 = vpop.f32.mrf.mxu0
        %4929 = vmatprep.mubr.f32.mxu0 0.0
        %4930 = vmatmul.mubr.f32.gmra.mxu0 %v4645
        %v4931 = vpop.f32.mrf.mxu0
        %v4932 = vadd.f32 0.0, %v4931
        %v4933 = vpop.f32.mrf.mxu0
        %4934 = vmatprep.mubr.f32.mxu0 0.0
        %4935 = vmatmul.mubr.f32.gmra.mxu0 %v4647
        %v4936 = vpop.f32.mrf.mxu0
        %v4937 = vadd.f32 0.0, %v4936
        %v4938 = vpop.f32.mrf.mxu0
        %4939 = vmatprep.mubr.f32.mxu0 0.0
        %4940 = vmatmul.mubr.f32.gmra.mxu0 %v4649
        %v4941 = vpop.f32.mrf.mxu0
        %v4942 = vadd.f32 0.0, %v4941
        %v4943 = vpop.f32.mrf.mxu0
        %4944 = vmatprep.mubr.f32.mxu0 0.0
        %4945 = vmatmul.mubr.f32.gmra.mxu0 %v4651
        %v4946 = vpop.f32.mrf.mxu0
        %v4947 = vadd.f32 0.0, %v4946
        %v4948 = vpop.f32.mrf.mxu0
        %4949 = vmatprep.mubr.f32.mxu0 0.0
        %4950 = vmatmul.mubr.f32.gmra.mxu0 %v4653
        %v4951 = vpop.f32.mrf.mxu0
        %v4952 = vadd.f32 0.0, %v4951
        %v4953 = vpop.f32.mrf.mxu0
        %4954 = vmatprep.mubr.f32.mxu0 0.0
        %4955 = vmatmul.mubr.f32.gmra.mxu0 %v4655
        %v4956 = vpop.f32.mrf.mxu0
        %v4957 = vadd.f32 0.0, %v4956
        %v4958 = vpop.f32.mrf.mxu0
        %4959 = vmatprep.mubr.f32.mxu0 0.0
        %4960 = vmatmul.mubr.f32.gmra.mxu0 %v4657
        %v4961 = vpop.f32.mrf.mxu0
        %v4962 = vadd.f32 0.0, %v4961
        %v4963 = vpop.f32.mrf.mxu0
        %4964 = vmatprep.mubr.f32.mxu0 0.0
        %4965 = vmatmul.mubr.f32.gmra.mxu0 %v4659
        %v4966 = vpop.f32.mrf.mxu0
        %v4967 = vadd.f32 0.0, %v4966
        %v4968 = vpop.f32.mrf.mxu0
        %4969 = vmatprep.mubr.f32.mxu0 0.0
        %4970 = vmatmul.mubr.f32.gmra.mxu0 %v4661
        %v4971 = vpop.f32.mrf.mxu0
        %v4972 = vadd.f32 0.0, %v4971
        %v4973 = vpop.f32.mrf.mxu0
        %4974 = vmatprep.mubr.f32.mxu0 0.0
        %4975 = vmatmul.mubr.f32.gmra.mxu0 %v4663
        %v4976 = vpop.f32.mrf.mxu0
        %v4977 = vadd.f32 0.0, %v4976
        %v4978 = vpop.f32.mrf.mxu0
        %4979 = vmatprep.mubr.f32.mxu0 0.0
        %4980 = vmatmul.mubr.f32.gmra.mxu0 %v4665
        %v4981 = vpop.f32.mrf.mxu0
        %v4982 = vadd.f32 0.0, %v4981
        %v4983 = vpop.f32.mrf.mxu0
        %4984 = vmatprep.mubr.f32.mxu0 0.0
        %4985 = vmatmul.mubr.f32.gmra.mxu0 %v4667
        %v4986 = vpop.f32.mrf.mxu0
        %v4987 = vadd.f32 0.0, %v4986
        %v4988 = vpop.f32.mrf.mxu0
        %4989 = vmatprep.mubr.f32.mxu0 0.0
        %4990 = vmatmul.mubr.f32.gmra.mxu0 %v4669
        %v4991 = vpop.f32.mrf.mxu0
        %v4992 = vadd.f32 0.0, %v4991
        %v4993 = vpop.f32.mrf.mxu0
        %4994 = vmatprep.mubr.f32.mxu0 0.0
        %4995 = vmatmul.mubr.f32.gmra.mxu0 %v4671
        %v4996 = vpop.f32.mrf.mxu0
        %v4997 = vadd.f32 0.0, %v4996
        %v4998 = vpop.f32.mrf.mxu0
        %4999 = vmatprep.mubr.f32.mxu0 0.0
        %5000 = vmatmul.mubr.f32.gmra.mxu0 %v4673
        %v5001 = vpop.f32.mrf.mxu0
        %v5002 = vadd.f32 0.0, %v5001
        %v5003 = vpop.f32.mrf.mxu0
        %5004 = vmatprep.mubr.f32.mxu0 0.0
        %5005 = vmatmul.mubr.f32.gmra.mxu0 %v4675
        %v5006 = vpop.f32.mrf.mxu0
        %v5007 = vadd.f32 0.0, %v5006
        %v5008 = vpop.f32.mrf.mxu0
        %5009 = vmatprep.mubr.f32.mxu0 0.0
        %5010 = vmatmul.mubr.f32.gmra.mxu0 %v4677
        %v5011 = vpop.f32.mrf.mxu0
        %v5012 = vadd.f32 0.0, %v5011
        %v5013 = vpop.f32.mrf.mxu0
        %5014 = vmatprep.mubr.f32.mxu0 0.0
        %5015 = vmatmul.mubr.f32.gmra.mxu0 %v4679
        %v5016 = vpop.f32.mrf.mxu0
        %v5017 = vadd.f32 0.0, %v5016
        %v5018 = vpop.f32.mrf.mxu0
        %5019 = vmatprep.mubr.f32.mxu0 0.0
        %5020 = vmatmul.mubr.f32.gmra.mxu0 %v4681
        %v5021 = vpop.f32.mrf.mxu0
        %v5022 = vadd.f32 0.0, %v5021
        %v5023 = vpop.f32.mrf.mxu0
        %5024 = vmatprep.mubr.f32.mxu0 0.0
        %5025 = vmatmul.mubr.f32.gmra.mxu0 %v4683
        %v5026 = vpop.f32.mrf.mxu0
        %v5027 = vadd.f32 0.0, %v5026
        %v5028 = vpop.f32.mrf.mxu0
        %5029 = vmatprep.mubr.f32.mxu0 0.0
        %5030 = vmatmul.mubr.f32.gmra.mxu0 %v4685
        %v5031 = vpop.f32.mrf.mxu0
        %v5032 = vadd.f32 0.0, %v5031
        %v5033 = vpop.f32.mrf.mxu0
        %5034 = vmatprep.mubr.f32.mxu0 0.0
        %5035 = vmatmul.mubr.f32.gmra.mxu0 %v4687
        %v5036 = vpop.f32.mrf.mxu0
        %v5037 = vadd.f32 0.0, %v5036
        %v5038 = vpop.f32.mrf.mxu0
        %5039 = vmatprep.mubr.f32.mxu0 0.0
        %5040 = vmatmul.mubr.f32.gmra.mxu0 %v4689
        %v5041 = vpop.f32.mrf.mxu0
        %v5042 = vadd.f32 0.0, %v5041
        %v5043 = vpop.f32.mrf.mxu0
        %5044 = vmatprep.mubr.f32.mxu0 0.0
        %5045 = vmatmul.mubr.f32.gmra.mxu0 %v4691
        %v5046 = vpop.f32.mrf.mxu0
        %v5047 = vadd.f32 0.0, %v5046
        %v5048 = vpop.f32.mrf.mxu0
        %5049 = vmatprep.mubr.f32.mxu0 0.0
        %5050 = vmatmul.mubr.f32.gmra.mxu0 %v4693
        %v5051 = vpop.f32.mrf.mxu0
        %v5052 = vadd.f32 0.0, %v5051
        %v5053 = vpop.f32.mrf.mxu0
        %5054 = vmatprep.mubr.f32.mxu0 0.0
        %5055 = vmatmul.mubr.f32.gmra.mxu0 %v4695
        %v5056 = vpop.f32.mrf.mxu0
        %v5057 = vadd.f32 0.0, %v5056
        %v5058 = vpop.f32.mrf.mxu0
        %5059 = vmatprep.mubr.f32.mxu0 0.0
        %5060 = vmatmul.mubr.f32.gmra.mxu0 %v4697
        %v5061 = vpop.f32.mrf.mxu0
        %v5062 = vadd.f32 0.0, %v5061
        %v5063 = vpop.f32.mrf.mxu0
        %5064 = vmatprep.mubr.f32.mxu0 0.0
        %5065 = vmatmul.mubr.f32.gmra.mxu0 %v4699
        %v5066 = vpop.f32.mrf.mxu0
        %v5067 = vadd.f32 0.0, %v5066
        %v5068 = vpop.f32.mrf.mxu0
        %5069 = vmatprep.mubr.f32.mxu0 0.0
        %5070 = vmatmul.mubr.f32.gmra.mxu0 %v4701
        %v5071 = vpop.f32.mrf.mxu0
        %v5072 = vadd.f32 0.0, %v5071
        %v5073 = vpop.f32.mrf.mxu0
        %5074 = vmatprep.mubr.f32.mxu0 0.0
        %5075 = vmatmul.mubr.f32.gmra.mxu0 %v4703
        %v5076 = vpop.f32.mrf.mxu0
        %v5077 = vadd.f32 0.0, %v5076
        %v5078 = vpop.f32.mrf.mxu0
        %5079 = vmatprep.mubr.f32.mxu0 0.0
        %5080 = vmatmul.mubr.f32.gmra.mxu0 %v4705
        %v5081 = vpop.f32.mrf.mxu0
        %v5082 = vadd.f32 0.0, %v5081
        %v5083 = vpop.f32.mrf.mxu0
        %5084 = vmatprep.mubr.f32.mxu0 0.0
        %5085 = vmatmul.mubr.f32.gmra.mxu0 %v4707
        %v5086 = vpop.f32.mrf.mxu0
        %v5087 = vadd.f32 0.0, %v5086
        %v5088 = vpop.f32.mrf.mxu0
        %5089 = vmatprep.mubr.f32.mxu0 0.0
        %5090 = vmatmul.mubr.f32.gmra.mxu0 %v4709
        %v5091 = vpop.f32.mrf.mxu0
        %v5092 = vadd.f32 0.0, %v5091
        %v5093 = vpop.f32.mrf.mxu0
        %5094 = vmatprep.mubr.f32.mxu0 0.0
        %5095 = vmatmul.mubr.f32.gmra.mxu0 %v4711
        %v5096 = vpop.f32.mrf.mxu0
        %v5097 = vadd.f32 0.0, %v5096
        %v5098 = vpop.f32.mrf.mxu0
        %5099 = vmatprep.mubr.f32.mxu0 0.0
        %5100 = vmatmul.mubr.f32.gmra.mxu0 %v4713
        %v5101 = vpop.f32.mrf.mxu0
        %v5102 = vadd.f32 0.0, %v5101
        %v5103 = vpop.f32.mrf.mxu0
        %5104 = vmatprep.mubr.f32.mxu0 0.0
        %5105 = vmatmul.mubr.f32.gmra.mxu0 %v4715
        %v5106 = vpop.f32.mrf.mxu0
        %v5107 = vadd.f32 0.0, %v5106
        %v5108 = vpop.f32.mrf.mxu0
        %5109 = vmatprep.mubr.f32.mxu0 0.0
        %5110 = vmatmul.mubr.f32.gmra.mxu0 %v4717
        %v5111 = vpop.f32.mrf.mxu0
        %v5112 = vadd.f32 0.0, %v5111
        %v5113 = vpop.f32.mrf.mxu0
        %5114 = vmatprep.mubr.f32.mxu0 0.0
        %5115 = vmatmul.mubr.f32.gmra.mxu0 %v4719
        %v5116 = vpop.f32.mrf.mxu0
        %v5117 = vadd.f32 0.0, %v5116
        %v5118 = vpop.f32.mrf.mxu0
        %5119 = vmatprep.mubr.f32.mxu0 0.0
        %5120 = vmatmul.mubr.f32.gmra.mxu0 %v4721
        %v5121 = vpop.f32.mrf.mxu0
        %v5122 = vadd.f32 0.0, %v5121
        %v5123 = vpop.f32.mrf.mxu0
        %5124 = vmatprep.mubr.f32.mxu0 0.0
        %5125 = vmatmul.mubr.f32.gmra.mxu0 %v4723
        %v5126 = vpop.f32.mrf.mxu0
        %v5127 = vadd.f32 0.0, %v5126
        %v5128 = vpop.f32.mrf.mxu0
        %5129 = vmatprep.mubr.f32.mxu0 0.0
        %5130 = vmatmul.mubr.f32.gmra.mxu0 %v4725
        %v5131 = vpop.f32.mrf.mxu0
        %v5132 = vadd.f32 0.0, %v5131
        %v5133 = vpop.f32.mrf.mxu0
        %5134 = vmatprep.mubr.f32.mxu0 0.0
        %5135 = vmatmul.mubr.f32.gmra.mxu0 %v4727
        %v5136 = vpop.f32.mrf.mxu0
        %v5137 = vadd.f32 0.0, %v5136
        %v5138 = vpop.f32.mrf.mxu0
        %5139 = vmatprep.mubr.f32.mxu0 0.0
        %5140 = vmatmul.mubr.f32.gmra.mxu0 %v4729
        %v5141 = vpop.f32.mrf.mxu0
        %v5142 = vadd.f32 0.0, %v5141
        %v5143 = vpop.f32.mrf.mxu0
        %5144 = vmatprep.mubr.f32.mxu0 0.0
        %5145 = vmatmul.mubr.f32.gmra.mxu0 %v4731
        %v5146 = vpop.f32.mrf.mxu0
        %v5147 = vadd.f32 0.0, %v5146
        %v5148 = vpop.f32.mrf.mxu0
        %5149 = vmatprep.mubr.f32.mxu0 0.0
        %5150 = vmatmul.mubr.f32.gmra.mxu0 %v4733
        %v5151 = vpop.f32.mrf.mxu0
        %v5152 = vadd.f32 0.0, %v5151
        %v5153 = vpop.f32.mrf.mxu0
        %5154 = vmatprep.mubr.f32.mxu0 0.0
        %5155 = vmatmul.mubr.f32.gmra.mxu0 %v4735
        %v5156 = vpop.f32.mrf.mxu0
        %v5157 = vadd.f32 0.0, %v5156
        %v5158 = vpop.f32.mrf.mxu0
        %5159 = vdwg.mxu0
        %v5160 = vadd.f32 %v4378, %v4807
        %v5161 = vadd.f32 %v4379, %v4812
        %v5162 = vadd.f32 %v4380, %v4817
        %v5163 = vadd.f32 %v4381, %v4822
        %v5164 = vadd.f32 %v4382, %v4827
        %v5165 = vadd.f32 %v4383, %v4832
        %v5166 = vadd.f32 %v4384, %v4837
        %v5167 = vadd.f32 %v4385, %v4842
        %v5168 = vadd.f32 %v4386, %v4847
        %v5169 = vadd.f32 %v4387, %v4852
        %v5170 = vadd.f32 %v4388, %v4857
        %v5171 = vadd.f32 %v4389, %v4862
        %v5172 = vadd.f32 %v4390, %v4867
        %v5173 = vadd.f32 %v4391, %v4872
        %v5174 = vadd.f32 %v4392, %v4877
        %v5175 = vadd.f32 %v4393, %v4882
        %v5176 = vadd.f32 %v4394, %v4887
        %v5177 = vadd.f32 %v4395, %v4892
        %v5178 = vadd.f32 %v4396, %v4897
        %v5179 = vadd.f32 %v4397, %v4902
        %v5180 = vadd.f32 %v4398, %v4907
        %v5181 = vadd.f32 %v4399, %v4912
        %v5182 = vadd.f32 %v4400, %v4917
        %v5183 = vadd.f32 %v4401, %v4922
        %v5184 = vadd.f32 %v4402, %v4927
        %v5185 = vadd.f32 %v4403, %v4932
        %v5186 = vadd.f32 %v4404, %v4937
        %v5187 = vadd.f32 %v4405, %v4942
        %v5188 = vadd.f32 %v4406, %v4947
        %v5189 = vadd.f32 %v4407, %v4952
        %v5190 = vadd.f32 %v4408, %v4957
        %v5191 = vadd.f32 %v4409, %v4962
        %v5192 = vadd.f32 %v4410, %v4967
        %v5193 = vadd.f32 %v4411, %v4972
        %v5194 = vadd.f32 %v4412, %v4977
        %v5195 = vadd.f32 %v4413, %v4982
        %v5196 = vadd.f32 %v4414, %v4987
        %v5197 = vadd.f32 %v4415, %v4992
        %v5198 = vadd.f32 %v4416, %v4997
        %v5199 = vadd.f32 %v4417, %v5002
        %v5200 = vadd.f32 %v4418, %v5007
        %v5201 = vadd.f32 %v4419, %v5012
        %v5202 = vadd.f32 %v4420, %v5017
        %v5203 = vadd.f32 %v4421, %v5022
        %v5204 = vadd.f32 %v4422, %v5027
        %v5205 = vadd.f32 %v4423, %v5032
        %v5206 = vadd.f32 %v4424, %v5037
        %v5207 = vadd.f32 %v4425, %v5042
        %v5208 = vadd.f32 %v4426, %v5047
        %v5209 = vadd.f32 %v4427, %v5052
        %v5210 = vadd.f32 %v4428, %v5057
        %v5211 = vadd.f32 %v4429, %v5062
        %v5212 = vadd.f32 %v4430, %v5067
        %v5213 = vadd.f32 %v4431, %v5072
        %v5214 = vadd.f32 %v4432, %v5077
        %v5215 = vadd.f32 %v4433, %v5082
        %v5216 = vadd.f32 %v4434, %v5087
        %v5217 = vadd.f32 %v4435, %v5092
        %v5218 = vadd.f32 %v4436, %v5097
        %v5219 = vadd.f32 %v4437, %v5102
        %v5220 = vadd.f32 %v4438, %v5107
        %v5221 = vadd.f32 %v4439, %v5112
        %v5222 = vadd.f32 %v4440, %v5117
        %v5223 = vadd.f32 %v4441, %v5122
        %v5224 = vadd.f32 %v4442, %v5127
        %v5225 = vadd.f32 %v4443, %v5132
        %v5226 = vadd.f32 %v4444, %v5137
        %v5227 = vadd.f32 %v4445, %v5142
        %v5228 = vadd.f32 %v4446, %v5147
        %v5229 = vadd.f32 %v4447, %v5152
        %v5230 = vadd.f32 %v4448, %v5157
        %s5231 = scalar_lea.vmem %s3, 120
        %v5232 = vld [vmem:[%s5231] sm:$0xff]
        %v5233 = vld [vmem:[%s5231 + $0x8] sm:$0xff]
        %v5234 = vld [vmem:[%s5231 + $0x10] sm:$0x3f]
        %vm5235 = vcmask 1042432
        %v5236 = vrot.slane %v1178, 5
        %v5237 = vrot.slane %v1183, 5
        %v5238 = vsel %vm5235, %v5236, %v5237
        %v5239 = vrot.slane %v1188, 5
        %v5240 = vsel %vm5235, %v5237, %v5239
        %v5241 = vrot.slane %v1193, 5
        %v5242 = vsel %vm5235, %v5239, %v5241
        %v5243 = vrot.slane %v1198, 5
        %v5244 = vsel %vm5235, %v5241, %v5243
        %v5245 = vrot.slane %v1203, 5
        %v5246 = vsel %vm5235, %v5243, %v5245
        %v5247 = vrot.slane %v1208, 5
        %v5248 = vsel %vm5235, %v5245, %v5247
        %v5249 = vrot.slane %v1213, 5
        %v5250 = vsel %vm5235, %v5247, %v5249
        %v5251 = vrot.slane %v1218, 5
        %v5252 = vsel %vm5235, %v5249, %v5251
        %v5253 = vrot.slane %v1223, 5
        %v5254 = vsel %vm5235, %v5251, %v5253
        %v5255 = vrot.slane %v1228, 5
        %v5256 = vsel %vm5235, %v5253, %v5255
        %v5257 = vrot.slane %v1233, 5
        %v5258 = vsel %vm5235, %v5255, %v5257
        %v5259 = vrot.slane %v1238, 5
        %v5260 = vsel %vm5235, %v5257, %v5259
        %v5261 = vrot.slane %v1243, 5
        %v5262 = vsel %vm5235, %v5259, %v5261
        %v5263 = vrot.slane %v1248, 5
        %v5264 = vsel %vm5235, %v5261, %v5263
        %v5265 = vrot.slane %v1253, 5
        %v5266 = vsel %vm5235, %v5263, %v5265
        %v5267 = vrot.slane %v1258, 5
        %v5268 = vsel %vm5235, %v5265, %v5267
        %v5269 = vrot.slane %v1263, 5
        %v5270 = vsel %vm5235, %v5267, %v5269
        %v5271 = vrot.slane %v1268, 5
        %v5272 = vsel %vm5235, %v5269, %v5271
        %v5273 = vrot.slane %v1273, 5
        %v5274 = vsel %vm5235, %v5271, %v5273
        %v5275 = vrot.slane %v1278, 5
        %v5276 = vsel %vm5235, %v5273, %v5275
        %v5277 = vrot.slane %v1283, 5
        %v5278 = vsel %vm5235, %v5275, %v5277
        %v5279 = vrot.slane %v1288, 5
        %v5280 = vsel %vm5235, %v5277, %v5279
        %v5281 = vrot.slane %v1293, 5
        %v5282 = vsel %vm5235, %v5279, %v5281
        %v5283 = vrot.slane %v1298, 5
        %v5284 = vsel %vm5235, %v5281, %v5283
        %v5285 = vrot.slane %v1303, 5
        %v5286 = vsel %vm5235, %v5283, %v5285
        %v5287 = vrot.slane %v1308, 5
        %v5288 = vsel %vm5235, %v5285, %v5287
        %v5289 = vrot.slane %v1313, 5
        %v5290 = vsel %vm5235, %v5287, %v5289
        %v5291 = vrot.slane %v1318, 5
        %v5292 = vsel %vm5235, %v5289, %v5291
        %v5293 = vrot.slane %v1323, 5
        %v5294 = vsel %vm5235, %v5291, %v5293
        %v5295 = vrot.slane %v1328, 5
        %v5296 = vsel %vm5235, %v5293, %v5295
        %v5297 = vrot.slane %v1333, 5
        %v5298 = vsel %vm5235, %v5295, %v5297
        %v5299 = vrot.slane %v1338, 5
        %v5300 = vsel %vm5235, %v5297, %v5299
        %v5301 = vrot.slane %v1343, 5
        %v5302 = vsel %vm5235, %v5299, %v5301
        %v5303 = vrot.slane %v1348, 5
        %v5304 = vsel %vm5235, %v5301, %v5303
        %v5305 = vrot.slane %v1353, 5
        %v5306 = vsel %vm5235, %v5303, %v5305
        %v5307 = vrot.slane %v1358, 5
        %v5308 = vsel %vm5235, %v5305, %v5307
        %v5309 = vrot.slane %v1363, 5
        %v5310 = vsel %vm5235, %v5307, %v5309
        %v5311 = vrot.slane %v1368, 5
        %v5312 = vsel %vm5235, %v5309, %v5311
        %v5313 = vrot.slane %v1373, 5
        %v5314 = vsel %vm5235, %v5311, %v5313
        %v5315 = vrot.slane %v1378, 5
        %v5316 = vsel %vm5235, %v5313, %v5315
        %v5317 = vrot.slane %v1383, 5
        %v5318 = vsel %vm5235, %v5315, %v5317
        %v5319 = vrot.slane %v1388, 5
        %v5320 = vsel %vm5235, %v5317, %v5319
        %v5321 = vrot.slane %v1393, 5
        %v5322 = vsel %vm5235, %v5319, %v5321
        %v5323 = vrot.slane %v1398, 5
        %v5324 = vsel %vm5235, %v5321, %v5323
        %v5325 = vrot.slane %v1403, 5
        %v5326 = vsel %vm5235, %v5323, %v5325
        %v5327 = vrot.slane %v1408, 5
        %v5328 = vsel %vm5235, %v5325, %v5327
        %v5329 = vrot.slane %v1413, 5
        %v5330 = vsel %vm5235, %v5327, %v5329
        %v5331 = vrot.slane %v1418, 5
        %v5332 = vsel %vm5235, %v5329, %v5331
        %v5333 = vrot.slane %v1423, 5
        %v5334 = vsel %vm5235, %v5331, %v5333
        %v5335 = vrot.slane %v1428, 5
        %v5336 = vsel %vm5235, %v5333, %v5335
        %v5337 = vrot.slane %v1433, 5
        %v5338 = vsel %vm5235, %v5335, %v5337
        %v5339 = vrot.slane %v1438, 5
        %v5340 = vsel %vm5235, %v5337, %v5339
        %v5341 = vrot.slane %v1443, 5
        %v5342 = vsel %vm5235, %v5339, %v5341
        %v5343 = vrot.slane %v1448, 5
        %v5344 = vsel %vm5235, %v5341, %v5343
        %v5345 = vrot.slane %v1453, 5
        %v5346 = vsel %vm5235, %v5343, %v5345
        %v5347 = vrot.slane %v1458, 5
        %v5348 = vsel %vm5235, %v5345, %v5347
        %v5349 = vrot.slane %v1463, 5
        %v5350 = vsel %vm5235, %v5347, %v5349
        %v5351 = vrot.slane %v1468, 5
        %v5352 = vsel %vm5235, %v5349, %v5351
        %v5353 = vrot.slane %v1473, 5
        %v5354 = vsel %vm5235, %v5351, %v5353
        %v5355 = vrot.slane %v1478, 5
        %v5356 = vsel %vm5235, %v5353, %v5355
        %v5357 = vrot.slane %v1483, 5
        %v5358 = vsel %vm5235, %v5355, %v5357
        %v5359 = vrot.slane %v1488, 5
        %v5360 = vsel %vm5235, %v5357, %v5359
        %v5361 = vrot.slane %v1493, 5
        %v5362 = vsel %vm5235, %v5359, %v5361
        %v5363 = vrot.slane %v1498, 5
        %v5364 = vsel %vm5235, %v5361, %v5363
        %v5365 = vrot.slane %v1503, 5
        %v5366 = vsel %vm5235, %v5363, %v5365
        %v5367 = vrot.slane %v1508, 5
        %v5368 = vsel %vm5235, %v5365, %v5367
        %v5369 = vrot.slane %v1513, 5
        %v5370 = vsel %vm5235, %v5367, %v5369
        %v5371 = vrot.slane %v1518, 5
        %v5372 = vsel %vm5235, %v5369, %v5371
        %v5373 = vrot.slane %v1523, 5
        %v5374 = vsel %vm5235, %v5371, %v5373
        %v5375 = vrot.slane %v1528, 5
        %v5376 = vsel %vm5235, %v5373, %v5375
        %v5377 = vsel %vm890, %v5238, 0
        %v5379 = vsel %vm890, %v5240, 0
        %v5381 = vsel %vm890, %v5242, 0
        %v5383 = vsel %vm890, %v5244, 0
        %v5385 = vsel %vm890, %v5246, 0
        %v5387 = vsel %vm890, %v5248, 0
        %v5389 = vsel %vm890, %v5250, 0
        %v5391 = vsel %vm890, %v5252, 0
        %v5393 = vsel %vm890, %v5254, 0
        %v5395 = vsel %vm890, %v5256, 0
        %v5397 = vsel %vm890, %v5258, 0
        %v5399 = vsel %vm890, %v5260, 0
        %v5401 = vsel %vm890, %v5262, 0
        %v5403 = vsel %vm890, %v5264, 0
        %v5405 = vsel %vm890, %v5266, 0
        %v5407 = vsel %vm890, %v5268, 0
        %v5409 = vsel %vm890, %v5270, 0
        %v5411 = vsel %vm890, %v5272, 0
        %v5413 = vsel %vm890, %v5274, 0
        %v5415 = vsel %vm890, %v5276, 0
        %v5417 = vsel %vm890, %v5278, 0
        %v5419 = vsel %vm890, %v5280, 0
        %v5421 = vsel %vm890, %v5282, 0
        %v5423 = vsel %vm890, %v5284, 0
        %v5425 = vsel %vm890, %v5286, 0
        %v5427 = vsel %vm890, %v5288, 0
        %v5429 = vsel %vm890, %v5290, 0
        %v5431 = vsel %vm890, %v5292, 0
        %v5433 = vsel %vm890, %v5294, 0
        %v5435 = vsel %vm890, %v5296, 0
        %v5437 = vsel %vm890, %v5298, 0
        %v5439 = vsel %vm890, %v5300, 0
        %v5441 = vsel %vm890, %v5302, 0
        %v5443 = vsel %vm890, %v5304, 0
        %v5445 = vsel %vm890, %v5306, 0
        %v5447 = vsel %vm890, %v5308, 0
        %v5449 = vsel %vm890, %v5310, 0
        %v5451 = vsel %vm890, %v5312, 0
        %v5453 = vsel %vm890, %v5314, 0
        %v5455 = vsel %vm890, %v5316, 0
        %v5457 = vsel %vm890, %v5318, 0
        %v5459 = vsel %vm890, %v5320, 0
        %v5461 = vsel %vm890, %v5322, 0
        %v5463 = vsel %vm890, %v5324, 0
        %v5465 = vsel %vm890, %v5326, 0
        %v5467 = vsel %vm890, %v5328, 0
        %v5469 = vsel %vm890, %v5330, 0
        %v5471 = vsel %vm890, %v5332, 0
        %v5473 = vsel %vm890, %v5334, 0
        %v5475 = vsel %vm890, %v5336, 0
        %v5477 = vsel %vm890, %v5338, 0
        %v5479 = vsel %vm890, %v5340, 0
        %v5481 = vsel %vm890, %v5342, 0
        %v5483 = vsel %vm890, %v5344, 0
        %v5485 = vsel %vm890, %v5346, 0
        %v5487 = vsel %vm890, %v5348, 0
        %v5489 = vsel %vm890, %v5350, 0
        %v5491 = vsel %vm890, %v5352, 0
        %v5493 = vsel %vm890, %v5354, 0
        %v5495 = vsel %vm890, %v5356, 0
        %v5497 = vsel %vm890, %v5358, 0
        %v5499 = vsel %vm890, %v5360, 0
        %v5501 = vsel %vm890, %v5362, 0
        %v5503 = vsel %vm890, %v5364, 0
        %v5505 = vsel %vm890, %v5366, 0
        %v5507 = vsel %vm890, %v5368, 0
        %v5509 = vsel %vm890, %v5370, 0
        %v5511 = vsel %vm890, %v5372, 0
        %v5513 = vsel %vm890, %v5374, 0
        %v5515 = vsel %vm890, %v5376, 0
        %v5517 = vsel %vm890, %v5375, 0
        %v5520 = vsel %vm1107, %v5234, 0
        %5522 = vmatprep.subr.mxu0 0.0
        %5523 = vmatpush1.msra.mxu0 0.0
        %5524 = vmatprep.subr.mxu0 0.0
        %5525 = vmatpush1.msra.mxu0 0.0
        %5526 = vmatprep.subr.mxu0 0.0
        %5527 = vmatpush1.msra.mxu0 0.0
        %5528 = vmatprep.subr.mxu0 0.0
        %5529 = vmatpush1.msra.mxu0 0.0
        %5530 = vmatprep.subr.mxu0 0.0
        %5531 = vmatpush1.msra.mxu0 0.0
        %5532 = vmatprep.subr.mxu0 0.0
        %5533 = vmatpush1.msra.mxu0 0.0
        %5534 = vmatprep.subr.mxu0 0.0
        %5535 = vmatpush1.msra.mxu0 0.0
        %5536 = vmatprep.subr.mxu0 0.0
        %5537 = vmatpush1.msra.mxu0 0.0
        %5538 = vmatprep.subr.mxu0 0.0
        %5539 = vmatpush1.msra.mxu0 0.0
        %5540 = vmatprep.subr.mxu0 0.0
        %5541 = vmatpush1.msra.mxu0 0.0
        %5542 = vmatprep.subr.mxu0 0.0
        %5543 = vmatpush1.msra.mxu0 0.0
        %5544 = vmatprep.subr.mxu0 0.0
        %5545 = vmatpush1.msra.mxu0 0.0
        %5546 = vmatprep.subr.mxu0 0.0
        %5547 = vmatpush1.msra.mxu0 0.0
        %5548 = vmatprep.subr.mxu0 0.0
        %5549 = vmatpush1.msra.mxu0 %v5520
        %5550 = vmatprep.subr.mxu0 0.0
        %5551 = vmatpush1.msra.mxu0 %v5233
        %5552 = vmatprep.subr.mxu0 0.0
        %5553 = vmatpush1.msra.mxu0 %v5232
        %5554 = vmatprep.subr.mxu0 0.0
        %5555 = vmatpush2.msra.mxu0 0.0
        %5556 = vmatprep.subr.mxu0 0.0
        %5557 = vmatpush2.msra.mxu0 0.0
        %5558 = vmatprep.subr.mxu0 0.0
        %5559 = vmatpush2.msra.mxu0 0.0
        %5560 = vmatprep.subr.mxu0 0.0
        %5561 = vmatpush2.msra.mxu0 0.0
        %5562 = vmatprep.subr.mxu0 0.0
        %5563 = vmatpush2.msra.mxu0 0.0
        %5564 = vmatprep.subr.mxu0 0.0
        %5565 = vmatpush2.msra.mxu0 0.0
        %5566 = vmatprep.subr.mxu0 0.0
        %5567 = vmatpush2.msra.mxu0 0.0
        %5568 = vmatprep.subr.mxu0 0.0
        %5569 = vmatpush2.msra.mxu0 0.0
        %5570 = vmatprep.subr.mxu0 0.0
        %5571 = vmatpush2.msra.mxu0 0.0
        %5572 = vmatprep.subr.mxu0 0.0
        %5573 = vmatpush2.msra.mxu0 0.0
        %5574 = vmatprep.subr.mxu0 0.0
        %5575 = vmatpush2.msra.mxu0 0.0
        %5576 = vmatprep.subr.mxu0 0.0
        %5577 = vmatpush2.msra.mxu0 0.0
        %5578 = vmatprep.subr.mxu0 0.0
        %5579 = vmatpush2.msra.mxu0 0.0
        %5580 = vmatprep.subr.mxu0 0.0
        %5581 = vmatpush2.msra.mxu0 0.0
        %5582 = vmatprep.subr.mxu0 0.0
        %5583 = vmatpush2.msra.mxu0 0.0
        %5584 = vmatprep.subr.mxu0 0.0
        %5585 = vmatpush2.msra.mxu0 0.0
        %5586 = vmatprep.mubr.f32.mxu0 0.0
        %5587 = vmatmul.mubr.f32.gmra.mxu0 %v5377
        %v5588 = vpop.f32.mrf.mxu0
        %v5589 = vadd.f32 0.0, %v5588
        %v5590 = vpop.f32.mrf.mxu0
        %5591 = vmatprep.mubr.f32.mxu0 0.0
        %5592 = vmatmul.mubr.f32.gmra.mxu0 %v5379
        %v5593 = vpop.f32.mrf.mxu0
        %v5594 = vadd.f32 0.0, %v5593
        %v5595 = vpop.f32.mrf.mxu0
        %5596 = vmatprep.mubr.f32.mxu0 0.0
        %5597 = vmatmul.mubr.f32.gmra.mxu0 %v5381
        %v5598 = vpop.f32.mrf.mxu0
        %v5599 = vadd.f32 0.0, %v5598
        %v5600 = vpop.f32.mrf.mxu0
        %5601 = vmatprep.mubr.f32.mxu0 0.0
        %5602 = vmatmul.mubr.f32.gmra.mxu0 %v5383
        %v5603 = vpop.f32.mrf.mxu0
        %v5604 = vadd.f32 0.0, %v5603
        %v5605 = vpop.f32.mrf.mxu0
        %5606 = vmatprep.mubr.f32.mxu0 0.0
        %5607 = vmatmul.mubr.f32.gmra.mxu0 %v5385
        %v5608 = vpop.f32.mrf.mxu0
        %v5609 = vadd.f32 0.0, %v5608
        %v5610 = vpop.f32.mrf.mxu0
        %5611 = vmatprep.mubr.f32.mxu0 0.0
        %5612 = vmatmul.mubr.f32.gmra.mxu0 %v5387
        %v5613 = vpop.f32.mrf.mxu0
        %v5614 = vadd.f32 0.0, %v5613
        %v5615 = vpop.f32.mrf.mxu0
        %5616 = vmatprep.mubr.f32.mxu0 0.0
        %5617 = vmatmul.mubr.f32.gmra.mxu0 %v5389
        %v5618 = vpop.f32.mrf.mxu0
        %v5619 = vadd.f32 0.0, %v5618
        %v5620 = vpop.f32.mrf.mxu0
        %5621 = vmatprep.mubr.f32.mxu0 0.0
        %5622 = vmatmul.mubr.f32.gmra.mxu0 %v5391
        %v5623 = vpop.f32.mrf.mxu0
        %v5624 = vadd.f32 0.0, %v5623
        %v5625 = vpop.f32.mrf.mxu0
        %5626 = vmatprep.mubr.f32.mxu0 0.0
        %5627 = vmatmul.mubr.f32.gmra.mxu0 %v5393
        %v5628 = vpop.f32.mrf.mxu0
        %v5629 = vadd.f32 0.0, %v5628
        %v5630 = vpop.f32.mrf.mxu0
        %5631 = vmatprep.mubr.f32.mxu0 0.0
        %5632 = vmatmul.mubr.f32.gmra.mxu0 %v5395
        %v5633 = vpop.f32.mrf.mxu0
        %v5634 = vadd.f32 0.0, %v5633
        %v5635 = vpop.f32.mrf.mxu0
        %5636 = vmatprep.mubr.f32.mxu0 0.0
        %5637 = vmatmul.mubr.f32.gmra.mxu0 %v5397
        %v5638 = vpop.f32.mrf.mxu0
        %v5639 = vadd.f32 0.0, %v5638
        %v5640 = vpop.f32.mrf.mxu0
        %5641 = vmatprep.mubr.f32.mxu0 0.0
        %5642 = vmatmul.mubr.f32.gmra.mxu0 %v5399
        %v5643 = vpop.f32.mrf.mxu0
        %v5644 = vadd.f32 0.0, %v5643
        %v5645 = vpop.f32.mrf.mxu0
        %5646 = vmatprep.mubr.f32.mxu0 0.0
        %5647 = vmatmul.mubr.f32.gmra.mxu0 %v5401
        %v5648 = vpop.f32.mrf.mxu0
        %v5649 = vadd.f32 0.0, %v5648
        %v5650 = vpop.f32.mrf.mxu0
        %5651 = vmatprep.mubr.f32.mxu0 0.0
        %5652 = vmatmul.mubr.f32.gmra.mxu0 %v5403
        %v5653 = vpop.f32.mrf.mxu0
        %v5654 = vadd.f32 0.0, %v5653
        %v5655 = vpop.f32.mrf.mxu0
        %5656 = vmatprep.mubr.f32.mxu0 0.0
        %5657 = vmatmul.mubr.f32.gmra.mxu0 %v5405
        %v5658 = vpop.f32.mrf.mxu0
        %v5659 = vadd.f32 0.0, %v5658
        %v5660 = vpop.f32.mrf.mxu0
        %5661 = vmatprep.mubr.f32.mxu0 0.0
        %5662 = vmatmul.mubr.f32.gmra.mxu0 %v5407
        %v5663 = vpop.f32.mrf.mxu0
        %v5664 = vadd.f32 0.0, %v5663
        %v5665 = vpop.f32.mrf.mxu0
        %5666 = vmatprep.mubr.f32.mxu0 0.0
        %5667 = vmatmul.mubr.f32.gmra.mxu0 %v5409
        %v5668 = vpop.f32.mrf.mxu0
        %v5669 = vadd.f32 0.0, %v5668
        %v5670 = vpop.f32.mrf.mxu0
        %5671 = vmatprep.mubr.f32.mxu0 0.0
        %5672 = vmatmul.mubr.f32.gmra.mxu0 %v5411
        %v5673 = vpop.f32.mrf.mxu0
        %v5674 = vadd.f32 0.0, %v5673
        %v5675 = vpop.f32.mrf.mxu0
        %5676 = vmatprep.mubr.f32.mxu0 0.0
        %5677 = vmatmul.mubr.f32.gmra.mxu0 %v5413
        %v5678 = vpop.f32.mrf.mxu0
        %v5679 = vadd.f32 0.0, %v5678
        %v5680 = vpop.f32.mrf.mxu0
        %5681 = vmatprep.mubr.f32.mxu0 0.0
        %5682 = vmatmul.mubr.f32.gmra.mxu0 %v5415
        %v5683 = vpop.f32.mrf.mxu0
        %v5684 = vadd.f32 0.0, %v5683
        %v5685 = vpop.f32.mrf.mxu0
        %5686 = vmatprep.mubr.f32.mxu0 0.0
        %5687 = vmatmul.mubr.f32.gmra.mxu0 %v5417
        %v5688 = vpop.f32.mrf.mxu0
        %v5689 = vadd.f32 0.0, %v5688
        %v5690 = vpop.f32.mrf.mxu0
        %5691 = vmatprep.mubr.f32.mxu0 0.0
        %5692 = vmatmul.mubr.f32.gmra.mxu0 %v5419
        %v5693 = vpop.f32.mrf.mxu0
        %v5694 = vadd.f32 0.0, %v5693
        %v5695 = vpop.f32.mrf.mxu0
        %5696 = vmatprep.mubr.f32.mxu0 0.0
        %5697 = vmatmul.mubr.f32.gmra.mxu0 %v5421
        %v5698 = vpop.f32.mrf.mxu0
        %v5699 = vadd.f32 0.0, %v5698
        %v5700 = vpop.f32.mrf.mxu0
        %5701 = vmatprep.mubr.f32.mxu0 0.0
        %5702 = vmatmul.mubr.f32.gmra.mxu0 %v5423
        %v5703 = vpop.f32.mrf.mxu0
        %v5704 = vadd.f32 0.0, %v5703
        %v5705 = vpop.f32.mrf.mxu0
        %5706 = vmatprep.mubr.f32.mxu0 0.0
        %5707 = vmatmul.mubr.f32.gmra.mxu0 %v5425
        %v5708 = vpop.f32.mrf.mxu0
        %v5709 = vadd.f32 0.0, %v5708
        %v5710 = vpop.f32.mrf.mxu0
        %5711 = vmatprep.mubr.f32.mxu0 0.0
        %5712 = vmatmul.mubr.f32.gmra.mxu0 %v5427
        %v5713 = vpop.f32.mrf.mxu0
        %v5714 = vadd.f32 0.0, %v5713
        %v5715 = vpop.f32.mrf.mxu0
        %5716 = vmatprep.mubr.f32.mxu0 0.0
        %5717 = vmatmul.mubr.f32.gmra.mxu0 %v5429
        %v5718 = vpop.f32.mrf.mxu0
        %v5719 = vadd.f32 0.0, %v5718
        %v5720 = vpop.f32.mrf.mxu0
        %5721 = vmatprep.mubr.f32.mxu0 0.0
        %5722 = vmatmul.mubr.f32.gmra.mxu0 %v5431
        %v5723 = vpop.f32.mrf.mxu0
        %v5724 = vadd.f32 0.0, %v5723
        %v5725 = vpop.f32.mrf.mxu0
        %5726 = vmatprep.mubr.f32.mxu0 0.0
        %5727 = vmatmul.mubr.f32.gmra.mxu0 %v5433
        %v5728 = vpop.f32.mrf.mxu0
        %v5729 = vadd.f32 0.0, %v5728
        %v5730 = vpop.f32.mrf.mxu0
        %5731 = vmatprep.mubr.f32.mxu0 0.0
        %5732 = vmatmul.mubr.f32.gmra.mxu0 %v5435
        %v5733 = vpop.f32.mrf.mxu0
        %v5734 = vadd.f32 0.0, %v5733
        %v5735 = vpop.f32.mrf.mxu0
        %5736 = vmatprep.mubr.f32.mxu0 0.0
        %5737 = vmatmul.mubr.f32.gmra.mxu0 %v5437
        %v5738 = vpop.f32.mrf.mxu0
        %v5739 = vadd.f32 0.0, %v5738
        %v5740 = vpop.f32.mrf.mxu0
        %5741 = vmatprep.mubr.f32.mxu0 0.0
        %5742 = vmatmul.mubr.f32.gmra.mxu0 %v5439
        %v5743 = vpop.f32.mrf.mxu0
        %v5744 = vadd.f32 0.0, %v5743
        %v5745 = vpop.f32.mrf.mxu0
        %5746 = vmatprep.mubr.f32.mxu0 0.0
        %5747 = vmatmul.mubr.f32.gmra.mxu0 %v5441
        %v5748 = vpop.f32.mrf.mxu0
        %v5749 = vadd.f32 0.0, %v5748
        %v5750 = vpop.f32.mrf.mxu0
        %5751 = vmatprep.mubr.f32.mxu0 0.0
        %5752 = vmatmul.mubr.f32.gmra.mxu0 %v5443
        %v5753 = vpop.f32.mrf.mxu0
        %v5754 = vadd.f32 0.0, %v5753
        %v5755 = vpop.f32.mrf.mxu0
        %5756 = vmatprep.mubr.f32.mxu0 0.0
        %5757 = vmatmul.mubr.f32.gmra.mxu0 %v5445
        %v5758 = vpop.f32.mrf.mxu0
        %v5759 = vadd.f32 0.0, %v5758
        %v5760 = vpop.f32.mrf.mxu0
        %5761 = vmatprep.mubr.f32.mxu0 0.0
        %5762 = vmatmul.mubr.f32.gmra.mxu0 %v5447
        %v5763 = vpop.f32.mrf.mxu0
        %v5764 = vadd.f32 0.0, %v5763
        %v5765 = vpop.f32.mrf.mxu0
        %5766 = vmatprep.mubr.f32.mxu0 0.0
        %5767 = vmatmul.mubr.f32.gmra.mxu0 %v5449
        %v5768 = vpop.f32.mrf.mxu0
        %v5769 = vadd.f32 0.0, %v5768
        %v5770 = vpop.f32.mrf.mxu0
        %5771 = vmatprep.mubr.f32.mxu0 0.0
        %5772 = vmatmul.mubr.f32.gmra.mxu0 %v5451
        %v5773 = vpop.f32.mrf.mxu0
        %v5774 = vadd.f32 0.0, %v5773
        %v5775 = vpop.f32.mrf.mxu0
        %5776 = vmatprep.mubr.f32.mxu0 0.0
        %5777 = vmatmul.mubr.f32.gmra.mxu0 %v5453
        %v5778 = vpop.f32.mrf.mxu0
        %v5779 = vadd.f32 0.0, %v5778
        %v5780 = vpop.f32.mrf.mxu0
        %5781 = vmatprep.mubr.f32.mxu0 0.0
        %5782 = vmatmul.mubr.f32.gmra.mxu0 %v5455
        %v5783 = vpop.f32.mrf.mxu0
        %v5784 = vadd.f32 0.0, %v5783
        %v5785 = vpop.f32.mrf.mxu0
        %5786 = vmatprep.mubr.f32.mxu0 0.0
        %5787 = vmatmul.mubr.f32.gmra.mxu0 %v5457
        %v5788 = vpop.f32.mrf.mxu0
        %v5789 = vadd.f32 0.0, %v5788
        %v5790 = vpop.f32.mrf.mxu0
        %5791 = vmatprep.mubr.f32.mxu0 0.0
        %5792 = vmatmul.mubr.f32.gmra.mxu0 %v5459
        %v5793 = vpop.f32.mrf.mxu0
        %v5794 = vadd.f32 0.0, %v5793
        %v5795 = vpop.f32.mrf.mxu0
        %5796 = vmatprep.mubr.f32.mxu0 0.0
        %5797 = vmatmul.mubr.f32.gmra.mxu0 %v5461
        %v5798 = vpop.f32.mrf.mxu0
        %v5799 = vadd.f32 0.0, %v5798
        %v5800 = vpop.f32.mrf.mxu0
        %5801 = vmatprep.mubr.f32.mxu0 0.0
        %5802 = vmatmul.mubr.f32.gmra.mxu0 %v5463
        %v5803 = vpop.f32.mrf.mxu0
        %v5804 = vadd.f32 0.0, %v5803
        %v5805 = vpop.f32.mrf.mxu0
        %5806 = vmatprep.mubr.f32.mxu0 0.0
        %5807 = vmatmul.mubr.f32.gmra.mxu0 %v5465
        %v5808 = vpop.f32.mrf.mxu0
        %v5809 = vadd.f32 0.0, %v5808
        %v5810 = vpop.f32.mrf.mxu0
        %5811 = vmatprep.mubr.f32.mxu0 0.0
        %5812 = vmatmul.mubr.f32.gmra.mxu0 %v5467
        %v5813 = vpop.f32.mrf.mxu0
        %v5814 = vadd.f32 0.0, %v5813
        %v5815 = vpop.f32.mrf.mxu0
        %5816 = vmatprep.mubr.f32.mxu0 0.0
        %5817 = vmatmul.mubr.f32.gmra.mxu0 %v5469
        %v5818 = vpop.f32.mrf.mxu0
        %v5819 = vadd.f32 0.0, %v5818
        %v5820 = vpop.f32.mrf.mxu0
        %5821 = vmatprep.mubr.f32.mxu0 0.0
        %5822 = vmatmul.mubr.f32.gmra.mxu0 %v5471
        %v5823 = vpop.f32.mrf.mxu0
        %v5824 = vadd.f32 0.0, %v5823
        %v5825 = vpop.f32.mrf.mxu0
        %5826 = vmatprep.mubr.f32.mxu0 0.0
        %5827 = vmatmul.mubr.f32.gmra.mxu0 %v5473
        %v5828 = vpop.f32.mrf.mxu0
        %v5829 = vadd.f32 0.0, %v5828
        %v5830 = vpop.f32.mrf.mxu0
        %5831 = vmatprep.mubr.f32.mxu0 0.0
        %5832 = vmatmul.mubr.f32.gmra.mxu0 %v5475
        %v5833 = vpop.f32.mrf.mxu0
        %v5834 = vadd.f32 0.0, %v5833
        %v5835 = vpop.f32.mrf.mxu0
        %5836 = vmatprep.mubr.f32.mxu0 0.0
        %5837 = vmatmul.mubr.f32.gmra.mxu0 %v5477
        %v5838 = vpop.f32.mrf.mxu0
        %v5839 = vadd.f32 0.0, %v5838
        %v5840 = vpop.f32.mrf.mxu0
        %5841 = vmatprep.mubr.f32.mxu0 0.0
        %5842 = vmatmul.mubr.f32.gmra.mxu0 %v5479
        %v5843 = vpop.f32.mrf.mxu0
        %v5844 = vadd.f32 0.0, %v5843
        %v5845 = vpop.f32.mrf.mxu0
        %5846 = vmatprep.mubr.f32.mxu0 0.0
        %5847 = vmatmul.mubr.f32.gmra.mxu0 %v5481
        %v5848 = vpop.f32.mrf.mxu0
        %v5849 = vadd.f32 0.0, %v5848
        %v5850 = vpop.f32.mrf.mxu0
        %5851 = vmatprep.mubr.f32.mxu0 0.0
        %5852 = vmatmul.mubr.f32.gmra.mxu0 %v5483
        %v5853 = vpop.f32.mrf.mxu0
        %v5854 = vadd.f32 0.0, %v5853
        %v5855 = vpop.f32.mrf.mxu0
        %5856 = vmatprep.mubr.f32.mxu0 0.0
        %5857 = vmatmul.mubr.f32.gmra.mxu0 %v5485
        %v5858 = vpop.f32.mrf.mxu0
        %v5859 = vadd.f32 0.0, %v5858
        %v5860 = vpop.f32.mrf.mxu0
        %5861 = vmatprep.mubr.f32.mxu0 0.0
        %5862 = vmatmul.mubr.f32.gmra.mxu0 %v5487
        %v5863 = vpop.f32.mrf.mxu0
        %v5864 = vadd.f32 0.0, %v5863
        %v5865 = vpop.f32.mrf.mxu0
        %5866 = vmatprep.mubr.f32.mxu0 0.0
        %5867 = vmatmul.mubr.f32.gmra.mxu0 %v5489
        %v5868 = vpop.f32.mrf.mxu0
        %v5869 = vadd.f32 0.0, %v5868
        %v5870 = vpop.f32.mrf.mxu0
        %5871 = vmatprep.mubr.f32.mxu0 0.0
        %5872 = vmatmul.mubr.f32.gmra.mxu0 %v5491
        %v5873 = vpop.f32.mrf.mxu0
        %v5874 = vadd.f32 0.0, %v5873
        %v5875 = vpop.f32.mrf.mxu0
        %5876 = vmatprep.mubr.f32.mxu0 0.0
        %5877 = vmatmul.mubr.f32.gmra.mxu0 %v5493
        %v5878 = vpop.f32.mrf.mxu0
        %v5879 = vadd.f32 0.0, %v5878
        %v5880 = vpop.f32.mrf.mxu0
        %5881 = vmatprep.mubr.f32.mxu0 0.0
        %5882 = vmatmul.mubr.f32.gmra.mxu0 %v5495
        %v5883 = vpop.f32.mrf.mxu0
        %v5884 = vadd.f32 0.0, %v5883
        %v5885 = vpop.f32.mrf.mxu0
        %5886 = vmatprep.mubr.f32.mxu0 0.0
        %5887 = vmatmul.mubr.f32.gmra.mxu0 %v5497
        %v5888 = vpop.f32.mrf.mxu0
        %v5889 = vadd.f32 0.0, %v5888
        %v5890 = vpop.f32.mrf.mxu0
        %5891 = vmatprep.mubr.f32.mxu0 0.0
        %5892 = vmatmul.mubr.f32.gmra.mxu0 %v5499
        %v5893 = vpop.f32.mrf.mxu0
        %v5894 = vadd.f32 0.0, %v5893
        %v5895 = vpop.f32.mrf.mxu0
        %5896 = vmatprep.mubr.f32.mxu0 0.0
        %5897 = vmatmul.mubr.f32.gmra.mxu0 %v5501
        %v5898 = vpop.f32.mrf.mxu0
        %v5899 = vadd.f32 0.0, %v5898
        %v5900 = vpop.f32.mrf.mxu0
        %5901 = vmatprep.mubr.f32.mxu0 0.0
        %5902 = vmatmul.mubr.f32.gmra.mxu0 %v5503
        %v5903 = vpop.f32.mrf.mxu0
        %v5904 = vadd.f32 0.0, %v5903
        %v5905 = vpop.f32.mrf.mxu0
        %5906 = vmatprep.mubr.f32.mxu0 0.0
        %5907 = vmatmul.mubr.f32.gmra.mxu0 %v5505
        %v5908 = vpop.f32.mrf.mxu0
        %v5909 = vadd.f32 0.0, %v5908
        %v5910 = vpop.f32.mrf.mxu0
        %5911 = vmatprep.mubr.f32.mxu0 0.0
        %5912 = vmatmul.mubr.f32.gmra.mxu0 %v5507
        %v5913 = vpop.f32.mrf.mxu0
        %v5914 = vadd.f32 0.0, %v5913
        %v5915 = vpop.f32.mrf.mxu0
        %5916 = vmatprep.mubr.f32.mxu0 0.0
        %5917 = vmatmul.mubr.f32.gmra.mxu0 %v5509
        %v5918 = vpop.f32.mrf.mxu0
        %v5919 = vadd.f32 0.0, %v5918
        %v5920 = vpop.f32.mrf.mxu0
        %5921 = vmatprep.mubr.f32.mxu0 0.0
        %5922 = vmatmul.mubr.f32.gmra.mxu0 %v5511
        %v5923 = vpop.f32.mrf.mxu0
        %v5924 = vadd.f32 0.0, %v5923
        %v5925 = vpop.f32.mrf.mxu0
        %5926 = vmatprep.mubr.f32.mxu0 0.0
        %5927 = vmatmul.mubr.f32.gmra.mxu0 %v5513
        %v5928 = vpop.f32.mrf.mxu0
        %v5929 = vadd.f32 0.0, %v5928
        %v5930 = vpop.f32.mrf.mxu0
        %5931 = vmatprep.mubr.f32.mxu0 0.0
        %5932 = vmatmul.mubr.f32.gmra.mxu0 %v5515
        %v5933 = vpop.f32.mrf.mxu0
        %v5934 = vadd.f32 0.0, %v5933
        %v5935 = vpop.f32.mrf.mxu0
        %5936 = vmatprep.mubr.f32.mxu0 0.0
        %5937 = vmatmul.mubr.f32.gmra.mxu0 %v5517
        %v5938 = vpop.f32.mrf.mxu0
        %v5939 = vadd.f32 0.0, %v5938
        %v5940 = vpop.f32.mrf.mxu0
        %5941 = vdwg.mxu0
        %v5942 = vadd.f32 %v5160, %v5589
        %v5943 = vadd.f32 %v5161, %v5594
        %v5944 = vadd.f32 %v5162, %v5599
        %v5945 = vadd.f32 %v5163, %v5604
        %v5946 = vadd.f32 %v5164, %v5609
        %v5947 = vadd.f32 %v5165, %v5614
        %v5948 = vadd.f32 %v5166, %v5619
        %v5949 = vadd.f32 %v5167, %v5624
        %v5950 = vadd.f32 %v5168, %v5629
        %v5951 = vadd.f32 %v5169, %v5634
        %v5952 = vadd.f32 %v5170, %v5639
        %v5953 = vadd.f32 %v5171, %v5644
        %v5954 = vadd.f32 %v5172, %v5649
        %v5955 = vadd.f32 %v5173, %v5654
        %v5956 = vadd.f32 %v5174, %v5659
        %v5957 = vadd.f32 %v5175, %v5664
        %v5958 = vadd.f32 %v5176, %v5669
        %v5959 = vadd.f32 %v5177, %v5674
        %v5960 = vadd.f32 %v5178, %v5679
        %v5961 = vadd.f32 %v5179, %v5684
        %v5962 = vadd.f32 %v5180, %v5689
        %v5963 = vadd.f32 %v5181, %v5694
        %v5964 = vadd.f32 %v5182, %v5699
        %v5965 = vadd.f32 %v5183, %v5704
        %v5966 = vadd.f32 %v5184, %v5709
        %v5967 = vadd.f32 %v5185, %v5714
        %v5968 = vadd.f32 %v5186, %v5719
        %v5969 = vadd.f32 %v5187, %v5724
        %v5970 = vadd.f32 %v5188, %v5729
        %v5971 = vadd.f32 %v5189, %v5734
        %v5972 = vadd.f32 %v5190, %v5739
        %v5973 = vadd.f32 %v5191, %v5744
        %v5974 = vadd.f32 %v5192, %v5749
        %v5975 = vadd.f32 %v5193, %v5754
        %v5976 = vadd.f32 %v5194, %v5759
        %v5977 = vadd.f32 %v5195, %v5764
        %v5978 = vadd.f32 %v5196, %v5769
        %v5979 = vadd.f32 %v5197, %v5774
        %v5980 = vadd.f32 %v5198, %v5779
        %v5981 = vadd.f32 %v5199, %v5784
        %v5982 = vadd.f32 %v5200, %v5789
        %v5983 = vadd.f32 %v5201, %v5794
        %v5984 = vadd.f32 %v5202, %v5799
        %v5985 = vadd.f32 %v5203, %v5804
        %v5986 = vadd.f32 %v5204, %v5809
        %v5987 = vadd.f32 %v5205, %v5814
        %v5988 = vadd.f32 %v5206, %v5819
        %v5989 = vadd.f32 %v5207, %v5824
        %v5990 = vadd.f32 %v5208, %v5829
        %v5991 = vadd.f32 %v5209, %v5834
        %v5992 = vadd.f32 %v5210, %v5839
        %v5993 = vadd.f32 %v5211, %v5844
        %v5994 = vadd.f32 %v5212, %v5849
        %v5995 = vadd.f32 %v5213, %v5854
        %v5996 = vadd.f32 %v5214, %v5859
        %v5997 = vadd.f32 %v5215, %v5864
        %v5998 = vadd.f32 %v5216, %v5869
        %v5999 = vadd.f32 %v5217, %v5874
        %v6000 = vadd.f32 %v5218, %v5879
        %v6001 = vadd.f32 %v5219, %v5884
        %v6002 = vadd.f32 %v5220, %v5889
        %v6003 = vadd.f32 %v5221, %v5894
        %v6004 = vadd.f32 %v5222, %v5899
        %v6005 = vadd.f32 %v5223, %v5904
        %v6006 = vadd.f32 %v5224, %v5909
        %v6007 = vadd.f32 %v5225, %v5914
        %v6008 = vadd.f32 %v5226, %v5919
        %v6009 = vadd.f32 %v5227, %v5924
        %v6010 = vadd.f32 %v5228, %v5929
        %v6011 = vadd.f32 %v5229, %v5934
        %v6012 = vadd.f32 %v5230, %v5939
        %s6013 = scalar_lea.vmem %s3, 144
        %v6014 = vld [vmem:[%s6013] sm:$0xff]
        %v6015 = vld [vmem:[%s6013 + $0x8] sm:$0xff]
        %v6016 = vld [vmem:[%s6013 + $0x10] sm:$0x3f]
        %vm6018 = vcmask 1041408
        %v6019 = vrot.slane %v1178, 6
        %v6020 = vrot.slane %v1183, 6
        %v6021 = vsel %vm6018, %v6019, %v6020
        %v6022 = vrot.slane %v1188, 6
        %v6023 = vsel %vm6018, %v6020, %v6022
        %v6024 = vrot.slane %v1193, 6
        %v6025 = vsel %vm6018, %v6022, %v6024
        %v6026 = vrot.slane %v1198, 6
        %v6027 = vsel %vm6018, %v6024, %v6026
        %v6028 = vrot.slane %v1203, 6
        %v6029 = vsel %vm6018, %v6026, %v6028
        %v6030 = vrot.slane %v1208, 6
        %v6031 = vsel %vm6018, %v6028, %v6030
        %v6032 = vrot.slane %v1213, 6
        %v6033 = vsel %vm6018, %v6030, %v6032
        %v6034 = vrot.slane %v1218, 6
        %v6035 = vsel %vm6018, %v6032, %v6034
        %v6036 = vrot.slane %v1223, 6
        %v6037 = vsel %vm6018, %v6034, %v6036
        %v6038 = vrot.slane %v1228, 6
        %v6039 = vsel %vm6018, %v6036, %v6038
        %v6040 = vrot.slane %v1233, 6
        %v6041 = vsel %vm6018, %v6038, %v6040
        %v6042 = vrot.slane %v1238, 6
        %v6043 = vsel %vm6018, %v6040, %v6042
        %v6044 = vrot.slane %v1243, 6
        %v6045 = vsel %vm6018, %v6042, %v6044
        %v6046 = vrot.slane %v1248, 6
        %v6047 = vsel %vm6018, %v6044, %v6046
        %v6048 = vrot.slane %v1253, 6
        %v6049 = vsel %vm6018, %v6046, %v6048
        %v6050 = vrot.slane %v1258, 6
        %v6051 = vsel %vm6018, %v6048, %v6050
        %v6052 = vrot.slane %v1263, 6
        %v6053 = vsel %vm6018, %v6050, %v6052
        %v6054 = vrot.slane %v1268, 6
        %v6055 = vsel %vm6018, %v6052, %v6054
        %v6056 = vrot.slane %v1273, 6
        %v6057 = vsel %vm6018, %v6054, %v6056
        %v6058 = vrot.slane %v1278, 6
        %v6059 = vsel %vm6018, %v6056, %v6058
        %v6060 = vrot.slane %v1283, 6
        %v6061 = vsel %vm6018, %v6058, %v6060
        %v6062 = vrot.slane %v1288, 6
        %v6063 = vsel %vm6018, %v6060, %v6062
        %v6064 = vrot.slane %v1293, 6
        %v6065 = vsel %vm6018, %v6062, %v6064
        %v6066 = vrot.slane %v1298, 6
        %v6067 = vsel %vm6018, %v6064, %v6066
        %v6068 = vrot.slane %v1303, 6
        %v6069 = vsel %vm6018, %v6066, %v6068
        %v6070 = vrot.slane %v1308, 6
        %v6071 = vsel %vm6018, %v6068, %v6070
        %v6072 = vrot.slane %v1313, 6
        %v6073 = vsel %vm6018, %v6070, %v6072
        %v6074 = vrot.slane %v1318, 6
        %v6075 = vsel %vm6018, %v6072, %v6074
        %v6076 = vrot.slane %v1323, 6
        %v6077 = vsel %vm6018, %v6074, %v6076
        %v6078 = vrot.slane %v1328, 6
        %v6079 = vsel %vm6018, %v6076, %v6078
        %v6080 = vrot.slane %v1333, 6
        %v6081 = vsel %vm6018, %v6078, %v6080
        %v6082 = vrot.slane %v1338, 6
        %v6083 = vsel %vm6018, %v6080, %v6082
        %v6084 = vrot.slane %v1343, 6
        %v6085 = vsel %vm6018, %v6082, %v6084
        %v6086 = vrot.slane %v1348, 6
        %v6087 = vsel %vm6018, %v6084, %v6086
        %v6088 = vrot.slane %v1353, 6
        %v6089 = vsel %vm6018, %v6086, %v6088
        %v6090 = vrot.slane %v1358, 6
        %v6091 = vsel %vm6018, %v6088, %v6090
        %v6092 = vrot.slane %v1363, 6
        %v6093 = vsel %vm6018, %v6090, %v6092
        %v6094 = vrot.slane %v1368, 6
        %v6095 = vsel %vm6018, %v6092, %v6094
        %v6096 = vrot.slane %v1373, 6
        %v6097 = vsel %vm6018, %v6094, %v6096
        %v6098 = vrot.slane %v1378, 6
        %v6099 = vsel %vm6018, %v6096, %v6098
        %v6100 = vrot.slane %v1383, 6
        %v6101 = vsel %vm6018, %v6098, %v6100
        %v6102 = vrot.slane %v1388, 6
        %v6103 = vsel %vm6018, %v6100, %v6102
        %v6104 = vrot.slane %v1393, 6
        %v6105 = vsel %vm6018, %v6102, %v6104
        %v6106 = vrot.slane %v1398, 6
        %v6107 = vsel %vm6018, %v6104, %v6106
        %v6108 = vrot.slane %v1403, 6
        %v6109 = vsel %vm6018, %v6106, %v6108
        %v6110 = vrot.slane %v1408, 6
        %v6111 = vsel %vm6018, %v6108, %v6110
        %v6112 = vrot.slane %v1413, 6
        %v6113 = vsel %vm6018, %v6110, %v6112
        %v6114 = vrot.slane %v1418, 6
        %v6115 = vsel %vm6018, %v6112, %v6114
        %v6116 = vrot.slane %v1423, 6
        %v6117 = vsel %vm6018, %v6114, %v6116
        %v6118 = vrot.slane %v1428, 6
        %v6119 = vsel %vm6018, %v6116, %v6118
        %v6120 = vrot.slane %v1433, 6
        %v6121 = vsel %vm6018, %v6118, %v6120
        %v6122 = vrot.slane %v1438, 6
        %v6123 = vsel %vm6018, %v6120, %v6122
        %v6124 = vrot.slane %v1443, 6
        %v6125 = vsel %vm6018, %v6122, %v6124
        %v6126 = vrot.slane %v1448, 6
        %v6127 = vsel %vm6018, %v6124, %v6126
        %v6128 = vrot.slane %v1453, 6
        %v6129 = vsel %vm6018, %v6126, %v6128
        %v6130 = vrot.slane %v1458, 6
        %v6131 = vsel %vm6018, %v6128, %v6130
        %v6132 = vrot.slane %v1463, 6
        %v6133 = vsel %vm6018, %v6130, %v6132
        %v6134 = vrot.slane %v1468, 6
        %v6135 = vsel %vm6018, %v6132, %v6134
        %v6136 = vrot.slane %v1473, 6
        %v6137 = vsel %vm6018, %v6134, %v6136
        %v6138 = vrot.slane %v1478, 6
        %v6139 = vsel %vm6018, %v6136, %v6138
        %v6140 = vrot.slane %v1483, 6
        %v6141 = vsel %vm6018, %v6138, %v6140
        %v6142 = vrot.slane %v1488, 6
        %v6143 = vsel %vm6018, %v6140, %v6142
        %v6144 = vrot.slane %v1493, 6
        %v6145 = vsel %vm6018, %v6142, %v6144
        %v6146 = vrot.slane %v1498, 6
        %v6147 = vsel %vm6018, %v6144, %v6146
        %v6148 = vrot.slane %v1503, 6
        %v6149 = vsel %vm6018, %v6146, %v6148
        %v6150 = vrot.slane %v1508, 6
        %v6151 = vsel %vm6018, %v6148, %v6150
        %v6152 = vrot.slane %v1513, 6
        %v6153 = vsel %vm6018, %v6150, %v6152
        %v6154 = vrot.slane %v1518, 6
        %v6155 = vsel %vm6018, %v6152, %v6154
        %v6156 = vrot.slane %v1523, 6
        %v6157 = vsel %vm6018, %v6154, %v6156
        %v6158 = vrot.slane %v1528, 6
        %v6159 = vsel %vm6018, %v6156, %v6158
        %v6160 = vrot.slane %v1533, 6
        %v6161 = vsel %vm6018, %v6158, %v6160
        %v6162 = vsel %vm890, %v6021, 0
        %v6164 = vsel %vm890, %v6023, 0
        %v6166 = vsel %vm890, %v6025, 0
        %v6168 = vsel %vm890, %v6027, 0
        %v6170 = vsel %vm890, %v6029, 0
        %v6172 = vsel %vm890, %v6031, 0
        %v6174 = vsel %vm890, %v6033, 0
        %v6176 = vsel %vm890, %v6035, 0
        %v6178 = vsel %vm890, %v6037, 0
        %v6180 = vsel %vm890, %v6039, 0
        %v6182 = vsel %vm890, %v6041, 0
        %v6184 = vsel %vm890, %v6043, 0
        %v6186 = vsel %vm890, %v6045, 0
        %v6188 = vsel %vm890, %v6047, 0
        %v6190 = vsel %vm890, %v6049, 0
        %v6192 = vsel %vm890, %v6051, 0
        %v6194 = vsel %vm890, %v6053, 0
        %v6196 = vsel %vm890, %v6055, 0
        %v6198 = vsel %vm890, %v6057, 0
        %v6200 = vsel %vm890, %v6059, 0
        %v6202 = vsel %vm890, %v6061, 0
        %v6204 = vsel %vm890, %v6063, 0
        %v6206 = vsel %vm890, %v6065, 0
        %v6208 = vsel %vm890, %v6067, 0
        %v6210 = vsel %vm890, %v6069, 0
        %v6212 = vsel %vm890, %v6071, 0
        %v6214 = vsel %vm890, %v6073, 0
        %v6216 = vsel %vm890, %v6075, 0
        %v6218 = vsel %vm890, %v6077, 0
        %v6220 = vsel %vm890, %v6079, 0
        %v6222 = vsel %vm890, %v6081, 0
        %v6224 = vsel %vm890, %v6083, 0
        %v6226 = vsel %vm890, %v6085, 0
        %v6228 = vsel %vm890, %v6087, 0
        %v6230 = vsel %vm890, %v6089, 0
        %v6232 = vsel %vm890, %v6091, 0
        %v6234 = vsel %vm890, %v6093, 0
        %v6236 = vsel %vm890, %v6095, 0
        %v6238 = vsel %vm890, %v6097, 0
        %v6240 = vsel %vm890, %v6099, 0
        %v6242 = vsel %vm890, %v6101, 0
        %v6244 = vsel %vm890, %v6103, 0
        %v6246 = vsel %vm890, %v6105, 0
        %v6248 = vsel %vm890, %v6107, 0
        %v6250 = vsel %vm890, %v6109, 0
        %v6252 = vsel %vm890, %v6111, 0
        %v6254 = vsel %vm890, %v6113, 0
        %v6256 = vsel %vm890, %v6115, 0
        %v6258 = vsel %vm890, %v6117, 0
        %v6260 = vsel %vm890, %v6119, 0
        %v6262 = vsel %vm890, %v6121, 0
        %v6264 = vsel %vm890, %v6123, 0
        %v6266 = vsel %vm890, %v6125, 0
        %v6268 = vsel %vm890, %v6127, 0
        %v6270 = vsel %vm890, %v6129, 0
        %v6272 = vsel %vm890, %v6131, 0
        %v6274 = vsel %vm890, %v6133, 0
        %v6276 = vsel %vm890, %v6135, 0
        %v6278 = vsel %vm890, %v6137, 0
        %v6280 = vsel %vm890, %v6139, 0
        %v6282 = vsel %vm890, %v6141, 0
        %v6284 = vsel %vm890, %v6143, 0
        %v6286 = vsel %vm890, %v6145, 0
        %v6288 = vsel %vm890, %v6147, 0
        %v6290 = vsel %vm890, %v6149, 0
        %v6292 = vsel %vm890, %v6151, 0
        %v6294 = vsel %vm890, %v6153, 0
        %v6296 = vsel %vm890, %v6155, 0
        %v6298 = vsel %vm890, %v6157, 0
        %v6300 = vsel %vm890, %v6159, 0
        %v6302 = vsel %vm890, %v6161, 0
        %v6305 = vsel %vm1107, %v6016, 0
        %6307 = vmatprep.subr.mxu0 0.0
        %6308 = vmatpush1.msra.mxu0 0.0
        %6309 = vmatprep.subr.mxu0 0.0
        %6310 = vmatpush1.msra.mxu0 0.0
        %6311 = vmatprep.subr.mxu0 0.0
        %6312 = vmatpush1.msra.mxu0 0.0
        %6313 = vmatprep.subr.mxu0 0.0
        %6314 = vmatpush1.msra.mxu0 0.0
        %6315 = vmatprep.subr.mxu0 0.0
        %6316 = vmatpush1.msra.mxu0 0.0
        %6317 = vmatprep.subr.mxu0 0.0
        %6318 = vmatpush1.msra.mxu0 0.0
        %6319 = vmatprep.subr.mxu0 0.0
        %6320 = vmatpush1.msra.mxu0 0.0
        %6321 = vmatprep.subr.mxu0 0.0
        %6322 = vmatpush1.msra.mxu0 0.0
        %6323 = vmatprep.subr.mxu0 0.0
        %6324 = vmatpush1.msra.mxu0 0.0
        %6325 = vmatprep.subr.mxu0 0.0
        %6326 = vmatpush1.msra.mxu0 0.0
        %6327 = vmatprep.subr.mxu0 0.0
        %6328 = vmatpush1.msra.mxu0 0.0
        %6329 = vmatprep.subr.mxu0 0.0
        %6330 = vmatpush1.msra.mxu0 0.0
        %6331 = vmatprep.subr.mxu0 0.0
        %6332 = vmatpush1.msra.mxu0 0.0
        %6333 = vmatprep.subr.mxu0 0.0
        %6334 = vmatpush1.msra.mxu0 %v6305
        %6335 = vmatprep.subr.mxu0 0.0
        %6336 = vmatpush1.msra.mxu0 %v6015
        %6337 = vmatprep.subr.mxu0 0.0
        %6338 = vmatpush1.msra.mxu0 %v6014
        %6339 = vmatprep.subr.mxu0 0.0
        %6340 = vmatpush2.msra.mxu0 0.0
        %6341 = vmatprep.subr.mxu0 0.0
        %6342 = vmatpush2.msra.mxu0 0.0
        %6343 = vmatprep.subr.mxu0 0.0
        %6344 = vmatpush2.msra.mxu0 0.0
        %6345 = vmatprep.subr.mxu0 0.0
        %6346 = vmatpush2.msra.mxu0 0.0
        %6347 = vmatprep.subr.mxu0 0.0
        %6348 = vmatpush2.msra.mxu0 0.0
        %6349 = vmatprep.subr.mxu0 0.0
        %6350 = vmatpush2.msra.mxu0 0.0
        %6351 = vmatprep.subr.mxu0 0.0
        %6352 = vmatpush2.msra.mxu0 0.0
        %6353 = vmatprep.subr.mxu0 0.0
        %6354 = vmatpush2.msra.mxu0 0.0
        %6355 = vmatprep.subr.mxu0 0.0
        %6356 = vmatpush2.msra.mxu0 0.0
        %6357 = vmatprep.subr.mxu0 0.0
        %6358 = vmatpush2.msra.mxu0 0.0
        %6359 = vmatprep.subr.mxu0 0.0
        %6360 = vmatpush2.msra.mxu0 0.0
        %6361 = vmatprep.subr.mxu0 0.0
        %6362 = vmatpush2.msra.mxu0 0.0
        %6363 = vmatprep.subr.mxu0 0.0
        %6364 = vmatpush2.msra.mxu0 0.0
        %6365 = vmatprep.subr.mxu0 0.0
        %6366 = vmatpush2.msra.mxu0 0.0
        %6367 = vmatprep.subr.mxu0 0.0
        %6368 = vmatpush2.msra.mxu0 0.0
        %6369 = vmatprep.subr.mxu0 0.0
        %6370 = vmatpush2.msra.mxu0 0.0
        %6371 = vmatprep.mubr.f32.mxu0 0.0
        %6372 = vmatmul.mubr.f32.gmra.mxu0 %v6162
        %v6373 = vpop.f32.mrf.mxu0
        %v6374 = vadd.f32 0.0, %v6373
        %v6375 = vpop.f32.mrf.mxu0
        %6376 = vmatprep.mubr.f32.mxu0 0.0
        %6377 = vmatmul.mubr.f32.gmra.mxu0 %v6164
        %v6378 = vpop.f32.mrf.mxu0
        %v6379 = vadd.f32 0.0, %v6378
        %v6380 = vpop.f32.mrf.mxu0
        %6381 = vmatprep.mubr.f32.mxu0 0.0
        %6382 = vmatmul.mubr.f32.gmra.mxu0 %v6166
        %v6383 = vpop.f32.mrf.mxu0
        %v6384 = vadd.f32 0.0, %v6383
        %v6385 = vpop.f32.mrf.mxu0
        %6386 = vmatprep.mubr.f32.mxu0 0.0
        %6387 = vmatmul.mubr.f32.gmra.mxu0 %v6168
        %v6388 = vpop.f32.mrf.mxu0
        %v6389 = vadd.f32 0.0, %v6388
        %v6390 = vpop.f32.mrf.mxu0
        %6391 = vmatprep.mubr.f32.mxu0 0.0
        %6392 = vmatmul.mubr.f32.gmra.mxu0 %v6170
        %v6393 = vpop.f32.mrf.mxu0
        %v6394 = vadd.f32 0.0, %v6393
        %v6395 = vpop.f32.mrf.mxu0
        %6396 = vmatprep.mubr.f32.mxu0 0.0
        %6397 = vmatmul.mubr.f32.gmra.mxu0 %v6172
        %v6398 = vpop.f32.mrf.mxu0
        %v6399 = vadd.f32 0.0, %v6398
        %v6400 = vpop.f32.mrf.mxu0
        %6401 = vmatprep.mubr.f32.mxu0 0.0
        %6402 = vmatmul.mubr.f32.gmra.mxu0 %v6174
        %v6403 = vpop.f32.mrf.mxu0
        %v6404 = vadd.f32 0.0, %v6403
        %v6405 = vpop.f32.mrf.mxu0
        %6406 = vmatprep.mubr.f32.mxu0 0.0
        %6407 = vmatmul.mubr.f32.gmra.mxu0 %v6176
        %v6408 = vpop.f32.mrf.mxu0
        %v6409 = vadd.f32 0.0, %v6408
        %v6410 = vpop.f32.mrf.mxu0
        %6411 = vmatprep.mubr.f32.mxu0 0.0
        %6412 = vmatmul.mubr.f32.gmra.mxu0 %v6178
        %v6413 = vpop.f32.mrf.mxu0
        %v6414 = vadd.f32 0.0, %v6413
        %v6415 = vpop.f32.mrf.mxu0
        %6416 = vmatprep.mubr.f32.mxu0 0.0
        %6417 = vmatmul.mubr.f32.gmra.mxu0 %v6180
        %v6418 = vpop.f32.mrf.mxu0
        %v6419 = vadd.f32 0.0, %v6418
        %v6420 = vpop.f32.mrf.mxu0
        %6421 = vmatprep.mubr.f32.mxu0 0.0
        %6422 = vmatmul.mubr.f32.gmra.mxu0 %v6182
        %v6423 = vpop.f32.mrf.mxu0
        %v6424 = vadd.f32 0.0, %v6423
        %v6425 = vpop.f32.mrf.mxu0
        %6426 = vmatprep.mubr.f32.mxu0 0.0
        %6427 = vmatmul.mubr.f32.gmra.mxu0 %v6184
        %v6428 = vpop.f32.mrf.mxu0
        %v6429 = vadd.f32 0.0, %v6428
        %v6430 = vpop.f32.mrf.mxu0
        %6431 = vmatprep.mubr.f32.mxu0 0.0
        %6432 = vmatmul.mubr.f32.gmra.mxu0 %v6186
        %v6433 = vpop.f32.mrf.mxu0
        %v6434 = vadd.f32 0.0, %v6433
        %v6435 = vpop.f32.mrf.mxu0
        %6436 = vmatprep.mubr.f32.mxu0 0.0
        %6437 = vmatmul.mubr.f32.gmra.mxu0 %v6188
        %v6438 = vpop.f32.mrf.mxu0
        %v6439 = vadd.f32 0.0, %v6438
        %v6440 = vpop.f32.mrf.mxu0
        %6441 = vmatprep.mubr.f32.mxu0 0.0
        %6442 = vmatmul.mubr.f32.gmra.mxu0 %v6190
        %v6443 = vpop.f32.mrf.mxu0
        %v6444 = vadd.f32 0.0, %v6443
        %v6445 = vpop.f32.mrf.mxu0
        %6446 = vmatprep.mubr.f32.mxu0 0.0
        %6447 = vmatmul.mubr.f32.gmra.mxu0 %v6192
        %v6448 = vpop.f32.mrf.mxu0
        %v6449 = vadd.f32 0.0, %v6448
        %v6450 = vpop.f32.mrf.mxu0
        %6451 = vmatprep.mubr.f32.mxu0 0.0
        %6452 = vmatmul.mubr.f32.gmra.mxu0 %v6194
        %v6453 = vpop.f32.mrf.mxu0
        %v6454 = vadd.f32 0.0, %v6453
        %v6455 = vpop.f32.mrf.mxu0
        %6456 = vmatprep.mubr.f32.mxu0 0.0
        %6457 = vmatmul.mubr.f32.gmra.mxu0 %v6196
        %v6458 = vpop.f32.mrf.mxu0
        %v6459 = vadd.f32 0.0, %v6458
        %v6460 = vpop.f32.mrf.mxu0
        %6461 = vmatprep.mubr.f32.mxu0 0.0
        %6462 = vmatmul.mubr.f32.gmra.mxu0 %v6198
        %v6463 = vpop.f32.mrf.mxu0
        %v6464 = vadd.f32 0.0, %v6463
        %v6465 = vpop.f32.mrf.mxu0
        %6466 = vmatprep.mubr.f32.mxu0 0.0
        %6467 = vmatmul.mubr.f32.gmra.mxu0 %v6200
        %v6468 = vpop.f32.mrf.mxu0
        %v6469 = vadd.f32 0.0, %v6468
        %v6470 = vpop.f32.mrf.mxu0
        %6471 = vmatprep.mubr.f32.mxu0 0.0
        %6472 = vmatmul.mubr.f32.gmra.mxu0 %v6202
        %v6473 = vpop.f32.mrf.mxu0
        %v6474 = vadd.f32 0.0, %v6473
        %v6475 = vpop.f32.mrf.mxu0
        %6476 = vmatprep.mubr.f32.mxu0 0.0
        %6477 = vmatmul.mubr.f32.gmra.mxu0 %v6204
        %v6478 = vpop.f32.mrf.mxu0
        %v6479 = vadd.f32 0.0, %v6478
        %v6480 = vpop.f32.mrf.mxu0
        %6481 = vmatprep.mubr.f32.mxu0 0.0
        %6482 = vmatmul.mubr.f32.gmra.mxu0 %v6206
        %v6483 = vpop.f32.mrf.mxu0
        %v6484 = vadd.f32 0.0, %v6483
        %v6485 = vpop.f32.mrf.mxu0
        %6486 = vmatprep.mubr.f32.mxu0 0.0
        %6487 = vmatmul.mubr.f32.gmra.mxu0 %v6208
        %v6488 = vpop.f32.mrf.mxu0
        %v6489 = vadd.f32 0.0, %v6488
        %v6490 = vpop.f32.mrf.mxu0
        %6491 = vmatprep.mubr.f32.mxu0 0.0
        %6492 = vmatmul.mubr.f32.gmra.mxu0 %v6210
        %v6493 = vpop.f32.mrf.mxu0
        %v6494 = vadd.f32 0.0, %v6493
        %v6495 = vpop.f32.mrf.mxu0
        %6496 = vmatprep.mubr.f32.mxu0 0.0
        %6497 = vmatmul.mubr.f32.gmra.mxu0 %v6212
        %v6498 = vpop.f32.mrf.mxu0
        %v6499 = vadd.f32 0.0, %v6498
        %v6500 = vpop.f32.mrf.mxu0
        %6501 = vmatprep.mubr.f32.mxu0 0.0
        %6502 = vmatmul.mubr.f32.gmra.mxu0 %v6214
        %v6503 = vpop.f32.mrf.mxu0
        %v6504 = vadd.f32 0.0, %v6503
        %v6505 = vpop.f32.mrf.mxu0
        %6506 = vmatprep.mubr.f32.mxu0 0.0
        %6507 = vmatmul.mubr.f32.gmra.mxu0 %v6216
        %v6508 = vpop.f32.mrf.mxu0
        %v6509 = vadd.f32 0.0, %v6508
        %v6510 = vpop.f32.mrf.mxu0
        %6511 = vmatprep.mubr.f32.mxu0 0.0
        %6512 = vmatmul.mubr.f32.gmra.mxu0 %v6218
        %v6513 = vpop.f32.mrf.mxu0
        %v6514 = vadd.f32 0.0, %v6513
        %v6515 = vpop.f32.mrf.mxu0
        %6516 = vmatprep.mubr.f32.mxu0 0.0
        %6517 = vmatmul.mubr.f32.gmra.mxu0 %v6220
        %v6518 = vpop.f32.mrf.mxu0
        %v6519 = vadd.f32 0.0, %v6518
        %v6520 = vpop.f32.mrf.mxu0
        %6521 = vmatprep.mubr.f32.mxu0 0.0
        %6522 = vmatmul.mubr.f32.gmra.mxu0 %v6222
        %v6523 = vpop.f32.mrf.mxu0
        %v6524 = vadd.f32 0.0, %v6523
        %v6525 = vpop.f32.mrf.mxu0
        %6526 = vmatprep.mubr.f32.mxu0 0.0
        %6527 = vmatmul.mubr.f32.gmra.mxu0 %v6224
        %v6528 = vpop.f32.mrf.mxu0
        %v6529 = vadd.f32 0.0, %v6528
        %v6530 = vpop.f32.mrf.mxu0
        %6531 = vmatprep.mubr.f32.mxu0 0.0
        %6532 = vmatmul.mubr.f32.gmra.mxu0 %v6226
        %v6533 = vpop.f32.mrf.mxu0
        %v6534 = vadd.f32 0.0, %v6533
        %v6535 = vpop.f32.mrf.mxu0
        %6536 = vmatprep.mubr.f32.mxu0 0.0
        %6537 = vmatmul.mubr.f32.gmra.mxu0 %v6228
        %v6538 = vpop.f32.mrf.mxu0
        %v6539 = vadd.f32 0.0, %v6538
        %v6540 = vpop.f32.mrf.mxu0
        %6541 = vmatprep.mubr.f32.mxu0 0.0
        %6542 = vmatmul.mubr.f32.gmra.mxu0 %v6230
        %v6543 = vpop.f32.mrf.mxu0
        %v6544 = vadd.f32 0.0, %v6543
        %v6545 = vpop.f32.mrf.mxu0
        %6546 = vmatprep.mubr.f32.mxu0 0.0
        %6547 = vmatmul.mubr.f32.gmra.mxu0 %v6232
        %v6548 = vpop.f32.mrf.mxu0
        %v6549 = vadd.f32 0.0, %v6548
        %v6550 = vpop.f32.mrf.mxu0
        %6551 = vmatprep.mubr.f32.mxu0 0.0
        %6552 = vmatmul.mubr.f32.gmra.mxu0 %v6234
        %v6553 = vpop.f32.mrf.mxu0
        %v6554 = vadd.f32 0.0, %v6553
        %v6555 = vpop.f32.mrf.mxu0
        %6556 = vmatprep.mubr.f32.mxu0 0.0
        %6557 = vmatmul.mubr.f32.gmra.mxu0 %v6236
        %v6558 = vpop.f32.mrf.mxu0
        %v6559 = vadd.f32 0.0, %v6558
        %v6560 = vpop.f32.mrf.mxu0
        %6561 = vmatprep.mubr.f32.mxu0 0.0
        %6562 = vmatmul.mubr.f32.gmra.mxu0 %v6238
        %v6563 = vpop.f32.mrf.mxu0
        %v6564 = vadd.f32 0.0, %v6563
        %v6565 = vpop.f32.mrf.mxu0
        %6566 = vmatprep.mubr.f32.mxu0 0.0
        %6567 = vmatmul.mubr.f32.gmra.mxu0 %v6240
        %v6568 = vpop.f32.mrf.mxu0
        %v6569 = vadd.f32 0.0, %v6568
        %v6570 = vpop.f32.mrf.mxu0
        %6571 = vmatprep.mubr.f32.mxu0 0.0
        %6572 = vmatmul.mubr.f32.gmra.mxu0 %v6242
        %v6573 = vpop.f32.mrf.mxu0
        %v6574 = vadd.f32 0.0, %v6573
        %v6575 = vpop.f32.mrf.mxu0
        %6576 = vmatprep.mubr.f32.mxu0 0.0
        %6577 = vmatmul.mubr.f32.gmra.mxu0 %v6244
        %v6578 = vpop.f32.mrf.mxu0
        %v6579 = vadd.f32 0.0, %v6578
        %v6580 = vpop.f32.mrf.mxu0
        %6581 = vmatprep.mubr.f32.mxu0 0.0
        %6582 = vmatmul.mubr.f32.gmra.mxu0 %v6246
        %v6583 = vpop.f32.mrf.mxu0
        %v6584 = vadd.f32 0.0, %v6583
        %v6585 = vpop.f32.mrf.mxu0
        %6586 = vmatprep.mubr.f32.mxu0 0.0
        %6587 = vmatmul.mubr.f32.gmra.mxu0 %v6248
        %v6588 = vpop.f32.mrf.mxu0
        %v6589 = vadd.f32 0.0, %v6588
        %v6590 = vpop.f32.mrf.mxu0
        %6591 = vmatprep.mubr.f32.mxu0 0.0
        %6592 = vmatmul.mubr.f32.gmra.mxu0 %v6250
        %v6593 = vpop.f32.mrf.mxu0
        %v6594 = vadd.f32 0.0, %v6593
        %v6595 = vpop.f32.mrf.mxu0
        %6596 = vmatprep.mubr.f32.mxu0 0.0
        %6597 = vmatmul.mubr.f32.gmra.mxu0 %v6252
        %v6598 = vpop.f32.mrf.mxu0
        %v6599 = vadd.f32 0.0, %v6598
        %v6600 = vpop.f32.mrf.mxu0
        %6601 = vmatprep.mubr.f32.mxu0 0.0
        %6602 = vmatmul.mubr.f32.gmra.mxu0 %v6254
        %v6603 = vpop.f32.mrf.mxu0
        %v6604 = vadd.f32 0.0, %v6603
        %v6605 = vpop.f32.mrf.mxu0
        %6606 = vmatprep.mubr.f32.mxu0 0.0
        %6607 = vmatmul.mubr.f32.gmra.mxu0 %v6256
        %v6608 = vpop.f32.mrf.mxu0
        %v6609 = vadd.f32 0.0, %v6608
        %v6610 = vpop.f32.mrf.mxu0
        %6611 = vmatprep.mubr.f32.mxu0 0.0
        %6612 = vmatmul.mubr.f32.gmra.mxu0 %v6258
        %v6613 = vpop.f32.mrf.mxu0
        %v6614 = vadd.f32 0.0, %v6613
        %v6615 = vpop.f32.mrf.mxu0
        %6616 = vmatprep.mubr.f32.mxu0 0.0
        %6617 = vmatmul.mubr.f32.gmra.mxu0 %v6260
        %v6618 = vpop.f32.mrf.mxu0
        %v6619 = vadd.f32 0.0, %v6618
        %v6620 = vpop.f32.mrf.mxu0
        %6621 = vmatprep.mubr.f32.mxu0 0.0
        %6622 = vmatmul.mubr.f32.gmra.mxu0 %v6262
        %v6623 = vpop.f32.mrf.mxu0
        %v6624 = vadd.f32 0.0, %v6623
        %v6625 = vpop.f32.mrf.mxu0
        %6626 = vmatprep.mubr.f32.mxu0 0.0
        %6627 = vmatmul.mubr.f32.gmra.mxu0 %v6264
        %v6628 = vpop.f32.mrf.mxu0
        %v6629 = vadd.f32 0.0, %v6628
        %v6630 = vpop.f32.mrf.mxu0
        %6631 = vmatprep.mubr.f32.mxu0 0.0
        %6632 = vmatmul.mubr.f32.gmra.mxu0 %v6266
        %v6633 = vpop.f32.mrf.mxu0
        %v6634 = vadd.f32 0.0, %v6633
        %v6635 = vpop.f32.mrf.mxu0
        %6636 = vmatprep.mubr.f32.mxu0 0.0
        %6637 = vmatmul.mubr.f32.gmra.mxu0 %v6268
        %v6638 = vpop.f32.mrf.mxu0
        %v6639 = vadd.f32 0.0, %v6638
        %v6640 = vpop.f32.mrf.mxu0
        %6641 = vmatprep.mubr.f32.mxu0 0.0
        %6642 = vmatmul.mubr.f32.gmra.mxu0 %v6270
        %v6643 = vpop.f32.mrf.mxu0
        %v6644 = vadd.f32 0.0, %v6643
        %v6645 = vpop.f32.mrf.mxu0
        %6646 = vmatprep.mubr.f32.mxu0 0.0
        %6647 = vmatmul.mubr.f32.gmra.mxu0 %v6272
        %v6648 = vpop.f32.mrf.mxu0
        %v6649 = vadd.f32 0.0, %v6648
        %v6650 = vpop.f32.mrf.mxu0
        %6651 = vmatprep.mubr.f32.mxu0 0.0
        %6652 = vmatmul.mubr.f32.gmra.mxu0 %v6274
        %v6653 = vpop.f32.mrf.mxu0
        %v6654 = vadd.f32 0.0, %v6653
        %v6655 = vpop.f32.mrf.mxu0
        %6656 = vmatprep.mubr.f32.mxu0 0.0
        %6657 = vmatmul.mubr.f32.gmra.mxu0 %v6276
        %v6658 = vpop.f32.mrf.mxu0
        %v6659 = vadd.f32 0.0, %v6658
        %v6660 = vpop.f32.mrf.mxu0
        %6661 = vmatprep.mubr.f32.mxu0 0.0
        %6662 = vmatmul.mubr.f32.gmra.mxu0 %v6278
        %v6663 = vpop.f32.mrf.mxu0
        %v6664 = vadd.f32 0.0, %v6663
        %v6665 = vpop.f32.mrf.mxu0
        %6666 = vmatprep.mubr.f32.mxu0 0.0
        %6667 = vmatmul.mubr.f32.gmra.mxu0 %v6280
        %v6668 = vpop.f32.mrf.mxu0
        %v6669 = vadd.f32 0.0, %v6668
        %v6670 = vpop.f32.mrf.mxu0
        %6671 = vmatprep.mubr.f32.mxu0 0.0
        %6672 = vmatmul.mubr.f32.gmra.mxu0 %v6282
        %v6673 = vpop.f32.mrf.mxu0
        %v6674 = vadd.f32 0.0, %v6673
        %v6675 = vpop.f32.mrf.mxu0
        %6676 = vmatprep.mubr.f32.mxu0 0.0
        %6677 = vmatmul.mubr.f32.gmra.mxu0 %v6284
        %v6678 = vpop.f32.mrf.mxu0
        %v6679 = vadd.f32 0.0, %v6678
        %v6680 = vpop.f32.mrf.mxu0
        %6681 = vmatprep.mubr.f32.mxu0 0.0
        %6682 = vmatmul.mubr.f32.gmra.mxu0 %v6286
        %v6683 = vpop.f32.mrf.mxu0
        %v6684 = vadd.f32 0.0, %v6683
        %v6685 = vpop.f32.mrf.mxu0
        %6686 = vmatprep.mubr.f32.mxu0 0.0
        %6687 = vmatmul.mubr.f32.gmra.mxu0 %v6288
        %v6688 = vpop.f32.mrf.mxu0
        %v6689 = vadd.f32 0.0, %v6688
        %v6690 = vpop.f32.mrf.mxu0
        %6691 = vmatprep.mubr.f32.mxu0 0.0
        %6692 = vmatmul.mubr.f32.gmra.mxu0 %v6290
        %v6693 = vpop.f32.mrf.mxu0
        %v6694 = vadd.f32 0.0, %v6693
        %v6695 = vpop.f32.mrf.mxu0
        %6696 = vmatprep.mubr.f32.mxu0 0.0
        %6697 = vmatmul.mubr.f32.gmra.mxu0 %v6292
        %v6698 = vpop.f32.mrf.mxu0
        %v6699 = vadd.f32 0.0, %v6698
        %v6700 = vpop.f32.mrf.mxu0
        %6701 = vmatprep.mubr.f32.mxu0 0.0
        %6702 = vmatmul.mubr.f32.gmra.mxu0 %v6294
        %v6703 = vpop.f32.mrf.mxu0
        %v6704 = vadd.f32 0.0, %v6703
        %v6705 = vpop.f32.mrf.mxu0
        %6706 = vmatprep.mubr.f32.mxu0 0.0
        %6707 = vmatmul.mubr.f32.gmra.mxu0 %v6296
        %v6708 = vpop.f32.mrf.mxu0
        %v6709 = vadd.f32 0.0, %v6708
        %v6710 = vpop.f32.mrf.mxu0
        %6711 = vmatprep.mubr.f32.mxu0 0.0
        %6712 = vmatmul.mubr.f32.gmra.mxu0 %v6298
        %v6713 = vpop.f32.mrf.mxu0
        %v6714 = vadd.f32 0.0, %v6713
        %v6715 = vpop.f32.mrf.mxu0
        %6716 = vmatprep.mubr.f32.mxu0 0.0
        %6717 = vmatmul.mubr.f32.gmra.mxu0 %v6300
        %v6718 = vpop.f32.mrf.mxu0
        %v6719 = vadd.f32 0.0, %v6718
        %v6720 = vpop.f32.mrf.mxu0
        %6721 = vmatprep.mubr.f32.mxu0 0.0
        %6722 = vmatmul.mubr.f32.gmra.mxu0 %v6302
        %v6723 = vpop.f32.mrf.mxu0
        %v6724 = vadd.f32 0.0, %v6723
        %v6725 = vpop.f32.mrf.mxu0
        %6726 = vdwg.mxu0
        %v6727 = vadd.f32 %v5942, %v6374
        %v6728 = vadd.f32 %v5943, %v6379
        %v6729 = vadd.f32 %v5944, %v6384
        %v6730 = vadd.f32 %v5945, %v6389
        %v6731 = vadd.f32 %v5946, %v6394
        %v6732 = vadd.f32 %v5947, %v6399
        %v6733 = vadd.f32 %v5948, %v6404
        %v6734 = vadd.f32 %v5949, %v6409
        %v6735 = vadd.f32 %v5950, %v6414
        %v6736 = vadd.f32 %v5951, %v6419
        %v6737 = vadd.f32 %v5952, %v6424
        %v6738 = vadd.f32 %v5953, %v6429
        %v6739 = vadd.f32 %v5954, %v6434
        %v6740 = vadd.f32 %v5955, %v6439
        %v6741 = vadd.f32 %v5956, %v6444
        %v6742 = vadd.f32 %v5957, %v6449
        %v6743 = vadd.f32 %v5958, %v6454
        %v6744 = vadd.f32 %v5959, %v6459
        %v6745 = vadd.f32 %v5960, %v6464
        %v6746 = vadd.f32 %v5961, %v6469
        %v6747 = vadd.f32 %v5962, %v6474
        %v6748 = vadd.f32 %v5963, %v6479
        %v6749 = vadd.f32 %v5964, %v6484
        %v6750 = vadd.f32 %v5965, %v6489
        %v6751 = vadd.f32 %v5966, %v6494
        %v6752 = vadd.f32 %v5967, %v6499
        %v6753 = vadd.f32 %v5968, %v6504
        %v6754 = vadd.f32 %v5969, %v6509
        %v6755 = vadd.f32 %v5970, %v6514
        %v6756 = vadd.f32 %v5971, %v6519
        %v6757 = vadd.f32 %v5972, %v6524
        %v6758 = vadd.f32 %v5973, %v6529
        %v6759 = vadd.f32 %v5974, %v6534
        %v6760 = vadd.f32 %v5975, %v6539
        %v6761 = vadd.f32 %v5976, %v6544
        %v6762 = vadd.f32 %v5977, %v6549
        %v6763 = vadd.f32 %v5978, %v6554
        %v6764 = vadd.f32 %v5979, %v6559
        %v6765 = vadd.f32 %v5980, %v6564
        %v6766 = vadd.f32 %v5981, %v6569
        %v6767 = vadd.f32 %v5982, %v6574
        %v6768 = vadd.f32 %v5983, %v6579
        %v6769 = vadd.f32 %v5984, %v6584
        %v6770 = vadd.f32 %v5985, %v6589
        %v6771 = vadd.f32 %v5986, %v6594
        %v6772 = vadd.f32 %v5987, %v6599
        %v6773 = vadd.f32 %v5988, %v6604
        %v6774 = vadd.f32 %v5989, %v6609
        %v6775 = vadd.f32 %v5990, %v6614
        %v6776 = vadd.f32 %v5991, %v6619
        %v6777 = vadd.f32 %v5992, %v6624
        %v6778 = vadd.f32 %v5993, %v6629
        %v6779 = vadd.f32 %v5994, %v6634
        %v6780 = vadd.f32 %v5995, %v6639
        %v6781 = vadd.f32 %v5996, %v6644
        %v6782 = vadd.f32 %v5997, %v6649
        %v6783 = vadd.f32 %v5998, %v6654
        %v6784 = vadd.f32 %v5999, %v6659
        %v6785 = vadd.f32 %v6000, %v6664
        %v6786 = vadd.f32 %v6001, %v6669
        %v6787 = vadd.f32 %v6002, %v6674
        %v6788 = vadd.f32 %v6003, %v6679
        %v6789 = vadd.f32 %v6004, %v6684
        %v6790 = vadd.f32 %v6005, %v6689
        %v6791 = vadd.f32 %v6006, %v6694
        %v6792 = vadd.f32 %v6007, %v6699
        %v6793 = vadd.f32 %v6008, %v6704
        %v6794 = vadd.f32 %v6009, %v6709
        %v6795 = vadd.f32 %v6010, %v6714
        %v6796 = vadd.f32 %v6011, %v6719
        %v6797 = vadd.f32 %v6012, %v6724
        %s6798 = scalar_lea.vmem %s3, 168
        %v6799 = vld [vmem:[%s6798] sm:$0xff]
        %v6800 = vld [vmem:[%s6798 + $0x8] sm:$0xff]
        %v6801 = vld [vmem:[%s6798 + $0x10] sm:$0x3f]
        %vm6802 = vcmask 1040384
        %v6803 = vrot.slane %v1178, 7
        %v6804 = vrot.slane %v1183, 7
        %v6805 = vsel %vm6802, %v6803, %v6804
        %v6806 = vrot.slane %v1188, 7
        %v6807 = vsel %vm6802, %v6804, %v6806
        %v6808 = vrot.slane %v1193, 7
        %v6809 = vsel %vm6802, %v6806, %v6808
        %v6810 = vrot.slane %v1198, 7
        %v6811 = vsel %vm6802, %v6808, %v6810
        %v6812 = vrot.slane %v1203, 7
        %v6813 = vsel %vm6802, %v6810, %v6812
        %v6814 = vrot.slane %v1208, 7
        %v6815 = vsel %vm6802, %v6812, %v6814
        %v6816 = vrot.slane %v1213, 7
        %v6817 = vsel %vm6802, %v6814, %v6816
        %v6818 = vrot.slane %v1218, 7
        %v6819 = vsel %vm6802, %v6816, %v6818
        %v6820 = vrot.slane %v1223, 7
        %v6821 = vsel %vm6802, %v6818, %v6820
        %v6822 = vrot.slane %v1228, 7
        %v6823 = vsel %vm6802, %v6820, %v6822
        %v6824 = vrot.slane %v1233, 7
        %v6825 = vsel %vm6802, %v6822, %v6824
        %v6826 = vrot.slane %v1238, 7
        %v6827 = vsel %vm6802, %v6824, %v6826
        %v6828 = vrot.slane %v1243, 7
        %v6829 = vsel %vm6802, %v6826, %v6828
        %v6830 = vrot.slane %v1248, 7
        %v6831 = vsel %vm6802, %v6828, %v6830
        %v6832 = vrot.slane %v1253, 7
        %v6833 = vsel %vm6802, %v6830, %v6832
        %v6834 = vrot.slane %v1258, 7
        %v6835 = vsel %vm6802, %v6832, %v6834
        %v6836 = vrot.slane %v1263, 7
        %v6837 = vsel %vm6802, %v6834, %v6836
        %v6838 = vrot.slane %v1268, 7
        %v6839 = vsel %vm6802, %v6836, %v6838
        %v6840 = vrot.slane %v1273, 7
        %v6841 = vsel %vm6802, %v6838, %v6840
        %v6842 = vrot.slane %v1278, 7
        %v6843 = vsel %vm6802, %v6840, %v6842
        %v6844 = vrot.slane %v1283, 7
        %v6845 = vsel %vm6802, %v6842, %v6844
        %v6846 = vrot.slane %v1288, 7
        %v6847 = vsel %vm6802, %v6844, %v6846
        %v6848 = vrot.slane %v1293, 7
        %v6849 = vsel %vm6802, %v6846, %v6848
        %v6850 = vrot.slane %v1298, 7
        %v6851 = vsel %vm6802, %v6848, %v6850
        %v6852 = vrot.slane %v1303, 7
        %v6853 = vsel %vm6802, %v6850, %v6852
        %v6854 = vrot.slane %v1308, 7
        %v6855 = vsel %vm6802, %v6852, %v6854
        %v6856 = vrot.slane %v1313, 7
        %v6857 = vsel %vm6802, %v6854, %v6856
        %v6858 = vrot.slane %v1318, 7
        %v6859 = vsel %vm6802, %v6856, %v6858
        %v6860 = vrot.slane %v1323, 7
        %v6861 = vsel %vm6802, %v6858, %v6860
        %v6862 = vrot.slane %v1328, 7
        %v6863 = vsel %vm6802, %v6860, %v6862
        %v6864 = vrot.slane %v1333, 7
        %v6865 = vsel %vm6802, %v6862, %v6864
        %v6866 = vrot.slane %v1338, 7
        %v6867 = vsel %vm6802, %v6864, %v6866
        %v6868 = vrot.slane %v1343, 7
        %v6869 = vsel %vm6802, %v6866, %v6868
        %v6870 = vrot.slane %v1348, 7
        %v6871 = vsel %vm6802, %v6868, %v6870
        %v6872 = vrot.slane %v1353, 7
        %v6873 = vsel %vm6802, %v6870, %v6872
        %v6874 = vrot.slane %v1358, 7
        %v6875 = vsel %vm6802, %v6872, %v6874
        %v6876 = vrot.slane %v1363, 7
        %v6877 = vsel %vm6802, %v6874, %v6876
        %v6878 = vrot.slane %v1368, 7
        %v6879 = vsel %vm6802, %v6876, %v6878
        %v6880 = vrot.slane %v1373, 7
        %v6881 = vsel %vm6802, %v6878, %v6880
        %v6882 = vrot.slane %v1378, 7
        %v6883 = vsel %vm6802, %v6880, %v6882
        %v6884 = vrot.slane %v1383, 7
        %v6885 = vsel %vm6802, %v6882, %v6884
        %v6886 = vrot.slane %v1388, 7
        %v6887 = vsel %vm6802, %v6884, %v6886
        %v6888 = vrot.slane %v1393, 7
        %v6889 = vsel %vm6802, %v6886, %v6888
        %v6890 = vrot.slane %v1398, 7
        %v6891 = vsel %vm6802, %v6888, %v6890
        %v6892 = vrot.slane %v1403, 7
        %v6893 = vsel %vm6802, %v6890, %v6892
        %v6894 = vrot.slane %v1408, 7
        %v6895 = vsel %vm6802, %v6892, %v6894
        %v6896 = vrot.slane %v1413, 7
        %v6897 = vsel %vm6802, %v6894, %v6896
        %v6898 = vrot.slane %v1418, 7
        %v6899 = vsel %vm6802, %v6896, %v6898
        %v6900 = vrot.slane %v1423, 7
        %v6901 = vsel %vm6802, %v6898, %v6900
        %v6902 = vrot.slane %v1428, 7
        %v6903 = vsel %vm6802, %v6900, %v6902
        %v6904 = vrot.slane %v1433, 7
        %v6905 = vsel %vm6802, %v6902, %v6904
        %v6906 = vrot.slane %v1438, 7
        %v6907 = vsel %vm6802, %v6904, %v6906
        %v6908 = vrot.slane %v1443, 7
        %v6909 = vsel %vm6802, %v6906, %v6908
        %v6910 = vrot.slane %v1448, 7
        %v6911 = vsel %vm6802, %v6908, %v6910
        %v6912 = vrot.slane %v1453, 7
        %v6913 = vsel %vm6802, %v6910, %v6912
        %v6914 = vrot.slane %v1458, 7
        %v6915 = vsel %vm6802, %v6912, %v6914
        %v6916 = vrot.slane %v1463, 7
        %v6917 = vsel %vm6802, %v6914, %v6916
        %v6918 = vrot.slane %v1468, 7
        %v6919 = vsel %vm6802, %v6916, %v6918
        %v6920 = vrot.slane %v1473, 7
        %v6921 = vsel %vm6802, %v6918, %v6920
        %v6922 = vrot.slane %v1478, 7
        %v6923 = vsel %vm6802, %v6920, %v6922
        %v6924 = vrot.slane %v1483, 7
        %v6925 = vsel %vm6802, %v6922, %v6924
        %v6926 = vrot.slane %v1488, 7
        %v6927 = vsel %vm6802, %v6924, %v6926
        %v6928 = vrot.slane %v1493, 7
        %v6929 = vsel %vm6802, %v6926, %v6928
        %v6930 = vrot.slane %v1498, 7
        %v6931 = vsel %vm6802, %v6928, %v6930
        %v6932 = vrot.slane %v1503, 7
        %v6933 = vsel %vm6802, %v6930, %v6932
        %v6934 = vrot.slane %v1508, 7
        %v6935 = vsel %vm6802, %v6932, %v6934
        %v6936 = vrot.slane %v1513, 7
        %v6937 = vsel %vm6802, %v6934, %v6936
        %v6938 = vrot.slane %v1518, 7
        %v6939 = vsel %vm6802, %v6936, %v6938
        %v6940 = vrot.slane %v1523, 7
        %v6941 = vsel %vm6802, %v6938, %v6940
        %v6942 = vrot.slane %v1528, 7
        %v6943 = vsel %vm6802, %v6940, %v6942
        %v6944 = vrot.slane %v1533, 7
        %v6945 = vsel %vm6802, %v6942, %v6944
        %v6946 = vsel %vm890, %v6805, 0
        %v6948 = vsel %vm890, %v6807, 0
        %v6950 = vsel %vm890, %v6809, 0
        %v6952 = vsel %vm890, %v6811, 0
        %v6954 = vsel %vm890, %v6813, 0
        %v6956 = vsel %vm890, %v6815, 0
        %v6958 = vsel %vm890, %v6817, 0
        %v6960 = vsel %vm890, %v6819, 0
        %v6962 = vsel %vm890, %v6821, 0
        %v6964 = vsel %vm890, %v6823, 0
        %v6966 = vsel %vm890, %v6825, 0
        %v6968 = vsel %vm890, %v6827, 0
        %v6970 = vsel %vm890, %v6829, 0
        %v6972 = vsel %vm890, %v6831, 0
        %v6974 = vsel %vm890, %v6833, 0
        %v6976 = vsel %vm890, %v6835, 0
        %v6978 = vsel %vm890, %v6837, 0
        %v6980 = vsel %vm890, %v6839, 0
        %v6982 = vsel %vm890, %v6841, 0
        %v6984 = vsel %vm890, %v6843, 0
        %v6986 = vsel %vm890, %v6845, 0
        %v6988 = vsel %vm890, %v6847, 0
        %v6990 = vsel %vm890, %v6849, 0
        %v6992 = vsel %vm890, %v6851, 0
        %v6994 = vsel %vm890, %v6853, 0
        %v6996 = vsel %vm890, %v6855, 0
        %v6998 = vsel %vm890, %v6857, 0
        %v7000 = vsel %vm890, %v6859, 0
        %v7002 = vsel %vm890, %v6861, 0
        %v7004 = vsel %vm890, %v6863, 0
        %v7006 = vsel %vm890, %v6865, 0
        %v7008 = vsel %vm890, %v6867, 0
        %v7010 = vsel %vm890, %v6869, 0
        %v7012 = vsel %vm890, %v6871, 0
        %v7014 = vsel %vm890, %v6873, 0
        %v7016 = vsel %vm890, %v6875, 0
        %v7018 = vsel %vm890, %v6877, 0
        %v7020 = vsel %vm890, %v6879, 0
        %v7022 = vsel %vm890, %v6881, 0
        %v7024 = vsel %vm890, %v6883, 0
        %v7026 = vsel %vm890, %v6885, 0
        %v7028 = vsel %vm890, %v6887, 0
        %v7030 = vsel %vm890, %v6889, 0
        %v7032 = vsel %vm890, %v6891, 0
        %v7034 = vsel %vm890, %v6893, 0
        %v7036 = vsel %vm890, %v6895, 0
        %v7038 = vsel %vm890, %v6897, 0
        %v7040 = vsel %vm890, %v6899, 0
        %v7042 = vsel %vm890, %v6901, 0
        %v7044 = vsel %vm890, %v6903, 0
        %v7046 = vsel %vm890, %v6905, 0
        %v7048 = vsel %vm890, %v6907, 0
        %v7050 = vsel %vm890, %v6909, 0
        %v7052 = vsel %vm890, %v6911, 0
        %v7054 = vsel %vm890, %v6913, 0
        %v7056 = vsel %vm890, %v6915, 0
        %v7058 = vsel %vm890, %v6917, 0
        %v7060 = vsel %vm890, %v6919, 0
        %v7062 = vsel %vm890, %v6921, 0
        %v7064 = vsel %vm890, %v6923, 0
        %v7066 = vsel %vm890, %v6925, 0
        %v7068 = vsel %vm890, %v6927, 0
        %v7070 = vsel %vm890, %v6929, 0
        %v7072 = vsel %vm890, %v6931, 0
        %v7074 = vsel %vm890, %v6933, 0
        %v7076 = vsel %vm890, %v6935, 0
        %v7078 = vsel %vm890, %v6937, 0
        %v7080 = vsel %vm890, %v6939, 0
        %v7082 = vsel %vm890, %v6941, 0
        %v7084 = vsel %vm890, %v6943, 0
        %v7086 = vsel %vm890, %v6945, 0
        %v7089 = vsel %vm1107, %v6801, 0
        %7091 = vmatprep.subr.mxu0 0.0
        %7092 = vmatpush1.msra.mxu0 0.0
        %7093 = vmatprep.subr.mxu0 0.0
        %7094 = vmatpush1.msra.mxu0 0.0
        %7095 = vmatprep.subr.mxu0 0.0
        %7096 = vmatpush1.msra.mxu0 0.0
        %7097 = vmatprep.subr.mxu0 0.0
        %7098 = vmatpush1.msra.mxu0 0.0
        %7099 = vmatprep.subr.mxu0 0.0
        %7100 = vmatpush1.msra.mxu0 0.0
        %7101 = vmatprep.subr.mxu0 0.0
        %7102 = vmatpush1.msra.mxu0 0.0
        %7103 = vmatprep.subr.mxu0 0.0
        %7104 = vmatpush1.msra.mxu0 0.0
        %7105 = vmatprep.subr.mxu0 0.0
        %7106 = vmatpush1.msra.mxu0 0.0
        %7107 = vmatprep.subr.mxu0 0.0
        %7108 = vmatpush1.msra.mxu0 0.0
        %7109 = vmatprep.subr.mxu0 0.0
        %7110 = vmatpush1.msra.mxu0 0.0
        %7111 = vmatprep.subr.mxu0 0.0
        %7112 = vmatpush1.msra.mxu0 0.0
        %7113 = vmatprep.subr.mxu0 0.0
        %7114 = vmatpush1.msra.mxu0 0.0
        %7115 = vmatprep.subr.mxu0 0.0
        %7116 = vmatpush1.msra.mxu0 0.0
        %7117 = vmatprep.subr.mxu0 0.0
        %7118 = vmatpush1.msra.mxu0 %v7089
        %7119 = vmatprep.subr.mxu0 0.0
        %7120 = vmatpush1.msra.mxu0 %v6800
        %7121 = vmatprep.subr.mxu0 0.0
        %7122 = vmatpush1.msra.mxu0 %v6799
        %7123 = vmatprep.subr.mxu0 0.0
        %7124 = vmatpush2.msra.mxu0 0.0
        %7125 = vmatprep.subr.mxu0 0.0
        %7126 = vmatpush2.msra.mxu0 0.0
        %7127 = vmatprep.subr.mxu0 0.0
        %7128 = vmatpush2.msra.mxu0 0.0
        %7129 = vmatprep.subr.mxu0 0.0
        %7130 = vmatpush2.msra.mxu0 0.0
        %7131 = vmatprep.subr.mxu0 0.0
        %7132 = vmatpush2.msra.mxu0 0.0
        %7133 = vmatprep.subr.mxu0 0.0
        %7134 = vmatpush2.msra.mxu0 0.0
        %7135 = vmatprep.subr.mxu0 0.0
        %7136 = vmatpush2.msra.mxu0 0.0
        %7137 = vmatprep.subr.mxu0 0.0
        %7138 = vmatpush2.msra.mxu0 0.0
        %7139 = vmatprep.subr.mxu0 0.0
        %7140 = vmatpush2.msra.mxu0 0.0
        %7141 = vmatprep.subr.mxu0 0.0
        %7142 = vmatpush2.msra.mxu0 0.0
        %7143 = vmatprep.subr.mxu0 0.0
        %7144 = vmatpush2.msra.mxu0 0.0
        %7145 = vmatprep.subr.mxu0 0.0
        %7146 = vmatpush2.msra.mxu0 0.0
        %7147 = vmatprep.subr.mxu0 0.0
        %7148 = vmatpush2.msra.mxu0 0.0
        %7149 = vmatprep.subr.mxu0 0.0
        %7150 = vmatpush2.msra.mxu0 0.0
        %7151 = vmatprep.subr.mxu0 0.0
        %7152 = vmatpush2.msra.mxu0 0.0
        %7153 = vmatprep.subr.mxu0 0.0
        %7154 = vmatpush2.msra.mxu0 0.0
        %7155 = vmatprep.mubr.f32.mxu0 0.0
        %7156 = vmatmul.mubr.f32.gmra.mxu0 %v6946
        %v7157 = vpop.f32.mrf.mxu0
        %v7158 = vadd.f32 0.0, %v7157
        %v7159 = vpop.f32.mrf.mxu0
        %7160 = vmatprep.mubr.f32.mxu0 0.0
        %7161 = vmatmul.mubr.f32.gmra.mxu0 %v6948
        %v7162 = vpop.f32.mrf.mxu0
        %v7163 = vadd.f32 0.0, %v7162
        %v7164 = vpop.f32.mrf.mxu0
        %7165 = vmatprep.mubr.f32.mxu0 0.0
        %7166 = vmatmul.mubr.f32.gmra.mxu0 %v6950
        %v7167 = vpop.f32.mrf.mxu0
        %v7168 = vadd.f32 0.0, %v7167
        %v7169 = vpop.f32.mrf.mxu0
        %7170 = vmatprep.mubr.f32.mxu0 0.0
        %7171 = vmatmul.mubr.f32.gmra.mxu0 %v6952
        %v7172 = vpop.f32.mrf.mxu0
        %v7173 = vadd.f32 0.0, %v7172
        %v7174 = vpop.f32.mrf.mxu0
        %7175 = vmatprep.mubr.f32.mxu0 0.0
        %7176 = vmatmul.mubr.f32.gmra.mxu0 %v6954
        %v7177 = vpop.f32.mrf.mxu0
        %v7178 = vadd.f32 0.0, %v7177
        %v7179 = vpop.f32.mrf.mxu0
        %7180 = vmatprep.mubr.f32.mxu0 0.0
        %7181 = vmatmul.mubr.f32.gmra.mxu0 %v6956
        %v7182 = vpop.f32.mrf.mxu0
        %v7183 = vadd.f32 0.0, %v7182
        %v7184 = vpop.f32.mrf.mxu0
        %7185 = vmatprep.mubr.f32.mxu0 0.0
        %7186 = vmatmul.mubr.f32.gmra.mxu0 %v6958
        %v7187 = vpop.f32.mrf.mxu0
        %v7188 = vadd.f32 0.0, %v7187
        %v7189 = vpop.f32.mrf.mxu0
        %7190 = vmatprep.mubr.f32.mxu0 0.0
        %7191 = vmatmul.mubr.f32.gmra.mxu0 %v6960
        %v7192 = vpop.f32.mrf.mxu0
        %v7193 = vadd.f32 0.0, %v7192
        %v7194 = vpop.f32.mrf.mxu0
        %7195 = vmatprep.mubr.f32.mxu0 0.0
        %7196 = vmatmul.mubr.f32.gmra.mxu0 %v6962
        %v7197 = vpop.f32.mrf.mxu0
        %v7198 = vadd.f32 0.0, %v7197
        %v7199 = vpop.f32.mrf.mxu0
        %7200 = vmatprep.mubr.f32.mxu0 0.0
        %7201 = vmatmul.mubr.f32.gmra.mxu0 %v6964
        %v7202 = vpop.f32.mrf.mxu0
        %v7203 = vadd.f32 0.0, %v7202
        %v7204 = vpop.f32.mrf.mxu0
        %7205 = vmatprep.mubr.f32.mxu0 0.0
        %7206 = vmatmul.mubr.f32.gmra.mxu0 %v6966
        %v7207 = vpop.f32.mrf.mxu0
        %v7208 = vadd.f32 0.0, %v7207
        %v7209 = vpop.f32.mrf.mxu0
        %7210 = vmatprep.mubr.f32.mxu0 0.0
        %7211 = vmatmul.mubr.f32.gmra.mxu0 %v6968
        %v7212 = vpop.f32.mrf.mxu0
        %v7213 = vadd.f32 0.0, %v7212
        %v7214 = vpop.f32.mrf.mxu0
        %7215 = vmatprep.mubr.f32.mxu0 0.0
        %7216 = vmatmul.mubr.f32.gmra.mxu0 %v6970
        %v7217 = vpop.f32.mrf.mxu0
        %v7218 = vadd.f32 0.0, %v7217
        %v7219 = vpop.f32.mrf.mxu0
        %7220 = vmatprep.mubr.f32.mxu0 0.0
        %7221 = vmatmul.mubr.f32.gmra.mxu0 %v6972
        %v7222 = vpop.f32.mrf.mxu0
        %v7223 = vadd.f32 0.0, %v7222
        %v7224 = vpop.f32.mrf.mxu0
        %7225 = vmatprep.mubr.f32.mxu0 0.0
        %7226 = vmatmul.mubr.f32.gmra.mxu0 %v6974
        %v7227 = vpop.f32.mrf.mxu0
        %v7228 = vadd.f32 0.0, %v7227
        %v7229 = vpop.f32.mrf.mxu0
        %7230 = vmatprep.mubr.f32.mxu0 0.0
        %7231 = vmatmul.mubr.f32.gmra.mxu0 %v6976
        %v7232 = vpop.f32.mrf.mxu0
        %v7233 = vadd.f32 0.0, %v7232
        %v7234 = vpop.f32.mrf.mxu0
        %7235 = vmatprep.mubr.f32.mxu0 0.0
        %7236 = vmatmul.mubr.f32.gmra.mxu0 %v6978
        %v7237 = vpop.f32.mrf.mxu0
        %v7238 = vadd.f32 0.0, %v7237
        %v7239 = vpop.f32.mrf.mxu0
        %7240 = vmatprep.mubr.f32.mxu0 0.0
        %7241 = vmatmul.mubr.f32.gmra.mxu0 %v6980
        %v7242 = vpop.f32.mrf.mxu0
        %v7243 = vadd.f32 0.0, %v7242
        %v7244 = vpop.f32.mrf.mxu0
        %7245 = vmatprep.mubr.f32.mxu0 0.0
        %7246 = vmatmul.mubr.f32.gmra.mxu0 %v6982
        %v7247 = vpop.f32.mrf.mxu0
        %v7248 = vadd.f32 0.0, %v7247
        %v7249 = vpop.f32.mrf.mxu0
        %7250 = vmatprep.mubr.f32.mxu0 0.0
        %7251 = vmatmul.mubr.f32.gmra.mxu0 %v6984
        %v7252 = vpop.f32.mrf.mxu0
        %v7253 = vadd.f32 0.0, %v7252
        %v7254 = vpop.f32.mrf.mxu0
        %7255 = vmatprep.mubr.f32.mxu0 0.0
        %7256 = vmatmul.mubr.f32.gmra.mxu0 %v6986
        %v7257 = vpop.f32.mrf.mxu0
        %v7258 = vadd.f32 0.0, %v7257
        %v7259 = vpop.f32.mrf.mxu0
        %7260 = vmatprep.mubr.f32.mxu0 0.0
        %7261 = vmatmul.mubr.f32.gmra.mxu0 %v6988
        %v7262 = vpop.f32.mrf.mxu0
        %v7263 = vadd.f32 0.0, %v7262
        %v7264 = vpop.f32.mrf.mxu0
        %7265 = vmatprep.mubr.f32.mxu0 0.0
        %7266 = vmatmul.mubr.f32.gmra.mxu0 %v6990
        %v7267 = vpop.f32.mrf.mxu0
        %v7268 = vadd.f32 0.0, %v7267
        %v7269 = vpop.f32.mrf.mxu0
        %7270 = vmatprep.mubr.f32.mxu0 0.0
        %7271 = vmatmul.mubr.f32.gmra.mxu0 %v6992
        %v7272 = vpop.f32.mrf.mxu0
        %v7273 = vadd.f32 0.0, %v7272
        %v7274 = vpop.f32.mrf.mxu0
        %7275 = vmatprep.mubr.f32.mxu0 0.0
        %7276 = vmatmul.mubr.f32.gmra.mxu0 %v6994
        %v7277 = vpop.f32.mrf.mxu0
        %v7278 = vadd.f32 0.0, %v7277
        %v7279 = vpop.f32.mrf.mxu0
        %7280 = vmatprep.mubr.f32.mxu0 0.0
        %7281 = vmatmul.mubr.f32.gmra.mxu0 %v6996
        %v7282 = vpop.f32.mrf.mxu0
        %v7283 = vadd.f32 0.0, %v7282
        %v7284 = vpop.f32.mrf.mxu0
        %7285 = vmatprep.mubr.f32.mxu0 0.0
        %7286 = vmatmul.mubr.f32.gmra.mxu0 %v6998
        %v7287 = vpop.f32.mrf.mxu0
        %v7288 = vadd.f32 0.0, %v7287
        %v7289 = vpop.f32.mrf.mxu0
        %7290 = vmatprep.mubr.f32.mxu0 0.0
        %7291 = vmatmul.mubr.f32.gmra.mxu0 %v7000
        %v7292 = vpop.f32.mrf.mxu0
        %v7293 = vadd.f32 0.0, %v7292
        %v7294 = vpop.f32.mrf.mxu0
        %7295 = vmatprep.mubr.f32.mxu0 0.0
        %7296 = vmatmul.mubr.f32.gmra.mxu0 %v7002
        %v7297 = vpop.f32.mrf.mxu0
        %v7298 = vadd.f32 0.0, %v7297
        %v7299 = vpop.f32.mrf.mxu0
        %7300 = vmatprep.mubr.f32.mxu0 0.0
        %7301 = vmatmul.mubr.f32.gmra.mxu0 %v7004
        %v7302 = vpop.f32.mrf.mxu0
        %v7303 = vadd.f32 0.0, %v7302
        %v7304 = vpop.f32.mrf.mxu0
        %7305 = vmatprep.mubr.f32.mxu0 0.0
        %7306 = vmatmul.mubr.f32.gmra.mxu0 %v7006
        %v7307 = vpop.f32.mrf.mxu0
        %v7308 = vadd.f32 0.0, %v7307
        %v7309 = vpop.f32.mrf.mxu0
        %7310 = vmatprep.mubr.f32.mxu0 0.0
        %7311 = vmatmul.mubr.f32.gmra.mxu0 %v7008
        %v7312 = vpop.f32.mrf.mxu0
        %v7313 = vadd.f32 0.0, %v7312
        %v7314 = vpop.f32.mrf.mxu0
        %7315 = vmatprep.mubr.f32.mxu0 0.0
        %7316 = vmatmul.mubr.f32.gmra.mxu0 %v7010
        %v7317 = vpop.f32.mrf.mxu0
        %v7318 = vadd.f32 0.0, %v7317
        %v7319 = vpop.f32.mrf.mxu0
        %7320 = vmatprep.mubr.f32.mxu0 0.0
        %7321 = vmatmul.mubr.f32.gmra.mxu0 %v7012
        %v7322 = vpop.f32.mrf.mxu0
        %v7323 = vadd.f32 0.0, %v7322
        %v7324 = vpop.f32.mrf.mxu0
        %7325 = vmatprep.mubr.f32.mxu0 0.0
        %7326 = vmatmul.mubr.f32.gmra.mxu0 %v7014
        %v7327 = vpop.f32.mrf.mxu0
        %v7328 = vadd.f32 0.0, %v7327
        %v7329 = vpop.f32.mrf.mxu0
        %7330 = vmatprep.mubr.f32.mxu0 0.0
        %7331 = vmatmul.mubr.f32.gmra.mxu0 %v7016
        %v7332 = vpop.f32.mrf.mxu0
        %v7333 = vadd.f32 0.0, %v7332
        %v7334 = vpop.f32.mrf.mxu0
        %7335 = vmatprep.mubr.f32.mxu0 0.0
        %7336 = vmatmul.mubr.f32.gmra.mxu0 %v7018
        %v7337 = vpop.f32.mrf.mxu0
        %v7338 = vadd.f32 0.0, %v7337
        %v7339 = vpop.f32.mrf.mxu0
        %7340 = vmatprep.mubr.f32.mxu0 0.0
        %7341 = vmatmul.mubr.f32.gmra.mxu0 %v7020
        %v7342 = vpop.f32.mrf.mxu0
        %v7343 = vadd.f32 0.0, %v7342
        %v7344 = vpop.f32.mrf.mxu0
        %7345 = vmatprep.mubr.f32.mxu0 0.0
        %7346 = vmatmul.mubr.f32.gmra.mxu0 %v7022
        %v7347 = vpop.f32.mrf.mxu0
        %v7348 = vadd.f32 0.0, %v7347
        %v7349 = vpop.f32.mrf.mxu0
        %7350 = vmatprep.mubr.f32.mxu0 0.0
        %7351 = vmatmul.mubr.f32.gmra.mxu0 %v7024
        %v7352 = vpop.f32.mrf.mxu0
        %v7353 = vadd.f32 0.0, %v7352
        %v7354 = vpop.f32.mrf.mxu0
        %7355 = vmatprep.mubr.f32.mxu0 0.0
        %7356 = vmatmul.mubr.f32.gmra.mxu0 %v7026
        %v7357 = vpop.f32.mrf.mxu0
        %v7358 = vadd.f32 0.0, %v7357
        %v7359 = vpop.f32.mrf.mxu0
        %7360 = vmatprep.mubr.f32.mxu0 0.0
        %7361 = vmatmul.mubr.f32.gmra.mxu0 %v7028
        %v7362 = vpop.f32.mrf.mxu0
        %v7363 = vadd.f32 0.0, %v7362
        %v7364 = vpop.f32.mrf.mxu0
        %7365 = vmatprep.mubr.f32.mxu0 0.0
        %7366 = vmatmul.mubr.f32.gmra.mxu0 %v7030
        %v7367 = vpop.f32.mrf.mxu0
        %v7368 = vadd.f32 0.0, %v7367
        %v7369 = vpop.f32.mrf.mxu0
        %7370 = vmatprep.mubr.f32.mxu0 0.0
        %7371 = vmatmul.mubr.f32.gmra.mxu0 %v7032
        %v7372 = vpop.f32.mrf.mxu0
        %v7373 = vadd.f32 0.0, %v7372
        %v7374 = vpop.f32.mrf.mxu0
        %7375 = vmatprep.mubr.f32.mxu0 0.0
        %7376 = vmatmul.mubr.f32.gmra.mxu0 %v7034
        %v7377 = vpop.f32.mrf.mxu0
        %v7378 = vadd.f32 0.0, %v7377
        %v7379 = vpop.f32.mrf.mxu0
        %7380 = vmatprep.mubr.f32.mxu0 0.0
        %7381 = vmatmul.mubr.f32.gmra.mxu0 %v7036
        %v7382 = vpop.f32.mrf.mxu0
        %v7383 = vadd.f32 0.0, %v7382
        %v7384 = vpop.f32.mrf.mxu0
        %7385 = vmatprep.mubr.f32.mxu0 0.0
        %7386 = vmatmul.mubr.f32.gmra.mxu0 %v7038
        %v7387 = vpop.f32.mrf.mxu0
        %v7388 = vadd.f32 0.0, %v7387
        %v7389 = vpop.f32.mrf.mxu0
        %7390 = vmatprep.mubr.f32.mxu0 0.0
        %7391 = vmatmul.mubr.f32.gmra.mxu0 %v7040
        %v7392 = vpop.f32.mrf.mxu0
        %v7393 = vadd.f32 0.0, %v7392
        %v7394 = vpop.f32.mrf.mxu0
        %7395 = vmatprep.mubr.f32.mxu0 0.0
        %7396 = vmatmul.mubr.f32.gmra.mxu0 %v7042
        %v7397 = vpop.f32.mrf.mxu0
        %v7398 = vadd.f32 0.0, %v7397
        %v7399 = vpop.f32.mrf.mxu0
        %7400 = vmatprep.mubr.f32.mxu0 0.0
        %7401 = vmatmul.mubr.f32.gmra.mxu0 %v7044
        %v7402 = vpop.f32.mrf.mxu0
        %v7403 = vadd.f32 0.0, %v7402
        %v7404 = vpop.f32.mrf.mxu0
        %7405 = vmatprep.mubr.f32.mxu0 0.0
        %7406 = vmatmul.mubr.f32.gmra.mxu0 %v7046
        %v7407 = vpop.f32.mrf.mxu0
        %v7408 = vadd.f32 0.0, %v7407
        %v7409 = vpop.f32.mrf.mxu0
        %7410 = vmatprep.mubr.f32.mxu0 0.0
        %7411 = vmatmul.mubr.f32.gmra.mxu0 %v7048
        %v7412 = vpop.f32.mrf.mxu0
        %v7413 = vadd.f32 0.0, %v7412
        %v7414 = vpop.f32.mrf.mxu0
        %7415 = vmatprep.mubr.f32.mxu0 0.0
        %7416 = vmatmul.mubr.f32.gmra.mxu0 %v7050
        %v7417 = vpop.f32.mrf.mxu0
        %v7418 = vadd.f32 0.0, %v7417
        %v7419 = vpop.f32.mrf.mxu0
        %7420 = vmatprep.mubr.f32.mxu0 0.0
        %7421 = vmatmul.mubr.f32.gmra.mxu0 %v7052
        %v7422 = vpop.f32.mrf.mxu0
        %v7423 = vadd.f32 0.0, %v7422
        %v7424 = vpop.f32.mrf.mxu0
        %7425 = vmatprep.mubr.f32.mxu0 0.0
        %7426 = vmatmul.mubr.f32.gmra.mxu0 %v7054
        %v7427 = vpop.f32.mrf.mxu0
        %v7428 = vadd.f32 0.0, %v7427
        %v7429 = vpop.f32.mrf.mxu0
        %7430 = vmatprep.mubr.f32.mxu0 0.0
        %7431 = vmatmul.mubr.f32.gmra.mxu0 %v7056
        %v7432 = vpop.f32.mrf.mxu0
        %v7433 = vadd.f32 0.0, %v7432
        %v7434 = vpop.f32.mrf.mxu0
        %7435 = vmatprep.mubr.f32.mxu0 0.0
        %7436 = vmatmul.mubr.f32.gmra.mxu0 %v7058
        %v7437 = vpop.f32.mrf.mxu0
        %v7438 = vadd.f32 0.0, %v7437
        %v7439 = vpop.f32.mrf.mxu0
        %7440 = vmatprep.mubr.f32.mxu0 0.0
        %7441 = vmatmul.mubr.f32.gmra.mxu0 %v7060
        %v7442 = vpop.f32.mrf.mxu0
        %v7443 = vadd.f32 0.0, %v7442
        %v7444 = vpop.f32.mrf.mxu0
        %7445 = vmatprep.mubr.f32.mxu0 0.0
        %7446 = vmatmul.mubr.f32.gmra.mxu0 %v7062
        %v7447 = vpop.f32.mrf.mxu0
        %v7448 = vadd.f32 0.0, %v7447
        %v7449 = vpop.f32.mrf.mxu0
        %7450 = vmatprep.mubr.f32.mxu0 0.0
        %7451 = vmatmul.mubr.f32.gmra.mxu0 %v7064
        %v7452 = vpop.f32.mrf.mxu0
        %v7453 = vadd.f32 0.0, %v7452
        %v7454 = vpop.f32.mrf.mxu0
        %7455 = vmatprep.mubr.f32.mxu0 0.0
        %7456 = vmatmul.mubr.f32.gmra.mxu0 %v7066
        %v7457 = vpop.f32.mrf.mxu0
        %v7458 = vadd.f32 0.0, %v7457
        %v7459 = vpop.f32.mrf.mxu0
        %7460 = vmatprep.mubr.f32.mxu0 0.0
        %7461 = vmatmul.mubr.f32.gmra.mxu0 %v7068
        %v7462 = vpop.f32.mrf.mxu0
        %v7463 = vadd.f32 0.0, %v7462
        %v7464 = vpop.f32.mrf.mxu0
        %7465 = vmatprep.mubr.f32.mxu0 0.0
        %7466 = vmatmul.mubr.f32.gmra.mxu0 %v7070
        %v7467 = vpop.f32.mrf.mxu0
        %v7468 = vadd.f32 0.0, %v7467
        %v7469 = vpop.f32.mrf.mxu0
        %7470 = vmatprep.mubr.f32.mxu0 0.0
        %7471 = vmatmul.mubr.f32.gmra.mxu0 %v7072
        %v7472 = vpop.f32.mrf.mxu0
        %v7473 = vadd.f32 0.0, %v7472
        %v7474 = vpop.f32.mrf.mxu0
        %7475 = vmatprep.mubr.f32.mxu0 0.0
        %7476 = vmatmul.mubr.f32.gmra.mxu0 %v7074
        %v7477 = vpop.f32.mrf.mxu0
        %v7478 = vadd.f32 0.0, %v7477
        %v7479 = vpop.f32.mrf.mxu0
        %7480 = vmatprep.mubr.f32.mxu0 0.0
        %7481 = vmatmul.mubr.f32.gmra.mxu0 %v7076
        %v7482 = vpop.f32.mrf.mxu0
        %v7483 = vadd.f32 0.0, %v7482
        %v7484 = vpop.f32.mrf.mxu0
        %7485 = vmatprep.mubr.f32.mxu0 0.0
        %7486 = vmatmul.mubr.f32.gmra.mxu0 %v7078
        %v7487 = vpop.f32.mrf.mxu0
        %v7488 = vadd.f32 0.0, %v7487
        %v7489 = vpop.f32.mrf.mxu0
        %7490 = vmatprep.mubr.f32.mxu0 0.0
        %7491 = vmatmul.mubr.f32.gmra.mxu0 %v7080
        %v7492 = vpop.f32.mrf.mxu0
        %v7493 = vadd.f32 0.0, %v7492
        %v7494 = vpop.f32.mrf.mxu0
        %7495 = vmatprep.mubr.f32.mxu0 0.0
        %7496 = vmatmul.mubr.f32.gmra.mxu0 %v7082
        %v7497 = vpop.f32.mrf.mxu0
        %v7498 = vadd.f32 0.0, %v7497
        %v7499 = vpop.f32.mrf.mxu0
        %7500 = vmatprep.mubr.f32.mxu0 0.0
        %7501 = vmatmul.mubr.f32.gmra.mxu0 %v7084
        %v7502 = vpop.f32.mrf.mxu0
        %v7503 = vadd.f32 0.0, %v7502
        %v7504 = vpop.f32.mrf.mxu0
        %7505 = vmatprep.mubr.f32.mxu0 0.0
        %7506 = vmatmul.mubr.f32.gmra.mxu0 %v7086
        %v7507 = vpop.f32.mrf.mxu0
        %v7508 = vadd.f32 0.0, %v7507
        %v7509 = vpop.f32.mrf.mxu0
        %7510 = vdwg.mxu0
        %v7511 = vadd.f32 %v6727, %v7158
        %v7512 = vadd.f32 %v6728, %v7163
        %v7513 = vadd.f32 %v6729, %v7168
        %v7514 = vadd.f32 %v6730, %v7173
        %v7515 = vadd.f32 %v6731, %v7178
        %v7516 = vadd.f32 %v6732, %v7183
        %v7517 = vadd.f32 %v6733, %v7188
        %v7518 = vadd.f32 %v6734, %v7193
        %v7519 = vadd.f32 %v6735, %v7198
        %v7520 = vadd.f32 %v6736, %v7203
        %v7521 = vadd.f32 %v6737, %v7208
        %v7522 = vadd.f32 %v6738, %v7213
        %v7523 = vadd.f32 %v6739, %v7218
        %v7524 = vadd.f32 %v6740, %v7223
        %v7525 = vadd.f32 %v6741, %v7228
        %v7526 = vadd.f32 %v6742, %v7233
        %v7527 = vadd.f32 %v6743, %v7238
        %v7528 = vadd.f32 %v6744, %v7243
        %v7529 = vadd.f32 %v6745, %v7248
        %v7530 = vadd.f32 %v6746, %v7253
        %v7531 = vadd.f32 %v6747, %v7258
        %v7532 = vadd.f32 %v6748, %v7263
        %v7533 = vadd.f32 %v6749, %v7268
        %v7534 = vadd.f32 %v6750, %v7273
        %v7535 = vadd.f32 %v6751, %v7278
        %v7536 = vadd.f32 %v6752, %v7283
        %v7537 = vadd.f32 %v6753, %v7288
        %v7538 = vadd.f32 %v6754, %v7293
        %v7539 = vadd.f32 %v6755, %v7298
        %v7540 = vadd.f32 %v6756, %v7303
        %v7541 = vadd.f32 %v6757, %v7308
        %v7542 = vadd.f32 %v6758, %v7313
        %v7543 = vadd.f32 %v6759, %v7318
        %v7544 = vadd.f32 %v6760, %v7323
        %v7545 = vadd.f32 %v6761, %v7328
        %v7546 = vadd.f32 %v6762, %v7333
        %v7547 = vadd.f32 %v6763, %v7338
        %v7548 = vadd.f32 %v6764, %v7343
        %v7549 = vadd.f32 %v6765, %v7348
        %v7550 = vadd.f32 %v6766, %v7353
        %v7551 = vadd.f32 %v6767, %v7358
        %v7552 = vadd.f32 %v6768, %v7363
        %v7553 = vadd.f32 %v6769, %v7368
        %v7554 = vadd.f32 %v6770, %v7373
        %v7555 = vadd.f32 %v6771, %v7378
        %v7556 = vadd.f32 %v6772, %v7383
        %v7557 = vadd.f32 %v6773, %v7388
        %v7558 = vadd.f32 %v6774, %v7393
        %v7559 = vadd.f32 %v6775, %v7398
        %v7560 = vadd.f32 %v6776, %v7403
        %v7561 = vadd.f32 %v6777, %v7408
        %v7562 = vadd.f32 %v6778, %v7413
        %v7563 = vadd.f32 %v6779, %v7418
        %v7564 = vadd.f32 %v6780, %v7423
        %v7565 = vadd.f32 %v6781, %v7428
        %v7566 = vadd.f32 %v6782, %v7433
        %v7567 = vadd.f32 %v6783, %v7438
        %v7568 = vadd.f32 %v6784, %v7443
        %v7569 = vadd.f32 %v6785, %v7448
        %v7570 = vadd.f32 %v6786, %v7453
        %v7571 = vadd.f32 %v6787, %v7458
        %v7572 = vadd.f32 %v6788, %v7463
        %v7573 = vadd.f32 %v6789, %v7468
        %v7574 = vadd.f32 %v6790, %v7473
        %v7575 = vadd.f32 %v6791, %v7478
        %v7576 = vadd.f32 %v6792, %v7483
        %v7577 = vadd.f32 %v6793, %v7488
        %v7578 = vadd.f32 %v6794, %v7493
        %v7579 = vadd.f32 %v6795, %v7498
        %v7580 = vadd.f32 %v6796, %v7503
        %v7581 = vadd.f32 %v6797, %v7508
        %s7582 = scalar_lea.vmem %s3, 192
        %v7583 = vld [vmem:[%s7582] sm:$0xff]
        %v7584 = vld [vmem:[%s7582 + $0x8] sm:$0xff]
        %v7585 = vld [vmem:[%s7582 + $0x10] sm:$0x3f]
        %v7586 = vsel %vm890, %v1533, 0
        %v7589 = vsel %vm1107, %v7585, 0
        %7591 = vmatprep.subr.mxu0 0.0
        %7592 = vmatpush1.msra.mxu0 0.0
        %7593 = vmatprep.subr.mxu0 0.0
        %7594 = vmatpush1.msra.mxu0 0.0
        %7595 = vmatprep.subr.mxu0 0.0
        %7596 = vmatpush1.msra.mxu0 0.0
        %7597 = vmatprep.subr.mxu0 0.0
        %7598 = vmatpush1.msra.mxu0 0.0
        %7599 = vmatprep.subr.mxu0 0.0
        %7600 = vmatpush1.msra.mxu0 0.0
        %7601 = vmatprep.subr.mxu0 0.0
        %7602 = vmatpush1.msra.mxu0 0.0
        %7603 = vmatprep.subr.mxu0 0.0
        %7604 = vmatpush1.msra.mxu0 0.0
        %7605 = vmatprep.subr.mxu0 0.0
        %7606 = vmatpush1.msra.mxu0 0.0
        %7607 = vmatprep.subr.mxu0 0.0
        %7608 = vmatpush1.msra.mxu0 0.0
        %7609 = vmatprep.subr.mxu0 0.0
        %7610 = vmatpush1.msra.mxu0 0.0
        %7611 = vmatprep.subr.mxu0 0.0
        %7612 = vmatpush1.msra.mxu0 0.0
        %7613 = vmatprep.subr.mxu0 0.0
        %7614 = vmatpush1.msra.mxu0 0.0
        %7615 = vmatprep.subr.mxu0 0.0
        %7616 = vmatpush1.msra.mxu0 0.0
        %7617 = vmatprep.subr.mxu0 0.0
        %7618 = vmatpush1.msra.mxu0 %v7589
        %7619 = vmatprep.subr.mxu0 0.0
        %7620 = vmatpush1.msra.mxu0 %v7584
        %7621 = vmatprep.subr.mxu0 0.0
        %7622 = vmatpush1.msra.mxu0 %v7583
        %7623 = vmatprep.subr.mxu0 0.0
        %7624 = vmatpush2.msra.mxu0 0.0
        %7625 = vmatprep.subr.mxu0 0.0
        %7626 = vmatpush2.msra.mxu0 0.0
        %7627 = vmatprep.subr.mxu0 0.0
        %7628 = vmatpush2.msra.mxu0 0.0
        %7629 = vmatprep.subr.mxu0 0.0
        %7630 = vmatpush2.msra.mxu0 0.0
        %7631 = vmatprep.subr.mxu0 0.0
        %7632 = vmatpush2.msra.mxu0 0.0
        %7633 = vmatprep.subr.mxu0 0.0
        %7634 = vmatpush2.msra.mxu0 0.0
        %7635 = vmatprep.subr.mxu0 0.0
        %7636 = vmatpush2.msra.mxu0 0.0
        %7637 = vmatprep.subr.mxu0 0.0
        %7638 = vmatpush2.msra.mxu0 0.0
        %7639 = vmatprep.subr.mxu0 0.0
        %7640 = vmatpush2.msra.mxu0 0.0
        %7641 = vmatprep.subr.mxu0 0.0
        %7642 = vmatpush2.msra.mxu0 0.0
        %7643 = vmatprep.subr.mxu0 0.0
        %7644 = vmatpush2.msra.mxu0 0.0
        %7645 = vmatprep.subr.mxu0 0.0
        %7646 = vmatpush2.msra.mxu0 0.0
        %7647 = vmatprep.subr.mxu0 0.0
        %7648 = vmatpush2.msra.mxu0 0.0
        %7649 = vmatprep.subr.mxu0 0.0
        %7650 = vmatpush2.msra.mxu0 0.0
        %7651 = vmatprep.subr.mxu0 0.0
        %7652 = vmatpush2.msra.mxu0 0.0
        %7653 = vmatprep.subr.mxu0 0.0
        %7654 = vmatpush2.msra.mxu0 0.0
        %7655 = vmatprep.mubr.f32.mxu0 0.0
        %7656 = vmatmul.mubr.f32.gmra.mxu0 %v2323
        %v7657 = vpop.f32.mrf.mxu0
        %v7658 = vadd.f32 0.0, %v7657
        %v7659 = vpop.f32.mrf.mxu0
        %7660 = vmatprep.mubr.f32.mxu0 0.0
        %7661 = vmatmul.mubr.f32.gmra.mxu0 %v2325
        %v7662 = vpop.f32.mrf.mxu0
        %v7663 = vadd.f32 0.0, %v7662
        %v7664 = vpop.f32.mrf.mxu0
        %7665 = vmatprep.mubr.f32.mxu0 0.0
        %7666 = vmatmul.mubr.f32.gmra.mxu0 %v2327
        %v7667 = vpop.f32.mrf.mxu0
        %v7668 = vadd.f32 0.0, %v7667
        %v7669 = vpop.f32.mrf.mxu0
        %7670 = vmatprep.mubr.f32.mxu0 0.0
        %7671 = vmatmul.mubr.f32.gmra.mxu0 %v2329
        %v7672 = vpop.f32.mrf.mxu0
        %v7673 = vadd.f32 0.0, %v7672
        %v7674 = vpop.f32.mrf.mxu0
        %7675 = vmatprep.mubr.f32.mxu0 0.0
        %7676 = vmatmul.mubr.f32.gmra.mxu0 %v2331
        %v7677 = vpop.f32.mrf.mxu0
        %v7678 = vadd.f32 0.0, %v7677
        %v7679 = vpop.f32.mrf.mxu0
        %7680 = vmatprep.mubr.f32.mxu0 0.0
        %7681 = vmatmul.mubr.f32.gmra.mxu0 %v2333
        %v7682 = vpop.f32.mrf.mxu0
        %v7683 = vadd.f32 0.0, %v7682
        %v7684 = vpop.f32.mrf.mxu0
        %7685 = vmatprep.mubr.f32.mxu0 0.0
        %7686 = vmatmul.mubr.f32.gmra.mxu0 %v2335
        %v7687 = vpop.f32.mrf.mxu0
        %v7688 = vadd.f32 0.0, %v7687
        %v7689 = vpop.f32.mrf.mxu0
        %7690 = vmatprep.mubr.f32.mxu0 0.0
        %7691 = vmatmul.mubr.f32.gmra.mxu0 %v2337
        %v7692 = vpop.f32.mrf.mxu0
        %v7693 = vadd.f32 0.0, %v7692
        %v7694 = vpop.f32.mrf.mxu0
        %7695 = vmatprep.mubr.f32.mxu0 0.0
        %7696 = vmatmul.mubr.f32.gmra.mxu0 %v2339
        %v7697 = vpop.f32.mrf.mxu0
        %v7698 = vadd.f32 0.0, %v7697
        %v7699 = vpop.f32.mrf.mxu0
        %7700 = vmatprep.mubr.f32.mxu0 0.0
        %7701 = vmatmul.mubr.f32.gmra.mxu0 %v2341
        %v7702 = vpop.f32.mrf.mxu0
        %v7703 = vadd.f32 0.0, %v7702
        %v7704 = vpop.f32.mrf.mxu0
        %7705 = vmatprep.mubr.f32.mxu0 0.0
        %7706 = vmatmul.mubr.f32.gmra.mxu0 %v2343
        %v7707 = vpop.f32.mrf.mxu0
        %v7708 = vadd.f32 0.0, %v7707
        %v7709 = vpop.f32.mrf.mxu0
        %7710 = vmatprep.mubr.f32.mxu0 0.0
        %7711 = vmatmul.mubr.f32.gmra.mxu0 %v2345
        %v7712 = vpop.f32.mrf.mxu0
        %v7713 = vadd.f32 0.0, %v7712
        %v7714 = vpop.f32.mrf.mxu0
        %7715 = vmatprep.mubr.f32.mxu0 0.0
        %7716 = vmatmul.mubr.f32.gmra.mxu0 %v2347
        %v7717 = vpop.f32.mrf.mxu0
        %v7718 = vadd.f32 0.0, %v7717
        %v7719 = vpop.f32.mrf.mxu0
        %7720 = vmatprep.mubr.f32.mxu0 0.0
        %7721 = vmatmul.mubr.f32.gmra.mxu0 %v2349
        %v7722 = vpop.f32.mrf.mxu0
        %v7723 = vadd.f32 0.0, %v7722
        %v7724 = vpop.f32.mrf.mxu0
        %7725 = vmatprep.mubr.f32.mxu0 0.0
        %7726 = vmatmul.mubr.f32.gmra.mxu0 %v2351
        %v7727 = vpop.f32.mrf.mxu0
        %v7728 = vadd.f32 0.0, %v7727
        %v7729 = vpop.f32.mrf.mxu0
        %7730 = vmatprep.mubr.f32.mxu0 0.0
        %7731 = vmatmul.mubr.f32.gmra.mxu0 %v2353
        %v7732 = vpop.f32.mrf.mxu0
        %v7733 = vadd.f32 0.0, %v7732
        %v7734 = vpop.f32.mrf.mxu0
        %7735 = vmatprep.mubr.f32.mxu0 0.0
        %7736 = vmatmul.mubr.f32.gmra.mxu0 %v2355
        %v7737 = vpop.f32.mrf.mxu0
        %v7738 = vadd.f32 0.0, %v7737
        %v7739 = vpop.f32.mrf.mxu0
        %7740 = vmatprep.mubr.f32.mxu0 0.0
        %7741 = vmatmul.mubr.f32.gmra.mxu0 %v2357
        %v7742 = vpop.f32.mrf.mxu0
        %v7743 = vadd.f32 0.0, %v7742
        %v7744 = vpop.f32.mrf.mxu0
        %7745 = vmatprep.mubr.f32.mxu0 0.0
        %7746 = vmatmul.mubr.f32.gmra.mxu0 %v2359
        %v7747 = vpop.f32.mrf.mxu0
        %v7748 = vadd.f32 0.0, %v7747
        %v7749 = vpop.f32.mrf.mxu0
        %7750 = vmatprep.mubr.f32.mxu0 0.0
        %7751 = vmatmul.mubr.f32.gmra.mxu0 %v2361
        %v7752 = vpop.f32.mrf.mxu0
        %v7753 = vadd.f32 0.0, %v7752
        %v7754 = vpop.f32.mrf.mxu0
        %7755 = vmatprep.mubr.f32.mxu0 0.0
        %7756 = vmatmul.mubr.f32.gmra.mxu0 %v2363
        %v7757 = vpop.f32.mrf.mxu0
        %v7758 = vadd.f32 0.0, %v7757
        %v7759 = vpop.f32.mrf.mxu0
        %7760 = vmatprep.mubr.f32.mxu0 0.0
        %7761 = vmatmul.mubr.f32.gmra.mxu0 %v2365
        %v7762 = vpop.f32.mrf.mxu0
        %v7763 = vadd.f32 0.0, %v7762
        %v7764 = vpop.f32.mrf.mxu0
        %7765 = vmatprep.mubr.f32.mxu0 0.0
        %7766 = vmatmul.mubr.f32.gmra.mxu0 %v2367
        %v7767 = vpop.f32.mrf.mxu0
        %v7768 = vadd.f32 0.0, %v7767
        %v7769 = vpop.f32.mrf.mxu0
        %7770 = vmatprep.mubr.f32.mxu0 0.0
        %7771 = vmatmul.mubr.f32.gmra.mxu0 %v2369
        %v7772 = vpop.f32.mrf.mxu0
        %v7773 = vadd.f32 0.0, %v7772
        %v7774 = vpop.f32.mrf.mxu0
        %7775 = vmatprep.mubr.f32.mxu0 0.0
        %7776 = vmatmul.mubr.f32.gmra.mxu0 %v2371
        %v7777 = vpop.f32.mrf.mxu0
        %v7778 = vadd.f32 0.0, %v7777
        %v7779 = vpop.f32.mrf.mxu0
        %7780 = vmatprep.mubr.f32.mxu0 0.0
        %7781 = vmatmul.mubr.f32.gmra.mxu0 %v2373
        %v7782 = vpop.f32.mrf.mxu0
        %v7783 = vadd.f32 0.0, %v7782
        %v7784 = vpop.f32.mrf.mxu0
        %7785 = vmatprep.mubr.f32.mxu0 0.0
        %7786 = vmatmul.mubr.f32.gmra.mxu0 %v2375
        %v7787 = vpop.f32.mrf.mxu0
        %v7788 = vadd.f32 0.0, %v7787
        %v7789 = vpop.f32.mrf.mxu0
        %7790 = vmatprep.mubr.f32.mxu0 0.0
        %7791 = vmatmul.mubr.f32.gmra.mxu0 %v2377
        %v7792 = vpop.f32.mrf.mxu0
        %v7793 = vadd.f32 0.0, %v7792
        %v7794 = vpop.f32.mrf.mxu0
        %7795 = vmatprep.mubr.f32.mxu0 0.0
        %7796 = vmatmul.mubr.f32.gmra.mxu0 %v2379
        %v7797 = vpop.f32.mrf.mxu0
        %v7798 = vadd.f32 0.0, %v7797
        %v7799 = vpop.f32.mrf.mxu0
        %7800 = vmatprep.mubr.f32.mxu0 0.0
        %7801 = vmatmul.mubr.f32.gmra.mxu0 %v2381
        %v7802 = vpop.f32.mrf.mxu0
        %v7803 = vadd.f32 0.0, %v7802
        %v7804 = vpop.f32.mrf.mxu0
        %7805 = vmatprep.mubr.f32.mxu0 0.0
        %7806 = vmatmul.mubr.f32.gmra.mxu0 %v2383
        %v7807 = vpop.f32.mrf.mxu0
        %v7808 = vadd.f32 0.0, %v7807
        %v7809 = vpop.f32.mrf.mxu0
        %7810 = vmatprep.mubr.f32.mxu0 0.0
        %7811 = vmatmul.mubr.f32.gmra.mxu0 %v2385
        %v7812 = vpop.f32.mrf.mxu0
        %v7813 = vadd.f32 0.0, %v7812
        %v7814 = vpop.f32.mrf.mxu0
        %7815 = vmatprep.mubr.f32.mxu0 0.0
        %7816 = vmatmul.mubr.f32.gmra.mxu0 %v2387
        %v7817 = vpop.f32.mrf.mxu0
        %v7818 = vadd.f32 0.0, %v7817
        %v7819 = vpop.f32.mrf.mxu0
        %7820 = vmatprep.mubr.f32.mxu0 0.0
        %7821 = vmatmul.mubr.f32.gmra.mxu0 %v2389
        %v7822 = vpop.f32.mrf.mxu0
        %v7823 = vadd.f32 0.0, %v7822
        %v7824 = vpop.f32.mrf.mxu0
        %7825 = vmatprep.mubr.f32.mxu0 0.0
        %7826 = vmatmul.mubr.f32.gmra.mxu0 %v2391
        %v7827 = vpop.f32.mrf.mxu0
        %v7828 = vadd.f32 0.0, %v7827
        %v7829 = vpop.f32.mrf.mxu0
        %7830 = vmatprep.mubr.f32.mxu0 0.0
        %7831 = vmatmul.mubr.f32.gmra.mxu0 %v2393
        %v7832 = vpop.f32.mrf.mxu0
        %v7833 = vadd.f32 0.0, %v7832
        %v7834 = vpop.f32.mrf.mxu0
        %7835 = vmatprep.mubr.f32.mxu0 0.0
        %7836 = vmatmul.mubr.f32.gmra.mxu0 %v2395
        %v7837 = vpop.f32.mrf.mxu0
        %v7838 = vadd.f32 0.0, %v7837
        %v7839 = vpop.f32.mrf.mxu0
        %7840 = vmatprep.mubr.f32.mxu0 0.0
        %7841 = vmatmul.mubr.f32.gmra.mxu0 %v2397
        %v7842 = vpop.f32.mrf.mxu0
        %v7843 = vadd.f32 0.0, %v7842
        %v7844 = vpop.f32.mrf.mxu0
        %7845 = vmatprep.mubr.f32.mxu0 0.0
        %7846 = vmatmul.mubr.f32.gmra.mxu0 %v2399
        %v7847 = vpop.f32.mrf.mxu0
        %v7848 = vadd.f32 0.0, %v7847
        %v7849 = vpop.f32.mrf.mxu0
        %7850 = vmatprep.mubr.f32.mxu0 0.0
        %7851 = vmatmul.mubr.f32.gmra.mxu0 %v2401
        %v7852 = vpop.f32.mrf.mxu0
        %v7853 = vadd.f32 0.0, %v7852
        %v7854 = vpop.f32.mrf.mxu0
        %7855 = vmatprep.mubr.f32.mxu0 0.0
        %7856 = vmatmul.mubr.f32.gmra.mxu0 %v2403
        %v7857 = vpop.f32.mrf.mxu0
        %v7858 = vadd.f32 0.0, %v7857
        %v7859 = vpop.f32.mrf.mxu0
        %7860 = vmatprep.mubr.f32.mxu0 0.0
        %7861 = vmatmul.mubr.f32.gmra.mxu0 %v2405
        %v7862 = vpop.f32.mrf.mxu0
        %v7863 = vadd.f32 0.0, %v7862
        %v7864 = vpop.f32.mrf.mxu0
        %7865 = vmatprep.mubr.f32.mxu0 0.0
        %7866 = vmatmul.mubr.f32.gmra.mxu0 %v2407
        %v7867 = vpop.f32.mrf.mxu0
        %v7868 = vadd.f32 0.0, %v7867
        %v7869 = vpop.f32.mrf.mxu0
        %7870 = vmatprep.mubr.f32.mxu0 0.0
        %7871 = vmatmul.mubr.f32.gmra.mxu0 %v2409
        %v7872 = vpop.f32.mrf.mxu0
        %v7873 = vadd.f32 0.0, %v7872
        %v7874 = vpop.f32.mrf.mxu0
        %7875 = vmatprep.mubr.f32.mxu0 0.0
        %7876 = vmatmul.mubr.f32.gmra.mxu0 %v2411
        %v7877 = vpop.f32.mrf.mxu0
        %v7878 = vadd.f32 0.0, %v7877
        %v7879 = vpop.f32.mrf.mxu0
        %7880 = vmatprep.mubr.f32.mxu0 0.0
        %7881 = vmatmul.mubr.f32.gmra.mxu0 %v2413
        %v7882 = vpop.f32.mrf.mxu0
        %v7883 = vadd.f32 0.0, %v7882
        %v7884 = vpop.f32.mrf.mxu0
        %7885 = vmatprep.mubr.f32.mxu0 0.0
        %7886 = vmatmul.mubr.f32.gmra.mxu0 %v2415
        %v7887 = vpop.f32.mrf.mxu0
        %v7888 = vadd.f32 0.0, %v7887
        %v7889 = vpop.f32.mrf.mxu0
        %7890 = vmatprep.mubr.f32.mxu0 0.0
        %7891 = vmatmul.mubr.f32.gmra.mxu0 %v2417
        %v7892 = vpop.f32.mrf.mxu0
        %v7893 = vadd.f32 0.0, %v7892
        %v7894 = vpop.f32.mrf.mxu0
        %7895 = vmatprep.mubr.f32.mxu0 0.0
        %7896 = vmatmul.mubr.f32.gmra.mxu0 %v2419
        %v7897 = vpop.f32.mrf.mxu0
        %v7898 = vadd.f32 0.0, %v7897
        %v7899 = vpop.f32.mrf.mxu0
        %7900 = vmatprep.mubr.f32.mxu0 0.0
        %7901 = vmatmul.mubr.f32.gmra.mxu0 %v2421
        %v7902 = vpop.f32.mrf.mxu0
        %v7903 = vadd.f32 0.0, %v7902
        %v7904 = vpop.f32.mrf.mxu0
        %7905 = vmatprep.mubr.f32.mxu0 0.0
        %7906 = vmatmul.mubr.f32.gmra.mxu0 %v2423
        %v7907 = vpop.f32.mrf.mxu0
        %v7908 = vadd.f32 0.0, %v7907
        %v7909 = vpop.f32.mrf.mxu0
        %7910 = vmatprep.mubr.f32.mxu0 0.0
        %7911 = vmatmul.mubr.f32.gmra.mxu0 %v2425
        %v7912 = vpop.f32.mrf.mxu0
        %v7913 = vadd.f32 0.0, %v7912
        %v7914 = vpop.f32.mrf.mxu0
        %7915 = vmatprep.mubr.f32.mxu0 0.0
        %7916 = vmatmul.mubr.f32.gmra.mxu0 %v2427
        %v7917 = vpop.f32.mrf.mxu0
        %v7918 = vadd.f32 0.0, %v7917
        %v7919 = vpop.f32.mrf.mxu0
        %7920 = vmatprep.mubr.f32.mxu0 0.0
        %7921 = vmatmul.mubr.f32.gmra.mxu0 %v2429
        %v7922 = vpop.f32.mrf.mxu0
        %v7923 = vadd.f32 0.0, %v7922
        %v7924 = vpop.f32.mrf.mxu0
        %7925 = vmatprep.mubr.f32.mxu0 0.0
        %7926 = vmatmul.mubr.f32.gmra.mxu0 %v2431
        %v7927 = vpop.f32.mrf.mxu0
        %v7928 = vadd.f32 0.0, %v7927
        %v7929 = vpop.f32.mrf.mxu0
        %7930 = vmatprep.mubr.f32.mxu0 0.0
        %7931 = vmatmul.mubr.f32.gmra.mxu0 %v2433
        %v7932 = vpop.f32.mrf.mxu0
        %v7933 = vadd.f32 0.0, %v7932
        %v7934 = vpop.f32.mrf.mxu0
        %7935 = vmatprep.mubr.f32.mxu0 0.0
        %7936 = vmatmul.mubr.f32.gmra.mxu0 %v2435
        %v7937 = vpop.f32.mrf.mxu0
        %v7938 = vadd.f32 0.0, %v7937
        %v7939 = vpop.f32.mrf.mxu0
        %7940 = vmatprep.mubr.f32.mxu0 0.0
        %7941 = vmatmul.mubr.f32.gmra.mxu0 %v2437
        %v7942 = vpop.f32.mrf.mxu0
        %v7943 = vadd.f32 0.0, %v7942
        %v7944 = vpop.f32.mrf.mxu0
        %7945 = vmatprep.mubr.f32.mxu0 0.0
        %7946 = vmatmul.mubr.f32.gmra.mxu0 %v2439
        %v7947 = vpop.f32.mrf.mxu0
        %v7948 = vadd.f32 0.0, %v7947
        %v7949 = vpop.f32.mrf.mxu0
        %7950 = vmatprep.mubr.f32.mxu0 0.0
        %7951 = vmatmul.mubr.f32.gmra.mxu0 %v2441
        %v7952 = vpop.f32.mrf.mxu0
        %v7953 = vadd.f32 0.0, %v7952
        %v7954 = vpop.f32.mrf.mxu0
        %7955 = vmatprep.mubr.f32.mxu0 0.0
        %7956 = vmatmul.mubr.f32.gmra.mxu0 %v2443
        %v7957 = vpop.f32.mrf.mxu0
        %v7958 = vadd.f32 0.0, %v7957
        %v7959 = vpop.f32.mrf.mxu0
        %7960 = vmatprep.mubr.f32.mxu0 0.0
        %7961 = vmatmul.mubr.f32.gmra.mxu0 %v2445
        %v7962 = vpop.f32.mrf.mxu0
        %v7963 = vadd.f32 0.0, %v7962
        %v7964 = vpop.f32.mrf.mxu0
        %7965 = vmatprep.mubr.f32.mxu0 0.0
        %7966 = vmatmul.mubr.f32.gmra.mxu0 %v2447
        %v7967 = vpop.f32.mrf.mxu0
        %v7968 = vadd.f32 0.0, %v7967
        %v7969 = vpop.f32.mrf.mxu0
        %7970 = vmatprep.mubr.f32.mxu0 0.0
        %7971 = vmatmul.mubr.f32.gmra.mxu0 %v2449
        %v7972 = vpop.f32.mrf.mxu0
        %v7973 = vadd.f32 0.0, %v7972
        %v7974 = vpop.f32.mrf.mxu0
        %7975 = vmatprep.mubr.f32.mxu0 0.0
        %7976 = vmatmul.mubr.f32.gmra.mxu0 %v2451
        %v7977 = vpop.f32.mrf.mxu0
        %v7978 = vadd.f32 0.0, %v7977
        %v7979 = vpop.f32.mrf.mxu0
        %7980 = vmatprep.mubr.f32.mxu0 0.0
        %7981 = vmatmul.mubr.f32.gmra.mxu0 %v2453
        %v7982 = vpop.f32.mrf.mxu0
        %v7983 = vadd.f32 0.0, %v7982
        %v7984 = vpop.f32.mrf.mxu0
        %7985 = vmatprep.mubr.f32.mxu0 0.0
        %7986 = vmatmul.mubr.f32.gmra.mxu0 %v2455
        %v7987 = vpop.f32.mrf.mxu0
        %v7988 = vadd.f32 0.0, %v7987
        %v7989 = vpop.f32.mrf.mxu0
        %7990 = vmatprep.mubr.f32.mxu0 0.0
        %7991 = vmatmul.mubr.f32.gmra.mxu0 %v2457
        %v7992 = vpop.f32.mrf.mxu0
        %v7993 = vadd.f32 0.0, %v7992
        %v7994 = vpop.f32.mrf.mxu0
        %7995 = vmatprep.mubr.f32.mxu0 0.0
        %7996 = vmatmul.mubr.f32.gmra.mxu0 %v2459
        %v7997 = vpop.f32.mrf.mxu0
        %v7998 = vadd.f32 0.0, %v7997
        %v7999 = vpop.f32.mrf.mxu0
        %8000 = vmatprep.mubr.f32.mxu0 0.0
        %8001 = vmatmul.mubr.f32.gmra.mxu0 %v2461
        %v8002 = vpop.f32.mrf.mxu0
        %v8003 = vadd.f32 0.0, %v8002
        %v8004 = vpop.f32.mrf.mxu0
        %8005 = vmatprep.mubr.f32.mxu0 0.0
        %8006 = vmatmul.mubr.f32.gmra.mxu0 %v7586
        %v8007 = vpop.f32.mrf.mxu0
        %v8008 = vadd.f32 0.0, %v8007
        %v8009 = vpop.f32.mrf.mxu0
        %8010 = vdwg.mxu0
        %v8011 = vadd.f32 %v7511, %v7658
        %v8012 = vadd.f32 %v7512, %v7663
        %v8013 = vadd.f32 %v7513, %v7668
        %v8014 = vadd.f32 %v7514, %v7673
        %v8015 = vadd.f32 %v7515, %v7678
        %v8016 = vadd.f32 %v7516, %v7683
        %v8017 = vadd.f32 %v7517, %v7688
        %v8018 = vadd.f32 %v7518, %v7693
        %v8019 = vadd.f32 %v7519, %v7698
        %v8020 = vadd.f32 %v7520, %v7703
        %v8021 = vadd.f32 %v7521, %v7708
        %v8022 = vadd.f32 %v7522, %v7713
        %v8023 = vadd.f32 %v7523, %v7718
        %v8024 = vadd.f32 %v7524, %v7723
        %v8025 = vadd.f32 %v7525, %v7728
        %v8026 = vadd.f32 %v7526, %v7733
        %v8027 = vadd.f32 %v7527, %v7738
        %v8028 = vadd.f32 %v7528, %v7743
        %v8029 = vadd.f32 %v7529, %v7748
        %v8030 = vadd.f32 %v7530, %v7753
        %v8031 = vadd.f32 %v7531, %v7758
        %v8032 = vadd.f32 %v7532, %v7763
        %v8033 = vadd.f32 %v7533, %v7768
        %v8034 = vadd.f32 %v7534, %v7773
        %v8035 = vadd.f32 %v7535, %v7778
        %v8036 = vadd.f32 %v7536, %v7783
        %v8037 = vadd.f32 %v7537, %v7788
        %v8038 = vadd.f32 %v7538, %v7793
        %v8039 = vadd.f32 %v7539, %v7798
        %v8040 = vadd.f32 %v7540, %v7803
        %v8041 = vadd.f32 %v7541, %v7808
        %v8042 = vadd.f32 %v7542, %v7813
        %v8043 = vadd.f32 %v7543, %v7818
        %v8044 = vadd.f32 %v7544, %v7823
        %v8045 = vadd.f32 %v7545, %v7828
        %v8046 = vadd.f32 %v7546, %v7833
        %v8047 = vadd.f32 %v7547, %v7838
        %v8048 = vadd.f32 %v7548, %v7843
        %v8049 = vadd.f32 %v7549, %v7848
        %v8050 = vadd.f32 %v7550, %v7853
        %v8051 = vadd.f32 %v7551, %v7858
        %v8052 = vadd.f32 %v7552, %v7863
        %v8053 = vadd.f32 %v7553, %v7868
        %v8054 = vadd.f32 %v7554, %v7873
        %v8055 = vadd.f32 %v7555, %v7878
        %v8056 = vadd.f32 %v7556, %v7883
        %v8057 = vadd.f32 %v7557, %v7888
        %v8058 = vadd.f32 %v7558, %v7893
        %v8059 = vadd.f32 %v7559, %v7898
        %v8060 = vadd.f32 %v7560, %v7903
        %v8061 = vadd.f32 %v7561, %v7908
        %v8062 = vadd.f32 %v7562, %v7913
        %v8063 = vadd.f32 %v7563, %v7918
        %v8064 = vadd.f32 %v7564, %v7923
        %v8065 = vadd.f32 %v7565, %v7928
        %v8066 = vadd.f32 %v7566, %v7933
        %v8067 = vadd.f32 %v7567, %v7938
        %v8068 = vadd.f32 %v7568, %v7943
        %v8069 = vadd.f32 %v7569, %v7948
        %v8070 = vadd.f32 %v7570, %v7953
        %v8071 = vadd.f32 %v7571, %v7958
        %v8072 = vadd.f32 %v7572, %v7963
        %v8073 = vadd.f32 %v7573, %v7968
        %v8074 = vadd.f32 %v7574, %v7973
        %v8075 = vadd.f32 %v7575, %v7978
        %v8076 = vadd.f32 %v7576, %v7983
        %v8077 = vadd.f32 %v7577, %v7988
        %v8078 = vadd.f32 %v7578, %v7993
        %v8079 = vadd.f32 %v7579, %v7998
        %v8080 = vadd.f32 %v7580, %v8003
        %v8081 = vadd.f32 %v7581, %v8008
        %s8082 = scalar_lea.vmem %s3, 216
        %v8083 = vld [vmem:[%s8082] sm:$0xff]
        %v8084 = vld [vmem:[%s8082 + $0x8] sm:$0xff]
        %v8085 = vld [vmem:[%s8082 + $0x10] sm:$0x3f]
        %v8086 = vrot.slane %v1533, 1
        %v8087 = vsel %vm1614, %v1754, %v8086
        %v8088 = vsel %vm890, %v8087, 0
        %v8090 = vsel %vm890, %v8086, 0
        %v8093 = vsel %vm1107, %v8085, 0
        %8095 = vmatprep.subr.mxu0 0.0
        %8096 = vmatpush1.msra.mxu0 0.0
        %8097 = vmatprep.subr.mxu0 0.0
        %8098 = vmatpush1.msra.mxu0 0.0
        %8099 = vmatprep.subr.mxu0 0.0
        %8100 = vmatpush1.msra.mxu0 0.0
        %8101 = vmatprep.subr.mxu0 0.0
        %8102 = vmatpush1.msra.mxu0 0.0
        %8103 = vmatprep.subr.mxu0 0.0
        %8104 = vmatpush1.msra.mxu0 0.0
        %8105 = vmatprep.subr.mxu0 0.0
        %8106 = vmatpush1.msra.mxu0 0.0
        %8107 = vmatprep.subr.mxu0 0.0
        %8108 = vmatpush1.msra.mxu0 0.0
        %8109 = vmatprep.subr.mxu0 0.0
        %8110 = vmatpush1.msra.mxu0 0.0
        %8111 = vmatprep.subr.mxu0 0.0
        %8112 = vmatpush1.msra.mxu0 0.0
        %8113 = vmatprep.subr.mxu0 0.0
        %8114 = vmatpush1.msra.mxu0 0.0
        %8115 = vmatprep.subr.mxu0 0.0
        %8116 = vmatpush1.msra.mxu0 0.0
        %8117 = vmatprep.subr.mxu0 0.0
        %8118 = vmatpush1.msra.mxu0 0.0
        %8119 = vmatprep.subr.mxu0 0.0
        %8120 = vmatpush1.msra.mxu0 0.0
        %8121 = vmatprep.subr.mxu0 0.0
        %8122 = vmatpush1.msra.mxu0 %v8093
        %8123 = vmatprep.subr.mxu0 0.0
        %8124 = vmatpush1.msra.mxu0 %v8084
        %8125 = vmatprep.subr.mxu0 0.0
        %8126 = vmatpush1.msra.mxu0 %v8083
        %8127 = vmatprep.subr.mxu0 0.0
        %8128 = vmatpush2.msra.mxu0 0.0
        %8129 = vmatprep.subr.mxu0 0.0
        %8130 = vmatpush2.msra.mxu0 0.0
        %8131 = vmatprep.subr.mxu0 0.0
        %8132 = vmatpush2.msra.mxu0 0.0
        %8133 = vmatprep.subr.mxu0 0.0
        %8134 = vmatpush2.msra.mxu0 0.0
        %8135 = vmatprep.subr.mxu0 0.0
        %8136 = vmatpush2.msra.mxu0 0.0
        %8137 = vmatprep.subr.mxu0 0.0
        %8138 = vmatpush2.msra.mxu0 0.0
        %8139 = vmatprep.subr.mxu0 0.0
        %8140 = vmatpush2.msra.mxu0 0.0
        %8141 = vmatprep.subr.mxu0 0.0
        %8142 = vmatpush2.msra.mxu0 0.0
        %8143 = vmatprep.subr.mxu0 0.0
        %8144 = vmatpush2.msra.mxu0 0.0
        %8145 = vmatprep.subr.mxu0 0.0
        %8146 = vmatpush2.msra.mxu0 0.0
        %8147 = vmatprep.subr.mxu0 0.0
        %8148 = vmatpush2.msra.mxu0 0.0
        %8149 = vmatprep.subr.mxu0 0.0
        %8150 = vmatpush2.msra.mxu0 0.0
        %8151 = vmatprep.subr.mxu0 0.0
        %8152 = vmatpush2.msra.mxu0 0.0
        %8153 = vmatprep.subr.mxu0 0.0
        %8154 = vmatpush2.msra.mxu0 0.0
        %8155 = vmatprep.subr.mxu0 0.0
        %8156 = vmatpush2.msra.mxu0 0.0
        %8157 = vmatprep.subr.mxu0 0.0
        %8158 = vmatpush2.msra.mxu0 0.0
        %8159 = vmatprep.mubr.f32.mxu0 0.0
        %8160 = vmatmul.mubr.f32.gmra.mxu0 %v1758
        %v8161 = vpop.f32.mrf.mxu0
        %v8162 = vadd.f32 0.0, %v8161
        %v8163 = vpop.f32.mrf.mxu0
        %8164 = vmatprep.mubr.f32.mxu0 0.0
        %8165 = vmatmul.mubr.f32.gmra.mxu0 %v1760
        %v8166 = vpop.f32.mrf.mxu0
        %v8167 = vadd.f32 0.0, %v8166
        %v8168 = vpop.f32.mrf.mxu0
        %8169 = vmatprep.mubr.f32.mxu0 0.0
        %8170 = vmatmul.mubr.f32.gmra.mxu0 %v1762
        %v8171 = vpop.f32.mrf.mxu0
        %v8172 = vadd.f32 0.0, %v8171
        %v8173 = vpop.f32.mrf.mxu0
        %8174 = vmatprep.mubr.f32.mxu0 0.0
        %8175 = vmatmul.mubr.f32.gmra.mxu0 %v1764
        %v8176 = vpop.f32.mrf.mxu0
        %v8177 = vadd.f32 0.0, %v8176
        %v8178 = vpop.f32.mrf.mxu0
        %8179 = vmatprep.mubr.f32.mxu0 0.0
        %8180 = vmatmul.mubr.f32.gmra.mxu0 %v1766
        %v8181 = vpop.f32.mrf.mxu0
        %v8182 = vadd.f32 0.0, %v8181
        %v8183 = vpop.f32.mrf.mxu0
        %8184 = vmatprep.mubr.f32.mxu0 0.0
        %8185 = vmatmul.mubr.f32.gmra.mxu0 %v1768
        %v8186 = vpop.f32.mrf.mxu0
        %v8187 = vadd.f32 0.0, %v8186
        %v8188 = vpop.f32.mrf.mxu0
        %8189 = vmatprep.mubr.f32.mxu0 0.0
        %8190 = vmatmul.mubr.f32.gmra.mxu0 %v1770
        %v8191 = vpop.f32.mrf.mxu0
        %v8192 = vadd.f32 0.0, %v8191
        %v8193 = vpop.f32.mrf.mxu0
        %8194 = vmatprep.mubr.f32.mxu0 0.0
        %8195 = vmatmul.mubr.f32.gmra.mxu0 %v1772
        %v8196 = vpop.f32.mrf.mxu0
        %v8197 = vadd.f32 0.0, %v8196
        %v8198 = vpop.f32.mrf.mxu0
        %8199 = vmatprep.mubr.f32.mxu0 0.0
        %8200 = vmatmul.mubr.f32.gmra.mxu0 %v1774
        %v8201 = vpop.f32.mrf.mxu0
        %v8202 = vadd.f32 0.0, %v8201
        %v8203 = vpop.f32.mrf.mxu0
        %8204 = vmatprep.mubr.f32.mxu0 0.0
        %8205 = vmatmul.mubr.f32.gmra.mxu0 %v1776
        %v8206 = vpop.f32.mrf.mxu0
        %v8207 = vadd.f32 0.0, %v8206
        %v8208 = vpop.f32.mrf.mxu0
        %8209 = vmatprep.mubr.f32.mxu0 0.0
        %8210 = vmatmul.mubr.f32.gmra.mxu0 %v1778
        %v8211 = vpop.f32.mrf.mxu0
        %v8212 = vadd.f32 0.0, %v8211
        %v8213 = vpop.f32.mrf.mxu0
        %8214 = vmatprep.mubr.f32.mxu0 0.0
        %8215 = vmatmul.mubr.f32.gmra.mxu0 %v1780
        %v8216 = vpop.f32.mrf.mxu0
        %v8217 = vadd.f32 0.0, %v8216
        %v8218 = vpop.f32.mrf.mxu0
        %8219 = vmatprep.mubr.f32.mxu0 0.0
        %8220 = vmatmul.mubr.f32.gmra.mxu0 %v1782
        %v8221 = vpop.f32.mrf.mxu0
        %v8222 = vadd.f32 0.0, %v8221
        %v8223 = vpop.f32.mrf.mxu0
        %8224 = vmatprep.mubr.f32.mxu0 0.0
        %8225 = vmatmul.mubr.f32.gmra.mxu0 %v1784
        %v8226 = vpop.f32.mrf.mxu0
        %v8227 = vadd.f32 0.0, %v8226
        %v8228 = vpop.f32.mrf.mxu0
        %8229 = vmatprep.mubr.f32.mxu0 0.0
        %8230 = vmatmul.mubr.f32.gmra.mxu0 %v1786
        %v8231 = vpop.f32.mrf.mxu0
        %v8232 = vadd.f32 0.0, %v8231
        %v8233 = vpop.f32.mrf.mxu0
        %8234 = vmatprep.mubr.f32.mxu0 0.0
        %8235 = vmatmul.mubr.f32.gmra.mxu0 %v1788
        %v8236 = vpop.f32.mrf.mxu0
        %v8237 = vadd.f32 0.0, %v8236
        %v8238 = vpop.f32.mrf.mxu0
        %8239 = vmatprep.mubr.f32.mxu0 0.0
        %8240 = vmatmul.mubr.f32.gmra.mxu0 %v1790
        %v8241 = vpop.f32.mrf.mxu0
        %v8242 = vadd.f32 0.0, %v8241
        %v8243 = vpop.f32.mrf.mxu0
        %8244 = vmatprep.mubr.f32.mxu0 0.0
        %8245 = vmatmul.mubr.f32.gmra.mxu0 %v1792
        %v8246 = vpop.f32.mrf.mxu0
        %v8247 = vadd.f32 0.0, %v8246
        %v8248 = vpop.f32.mrf.mxu0
        %8249 = vmatprep.mubr.f32.mxu0 0.0
        %8250 = vmatmul.mubr.f32.gmra.mxu0 %v1794
        %v8251 = vpop.f32.mrf.mxu0
        %v8252 = vadd.f32 0.0, %v8251
        %v8253 = vpop.f32.mrf.mxu0
        %8254 = vmatprep.mubr.f32.mxu0 0.0
        %8255 = vmatmul.mubr.f32.gmra.mxu0 %v1796
        %v8256 = vpop.f32.mrf.mxu0
        %v8257 = vadd.f32 0.0, %v8256
        %v8258 = vpop.f32.mrf.mxu0
        %8259 = vmatprep.mubr.f32.mxu0 0.0
        %8260 = vmatmul.mubr.f32.gmra.mxu0 %v1798
        %v8261 = vpop.f32.mrf.mxu0
        %v8262 = vadd.f32 0.0, %v8261
        %v8263 = vpop.f32.mrf.mxu0
        %8264 = vmatprep.mubr.f32.mxu0 0.0
        %8265 = vmatmul.mubr.f32.gmra.mxu0 %v1800
        %v8266 = vpop.f32.mrf.mxu0
        %v8267 = vadd.f32 0.0, %v8266
        %v8268 = vpop.f32.mrf.mxu0
        %8269 = vmatprep.mubr.f32.mxu0 0.0
        %8270 = vmatmul.mubr.f32.gmra.mxu0 %v1802
        %v8271 = vpop.f32.mrf.mxu0
        %v8272 = vadd.f32 0.0, %v8271
        %v8273 = vpop.f32.mrf.mxu0
        %8274 = vmatprep.mubr.f32.mxu0 0.0
        %8275 = vmatmul.mubr.f32.gmra.mxu0 %v1804
        %v8276 = vpop.f32.mrf.mxu0
        %v8277 = vadd.f32 0.0, %v8276
        %v8278 = vpop.f32.mrf.mxu0
        %8279 = vmatprep.mubr.f32.mxu0 0.0
        %8280 = vmatmul.mubr.f32.gmra.mxu0 %v1806
        %v8281 = vpop.f32.mrf.mxu0
        %v8282 = vadd.f32 0.0, %v8281
        %v8283 = vpop.f32.mrf.mxu0
        %8284 = vmatprep.mubr.f32.mxu0 0.0
        %8285 = vmatmul.mubr.f32.gmra.mxu0 %v1808
        %v8286 = vpop.f32.mrf.mxu0
        %v8287 = vadd.f32 0.0, %v8286
        %v8288 = vpop.f32.mrf.mxu0
        %8289 = vmatprep.mubr.f32.mxu0 0.0
        %8290 = vmatmul.mubr.f32.gmra.mxu0 %v1810
        %v8291 = vpop.f32.mrf.mxu0
        %v8292 = vadd.f32 0.0, %v8291
        %v8293 = vpop.f32.mrf.mxu0
        %8294 = vmatprep.mubr.f32.mxu0 0.0
        %8295 = vmatmul.mubr.f32.gmra.mxu0 %v1812
        %v8296 = vpop.f32.mrf.mxu0
        %v8297 = vadd.f32 0.0, %v8296
        %v8298 = vpop.f32.mrf.mxu0
        %8299 = vmatprep.mubr.f32.mxu0 0.0
        %8300 = vmatmul.mubr.f32.gmra.mxu0 %v1814
        %v8301 = vpop.f32.mrf.mxu0
        %v8302 = vadd.f32 0.0, %v8301
        %v8303 = vpop.f32.mrf.mxu0
        %8304 = vmatprep.mubr.f32.mxu0 0.0
        %8305 = vmatmul.mubr.f32.gmra.mxu0 %v1816
        %v8306 = vpop.f32.mrf.mxu0
        %v8307 = vadd.f32 0.0, %v8306
        %v8308 = vpop.f32.mrf.mxu0
        %8309 = vmatprep.mubr.f32.mxu0 0.0
        %8310 = vmatmul.mubr.f32.gmra.mxu0 %v1818
        %v8311 = vpop.f32.mrf.mxu0
        %v8312 = vadd.f32 0.0, %v8311
        %v8313 = vpop.f32.mrf.mxu0
        %8314 = vmatprep.mubr.f32.mxu0 0.0
        %8315 = vmatmul.mubr.f32.gmra.mxu0 %v1820
        %v8316 = vpop.f32.mrf.mxu0
        %v8317 = vadd.f32 0.0, %v8316
        %v8318 = vpop.f32.mrf.mxu0
        %8319 = vmatprep.mubr.f32.mxu0 0.0
        %8320 = vmatmul.mubr.f32.gmra.mxu0 %v1822
        %v8321 = vpop.f32.mrf.mxu0
        %v8322 = vadd.f32 0.0, %v8321
        %v8323 = vpop.f32.mrf.mxu0
        %8324 = vmatprep.mubr.f32.mxu0 0.0
        %8325 = vmatmul.mubr.f32.gmra.mxu0 %v1824
        %v8326 = vpop.f32.mrf.mxu0
        %v8327 = vadd.f32 0.0, %v8326
        %v8328 = vpop.f32.mrf.mxu0
        %8329 = vmatprep.mubr.f32.mxu0 0.0
        %8330 = vmatmul.mubr.f32.gmra.mxu0 %v1826
        %v8331 = vpop.f32.mrf.mxu0
        %v8332 = vadd.f32 0.0, %v8331
        %v8333 = vpop.f32.mrf.mxu0
        %8334 = vmatprep.mubr.f32.mxu0 0.0
        %8335 = vmatmul.mubr.f32.gmra.mxu0 %v1828
        %v8336 = vpop.f32.mrf.mxu0
        %v8337 = vadd.f32 0.0, %v8336
        %v8338 = vpop.f32.mrf.mxu0
        %8339 = vmatprep.mubr.f32.mxu0 0.0
        %8340 = vmatmul.mubr.f32.gmra.mxu0 %v1830
        %v8341 = vpop.f32.mrf.mxu0
        %v8342 = vadd.f32 0.0, %v8341
        %v8343 = vpop.f32.mrf.mxu0
        %8344 = vmatprep.mubr.f32.mxu0 0.0
        %8345 = vmatmul.mubr.f32.gmra.mxu0 %v1832
        %v8346 = vpop.f32.mrf.mxu0
        %v8347 = vadd.f32 0.0, %v8346
        %v8348 = vpop.f32.mrf.mxu0
        %8349 = vmatprep.mubr.f32.mxu0 0.0
        %8350 = vmatmul.mubr.f32.gmra.mxu0 %v1834
        %v8351 = vpop.f32.mrf.mxu0
        %v8352 = vadd.f32 0.0, %v8351
        %v8353 = vpop.f32.mrf.mxu0
        %8354 = vmatprep.mubr.f32.mxu0 0.0
        %8355 = vmatmul.mubr.f32.gmra.mxu0 %v1836
        %v8356 = vpop.f32.mrf.mxu0
        %v8357 = vadd.f32 0.0, %v8356
        %v8358 = vpop.f32.mrf.mxu0
        %8359 = vmatprep.mubr.f32.mxu0 0.0
        %8360 = vmatmul.mubr.f32.gmra.mxu0 %v1838
        %v8361 = vpop.f32.mrf.mxu0
        %v8362 = vadd.f32 0.0, %v8361
        %v8363 = vpop.f32.mrf.mxu0
        %8364 = vmatprep.mubr.f32.mxu0 0.0
        %8365 = vmatmul.mubr.f32.gmra.mxu0 %v1840
        %v8366 = vpop.f32.mrf.mxu0
        %v8367 = vadd.f32 0.0, %v8366
        %v8368 = vpop.f32.mrf.mxu0
        %8369 = vmatprep.mubr.f32.mxu0 0.0
        %8370 = vmatmul.mubr.f32.gmra.mxu0 %v1842
        %v8371 = vpop.f32.mrf.mxu0
        %v8372 = vadd.f32 0.0, %v8371
        %v8373 = vpop.f32.mrf.mxu0
        %8374 = vmatprep.mubr.f32.mxu0 0.0
        %8375 = vmatmul.mubr.f32.gmra.mxu0 %v1844
        %v8376 = vpop.f32.mrf.mxu0
        %v8377 = vadd.f32 0.0, %v8376
        %v8378 = vpop.f32.mrf.mxu0
        %8379 = vmatprep.mubr.f32.mxu0 0.0
        %8380 = vmatmul.mubr.f32.gmra.mxu0 %v1846
        %v8381 = vpop.f32.mrf.mxu0
        %v8382 = vadd.f32 0.0, %v8381
        %v8383 = vpop.f32.mrf.mxu0
        %8384 = vmatprep.mubr.f32.mxu0 0.0
        %8385 = vmatmul.mubr.f32.gmra.mxu0 %v1848
        %v8386 = vpop.f32.mrf.mxu0
        %v8387 = vadd.f32 0.0, %v8386
        %v8388 = vpop.f32.mrf.mxu0
        %8389 = vmatprep.mubr.f32.mxu0 0.0
        %8390 = vmatmul.mubr.f32.gmra.mxu0 %v1850
        %v8391 = vpop.f32.mrf.mxu0
        %v8392 = vadd.f32 0.0, %v8391
        %v8393 = vpop.f32.mrf.mxu0
        %8394 = vmatprep.mubr.f32.mxu0 0.0
        %8395 = vmatmul.mubr.f32.gmra.mxu0 %v1852
        %v8396 = vpop.f32.mrf.mxu0
        %v8397 = vadd.f32 0.0, %v8396
        %v8398 = vpop.f32.mrf.mxu0
        %8399 = vmatprep.mubr.f32.mxu0 0.0
        %8400 = vmatmul.mubr.f32.gmra.mxu0 %v1854
        %v8401 = vpop.f32.mrf.mxu0
        %v8402 = vadd.f32 0.0, %v8401
        %v8403 = vpop.f32.mrf.mxu0
        %8404 = vmatprep.mubr.f32.mxu0 0.0
        %8405 = vmatmul.mubr.f32.gmra.mxu0 %v1856
        %v8406 = vpop.f32.mrf.mxu0
        %v8407 = vadd.f32 0.0, %v8406
        %v8408 = vpop.f32.mrf.mxu0
        %8409 = vmatprep.mubr.f32.mxu0 0.0
        %8410 = vmatmul.mubr.f32.gmra.mxu0 %v1858
        %v8411 = vpop.f32.mrf.mxu0
        %v8412 = vadd.f32 0.0, %v8411
        %v8413 = vpop.f32.mrf.mxu0
        %8414 = vmatprep.mubr.f32.mxu0 0.0
        %8415 = vmatmul.mubr.f32.gmra.mxu0 %v1860
        %v8416 = vpop.f32.mrf.mxu0
        %v8417 = vadd.f32 0.0, %v8416
        %v8418 = vpop.f32.mrf.mxu0
        %8419 = vmatprep.mubr.f32.mxu0 0.0
        %8420 = vmatmul.mubr.f32.gmra.mxu0 %v1862
        %v8421 = vpop.f32.mrf.mxu0
        %v8422 = vadd.f32 0.0, %v8421
        %v8423 = vpop.f32.mrf.mxu0
        %8424 = vmatprep.mubr.f32.mxu0 0.0
        %8425 = vmatmul.mubr.f32.gmra.mxu0 %v1864
        %v8426 = vpop.f32.mrf.mxu0
        %v8427 = vadd.f32 0.0, %v8426
        %v8428 = vpop.f32.mrf.mxu0
        %8429 = vmatprep.mubr.f32.mxu0 0.0
        %8430 = vmatmul.mubr.f32.gmra.mxu0 %v1866
        %v8431 = vpop.f32.mrf.mxu0
        %v8432 = vadd.f32 0.0, %v8431
        %v8433 = vpop.f32.mrf.mxu0
        %8434 = vmatprep.mubr.f32.mxu0 0.0
        %8435 = vmatmul.mubr.f32.gmra.mxu0 %v1868
        %v8436 = vpop.f32.mrf.mxu0
        %v8437 = vadd.f32 0.0, %v8436
        %v8438 = vpop.f32.mrf.mxu0
        %8439 = vmatprep.mubr.f32.mxu0 0.0
        %8440 = vmatmul.mubr.f32.gmra.mxu0 %v1870
        %v8441 = vpop.f32.mrf.mxu0
        %v8442 = vadd.f32 0.0, %v8441
        %v8443 = vpop.f32.mrf.mxu0
        %8444 = vmatprep.mubr.f32.mxu0 0.0
        %8445 = vmatmul.mubr.f32.gmra.mxu0 %v1872
        %v8446 = vpop.f32.mrf.mxu0
        %v8447 = vadd.f32 0.0, %v8446
        %v8448 = vpop.f32.mrf.mxu0
        %8449 = vmatprep.mubr.f32.mxu0 0.0
        %8450 = vmatmul.mubr.f32.gmra.mxu0 %v1874
        %v8451 = vpop.f32.mrf.mxu0
        %v8452 = vadd.f32 0.0, %v8451
        %v8453 = vpop.f32.mrf.mxu0
        %8454 = vmatprep.mubr.f32.mxu0 0.0
        %8455 = vmatmul.mubr.f32.gmra.mxu0 %v1876
        %v8456 = vpop.f32.mrf.mxu0
        %v8457 = vadd.f32 0.0, %v8456
        %v8458 = vpop.f32.mrf.mxu0
        %8459 = vmatprep.mubr.f32.mxu0 0.0
        %8460 = vmatmul.mubr.f32.gmra.mxu0 %v1878
        %v8461 = vpop.f32.mrf.mxu0
        %v8462 = vadd.f32 0.0, %v8461
        %v8463 = vpop.f32.mrf.mxu0
        %8464 = vmatprep.mubr.f32.mxu0 0.0
        %8465 = vmatmul.mubr.f32.gmra.mxu0 %v1880
        %v8466 = vpop.f32.mrf.mxu0
        %v8467 = vadd.f32 0.0, %v8466
        %v8468 = vpop.f32.mrf.mxu0
        %8469 = vmatprep.mubr.f32.mxu0 0.0
        %8470 = vmatmul.mubr.f32.gmra.mxu0 %v1882
        %v8471 = vpop.f32.mrf.mxu0
        %v8472 = vadd.f32 0.0, %v8471
        %v8473 = vpop.f32.mrf.mxu0
        %8474 = vmatprep.mubr.f32.mxu0 0.0
        %8475 = vmatmul.mubr.f32.gmra.mxu0 %v1884
        %v8476 = vpop.f32.mrf.mxu0
        %v8477 = vadd.f32 0.0, %v8476
        %v8478 = vpop.f32.mrf.mxu0
        %8479 = vmatprep.mubr.f32.mxu0 0.0
        %8480 = vmatmul.mubr.f32.gmra.mxu0 %v1886
        %v8481 = vpop.f32.mrf.mxu0
        %v8482 = vadd.f32 0.0, %v8481
        %v8483 = vpop.f32.mrf.mxu0
        %8484 = vmatprep.mubr.f32.mxu0 0.0
        %8485 = vmatmul.mubr.f32.gmra.mxu0 %v1888
        %v8486 = vpop.f32.mrf.mxu0
        %v8487 = vadd.f32 0.0, %v8486
        %v8488 = vpop.f32.mrf.mxu0
        %8489 = vmatprep.mubr.f32.mxu0 0.0
        %8490 = vmatmul.mubr.f32.gmra.mxu0 %v1890
        %v8491 = vpop.f32.mrf.mxu0
        %v8492 = vadd.f32 0.0, %v8491
        %v8493 = vpop.f32.mrf.mxu0
        %8494 = vmatprep.mubr.f32.mxu0 0.0
        %8495 = vmatmul.mubr.f32.gmra.mxu0 %v1892
        %v8496 = vpop.f32.mrf.mxu0
        %v8497 = vadd.f32 0.0, %v8496
        %v8498 = vpop.f32.mrf.mxu0
        %8499 = vmatprep.mubr.f32.mxu0 0.0
        %8500 = vmatmul.mubr.f32.gmra.mxu0 %v1894
        %v8501 = vpop.f32.mrf.mxu0
        %v8502 = vadd.f32 0.0, %v8501
        %v8503 = vpop.f32.mrf.mxu0
        %8504 = vmatprep.mubr.f32.mxu0 0.0
        %8505 = vmatmul.mubr.f32.gmra.mxu0 %v8088
        %v8506 = vpop.f32.mrf.mxu0
        %v8507 = vadd.f32 0.0, %v8506
        %v8508 = vpop.f32.mrf.mxu0
        %8509 = vmatprep.mubr.f32.mxu0 0.0
        %8510 = vmatmul.mubr.f32.gmra.mxu0 %v8090
        %v8511 = vpop.f32.mrf.mxu0
        %v8512 = vadd.f32 0.0, %v8511
        %v8513 = vpop.f32.mrf.mxu0
        %8514 = vdwg.mxu0
        %v8515 = vadd.f32 %v8011, %v8162
        %v8516 = vadd.f32 %v8012, %v8167
        %v8517 = vadd.f32 %v8013, %v8172
        %v8518 = vadd.f32 %v8014, %v8177
        %v8519 = vadd.f32 %v8015, %v8182
        %v8520 = vadd.f32 %v8016, %v8187
        %v8521 = vadd.f32 %v8017, %v8192
        %v8522 = vadd.f32 %v8018, %v8197
        %v8523 = vadd.f32 %v8019, %v8202
        %v8524 = vadd.f32 %v8020, %v8207
        %v8525 = vadd.f32 %v8021, %v8212
        %v8526 = vadd.f32 %v8022, %v8217
        %v8527 = vadd.f32 %v8023, %v8222
        %v8528 = vadd.f32 %v8024, %v8227
        %v8529 = vadd.f32 %v8025, %v8232
        %v8530 = vadd.f32 %v8026, %v8237
        %v8531 = vadd.f32 %v8027, %v8242
        %v8532 = vadd.f32 %v8028, %v8247
        %v8533 = vadd.f32 %v8029, %v8252
        %v8534 = vadd.f32 %v8030, %v8257
        %v8535 = vadd.f32 %v8031, %v8262
        %v8536 = vadd.f32 %v8032, %v8267
        %v8537 = vadd.f32 %v8033, %v8272
        %v8538 = vadd.f32 %v8034, %v8277
        %v8539 = vadd.f32 %v8035, %v8282
        %v8540 = vadd.f32 %v8036, %v8287
        %v8541 = vadd.f32 %v8037, %v8292
        %v8542 = vadd.f32 %v8038, %v8297
        %v8543 = vadd.f32 %v8039, %v8302
        %v8544 = vadd.f32 %v8040, %v8307
        %v8545 = vadd.f32 %v8041, %v8312
        %v8546 = vadd.f32 %v8042, %v8317
        %v8547 = vadd.f32 %v8043, %v8322
        %v8548 = vadd.f32 %v8044, %v8327
        %v8549 = vadd.f32 %v8045, %v8332
        %v8550 = vadd.f32 %v8046, %v8337
        %v8551 = vadd.f32 %v8047, %v8342
        %v8552 = vadd.f32 %v8048, %v8347
        %v8553 = vadd.f32 %v8049, %v8352
        %v8554 = vadd.f32 %v8050, %v8357
        %v8555 = vadd.f32 %v8051, %v8362
        %v8556 = vadd.f32 %v8052, %v8367
        %v8557 = vadd.f32 %v8053, %v8372
        %v8558 = vadd.f32 %v8054, %v8377
        %v8559 = vadd.f32 %v8055, %v8382
        %v8560 = vadd.f32 %v8056, %v8387
        %v8561 = vadd.f32 %v8057, %v8392
        %v8562 = vadd.f32 %v8058, %v8397
        %v8563 = vadd.f32 %v8059, %v8402
        %v8564 = vadd.f32 %v8060, %v8407
        %v8565 = vadd.f32 %v8061, %v8412
        %v8566 = vadd.f32 %v8062, %v8417
        %v8567 = vadd.f32 %v8063, %v8422
        %v8568 = vadd.f32 %v8064, %v8427
        %v8569 = vadd.f32 %v8065, %v8432
        %v8570 = vadd.f32 %v8066, %v8437
        %v8571 = vadd.f32 %v8067, %v8442
        %v8572 = vadd.f32 %v8068, %v8447
        %v8573 = vadd.f32 %v8069, %v8452
        %v8574 = vadd.f32 %v8070, %v8457
        %v8575 = vadd.f32 %v8071, %v8462
        %v8576 = vadd.f32 %v8072, %v8467
        %v8577 = vadd.f32 %v8073, %v8472
        %v8578 = vadd.f32 %v8074, %v8477
        %v8579 = vadd.f32 %v8075, %v8482
        %v8580 = vadd.f32 %v8076, %v8487
        %v8581 = vadd.f32 %v8077, %v8492
        %v8582 = vadd.f32 %v8078, %v8497
        %v8583 = vadd.f32 %v8079, %v8502
        %v8584 = vadd.f32 %v8080, %v8507
        %v8585 = vadd.f32 %v8081, %v8512
        %s8586 = scalar_lea.vmem %s3, 240
        %v8587 = vld [vmem:[%s8586] sm:$0xff]
        %v8588 = vld [vmem:[%s8586 + $0x8] sm:$0xff]
        %v8589 = vld [vmem:[%s8586 + $0x10] sm:$0x3f]
        %v8590 = vrot.slane %v1533, 2
        %v8591 = vsel %vm1107, %v3029, %v8590
        %v8592 = vsel %vm890, %v8591, 0
        %v8594 = vsel %vm890, %v8590, 0
        %v8597 = vsel %vm1107, %v8589, 0
        %8599 = vmatprep.subr.mxu0 0.0
        %8600 = vmatpush1.msra.mxu0 0.0
        %8601 = vmatprep.subr.mxu0 0.0
        %8602 = vmatpush1.msra.mxu0 0.0
        %8603 = vmatprep.subr.mxu0 0.0
        %8604 = vmatpush1.msra.mxu0 0.0
        %8605 = vmatprep.subr.mxu0 0.0
        %8606 = vmatpush1.msra.mxu0 0.0
        %8607 = vmatprep.subr.mxu0 0.0
        %8608 = vmatpush1.msra.mxu0 0.0
        %8609 = vmatprep.subr.mxu0 0.0
        %8610 = vmatpush1.msra.mxu0 0.0
        %8611 = vmatprep.subr.mxu0 0.0
        %8612 = vmatpush1.msra.mxu0 0.0
        %8613 = vmatprep.subr.mxu0 0.0
        %8614 = vmatpush1.msra.mxu0 0.0
        %8615 = vmatprep.subr.mxu0 0.0
        %8616 = vmatpush1.msra.mxu0 0.0
        %8617 = vmatprep.subr.mxu0 0.0
        %8618 = vmatpush1.msra.mxu0 0.0
        %8619 = vmatprep.subr.mxu0 0.0
        %8620 = vmatpush1.msra.mxu0 0.0
        %8621 = vmatprep.subr.mxu0 0.0
        %8622 = vmatpush1.msra.mxu0 0.0
        %8623 = vmatprep.subr.mxu0 0.0
        %8624 = vmatpush1.msra.mxu0 0.0
        %8625 = vmatprep.subr.mxu0 0.0
        %8626 = vmatpush1.msra.mxu0 %v8597
        %8627 = vmatprep.subr.mxu0 0.0
        %8628 = vmatpush1.msra.mxu0 %v8588
        %8629 = vmatprep.subr.mxu0 0.0
        %8630 = vmatpush1.msra.mxu0 %v8587
        %8631 = vmatprep.subr.mxu0 0.0
        %8632 = vmatpush2.msra.mxu0 0.0
        %8633 = vmatprep.subr.mxu0 0.0
        %8634 = vmatpush2.msra.mxu0 0.0
        %8635 = vmatprep.subr.mxu0 0.0
        %8636 = vmatpush2.msra.mxu0 0.0
        %8637 = vmatprep.subr.mxu0 0.0
        %8638 = vmatpush2.msra.mxu0 0.0
        %8639 = vmatprep.subr.mxu0 0.0
        %8640 = vmatpush2.msra.mxu0 0.0
        %8641 = vmatprep.subr.mxu0 0.0
        %8642 = vmatpush2.msra.mxu0 0.0
        %8643 = vmatprep.subr.mxu0 0.0
        %8644 = vmatpush2.msra.mxu0 0.0
        %8645 = vmatprep.subr.mxu0 0.0
        %8646 = vmatpush2.msra.mxu0 0.0
        %8647 = vmatprep.subr.mxu0 0.0
        %8648 = vmatpush2.msra.mxu0 0.0
        %8649 = vmatprep.subr.mxu0 0.0
        %8650 = vmatpush2.msra.mxu0 0.0
        %8651 = vmatprep.subr.mxu0 0.0
        %8652 = vmatpush2.msra.mxu0 0.0
        %8653 = vmatprep.subr.mxu0 0.0
        %8654 = vmatpush2.msra.mxu0 0.0
        %8655 = vmatprep.subr.mxu0 0.0
        %8656 = vmatpush2.msra.mxu0 0.0
        %8657 = vmatprep.subr.mxu0 0.0
        %8658 = vmatpush2.msra.mxu0 0.0
        %8659 = vmatprep.subr.mxu0 0.0
        %8660 = vmatpush2.msra.mxu0 0.0
        %8661 = vmatprep.subr.mxu0 0.0
        %8662 = vmatpush2.msra.mxu0 0.0
        %8663 = vmatprep.mubr.f32.mxu0 0.0
        %8664 = vmatmul.mubr.f32.gmra.mxu0 %v3033
        %v8665 = vpop.f32.mrf.mxu0
        %v8666 = vadd.f32 0.0, %v8665
        %v8667 = vpop.f32.mrf.mxu0
        %8668 = vmatprep.mubr.f32.mxu0 0.0
        %8669 = vmatmul.mubr.f32.gmra.mxu0 %v3035
        %v8670 = vpop.f32.mrf.mxu0
        %v8671 = vadd.f32 0.0, %v8670
        %v8672 = vpop.f32.mrf.mxu0
        %8673 = vmatprep.mubr.f32.mxu0 0.0
        %8674 = vmatmul.mubr.f32.gmra.mxu0 %v3037
        %v8675 = vpop.f32.mrf.mxu0
        %v8676 = vadd.f32 0.0, %v8675
        %v8677 = vpop.f32.mrf.mxu0
        %8678 = vmatprep.mubr.f32.mxu0 0.0
        %8679 = vmatmul.mubr.f32.gmra.mxu0 %v3039
        %v8680 = vpop.f32.mrf.mxu0
        %v8681 = vadd.f32 0.0, %v8680
        %v8682 = vpop.f32.mrf.mxu0
        %8683 = vmatprep.mubr.f32.mxu0 0.0
        %8684 = vmatmul.mubr.f32.gmra.mxu0 %v3041
        %v8685 = vpop.f32.mrf.mxu0
        %v8686 = vadd.f32 0.0, %v8685
        %v8687 = vpop.f32.mrf.mxu0
        %8688 = vmatprep.mubr.f32.mxu0 0.0
        %8689 = vmatmul.mubr.f32.gmra.mxu0 %v3043
        %v8690 = vpop.f32.mrf.mxu0
        %v8691 = vadd.f32 0.0, %v8690
        %v8692 = vpop.f32.mrf.mxu0
        %8693 = vmatprep.mubr.f32.mxu0 0.0
        %8694 = vmatmul.mubr.f32.gmra.mxu0 %v3045
        %v8695 = vpop.f32.mrf.mxu0
        %v8696 = vadd.f32 0.0, %v8695
        %v8697 = vpop.f32.mrf.mxu0
        %8698 = vmatprep.mubr.f32.mxu0 0.0
        %8699 = vmatmul.mubr.f32.gmra.mxu0 %v3047
        %v8700 = vpop.f32.mrf.mxu0
        %v8701 = vadd.f32 0.0, %v8700
        %v8702 = vpop.f32.mrf.mxu0
        %8703 = vmatprep.mubr.f32.mxu0 0.0
        %8704 = vmatmul.mubr.f32.gmra.mxu0 %v3049
        %v8705 = vpop.f32.mrf.mxu0
        %v8706 = vadd.f32 0.0, %v8705
        %v8707 = vpop.f32.mrf.mxu0
        %8708 = vmatprep.mubr.f32.mxu0 0.0
        %8709 = vmatmul.mubr.f32.gmra.mxu0 %v3051
        %v8710 = vpop.f32.mrf.mxu0
        %v8711 = vadd.f32 0.0, %v8710
        %v8712 = vpop.f32.mrf.mxu0
        %8713 = vmatprep.mubr.f32.mxu0 0.0
        %8714 = vmatmul.mubr.f32.gmra.mxu0 %v3053
        %v8715 = vpop.f32.mrf.mxu0
        %v8716 = vadd.f32 0.0, %v8715
        %v8717 = vpop.f32.mrf.mxu0
        %8718 = vmatprep.mubr.f32.mxu0 0.0
        %8719 = vmatmul.mubr.f32.gmra.mxu0 %v3055
        %v8720 = vpop.f32.mrf.mxu0
        %v8721 = vadd.f32 0.0, %v8720
        %v8722 = vpop.f32.mrf.mxu0
        %8723 = vmatprep.mubr.f32.mxu0 0.0
        %8724 = vmatmul.mubr.f32.gmra.mxu0 %v3057
        %v8725 = vpop.f32.mrf.mxu0
        %v8726 = vadd.f32 0.0, %v8725
        %v8727 = vpop.f32.mrf.mxu0
        %8728 = vmatprep.mubr.f32.mxu0 0.0
        %8729 = vmatmul.mubr.f32.gmra.mxu0 %v3059
        %v8730 = vpop.f32.mrf.mxu0
        %v8731 = vadd.f32 0.0, %v8730
        %v8732 = vpop.f32.mrf.mxu0
        %8733 = vmatprep.mubr.f32.mxu0 0.0
        %8734 = vmatmul.mubr.f32.gmra.mxu0 %v3061
        %v8735 = vpop.f32.mrf.mxu0
        %v8736 = vadd.f32 0.0, %v8735
        %v8737 = vpop.f32.mrf.mxu0
        %8738 = vmatprep.mubr.f32.mxu0 0.0
        %8739 = vmatmul.mubr.f32.gmra.mxu0 %v3063
        %v8740 = vpop.f32.mrf.mxu0
        %v8741 = vadd.f32 0.0, %v8740
        %v8742 = vpop.f32.mrf.mxu0
        %8743 = vmatprep.mubr.f32.mxu0 0.0
        %8744 = vmatmul.mubr.f32.gmra.mxu0 %v3065
        %v8745 = vpop.f32.mrf.mxu0
        %v8746 = vadd.f32 0.0, %v8745
        %v8747 = vpop.f32.mrf.mxu0
        %8748 = vmatprep.mubr.f32.mxu0 0.0
        %8749 = vmatmul.mubr.f32.gmra.mxu0 %v3067
        %v8750 = vpop.f32.mrf.mxu0
        %v8751 = vadd.f32 0.0, %v8750
        %v8752 = vpop.f32.mrf.mxu0
        %8753 = vmatprep.mubr.f32.mxu0 0.0
        %8754 = vmatmul.mubr.f32.gmra.mxu0 %v3069
        %v8755 = vpop.f32.mrf.mxu0
        %v8756 = vadd.f32 0.0, %v8755
        %v8757 = vpop.f32.mrf.mxu0
        %8758 = vmatprep.mubr.f32.mxu0 0.0
        %8759 = vmatmul.mubr.f32.gmra.mxu0 %v3071
        %v8760 = vpop.f32.mrf.mxu0
        %v8761 = vadd.f32 0.0, %v8760
        %v8762 = vpop.f32.mrf.mxu0
        %8763 = vmatprep.mubr.f32.mxu0 0.0
        %8764 = vmatmul.mubr.f32.gmra.mxu0 %v3073
        %v8765 = vpop.f32.mrf.mxu0
        %v8766 = vadd.f32 0.0, %v8765
        %v8767 = vpop.f32.mrf.mxu0
        %8768 = vmatprep.mubr.f32.mxu0 0.0
        %8769 = vmatmul.mubr.f32.gmra.mxu0 %v3075
        %v8770 = vpop.f32.mrf.mxu0
        %v8771 = vadd.f32 0.0, %v8770
        %v8772 = vpop.f32.mrf.mxu0
        %8773 = vmatprep.mubr.f32.mxu0 0.0
        %8774 = vmatmul.mubr.f32.gmra.mxu0 %v3077
        %v8775 = vpop.f32.mrf.mxu0
        %v8776 = vadd.f32 0.0, %v8775
        %v8777 = vpop.f32.mrf.mxu0
        %8778 = vmatprep.mubr.f32.mxu0 0.0
        %8779 = vmatmul.mubr.f32.gmra.mxu0 %v3079
        %v8780 = vpop.f32.mrf.mxu0
        %v8781 = vadd.f32 0.0, %v8780
        %v8782 = vpop.f32.mrf.mxu0
        %8783 = vmatprep.mubr.f32.mxu0 0.0
        %8784 = vmatmul.mubr.f32.gmra.mxu0 %v3081
        %v8785 = vpop.f32.mrf.mxu0
        %v8786 = vadd.f32 0.0, %v8785
        %v8787 = vpop.f32.mrf.mxu0
        %8788 = vmatprep.mubr.f32.mxu0 0.0
        %8789 = vmatmul.mubr.f32.gmra.mxu0 %v3083
        %v8790 = vpop.f32.mrf.mxu0
        %v8791 = vadd.f32 0.0, %v8790
        %v8792 = vpop.f32.mrf.mxu0
        %8793 = vmatprep.mubr.f32.mxu0 0.0
        %8794 = vmatmul.mubr.f32.gmra.mxu0 %v3085
        %v8795 = vpop.f32.mrf.mxu0
        %v8796 = vadd.f32 0.0, %v8795
        %v8797 = vpop.f32.mrf.mxu0
        %8798 = vmatprep.mubr.f32.mxu0 0.0
        %8799 = vmatmul.mubr.f32.gmra.mxu0 %v3087
        %v8800 = vpop.f32.mrf.mxu0
        %v8801 = vadd.f32 0.0, %v8800
        %v8802 = vpop.f32.mrf.mxu0
        %8803 = vmatprep.mubr.f32.mxu0 0.0
        %8804 = vmatmul.mubr.f32.gmra.mxu0 %v3089
        %v8805 = vpop.f32.mrf.mxu0
        %v8806 = vadd.f32 0.0, %v8805
        %v8807 = vpop.f32.mrf.mxu0
        %8808 = vmatprep.mubr.f32.mxu0 0.0
        %8809 = vmatmul.mubr.f32.gmra.mxu0 %v3091
        %v8810 = vpop.f32.mrf.mxu0
        %v8811 = vadd.f32 0.0, %v8810
        %v8812 = vpop.f32.mrf.mxu0
        %8813 = vmatprep.mubr.f32.mxu0 0.0
        %8814 = vmatmul.mubr.f32.gmra.mxu0 %v3093
        %v8815 = vpop.f32.mrf.mxu0
        %v8816 = vadd.f32 0.0, %v8815
        %v8817 = vpop.f32.mrf.mxu0
        %8818 = vmatprep.mubr.f32.mxu0 0.0
        %8819 = vmatmul.mubr.f32.gmra.mxu0 %v3095
        %v8820 = vpop.f32.mrf.mxu0
        %v8821 = vadd.f32 0.0, %v8820
        %v8822 = vpop.f32.mrf.mxu0
        %8823 = vmatprep.mubr.f32.mxu0 0.0
        %8824 = vmatmul.mubr.f32.gmra.mxu0 %v3097
        %v8825 = vpop.f32.mrf.mxu0
        %v8826 = vadd.f32 0.0, %v8825
        %v8827 = vpop.f32.mrf.mxu0
        %8828 = vmatprep.mubr.f32.mxu0 0.0
        %8829 = vmatmul.mubr.f32.gmra.mxu0 %v3099
        %v8830 = vpop.f32.mrf.mxu0
        %v8831 = vadd.f32 0.0, %v8830
        %v8832 = vpop.f32.mrf.mxu0
        %8833 = vmatprep.mubr.f32.mxu0 0.0
        %8834 = vmatmul.mubr.f32.gmra.mxu0 %v3101
        %v8835 = vpop.f32.mrf.mxu0
        %v8836 = vadd.f32 0.0, %v8835
        %v8837 = vpop.f32.mrf.mxu0
        %8838 = vmatprep.mubr.f32.mxu0 0.0
        %8839 = vmatmul.mubr.f32.gmra.mxu0 %v3103
        %v8840 = vpop.f32.mrf.mxu0
        %v8841 = vadd.f32 0.0, %v8840
        %v8842 = vpop.f32.mrf.mxu0
        %8843 = vmatprep.mubr.f32.mxu0 0.0
        %8844 = vmatmul.mubr.f32.gmra.mxu0 %v3105
        %v8845 = vpop.f32.mrf.mxu0
        %v8846 = vadd.f32 0.0, %v8845
        %v8847 = vpop.f32.mrf.mxu0
        %8848 = vmatprep.mubr.f32.mxu0 0.0
        %8849 = vmatmul.mubr.f32.gmra.mxu0 %v3107
        %v8850 = vpop.f32.mrf.mxu0
        %v8851 = vadd.f32 0.0, %v8850
        %v8852 = vpop.f32.mrf.mxu0
        %8853 = vmatprep.mubr.f32.mxu0 0.0
        %8854 = vmatmul.mubr.f32.gmra.mxu0 %v3109
        %v8855 = vpop.f32.mrf.mxu0
        %v8856 = vadd.f32 0.0, %v8855
        %v8857 = vpop.f32.mrf.mxu0
        %8858 = vmatprep.mubr.f32.mxu0 0.0
        %8859 = vmatmul.mubr.f32.gmra.mxu0 %v3111
        %v8860 = vpop.f32.mrf.mxu0
        %v8861 = vadd.f32 0.0, %v8860
        %v8862 = vpop.f32.mrf.mxu0
        %8863 = vmatprep.mubr.f32.mxu0 0.0
        %8864 = vmatmul.mubr.f32.gmra.mxu0 %v3113
        %v8865 = vpop.f32.mrf.mxu0
        %v8866 = vadd.f32 0.0, %v8865
        %v8867 = vpop.f32.mrf.mxu0
        %8868 = vmatprep.mubr.f32.mxu0 0.0
        %8869 = vmatmul.mubr.f32.gmra.mxu0 %v3115
        %v8870 = vpop.f32.mrf.mxu0
        %v8871 = vadd.f32 0.0, %v8870
        %v8872 = vpop.f32.mrf.mxu0
        %8873 = vmatprep.mubr.f32.mxu0 0.0
        %8874 = vmatmul.mubr.f32.gmra.mxu0 %v3117
        %v8875 = vpop.f32.mrf.mxu0
        %v8876 = vadd.f32 0.0, %v8875
        %v8877 = vpop.f32.mrf.mxu0
        %8878 = vmatprep.mubr.f32.mxu0 0.0
        %8879 = vmatmul.mubr.f32.gmra.mxu0 %v3119
        %v8880 = vpop.f32.mrf.mxu0
        %v8881 = vadd.f32 0.0, %v8880
        %v8882 = vpop.f32.mrf.mxu0
        %8883 = vmatprep.mubr.f32.mxu0 0.0
        %8884 = vmatmul.mubr.f32.gmra.mxu0 %v3121
        %v8885 = vpop.f32.mrf.mxu0
        %v8886 = vadd.f32 0.0, %v8885
        %v8887 = vpop.f32.mrf.mxu0
        %8888 = vmatprep.mubr.f32.mxu0 0.0
        %8889 = vmatmul.mubr.f32.gmra.mxu0 %v3123
        %v8890 = vpop.f32.mrf.mxu0
        %v8891 = vadd.f32 0.0, %v8890
        %v8892 = vpop.f32.mrf.mxu0
        %8893 = vmatprep.mubr.f32.mxu0 0.0
        %8894 = vmatmul.mubr.f32.gmra.mxu0 %v3125
        %v8895 = vpop.f32.mrf.mxu0
        %v8896 = vadd.f32 0.0, %v8895
        %v8897 = vpop.f32.mrf.mxu0
        %8898 = vmatprep.mubr.f32.mxu0 0.0
        %8899 = vmatmul.mubr.f32.gmra.mxu0 %v3127
        %v8900 = vpop.f32.mrf.mxu0
        %v8901 = vadd.f32 0.0, %v8900
        %v8902 = vpop.f32.mrf.mxu0
        %8903 = vmatprep.mubr.f32.mxu0 0.0
        %8904 = vmatmul.mubr.f32.gmra.mxu0 %v3129
        %v8905 = vpop.f32.mrf.mxu0
        %v8906 = vadd.f32 0.0, %v8905
        %v8907 = vpop.f32.mrf.mxu0
        %8908 = vmatprep.mubr.f32.mxu0 0.0
        %8909 = vmatmul.mubr.f32.gmra.mxu0 %v3131
        %v8910 = vpop.f32.mrf.mxu0
        %v8911 = vadd.f32 0.0, %v8910
        %v8912 = vpop.f32.mrf.mxu0
        %8913 = vmatprep.mubr.f32.mxu0 0.0
        %8914 = vmatmul.mubr.f32.gmra.mxu0 %v3133
        %v8915 = vpop.f32.mrf.mxu0
        %v8916 = vadd.f32 0.0, %v8915
        %v8917 = vpop.f32.mrf.mxu0
        %8918 = vmatprep.mubr.f32.mxu0 0.0
        %8919 = vmatmul.mubr.f32.gmra.mxu0 %v3135
        %v8920 = vpop.f32.mrf.mxu0
        %v8921 = vadd.f32 0.0, %v8920
        %v8922 = vpop.f32.mrf.mxu0
        %8923 = vmatprep.mubr.f32.mxu0 0.0
        %8924 = vmatmul.mubr.f32.gmra.mxu0 %v3137
        %v8925 = vpop.f32.mrf.mxu0
        %v8926 = vadd.f32 0.0, %v8925
        %v8927 = vpop.f32.mrf.mxu0
        %8928 = vmatprep.mubr.f32.mxu0 0.0
        %8929 = vmatmul.mubr.f32.gmra.mxu0 %v3139
        %v8930 = vpop.f32.mrf.mxu0
        %v8931 = vadd.f32 0.0, %v8930
        %v8932 = vpop.f32.mrf.mxu0
        %8933 = vmatprep.mubr.f32.mxu0 0.0
        %8934 = vmatmul.mubr.f32.gmra.mxu0 %v3141
        %v8935 = vpop.f32.mrf.mxu0
        %v8936 = vadd.f32 0.0, %v8935
        %v8937 = vpop.f32.mrf.mxu0
        %8938 = vmatprep.mubr.f32.mxu0 0.0
        %8939 = vmatmul.mubr.f32.gmra.mxu0 %v3143
        %v8940 = vpop.f32.mrf.mxu0
        %v8941 = vadd.f32 0.0, %v8940
        %v8942 = vpop.f32.mrf.mxu0
        %8943 = vmatprep.mubr.f32.mxu0 0.0
        %8944 = vmatmul.mubr.f32.gmra.mxu0 %v3145
        %v8945 = vpop.f32.mrf.mxu0
        %v8946 = vadd.f32 0.0, %v8945
        %v8947 = vpop.f32.mrf.mxu0
        %8948 = vmatprep.mubr.f32.mxu0 0.0
        %8949 = vmatmul.mubr.f32.gmra.mxu0 %v3147
        %v8950 = vpop.f32.mrf.mxu0
        %v8951 = vadd.f32 0.0, %v8950
        %v8952 = vpop.f32.mrf.mxu0
        %8953 = vmatprep.mubr.f32.mxu0 0.0
        %8954 = vmatmul.mubr.f32.gmra.mxu0 %v3149
        %v8955 = vpop.f32.mrf.mxu0
        %v8956 = vadd.f32 0.0, %v8955
        %v8957 = vpop.f32.mrf.mxu0
        %8958 = vmatprep.mubr.f32.mxu0 0.0
        %8959 = vmatmul.mubr.f32.gmra.mxu0 %v3151
        %v8960 = vpop.f32.mrf.mxu0
        %v8961 = vadd.f32 0.0, %v8960
        %v8962 = vpop.f32.mrf.mxu0
        %8963 = vmatprep.mubr.f32.mxu0 0.0
        %8964 = vmatmul.mubr.f32.gmra.mxu0 %v3153
        %v8965 = vpop.f32.mrf.mxu0
        %v8966 = vadd.f32 0.0, %v8965
        %v8967 = vpop.f32.mrf.mxu0
        %8968 = vmatprep.mubr.f32.mxu0 0.0
        %8969 = vmatmul.mubr.f32.gmra.mxu0 %v3155
        %v8970 = vpop.f32.mrf.mxu0
        %v8971 = vadd.f32 0.0, %v8970
        %v8972 = vpop.f32.mrf.mxu0
        %8973 = vmatprep.mubr.f32.mxu0 0.0
        %8974 = vmatmul.mubr.f32.gmra.mxu0 %v3157
        %v8975 = vpop.f32.mrf.mxu0
        %v8976 = vadd.f32 0.0, %v8975
        %v8977 = vpop.f32.mrf.mxu0
        %8978 = vmatprep.mubr.f32.mxu0 0.0
        %8979 = vmatmul.mubr.f32.gmra.mxu0 %v3159
        %v8980 = vpop.f32.mrf.mxu0
        %v8981 = vadd.f32 0.0, %v8980
        %v8982 = vpop.f32.mrf.mxu0
        %8983 = vmatprep.mubr.f32.mxu0 0.0
        %8984 = vmatmul.mubr.f32.gmra.mxu0 %v3161
        %v8985 = vpop.f32.mrf.mxu0
        %v8986 = vadd.f32 0.0, %v8985
        %v8987 = vpop.f32.mrf.mxu0
        %8988 = vmatprep.mubr.f32.mxu0 0.0
        %8989 = vmatmul.mubr.f32.gmra.mxu0 %v3163
        %v8990 = vpop.f32.mrf.mxu0
        %v8991 = vadd.f32 0.0, %v8990
        %v8992 = vpop.f32.mrf.mxu0
        %8993 = vmatprep.mubr.f32.mxu0 0.0
        %8994 = vmatmul.mubr.f32.gmra.mxu0 %v3165
        %v8995 = vpop.f32.mrf.mxu0
        %v8996 = vadd.f32 0.0, %v8995
        %v8997 = vpop.f32.mrf.mxu0
        %8998 = vmatprep.mubr.f32.mxu0 0.0
        %8999 = vmatmul.mubr.f32.gmra.mxu0 %v3167
        %v9000 = vpop.f32.mrf.mxu0
        %v9001 = vadd.f32 0.0, %v9000
        %v9002 = vpop.f32.mrf.mxu0
        %9003 = vmatprep.mubr.f32.mxu0 0.0
        %9004 = vmatmul.mubr.f32.gmra.mxu0 %v3169
        %v9005 = vpop.f32.mrf.mxu0
        %v9006 = vadd.f32 0.0, %v9005
        %v9007 = vpop.f32.mrf.mxu0
        %9008 = vmatprep.mubr.f32.mxu0 0.0
        %9009 = vmatmul.mubr.f32.gmra.mxu0 %v8592
        %v9010 = vpop.f32.mrf.mxu0
        %v9011 = vadd.f32 0.0, %v9010
        %v9012 = vpop.f32.mrf.mxu0
        %9013 = vmatprep.mubr.f32.mxu0 0.0
        %9014 = vmatmul.mubr.f32.gmra.mxu0 %v8594
        %v9015 = vpop.f32.mrf.mxu0
        %v9016 = vadd.f32 0.0, %v9015
        %v9017 = vpop.f32.mrf.mxu0
        %9018 = vdwg.mxu0
        %v9019 = vadd.f32 %v8515, %v8666
        %v9020 = vadd.f32 %v8516, %v8671
        %v9021 = vadd.f32 %v8517, %v8676
        %v9022 = vadd.f32 %v8518, %v8681
        %v9023 = vadd.f32 %v8519, %v8686
        %v9024 = vadd.f32 %v8520, %v8691
        %v9025 = vadd.f32 %v8521, %v8696
        %v9026 = vadd.f32 %v8522, %v8701
        %v9027 = vadd.f32 %v8523, %v8706
        %v9028 = vadd.f32 %v8524, %v8711
        %v9029 = vadd.f32 %v8525, %v8716
        %v9030 = vadd.f32 %v8526, %v8721
        %v9031 = vadd.f32 %v8527, %v8726
        %v9032 = vadd.f32 %v8528, %v8731
        %v9033 = vadd.f32 %v8529, %v8736
        %v9034 = vadd.f32 %v8530, %v8741
        %v9035 = vadd.f32 %v8531, %v8746
        %v9036 = vadd.f32 %v8532, %v8751
        %v9037 = vadd.f32 %v8533, %v8756
        %v9038 = vadd.f32 %v8534, %v8761
        %v9039 = vadd.f32 %v8535, %v8766
        %v9040 = vadd.f32 %v8536, %v8771
        %v9041 = vadd.f32 %v8537, %v8776
        %v9042 = vadd.f32 %v8538, %v8781
        %v9043 = vadd.f32 %v8539, %v8786
        %v9044 = vadd.f32 %v8540, %v8791
        %v9045 = vadd.f32 %v8541, %v8796
        %v9046 = vadd.f32 %v8542, %v8801
        %v9047 = vadd.f32 %v8543, %v8806
        %v9048 = vadd.f32 %v8544, %v8811
        %v9049 = vadd.f32 %v8545, %v8816
        %v9050 = vadd.f32 %v8546, %v8821
        %v9051 = vadd.f32 %v8547, %v8826
        %v9052 = vadd.f32 %v8548, %v8831
        %v9053 = vadd.f32 %v8549, %v8836
        %v9054 = vadd.f32 %v8550, %v8841
        %v9055 = vadd.f32 %v8551, %v8846
        %v9056 = vadd.f32 %v8552, %v8851
        %v9057 = vadd.f32 %v8553, %v8856
        %v9058 = vadd.f32 %v8554, %v8861
        %v9059 = vadd.f32 %v8555, %v8866
        %v9060 = vadd.f32 %v8556, %v8871
        %v9061 = vadd.f32 %v8557, %v8876
        %v9062 = vadd.f32 %v8558, %v8881
        %v9063 = vadd.f32 %v8559, %v8886
        %v9064 = vadd.f32 %v8560, %v8891
        %v9065 = vadd.f32 %v8561, %v8896
        %v9066 = vadd.f32 %v8562, %v8901
        %v9067 = vadd.f32 %v8563, %v8906
        %v9068 = vadd.f32 %v8564, %v8911
        %v9069 = vadd.f32 %v8565, %v8916
        %v9070 = vadd.f32 %v8566, %v8921
        %v9071 = vadd.f32 %v8567, %v8926
        %v9072 = vadd.f32 %v8568, %v8931
        %v9073 = vadd.f32 %v8569, %v8936
        %v9074 = vadd.f32 %v8570, %v8941
        %v9075 = vadd.f32 %v8571, %v8946
        %v9076 = vadd.f32 %v8572, %v8951
        %v9077 = vadd.f32 %v8573, %v8956
        %v9078 = vadd.f32 %v8574, %v8961
        %v9079 = vadd.f32 %v8575, %v8966
        %v9080 = vadd.f32 %v8576, %v8971
        %v9081 = vadd.f32 %v8577, %v8976
        %v9082 = vadd.f32 %v8578, %v8981
        %v9083 = vadd.f32 %v8579, %v8986
        %v9084 = vadd.f32 %v8580, %v8991
        %v9085 = vadd.f32 %v8581, %v8996
        %v9086 = vadd.f32 %v8582, %v9001
        %v9087 = vadd.f32 %v8583, %v9006
        %v9088 = vadd.f32 %v8584, %v9011
        %v9089 = vadd.f32 %v8585, %v9016
        %s9090 = scalar_lea.vmem %s3, 264
        %v9091 = vld [vmem:[%s9090] sm:$0xff]
        %v9092 = vld [vmem:[%s9090 + $0x8] sm:$0xff]
        %v9093 = vld [vmem:[%s9090 + $0x10] sm:$0x3f]
        %v9094 = vrot.slane %v1533, 3
        %v9095 = vsel %vm3671, %v3811, %v9094
        %v9096 = vsel %vm890, %v9095, 0
        %v9098 = vsel %vm890, %v9094, 0
        %v9101 = vsel %vm1107, %v9093, 0
        %9103 = vmatprep.subr.mxu0 0.0
        %9104 = vmatpush1.msra.mxu0 0.0
        %9105 = vmatprep.subr.mxu0 0.0
        %9106 = vmatpush1.msra.mxu0 0.0
        %9107 = vmatprep.subr.mxu0 0.0
        %9108 = vmatpush1.msra.mxu0 0.0
        %9109 = vmatprep.subr.mxu0 0.0
        %9110 = vmatpush1.msra.mxu0 0.0
        %9111 = vmatprep.subr.mxu0 0.0
        %9112 = vmatpush1.msra.mxu0 0.0
        %9113 = vmatprep.subr.mxu0 0.0
        %9114 = vmatpush1.msra.mxu0 0.0
        %9115 = vmatprep.subr.mxu0 0.0
        %9116 = vmatpush1.msra.mxu0 0.0
        %9117 = vmatprep.subr.mxu0 0.0
        %9118 = vmatpush1.msra.mxu0 0.0
        %9119 = vmatprep.subr.mxu0 0.0
        %9120 = vmatpush1.msra.mxu0 0.0
        %9121 = vmatprep.subr.mxu0 0.0
        %9122 = vmatpush1.msra.mxu0 0.0
        %9123 = vmatprep.subr.mxu0 0.0
        %9124 = vmatpush1.msra.mxu0 0.0
        %9125 = vmatprep.subr.mxu0 0.0
        %9126 = vmatpush1.msra.mxu0 0.0
        %9127 = vmatprep.subr.mxu0 0.0
        %9128 = vmatpush1.msra.mxu0 0.0
        %9129 = vmatprep.subr.mxu0 0.0
        %9130 = vmatpush1.msra.mxu0 %v9101
        %9131 = vmatprep.subr.mxu0 0.0
        %9132 = vmatpush1.msra.mxu0 %v9092
        %9133 = vmatprep.subr.mxu0 0.0
        %9134 = vmatpush1.msra.mxu0 %v9091
        %9135 = vmatprep.subr.mxu0 0.0
        %9136 = vmatpush2.msra.mxu0 0.0
        %9137 = vmatprep.subr.mxu0 0.0
        %9138 = vmatpush2.msra.mxu0 0.0
        %9139 = vmatprep.subr.mxu0 0.0
        %9140 = vmatpush2.msra.mxu0 0.0
        %9141 = vmatprep.subr.mxu0 0.0
        %9142 = vmatpush2.msra.mxu0 0.0
        %9143 = vmatprep.subr.mxu0 0.0
        %9144 = vmatpush2.msra.mxu0 0.0
        %9145 = vmatprep.subr.mxu0 0.0
        %9146 = vmatpush2.msra.mxu0 0.0
        %9147 = vmatprep.subr.mxu0 0.0
        %9148 = vmatpush2.msra.mxu0 0.0
        %9149 = vmatprep.subr.mxu0 0.0
        %9150 = vmatpush2.msra.mxu0 0.0
        %9151 = vmatprep.subr.mxu0 0.0
        %9152 = vmatpush2.msra.mxu0 0.0
        %9153 = vmatprep.subr.mxu0 0.0
        %9154 = vmatpush2.msra.mxu0 0.0
        %9155 = vmatprep.subr.mxu0 0.0
        %9156 = vmatpush2.msra.mxu0 0.0
        %9157 = vmatprep.subr.mxu0 0.0
        %9158 = vmatpush2.msra.mxu0 0.0
        %9159 = vmatprep.subr.mxu0 0.0
        %9160 = vmatpush2.msra.mxu0 0.0
        %9161 = vmatprep.subr.mxu0 0.0
        %9162 = vmatpush2.msra.mxu0 0.0
        %9163 = vmatprep.subr.mxu0 0.0
        %9164 = vmatpush2.msra.mxu0 0.0
        %9165 = vmatprep.subr.mxu0 0.0
        %9166 = vmatpush2.msra.mxu0 0.0
        %9167 = vmatprep.mubr.f32.mxu0 0.0
        %9168 = vmatmul.mubr.f32.gmra.mxu0 %v3815
        %v9169 = vpop.f32.mrf.mxu0
        %v9170 = vadd.f32 0.0, %v9169
        %v9171 = vpop.f32.mrf.mxu0
        %9172 = vmatprep.mubr.f32.mxu0 0.0
        %9173 = vmatmul.mubr.f32.gmra.mxu0 %v3817
        %v9174 = vpop.f32.mrf.mxu0
        %v9175 = vadd.f32 0.0, %v9174
        %v9176 = vpop.f32.mrf.mxu0
        %9177 = vmatprep.mubr.f32.mxu0 0.0
        %9178 = vmatmul.mubr.f32.gmra.mxu0 %v3819
        %v9179 = vpop.f32.mrf.mxu0
        %v9180 = vadd.f32 0.0, %v9179
        %v9181 = vpop.f32.mrf.mxu0
        %9182 = vmatprep.mubr.f32.mxu0 0.0
        %9183 = vmatmul.mubr.f32.gmra.mxu0 %v3821
        %v9184 = vpop.f32.mrf.mxu0
        %v9185 = vadd.f32 0.0, %v9184
        %v9186 = vpop.f32.mrf.mxu0
        %9187 = vmatprep.mubr.f32.mxu0 0.0
        %9188 = vmatmul.mubr.f32.gmra.mxu0 %v3823
        %v9189 = vpop.f32.mrf.mxu0
        %v9190 = vadd.f32 0.0, %v9189
        %v9191 = vpop.f32.mrf.mxu0
        %9192 = vmatprep.mubr.f32.mxu0 0.0
        %9193 = vmatmul.mubr.f32.gmra.mxu0 %v3825
        %v9194 = vpop.f32.mrf.mxu0
        %v9195 = vadd.f32 0.0, %v9194
        %v9196 = vpop.f32.mrf.mxu0
        %9197 = vmatprep.mubr.f32.mxu0 0.0
        %9198 = vmatmul.mubr.f32.gmra.mxu0 %v3827
        %v9199 = vpop.f32.mrf.mxu0
        %v9200 = vadd.f32 0.0, %v9199
        %v9201 = vpop.f32.mrf.mxu0
        %9202 = vmatprep.mubr.f32.mxu0 0.0
        %9203 = vmatmul.mubr.f32.gmra.mxu0 %v3829
        %v9204 = vpop.f32.mrf.mxu0
        %v9205 = vadd.f32 0.0, %v9204
        %v9206 = vpop.f32.mrf.mxu0
        %9207 = vmatprep.mubr.f32.mxu0 0.0
        %9208 = vmatmul.mubr.f32.gmra.mxu0 %v3831
        %v9209 = vpop.f32.mrf.mxu0
        %v9210 = vadd.f32 0.0, %v9209
        %v9211 = vpop.f32.mrf.mxu0
        %9212 = vmatprep.mubr.f32.mxu0 0.0
        %9213 = vmatmul.mubr.f32.gmra.mxu0 %v3833
        %v9214 = vpop.f32.mrf.mxu0
        %v9215 = vadd.f32 0.0, %v9214
        %v9216 = vpop.f32.mrf.mxu0
        %9217 = vmatprep.mubr.f32.mxu0 0.0
        %9218 = vmatmul.mubr.f32.gmra.mxu0 %v3835
        %v9219 = vpop.f32.mrf.mxu0
        %v9220 = vadd.f32 0.0, %v9219
        %v9221 = vpop.f32.mrf.mxu0
        %9222 = vmatprep.mubr.f32.mxu0 0.0
        %9223 = vmatmul.mubr.f32.gmra.mxu0 %v3837
        %v9224 = vpop.f32.mrf.mxu0
        %v9225 = vadd.f32 0.0, %v9224
        %v9226 = vpop.f32.mrf.mxu0
        %9227 = vmatprep.mubr.f32.mxu0 0.0
        %9228 = vmatmul.mubr.f32.gmra.mxu0 %v3839
        %v9229 = vpop.f32.mrf.mxu0
        %v9230 = vadd.f32 0.0, %v9229
        %v9231 = vpop.f32.mrf.mxu0
        %9232 = vmatprep.mubr.f32.mxu0 0.0
        %9233 = vmatmul.mubr.f32.gmra.mxu0 %v3841
        %v9234 = vpop.f32.mrf.mxu0
        %v9235 = vadd.f32 0.0, %v9234
        %v9236 = vpop.f32.mrf.mxu0
        %9237 = vmatprep.mubr.f32.mxu0 0.0
        %9238 = vmatmul.mubr.f32.gmra.mxu0 %v3843
        %v9239 = vpop.f32.mrf.mxu0
        %v9240 = vadd.f32 0.0, %v9239
        %v9241 = vpop.f32.mrf.mxu0
        %9242 = vmatprep.mubr.f32.mxu0 0.0
        %9243 = vmatmul.mubr.f32.gmra.mxu0 %v3845
        %v9244 = vpop.f32.mrf.mxu0
        %v9245 = vadd.f32 0.0, %v9244
        %v9246 = vpop.f32.mrf.mxu0
        %9247 = vmatprep.mubr.f32.mxu0 0.0
        %9248 = vmatmul.mubr.f32.gmra.mxu0 %v3847
        %v9249 = vpop.f32.mrf.mxu0
        %v9250 = vadd.f32 0.0, %v9249
        %v9251 = vpop.f32.mrf.mxu0
        %9252 = vmatprep.mubr.f32.mxu0 0.0
        %9253 = vmatmul.mubr.f32.gmra.mxu0 %v3849
        %v9254 = vpop.f32.mrf.mxu0
        %v9255 = vadd.f32 0.0, %v9254
        %v9256 = vpop.f32.mrf.mxu0
        %9257 = vmatprep.mubr.f32.mxu0 0.0
        %9258 = vmatmul.mubr.f32.gmra.mxu0 %v3851
        %v9259 = vpop.f32.mrf.mxu0
        %v9260 = vadd.f32 0.0, %v9259
        %v9261 = vpop.f32.mrf.mxu0
        %9262 = vmatprep.mubr.f32.mxu0 0.0
        %9263 = vmatmul.mubr.f32.gmra.mxu0 %v3853
        %v9264 = vpop.f32.mrf.mxu0
        %v9265 = vadd.f32 0.0, %v9264
        %v9266 = vpop.f32.mrf.mxu0
        %9267 = vmatprep.mubr.f32.mxu0 0.0
        %9268 = vmatmul.mubr.f32.gmra.mxu0 %v3855
        %v9269 = vpop.f32.mrf.mxu0
        %v9270 = vadd.f32 0.0, %v9269
        %v9271 = vpop.f32.mrf.mxu0
        %9272 = vmatprep.mubr.f32.mxu0 0.0
        %9273 = vmatmul.mubr.f32.gmra.mxu0 %v3857
        %v9274 = vpop.f32.mrf.mxu0
        %v9275 = vadd.f32 0.0, %v9274
        %v9276 = vpop.f32.mrf.mxu0
        %9277 = vmatprep.mubr.f32.mxu0 0.0
        %9278 = vmatmul.mubr.f32.gmra.mxu0 %v3859
        %v9279 = vpop.f32.mrf.mxu0
        %v9280 = vadd.f32 0.0, %v9279
        %v9281 = vpop.f32.mrf.mxu0
        %9282 = vmatprep.mubr.f32.mxu0 0.0
        %9283 = vmatmul.mubr.f32.gmra.mxu0 %v3861
        %v9284 = vpop.f32.mrf.mxu0
        %v9285 = vadd.f32 0.0, %v9284
        %v9286 = vpop.f32.mrf.mxu0
        %9287 = vmatprep.mubr.f32.mxu0 0.0
        %9288 = vmatmul.mubr.f32.gmra.mxu0 %v3863
        %v9289 = vpop.f32.mrf.mxu0
        %v9290 = vadd.f32 0.0, %v9289
        %v9291 = vpop.f32.mrf.mxu0
        %9292 = vmatprep.mubr.f32.mxu0 0.0
        %9293 = vmatmul.mubr.f32.gmra.mxu0 %v3865
        %v9294 = vpop.f32.mrf.mxu0
        %v9295 = vadd.f32 0.0, %v9294
        %v9296 = vpop.f32.mrf.mxu0
        %9297 = vmatprep.mubr.f32.mxu0 0.0
        %9298 = vmatmul.mubr.f32.gmra.mxu0 %v3867
        %v9299 = vpop.f32.mrf.mxu0
        %v9300 = vadd.f32 0.0, %v9299
        %v9301 = vpop.f32.mrf.mxu0
        %9302 = vmatprep.mubr.f32.mxu0 0.0
        %9303 = vmatmul.mubr.f32.gmra.mxu0 %v3869
        %v9304 = vpop.f32.mrf.mxu0
        %v9305 = vadd.f32 0.0, %v9304
        %v9306 = vpop.f32.mrf.mxu0
        %9307 = vmatprep.mubr.f32.mxu0 0.0
        %9308 = vmatmul.mubr.f32.gmra.mxu0 %v3871
        %v9309 = vpop.f32.mrf.mxu0
        %v9310 = vadd.f32 0.0, %v9309
        %v9311 = vpop.f32.mrf.mxu0
        %9312 = vmatprep.mubr.f32.mxu0 0.0
        %9313 = vmatmul.mubr.f32.gmra.mxu0 %v3873
        %v9314 = vpop.f32.mrf.mxu0
        %v9315 = vadd.f32 0.0, %v9314
        %v9316 = vpop.f32.mrf.mxu0
        %9317 = vmatprep.mubr.f32.mxu0 0.0
        %9318 = vmatmul.mubr.f32.gmra.mxu0 %v3875
        %v9319 = vpop.f32.mrf.mxu0
        %v9320 = vadd.f32 0.0, %v9319
        %v9321 = vpop.f32.mrf.mxu0
        %9322 = vmatprep.mubr.f32.mxu0 0.0
        %9323 = vmatmul.mubr.f32.gmra.mxu0 %v3877
        %v9324 = vpop.f32.mrf.mxu0
        %v9325 = vadd.f32 0.0, %v9324
        %v9326 = vpop.f32.mrf.mxu0
        %9327 = vmatprep.mubr.f32.mxu0 0.0
        %9328 = vmatmul.mubr.f32.gmra.mxu0 %v3879
        %v9329 = vpop.f32.mrf.mxu0
        %v9330 = vadd.f32 0.0, %v9329
        %v9331 = vpop.f32.mrf.mxu0
        %9332 = vmatprep.mubr.f32.mxu0 0.0
        %9333 = vmatmul.mubr.f32.gmra.mxu0 %v3881
        %v9334 = vpop.f32.mrf.mxu0
        %v9335 = vadd.f32 0.0, %v9334
        %v9336 = vpop.f32.mrf.mxu0
        %9337 = vmatprep.mubr.f32.mxu0 0.0
        %9338 = vmatmul.mubr.f32.gmra.mxu0 %v3883
        %v9339 = vpop.f32.mrf.mxu0
        %v9340 = vadd.f32 0.0, %v9339
        %v9341 = vpop.f32.mrf.mxu0
        %9342 = vmatprep.mubr.f32.mxu0 0.0
        %9343 = vmatmul.mubr.f32.gmra.mxu0 %v3885
        %v9344 = vpop.f32.mrf.mxu0
        %v9345 = vadd.f32 0.0, %v9344
        %v9346 = vpop.f32.mrf.mxu0
        %9347 = vmatprep.mubr.f32.mxu0 0.0
        %9348 = vmatmul.mubr.f32.gmra.mxu0 %v3887
        %v9349 = vpop.f32.mrf.mxu0
        %v9350 = vadd.f32 0.0, %v9349
        %v9351 = vpop.f32.mrf.mxu0
        %9352 = vmatprep.mubr.f32.mxu0 0.0
        %9353 = vmatmul.mubr.f32.gmra.mxu0 %v3889
        %v9354 = vpop.f32.mrf.mxu0
        %v9355 = vadd.f32 0.0, %v9354
        %v9356 = vpop.f32.mrf.mxu0
        %9357 = vmatprep.mubr.f32.mxu0 0.0
        %9358 = vmatmul.mubr.f32.gmra.mxu0 %v3891
        %v9359 = vpop.f32.mrf.mxu0
        %v9360 = vadd.f32 0.0, %v9359
        %v9361 = vpop.f32.mrf.mxu0
        %9362 = vmatprep.mubr.f32.mxu0 0.0
        %9363 = vmatmul.mubr.f32.gmra.mxu0 %v3893
        %v9364 = vpop.f32.mrf.mxu0
        %v9365 = vadd.f32 0.0, %v9364
        %v9366 = vpop.f32.mrf.mxu0
        %9367 = vmatprep.mubr.f32.mxu0 0.0
        %9368 = vmatmul.mubr.f32.gmra.mxu0 %v3895
        %v9369 = vpop.f32.mrf.mxu0
        %v9370 = vadd.f32 0.0, %v9369
        %v9371 = vpop.f32.mrf.mxu0
        %9372 = vmatprep.mubr.f32.mxu0 0.0
        %9373 = vmatmul.mubr.f32.gmra.mxu0 %v3897
        %v9374 = vpop.f32.mrf.mxu0
        %v9375 = vadd.f32 0.0, %v9374
        %v9376 = vpop.f32.mrf.mxu0
        %9377 = vmatprep.mubr.f32.mxu0 0.0
        %9378 = vmatmul.mubr.f32.gmra.mxu0 %v3899
        %v9379 = vpop.f32.mrf.mxu0
        %v9380 = vadd.f32 0.0, %v9379
        %v9381 = vpop.f32.mrf.mxu0
        %9382 = vmatprep.mubr.f32.mxu0 0.0
        %9383 = vmatmul.mubr.f32.gmra.mxu0 %v3901
        %v9384 = vpop.f32.mrf.mxu0
        %v9385 = vadd.f32 0.0, %v9384
        %v9386 = vpop.f32.mrf.mxu0
        %9387 = vmatprep.mubr.f32.mxu0 0.0
        %9388 = vmatmul.mubr.f32.gmra.mxu0 %v3903
        %v9389 = vpop.f32.mrf.mxu0
        %v9390 = vadd.f32 0.0, %v9389
        %v9391 = vpop.f32.mrf.mxu0
        %9392 = vmatprep.mubr.f32.mxu0 0.0
        %9393 = vmatmul.mubr.f32.gmra.mxu0 %v3905
        %v9394 = vpop.f32.mrf.mxu0
        %v9395 = vadd.f32 0.0, %v9394
        %v9396 = vpop.f32.mrf.mxu0
        %9397 = vmatprep.mubr.f32.mxu0 0.0
        %9398 = vmatmul.mubr.f32.gmra.mxu0 %v3907
        %v9399 = vpop.f32.mrf.mxu0
        %v9400 = vadd.f32 0.0, %v9399
        %v9401 = vpop.f32.mrf.mxu0
        %9402 = vmatprep.mubr.f32.mxu0 0.0
        %9403 = vmatmul.mubr.f32.gmra.mxu0 %v3909
        %v9404 = vpop.f32.mrf.mxu0
        %v9405 = vadd.f32 0.0, %v9404
        %v9406 = vpop.f32.mrf.mxu0
        %9407 = vmatprep.mubr.f32.mxu0 0.0
        %9408 = vmatmul.mubr.f32.gmra.mxu0 %v3911
        %v9409 = vpop.f32.mrf.mxu0
        %v9410 = vadd.f32 0.0, %v9409
        %v9411 = vpop.f32.mrf.mxu0
        %9412 = vmatprep.mubr.f32.mxu0 0.0
        %9413 = vmatmul.mubr.f32.gmra.mxu0 %v3913
        %v9414 = vpop.f32.mrf.mxu0
        %v9415 = vadd.f32 0.0, %v9414
        %v9416 = vpop.f32.mrf.mxu0
        %9417 = vmatprep.mubr.f32.mxu0 0.0
        %9418 = vmatmul.mubr.f32.gmra.mxu0 %v3915
        %v9419 = vpop.f32.mrf.mxu0
        %v9420 = vadd.f32 0.0, %v9419
        %v9421 = vpop.f32.mrf.mxu0
        %9422 = vmatprep.mubr.f32.mxu0 0.0
        %9423 = vmatmul.mubr.f32.gmra.mxu0 %v3917
        %v9424 = vpop.f32.mrf.mxu0
        %v9425 = vadd.f32 0.0, %v9424
        %v9426 = vpop.f32.mrf.mxu0
        %9427 = vmatprep.mubr.f32.mxu0 0.0
        %9428 = vmatmul.mubr.f32.gmra.mxu0 %v3919
        %v9429 = vpop.f32.mrf.mxu0
        %v9430 = vadd.f32 0.0, %v9429
        %v9431 = vpop.f32.mrf.mxu0
        %9432 = vmatprep.mubr.f32.mxu0 0.0
        %9433 = vmatmul.mubr.f32.gmra.mxu0 %v3921
        %v9434 = vpop.f32.mrf.mxu0
        %v9435 = vadd.f32 0.0, %v9434
        %v9436 = vpop.f32.mrf.mxu0
        %9437 = vmatprep.mubr.f32.mxu0 0.0
        %9438 = vmatmul.mubr.f32.gmra.mxu0 %v3923
        %v9439 = vpop.f32.mrf.mxu0
        %v9440 = vadd.f32 0.0, %v9439
        %v9441 = vpop.f32.mrf.mxu0
        %9442 = vmatprep.mubr.f32.mxu0 0.0
        %9443 = vmatmul.mubr.f32.gmra.mxu0 %v3925
        %v9444 = vpop.f32.mrf.mxu0
        %v9445 = vadd.f32 0.0, %v9444
        %v9446 = vpop.f32.mrf.mxu0
        %9447 = vmatprep.mubr.f32.mxu0 0.0
        %9448 = vmatmul.mubr.f32.gmra.mxu0 %v3927
        %v9449 = vpop.f32.mrf.mxu0
        %v9450 = vadd.f32 0.0, %v9449
        %v9451 = vpop.f32.mrf.mxu0
        %9452 = vmatprep.mubr.f32.mxu0 0.0
        %9453 = vmatmul.mubr.f32.gmra.mxu0 %v3929
        %v9454 = vpop.f32.mrf.mxu0
        %v9455 = vadd.f32 0.0, %v9454
        %v9456 = vpop.f32.mrf.mxu0
        %9457 = vmatprep.mubr.f32.mxu0 0.0
        %9458 = vmatmul.mubr.f32.gmra.mxu0 %v3931
        %v9459 = vpop.f32.mrf.mxu0
        %v9460 = vadd.f32 0.0, %v9459
        %v9461 = vpop.f32.mrf.mxu0
        %9462 = vmatprep.mubr.f32.mxu0 0.0
        %9463 = vmatmul.mubr.f32.gmra.mxu0 %v3933
        %v9464 = vpop.f32.mrf.mxu0
        %v9465 = vadd.f32 0.0, %v9464
        %v9466 = vpop.f32.mrf.mxu0
        %9467 = vmatprep.mubr.f32.mxu0 0.0
        %9468 = vmatmul.mubr.f32.gmra.mxu0 %v3935
        %v9469 = vpop.f32.mrf.mxu0
        %v9470 = vadd.f32 0.0, %v9469
        %v9471 = vpop.f32.mrf.mxu0
        %9472 = vmatprep.mubr.f32.mxu0 0.0
        %9473 = vmatmul.mubr.f32.gmra.mxu0 %v3937
        %v9474 = vpop.f32.mrf.mxu0
        %v9475 = vadd.f32 0.0, %v9474
        %v9476 = vpop.f32.mrf.mxu0
        %9477 = vmatprep.mubr.f32.mxu0 0.0
        %9478 = vmatmul.mubr.f32.gmra.mxu0 %v3939
        %v9479 = vpop.f32.mrf.mxu0
        %v9480 = vadd.f32 0.0, %v9479
        %v9481 = vpop.f32.mrf.mxu0
        %9482 = vmatprep.mubr.f32.mxu0 0.0
        %9483 = vmatmul.mubr.f32.gmra.mxu0 %v3941
        %v9484 = vpop.f32.mrf.mxu0
        %v9485 = vadd.f32 0.0, %v9484
        %v9486 = vpop.f32.mrf.mxu0
        %9487 = vmatprep.mubr.f32.mxu0 0.0
        %9488 = vmatmul.mubr.f32.gmra.mxu0 %v3943
        %v9489 = vpop.f32.mrf.mxu0
        %v9490 = vadd.f32 0.0, %v9489
        %v9491 = vpop.f32.mrf.mxu0
        %9492 = vmatprep.mubr.f32.mxu0 0.0
        %9493 = vmatmul.mubr.f32.gmra.mxu0 %v3945
        %v9494 = vpop.f32.mrf.mxu0
        %v9495 = vadd.f32 0.0, %v9494
        %v9496 = vpop.f32.mrf.mxu0
        %9497 = vmatprep.mubr.f32.mxu0 0.0
        %9498 = vmatmul.mubr.f32.gmra.mxu0 %v3947
        %v9499 = vpop.f32.mrf.mxu0
        %v9500 = vadd.f32 0.0, %v9499
        %v9501 = vpop.f32.mrf.mxu0
        %9502 = vmatprep.mubr.f32.mxu0 0.0
        %9503 = vmatmul.mubr.f32.gmra.mxu0 %v3949
        %v9504 = vpop.f32.mrf.mxu0
        %v9505 = vadd.f32 0.0, %v9504
        %v9506 = vpop.f32.mrf.mxu0
        %9507 = vmatprep.mubr.f32.mxu0 0.0
        %9508 = vmatmul.mubr.f32.gmra.mxu0 %v3951
        %v9509 = vpop.f32.mrf.mxu0
        %v9510 = vadd.f32 0.0, %v9509
        %v9511 = vpop.f32.mrf.mxu0
        %9512 = vmatprep.mubr.f32.mxu0 0.0
        %9513 = vmatmul.mubr.f32.gmra.mxu0 %v9096
        %v9514 = vpop.f32.mrf.mxu0
        %v9515 = vadd.f32 0.0, %v9514
        %v9516 = vpop.f32.mrf.mxu0
        %9517 = vmatprep.mubr.f32.mxu0 0.0
        %9518 = vmatmul.mubr.f32.gmra.mxu0 %v9098
        %v9519 = vpop.f32.mrf.mxu0
        %v9520 = vadd.f32 0.0, %v9519
        %v9521 = vpop.f32.mrf.mxu0
        %9522 = vdwg.mxu0
        %v9523 = vadd.f32 %v9019, %v9170
        %v9524 = vadd.f32 %v9020, %v9175
        %v9525 = vadd.f32 %v9021, %v9180
        %v9526 = vadd.f32 %v9022, %v9185
        %v9527 = vadd.f32 %v9023, %v9190
        %v9528 = vadd.f32 %v9024, %v9195
        %v9529 = vadd.f32 %v9025, %v9200
        %v9530 = vadd.f32 %v9026, %v9205
        %v9531 = vadd.f32 %v9027, %v9210
        %v9532 = vadd.f32 %v9028, %v9215
        %v9533 = vadd.f32 %v9029, %v9220
        %v9534 = vadd.f32 %v9030, %v9225
        %v9535 = vadd.f32 %v9031, %v9230
        %v9536 = vadd.f32 %v9032, %v9235
        %v9537 = vadd.f32 %v9033, %v9240
        %v9538 = vadd.f32 %v9034, %v9245
        %v9539 = vadd.f32 %v9035, %v9250
        %v9540 = vadd.f32 %v9036, %v9255
        %v9541 = vadd.f32 %v9037, %v9260
        %v9542 = vadd.f32 %v9038, %v9265
        %v9543 = vadd.f32 %v9039, %v9270
        %v9544 = vadd.f32 %v9040, %v9275
        %v9545 = vadd.f32 %v9041, %v9280
        %v9546 = vadd.f32 %v9042, %v9285
        %v9547 = vadd.f32 %v9043, %v9290
        %v9548 = vadd.f32 %v9044, %v9295
        %v9549 = vadd.f32 %v9045, %v9300
        %v9550 = vadd.f32 %v9046, %v9305
        %v9551 = vadd.f32 %v9047, %v9310
        %v9552 = vadd.f32 %v9048, %v9315
        %v9553 = vadd.f32 %v9049, %v9320
        %v9554 = vadd.f32 %v9050, %v9325
        %v9555 = vadd.f32 %v9051, %v9330
        %v9556 = vadd.f32 %v9052, %v9335
        %v9557 = vadd.f32 %v9053, %v9340
        %v9558 = vadd.f32 %v9054, %v9345
        %v9559 = vadd.f32 %v9055, %v9350
        %v9560 = vadd.f32 %v9056, %v9355
        %v9561 = vadd.f32 %v9057, %v9360
        %v9562 = vadd.f32 %v9058, %v9365
        %v9563 = vadd.f32 %v9059, %v9370
        %v9564 = vadd.f32 %v9060, %v9375
        %v9565 = vadd.f32 %v9061, %v9380
        %v9566 = vadd.f32 %v9062, %v9385
        %v9567 = vadd.f32 %v9063, %v9390
        %v9568 = vadd.f32 %v9064, %v9395
        %v9569 = vadd.f32 %v9065, %v9400
        %v9570 = vadd.f32 %v9066, %v9405
        %v9571 = vadd.f32 %v9067, %v9410
        %v9572 = vadd.f32 %v9068, %v9415
        %v9573 = vadd.f32 %v9069, %v9420
        %v9574 = vadd.f32 %v9070, %v9425
        %v9575 = vadd.f32 %v9071, %v9430
        %v9576 = vadd.f32 %v9072, %v9435
        %v9577 = vadd.f32 %v9073, %v9440
        %v9578 = vadd.f32 %v9074, %v9445
        %v9579 = vadd.f32 %v9075, %v9450
        %v9580 = vadd.f32 %v9076, %v9455
        %v9581 = vadd.f32 %v9077, %v9460
        %v9582 = vadd.f32 %v9078, %v9465
        %v9583 = vadd.f32 %v9079, %v9470
        %v9584 = vadd.f32 %v9080, %v9475
        %v9585 = vadd.f32 %v9081, %v9480
        %v9586 = vadd.f32 %v9082, %v9485
        %v9587 = vadd.f32 %v9083, %v9490
        %v9588 = vadd.f32 %v9084, %v9495
        %v9589 = vadd.f32 %v9085, %v9500
        %v9590 = vadd.f32 %v9086, %v9505
        %v9591 = vadd.f32 %v9087, %v9510
        %v9592 = vadd.f32 %v9088, %v9515
        %v9593 = vadd.f32 %v9089, %v9520
        %v9594 = vld [vmem:[%s4] sm:$0x1]
        %v9596 = vlaneseq
        %v9597 = vshrl.u32 %v9596, 7
        %v9598 = vsub.s32 0, %v9597
        %v9599 = vrot.slane %v9594, %v9598
        %v9601 = vadd.f32 %v9523, %v9599
        %v9602 = vadd.f32 %v9524, %v9599
        %v9603 = vadd.f32 %v9525, %v9599
        %v9604 = vadd.f32 %v9526, %v9599
        %v9605 = vadd.f32 %v9527, %v9599
        %v9606 = vadd.f32 %v9528, %v9599
        %v9607 = vadd.f32 %v9529, %v9599
        %v9608 = vadd.f32 %v9530, %v9599
        %v9609 = vadd.f32 %v9531, %v9599
        %v9610 = vadd.f32 %v9532, %v9599
        %v9611 = vadd.f32 %v9533, %v9599
        %v9612 = vadd.f32 %v9534, %v9599
        %v9613 = vadd.f32 %v9535, %v9599
        %v9614 = vadd.f32 %v9536, %v9599
        %v9615 = vadd.f32 %v9537, %v9599
        %v9616 = vadd.f32 %v9538, %v9599
        %v9617 = vadd.f32 %v9539, %v9599
        %v9618 = vadd.f32 %v9540, %v9599
        %v9619 = vadd.f32 %v9541, %v9599
        %v9620 = vadd.f32 %v9542, %v9599
        %v9621 = vadd.f32 %v9543, %v9599
        %v9622 = vadd.f32 %v9544, %v9599
        %v9623 = vadd.f32 %v9545, %v9599
        %v9624 = vadd.f32 %v9546, %v9599
        %v9625 = vadd.f32 %v9547, %v9599
        %v9626 = vadd.f32 %v9548, %v9599
        %v9627 = vadd.f32 %v9549, %v9599
        %v9628 = vadd.f32 %v9550, %v9599
        %v9629 = vadd.f32 %v9551, %v9599
        %v9630 = vadd.f32 %v9552, %v9599
        %v9631 = vadd.f32 %v9553, %v9599
        %v9632 = vadd.f32 %v9554, %v9599
        %v9633 = vadd.f32 %v9555, %v9599
        %v9634 = vadd.f32 %v9556, %v9599
        %v9635 = vadd.f32 %v9557, %v9599
        %v9636 = vadd.f32 %v9558, %v9599
        %v9637 = vadd.f32 %v9559, %v9599
        %v9638 = vadd.f32 %v9560, %v9599
        %v9639 = vadd.f32 %v9561, %v9599
        %v9640 = vadd.f32 %v9562, %v9599
        %v9641 = vadd.f32 %v9563, %v9599
        %v9642 = vadd.f32 %v9564, %v9599
        %v9643 = vadd.f32 %v9565, %v9599
        %v9644 = vadd.f32 %v9566, %v9599
        %v9645 = vadd.f32 %v9567, %v9599
        %v9646 = vadd.f32 %v9568, %v9599
        %v9647 = vadd.f32 %v9569, %v9599
        %v9648 = vadd.f32 %v9570, %v9599
        %v9649 = vadd.f32 %v9571, %v9599
        %v9650 = vadd.f32 %v9572, %v9599
        %v9651 = vadd.f32 %v9573, %v9599
        %v9652 = vadd.f32 %v9574, %v9599
        %v9653 = vadd.f32 %v9575, %v9599
        %v9654 = vadd.f32 %v9576, %v9599
        %v9655 = vadd.f32 %v9577, %v9599
        %v9656 = vadd.f32 %v9578, %v9599
        %v9657 = vadd.f32 %v9579, %v9599
        %v9658 = vadd.f32 %v9580, %v9599
        %v9659 = vadd.f32 %v9581, %v9599
        %v9660 = vadd.f32 %v9582, %v9599
        %v9661 = vadd.f32 %v9583, %v9599
        %v9662 = vadd.f32 %v9584, %v9599
        %v9663 = vadd.f32 %v9585, %v9599
        %v9664 = vadd.f32 %v9586, %v9599
        %v9665 = vadd.f32 %v9587, %v9599
        %v9666 = vadd.f32 %v9588, %v9599
        %v9667 = vadd.f32 %v9589, %v9599
        %v9668 = vadd.f32 %v9590, %v9599
        %v9669 = vadd.f32 %v9591, %v9599
        %v9670 = vadd.f32 %v9592, %v9599
        %v9671 = vadd.f32 %v9593, %v9599
        %v9672 = vmul.f32 %v9601, %v9601
        %v9673 = vmul.f32 %v9602, %v9602
        %v9674 = vmul.f32 %v9603, %v9603
        %v9675 = vmul.f32 %v9604, %v9604
        %v9676 = vmul.f32 %v9605, %v9605
        %v9677 = vmul.f32 %v9606, %v9606
        %v9678 = vmul.f32 %v9607, %v9607
        %v9679 = vmul.f32 %v9608, %v9608
        %v9680 = vmul.f32 %v9609, %v9609
        %v9681 = vmul.f32 %v9610, %v9610
        %v9682 = vmul.f32 %v9611, %v9611
        %v9683 = vmul.f32 %v9612, %v9612
        %v9684 = vmul.f32 %v9613, %v9613
        %v9685 = vmul.f32 %v9614, %v9614
        %v9686 = vmul.f32 %v9615, %v9615
        %v9687 = vmul.f32 %v9616, %v9616
        %v9688 = vmul.f32 %v9617, %v9617
        %v9689 = vmul.f32 %v9618, %v9618
        %v9690 = vmul.f32 %v9619, %v9619
        %v9691 = vmul.f32 %v9620, %v9620
        %v9692 = vmul.f32 %v9621, %v9621
        %v9693 = vmul.f32 %v9622, %v9622
        %v9694 = vmul.f32 %v9623, %v9623
        %v9695 = vmul.f32 %v9624, %v9624
        %v9696 = vmul.f32 %v9625, %v9625
        %v9697 = vmul.f32 %v9626, %v9626
        %v9698 = vmul.f32 %v9627, %v9627
        %v9699 = vmul.f32 %v9628, %v9628
        %v9700 = vmul.f32 %v9629, %v9629
        %v9701 = vmul.f32 %v9630, %v9630
        %v9702 = vmul.f32 %v9631, %v9631
        %v9703 = vmul.f32 %v9632, %v9632
        %v9704 = vmul.f32 %v9633, %v9633
        %v9705 = vmul.f32 %v9634, %v9634
        %v9706 = vmul.f32 %v9635, %v9635
        %v9707 = vmul.f32 %v9636, %v9636
        %v9708 = vmul.f32 %v9637, %v9637
        %v9709 = vmul.f32 %v9638, %v9638
        %v9710 = vmul.f32 %v9639, %v9639
        %v9711 = vmul.f32 %v9640, %v9640
        %v9712 = vmul.f32 %v9641, %v9641
        %v9713 = vmul.f32 %v9642, %v9642
        %v9714 = vmul.f32 %v9643, %v9643
        %v9715 = vmul.f32 %v9644, %v9644
        %v9716 = vmul.f32 %v9645, %v9645
        %v9717 = vmul.f32 %v9646, %v9646
        %v9718 = vmul.f32 %v9647, %v9647
        %v9719 = vmul.f32 %v9648, %v9648
        %v9720 = vmul.f32 %v9649, %v9649
        %v9721 = vmul.f32 %v9650, %v9650
        %v9722 = vmul.f32 %v9651, %v9651
        %v9723 = vmul.f32 %v9652, %v9652
        %v9724 = vmul.f32 %v9653, %v9653
        %v9725 = vmul.f32 %v9654, %v9654
        %v9726 = vmul.f32 %v9655, %v9655
        %v9727 = vmul.f32 %v9656, %v9656
        %v9728 = vmul.f32 %v9657, %v9657
        %v9729 = vmul.f32 %v9658, %v9658
        %v9730 = vmul.f32 %v9659, %v9659
        %v9731 = vmul.f32 %v9660, %v9660
        %v9732 = vmul.f32 %v9661, %v9661
        %v9733 = vmul.f32 %v9662, %v9662
        %v9734 = vmul.f32 %v9663, %v9663
        %v9735 = vmul.f32 %v9664, %v9664
        %v9736 = vmul.f32 %v9665, %v9665
        %v9737 = vmul.f32 %v9666, %v9666
        %v9738 = vmul.f32 %v9667, %v9667
        %v9739 = vmul.f32 %v9668, %v9668
        %v9740 = vmul.f32 %v9669, %v9669
        %v9741 = vmul.f32 %v9670, %v9670
        %v9742 = vmul.f32 %v9671, %v9671
        %v9743 = vld [vmem:[%s5] sm:$0xff]
        %v9744 = vld [vmem:[%s5 + $0x8] sm:$0xff]
        %v9745 = vld [vmem:[%s5 + $0x10] sm:$0xff]
        %v9746 = vld [vmem:[%s5 + $0x18] sm:$0xff]
        %v9747 = vld [vmem:[%s5 + $0x20] sm:$0xff]
        %v9748 = vld [vmem:[%s5 + $0x28] sm:$0xff]
        %v9749 = vld [vmem:[%s5 + $0x30] sm:$0xff]
        %v9750 = vld [vmem:[%s5 + $0x38] sm:$0xff]
        %v9751 = vld [vmem:[%s5 + $0x40] sm:$0xff]
        %v9752 = vld [vmem:[%s5 + $0x48] sm:$0xff]
        %v9753 = vld [vmem:[%s5 + $0x50] sm:$0xff]
        %v9754 = vld [vmem:[%s5 + $0x58] sm:$0xff]
        %v9755 = vld [vmem:[%s5 + $0x60] sm:$0xff]
        %v9756 = vld [vmem:[%s5 + $0x68] sm:$0xff]
        %v9757 = vld [vmem:[%s5 + $0x70] sm:$0xff]
        %v9758 = vld [vmem:[%s5 + $0x78] sm:$0xff]
        %v9759 = vld [vmem:[%s5 + $0x80] sm:$0xff]
        %v9760 = vld [vmem:[%s5 + $0x88] sm:$0xff]
        %v9761 = vld [vmem:[%s5 + $0x90] sm:$0xff]
        %v9762 = vld [vmem:[%s5 + $0x98] sm:$0xff]
        %v9763 = vld [vmem:[%s5 + $0xa0] sm:$0xff]
        %v9764 = vld [vmem:[%s5 + $0xa8] sm:$0xff]
        %v9765 = vld [vmem:[%s5 + $0xb0] sm:$0xff]
        %v9766 = vld [vmem:[%s5 + $0xb8] sm:$0xff]
        %v9767 = vld [vmem:[%s5 + $0xc0] sm:$0xff]
        %v9768 = vld [vmem:[%s5 + $0xc8] sm:$0x3]
        %v9769 = vld [vmem:[%s5 + $0xd0] sm:$0x3]
        %v9770 = vld [vmem:[%s5 + $0xd8] sm:$0x3]
        %v9771 = vld [vmem:[%s5 + $0xe0] sm:$0x3]
        %v9772 = vld [vmem:[%s5 + $0xe8] sm:$0x3]
        %vm9773 = vcmask 416768
        %v9775 = vsel %vm9773, %v9747, 0
        %v9778 = vsel %vm9773, %v9752, 0
        %v9781 = vsel %vm9773, %v9757, 0
        %v9784 = vsel %vm9773, %v9762, 0
        %v9787 = vsel %vm9773, %v9767, 0
        %v9790 = vsel %vm9773, %v9772, 0
        %v9793 = vsel %vm5235, %v9742, 0
        %9795 = vmatprep.subr.mxu0 0.0
        %9796 = vmatpush1.msra.mxu0 %v9687
        %9797 = vmatprep.subr.mxu0 0.0
        %9798 = vmatpush1.msra.mxu0 %v9686
        %9799 = vmatprep.subr.mxu0 0.0
        %9800 = vmatpush1.msra.mxu0 %v9685
        %9801 = vmatprep.subr.mxu0 0.0
        %9802 = vmatpush1.msra.mxu0 %v9684
        %9803 = vmatprep.subr.mxu0 0.0
        %9804 = vmatpush1.msra.mxu0 %v9683
        %9805 = vmatprep.subr.mxu0 0.0
        %9806 = vmatpush1.msra.mxu0 %v9682
        %9807 = vmatprep.subr.mxu0 0.0
        %9808 = vmatpush1.msra.mxu0 %v9681
        %9809 = vmatprep.subr.mxu0 0.0
        %9810 = vmatpush1.msra.mxu0 %v9680
        %9811 = vmatprep.subr.mxu0 0.0
        %9812 = vmatpush1.msra.mxu0 %v9679
        %9813 = vmatprep.subr.mxu0 0.0
        %9814 = vmatpush1.msra.mxu0 %v9678
        %9815 = vmatprep.subr.mxu0 0.0
        %9816 = vmatpush1.msra.mxu0 %v9677
        %9817 = vmatprep.subr.mxu0 0.0
        %9818 = vmatpush1.msra.mxu0 %v9676
        %9819 = vmatprep.subr.mxu0 0.0
        %9820 = vmatpush1.msra.mxu0 %v9675
        %9821 = vmatprep.subr.mxu0 0.0
        %9822 = vmatpush1.msra.mxu0 %v9674
        %9823 = vmatprep.subr.mxu0 0.0
        %9824 = vmatpush1.msra.mxu0 %v9673
        %9825 = vmatprep.subr.mxu0 0.0
        %9826 = vmatpush1.msra.mxu0 %v9672
        %9827 = vmatprep.subr.mxu0 0.0
        %9828 = vmatpush2.msra.mxu0 %v9703
        %9829 = vmatprep.subr.mxu0 0.0
        %9830 = vmatpush2.msra.mxu0 %v9702
        %9831 = vmatprep.subr.mxu0 0.0
        %9832 = vmatpush2.msra.mxu0 %v9701
        %9833 = vmatprep.subr.mxu0 0.0
        %9834 = vmatpush2.msra.mxu0 %v9700
        %9835 = vmatprep.subr.mxu0 0.0
        %9836 = vmatpush2.msra.mxu0 %v9699
        %9837 = vmatprep.subr.mxu0 0.0
        %9838 = vmatpush2.msra.mxu0 %v9698
        %9839 = vmatprep.subr.mxu0 0.0
        %9840 = vmatpush2.msra.mxu0 %v9697
        %9841 = vmatprep.subr.mxu0 0.0
        %9842 = vmatpush2.msra.mxu0 %v9696
        %9843 = vmatprep.subr.mxu0 0.0
        %9844 = vmatpush2.msra.mxu0 %v9695
        %9845 = vmatprep.subr.mxu0 0.0
        %9846 = vmatpush2.msra.mxu0 %v9694
        %9847 = vmatprep.subr.mxu0 0.0
        %9848 = vmatpush2.msra.mxu0 %v9693
        %9849 = vmatprep.subr.mxu0 0.0
        %9850 = vmatpush2.msra.mxu0 %v9692
        %9851 = vmatprep.subr.mxu0 0.0
        %9852 = vmatpush2.msra.mxu0 %v9691
        %9853 = vmatprep.subr.mxu0 0.0
        %9854 = vmatpush2.msra.mxu0 %v9690
        %9855 = vmatprep.subr.mxu0 0.0
        %9856 = vmatpush2.msra.mxu0 %v9689
        %9857 = vmatprep.subr.mxu0 0.0
        %9858 = vmatpush2.msra.mxu0 %v9688
        %9859 = vmatprep.mubr.f32.mxu0 %v9744
        %9860 = vmatmul.mubr.f32.gmra.mxu0 %v9743
        %v9861 = vpop.f32.mrf.mxu0
        %v9862 = vadd.f32 0.0, %v9861
        %v9863 = vpop.f32.mrf.mxu0
        %9864 = vmatprep.mubr.f32.mxu0 %v9749
        %9865 = vmatmul.mubr.f32.gmra.mxu0 %v9748
        %v9866 = vpop.f32.mrf.mxu0
        %v9867 = vadd.f32 0.0, %v9866
        %v9868 = vpop.f32.mrf.mxu0
        %9869 = vmatprep.mubr.f32.mxu0 %v9754
        %9870 = vmatmul.mubr.f32.gmra.mxu0 %v9753
        %v9871 = vpop.f32.mrf.mxu0
        %v9872 = vadd.f32 0.0, %v9871
        %v9873 = vpop.f32.mrf.mxu0
        %9874 = vmatprep.mubr.f32.mxu0 %v9759
        %9875 = vmatmul.mubr.f32.gmra.mxu0 %v9758
        %v9876 = vpop.f32.mrf.mxu0
        %v9877 = vadd.f32 0.0, %v9876
        %v9878 = vpop.f32.mrf.mxu0
        %9879 = vmatprep.mubr.f32.mxu0 %v9764
        %9880 = vmatmul.mubr.f32.gmra.mxu0 %v9763
        %v9881 = vpop.f32.mrf.mxu0
        %v9882 = vadd.f32 0.0, %v9881
        %v9883 = vpop.f32.mrf.mxu0
        %9884 = vmatprep.mubr.f32.mxu0 %v9769
        %9885 = vmatmul.mubr.f32.gmra.mxu0 %v9768
        %v9886 = vpop.f32.mrf.mxu0
        %v9887 = vadd.f32 0.0, %v9886
        %v9888 = vpop.f32.mrf.mxu0
        %9889 = vdwg.mxu0
        %9890 = vmatprep.subr.mxu0 0.0
        %9891 = vmatpush1.msra.mxu0 %v9719
        %9892 = vmatprep.subr.mxu0 0.0
        %9893 = vmatpush1.msra.mxu0 %v9718
        %9894 = vmatprep.subr.mxu0 0.0
        %9895 = vmatpush1.msra.mxu0 %v9717
        %9896 = vmatprep.subr.mxu0 0.0
        %9897 = vmatpush1.msra.mxu0 %v9716
        %9898 = vmatprep.subr.mxu0 0.0
        %9899 = vmatpush1.msra.mxu0 %v9715
        %9900 = vmatprep.subr.mxu0 0.0
        %9901 = vmatpush1.msra.mxu0 %v9714
        %9902 = vmatprep.subr.mxu0 0.0
        %9903 = vmatpush1.msra.mxu0 %v9713
        %9904 = vmatprep.subr.mxu0 0.0
        %9905 = vmatpush1.msra.mxu0 %v9712
        %9906 = vmatprep.subr.mxu0 0.0
        %9907 = vmatpush1.msra.mxu0 %v9711
        %9908 = vmatprep.subr.mxu0 0.0
        %9909 = vmatpush1.msra.mxu0 %v9710
        %9910 = vmatprep.subr.mxu0 0.0
        %9911 = vmatpush1.msra.mxu0 %v9709
        %9912 = vmatprep.subr.mxu0 0.0
        %9913 = vmatpush1.msra.mxu0 %v9708
        %9914 = vmatprep.subr.mxu0 0.0
        %9915 = vmatpush1.msra.mxu0 %v9707
        %9916 = vmatprep.subr.mxu0 0.0
        %9917 = vmatpush1.msra.mxu0 %v9706
        %9918 = vmatprep.subr.mxu0 0.0
        %9919 = vmatpush1.msra.mxu0 %v9705
        %9920 = vmatprep.subr.mxu0 0.0
        %9921 = vmatpush1.msra.mxu0 %v9704
        %9922 = vmatprep.subr.mxu0 0.0
        %9923 = vmatpush2.msra.mxu0 %v9735
        %9924 = vmatprep.subr.mxu0 0.0
        %9925 = vmatpush2.msra.mxu0 %v9734
        %9926 = vmatprep.subr.mxu0 0.0
        %9927 = vmatpush2.msra.mxu0 %v9733
        %9928 = vmatprep.subr.mxu0 0.0
        %9929 = vmatpush2.msra.mxu0 %v9732
        %9930 = vmatprep.subr.mxu0 0.0
        %9931 = vmatpush2.msra.mxu0 %v9731
        %9932 = vmatprep.subr.mxu0 0.0
        %9933 = vmatpush2.msra.mxu0 %v9730
        %9934 = vmatprep.subr.mxu0 0.0
        %9935 = vmatpush2.msra.mxu0 %v9729
        %9936 = vmatprep.subr.mxu0 0.0
        %9937 = vmatpush2.msra.mxu0 %v9728
        %9938 = vmatprep.subr.mxu0 0.0
        %9939 = vmatpush2.msra.mxu0 %v9727
        %9940 = vmatprep.subr.mxu0 0.0
        %9941 = vmatpush2.msra.mxu0 %v9726
        %9942 = vmatprep.subr.mxu0 0.0
        %9943 = vmatpush2.msra.mxu0 %v9725
        %9944 = vmatprep.subr.mxu0 0.0
        %9945 = vmatpush2.msra.mxu0 %v9724
        %9946 = vmatprep.subr.mxu0 0.0
        %9947 = vmatpush2.msra.mxu0 %v9723
        %9948 = vmatprep.subr.mxu0 0.0
        %9949 = vmatpush2.msra.mxu0 %v9722
        %9950 = vmatprep.subr.mxu0 0.0
        %9951 = vmatpush2.msra.mxu0 %v9721
        %9952 = vmatprep.subr.mxu0 0.0
        %9953 = vmatpush2.msra.mxu0 %v9720
        %9954 = vmatprep.mubr.f32.mxu0 %v9746
        %9955 = vmatmul.mubr.f32.gmra.mxu0 %v9745
        %v9956 = vpop.f32.mrf.mxu0
        %v9957 = vadd.f32 %v9862, %v9956
        %v9958 = vpop.f32.mrf.mxu0
        %9959 = vmatprep.mubr.f32.mxu0 %v9751
        %9960 = vmatmul.mubr.f32.gmra.mxu0 %v9750
        %v9961 = vpop.f32.mrf.mxu0
        %v9962 = vadd.f32 %v9867, %v9961
        %v9963 = vpop.f32.mrf.mxu0
        %9964 = vmatprep.mubr.f32.mxu0 %v9756
        %9965 = vmatmul.mubr.f32.gmra.mxu0 %v9755
        %v9966 = vpop.f32.mrf.mxu0
        %v9967 = vadd.f32 %v9872, %v9966
        %v9968 = vpop.f32.mrf.mxu0
        %9969 = vmatprep.mubr.f32.mxu0 %v9761
        %9970 = vmatmul.mubr.f32.gmra.mxu0 %v9760
        %v9971 = vpop.f32.mrf.mxu0
        %v9972 = vadd.f32 %v9877, %v9971
        %v9973 = vpop.f32.mrf.mxu0
        %9974 = vmatprep.mubr.f32.mxu0 %v9766
        %9975 = vmatmul.mubr.f32.gmra.mxu0 %v9765
        %v9976 = vpop.f32.mrf.mxu0
        %v9977 = vadd.f32 %v9882, %v9976
        %v9978 = vpop.f32.mrf.mxu0
        %9979 = vmatprep.mubr.f32.mxu0 %v9771
        %9980 = vmatmul.mubr.f32.gmra.mxu0 %v9770
        %v9981 = vpop.f32.mrf.mxu0
        %v9982 = vadd.f32 %v9887, %v9981
        %v9983 = vpop.f32.mrf.mxu0
        %9984 = vdwg.mxu0
        %9985 = vmatprep.subr.mxu0 0.0
        %9986 = vmatpush1.msra.mxu0 0.0
        %9987 = vmatprep.subr.mxu0 0.0
        %9988 = vmatpush1.msra.mxu0 0.0
        %9989 = vmatprep.subr.mxu0 0.0
        %9990 = vmatpush1.msra.mxu0 0.0
        %9991 = vmatprep.subr.mxu0 0.0
        %9992 = vmatpush1.msra.mxu0 0.0
        %9993 = vmatprep.subr.mxu0 0.0
        %9994 = vmatpush1.msra.mxu0 0.0
        %9995 = vmatprep.subr.mxu0 0.0
        %9996 = vmatpush1.msra.mxu0 0.0
        %9997 = vmatprep.subr.mxu0 0.0
        %9998 = vmatpush1.msra.mxu0 0.0
        %9999 = vmatprep.subr.mxu0 0.0
        %10000 = vmatpush1.msra.mxu0 0.0
        %10001 = vmatprep.subr.mxu0 0.0
        %10002 = vmatpush1.msra.mxu0 0.0
        %10003 = vmatprep.subr.mxu0 0.0
        %10004 = vmatpush1.msra.mxu0 %v9793
        %10005 = vmatprep.subr.mxu0 0.0
        %10006 = vmatpush1.msra.mxu0 %v9741
        %10007 = vmatprep.subr.mxu0 0.0
        %10008 = vmatpush1.msra.mxu0 %v9740
        %10009 = vmatprep.subr.mxu0 0.0
        %10010 = vmatpush1.msra.mxu0 %v9739
        %10011 = vmatprep.subr.mxu0 0.0
        %10012 = vmatpush1.msra.mxu0 %v9738
        %10013 = vmatprep.subr.mxu0 0.0
        %10014 = vmatpush1.msra.mxu0 %v9737
        %10015 = vmatprep.subr.mxu0 0.0
        %10016 = vmatpush1.msra.mxu0 %v9736
        %10017 = vmatprep.subr.mxu0 0.0
        %10018 = vmatpush2.msra.mxu0 0.0
        %10019 = vmatprep.subr.mxu0 0.0
        %10020 = vmatpush2.msra.mxu0 0.0
        %10021 = vmatprep.subr.mxu0 0.0
        %10022 = vmatpush2.msra.mxu0 0.0
        %10023 = vmatprep.subr.mxu0 0.0
        %10024 = vmatpush2.msra.mxu0 0.0
        %10025 = vmatprep.subr.mxu0 0.0
        %10026 = vmatpush2.msra.mxu0 0.0
        %10027 = vmatprep.subr.mxu0 0.0
        %10028 = vmatpush2.msra.mxu0 0.0
        %10029 = vmatprep.subr.mxu0 0.0
        %10030 = vmatpush2.msra.mxu0 0.0
        %10031 = vmatprep.subr.mxu0 0.0
        %10032 = vmatpush2.msra.mxu0 0.0
        %10033 = vmatprep.subr.mxu0 0.0
        %10034 = vmatpush2.msra.mxu0 0.0
        %10035 = vmatprep.subr.mxu0 0.0
        %10036 = vmatpush2.msra.mxu0 0.0
        %10037 = vmatprep.subr.mxu0 0.0
        %10038 = vmatpush2.msra.mxu0 0.0
        %10039 = vmatprep.subr.mxu0 0.0
        %10040 = vmatpush2.msra.mxu0 0.0
        %10041 = vmatprep.subr.mxu0 0.0
        %10042 = vmatpush2.msra.mxu0 0.0
        %10043 = vmatprep.subr.mxu0 0.0
        %10044 = vmatpush2.msra.mxu0 0.0
        %10045 = vmatprep.subr.mxu0 0.0
        %10046 = vmatpush2.msra.mxu0 0.0
        %10047 = vmatprep.subr.mxu0 0.0
        %10048 = vmatpush2.msra.mxu0 0.0
        %10049 = vmatprep.mubr.f32.mxu0 0.0
        %10050 = vmatmul.mubr.f32.gmra.mxu0 %v9775
        %v10051 = vpop.f32.mrf.mxu0
        %v10052 = vadd.f32 %v9957, %v10051
        %v10053 = vpop.f32.mrf.mxu0
        %10054 = vmatprep.mubr.f32.mxu0 0.0
        %10055 = vmatmul.mubr.f32.gmra.mxu0 %v9778
        %v10056 = vpop.f32.mrf.mxu0
        %v10057 = vadd.f32 %v9962, %v10056
        %v10058 = vpop.f32.mrf.mxu0
        %10059 = vmatprep.mubr.f32.mxu0 0.0
        %10060 = vmatmul.mubr.f32.gmra.mxu0 %v9781
        %v10061 = vpop.f32.mrf.mxu0
        %v10062 = vadd.f32 %v9967, %v10061
        %v10063 = vpop.f32.mrf.mxu0
        %10064 = vmatprep.mubr.f32.mxu0 0.0
        %10065 = vmatmul.mubr.f32.gmra.mxu0 %v9784
        %v10066 = vpop.f32.mrf.mxu0
        %v10067 = vadd.f32 %v9972, %v10066
        %v10068 = vpop.f32.mrf.mxu0
        %10069 = vmatprep.mubr.f32.mxu0 0.0
        %10070 = vmatmul.mubr.f32.gmra.mxu0 %v9787
        %v10071 = vpop.f32.mrf.mxu0
        %v10072 = vadd.f32 %v9977, %v10071
        %v10073 = vpop.f32.mrf.mxu0
        %10074 = vmatprep.mubr.f32.mxu0 0.0
        %10075 = vmatmul.mubr.f32.gmra.mxu0 %v9790
        %v10076 = vpop.f32.mrf.mxu0
        %v10077 = vadd.f32 %v9982, %v10076
        %v10078 = vpop.f32.mrf.mxu0
        %10079 = vdwg.mxu0
        %v10080 = vlog2.pop %v10052
        %v10081 = vmul.f32 %v10080, 0.6931472
        %v10082 = vlog2.pop %v10057
        %v10083 = vmul.f32 %v10082, 0.6931472
        %v10084 = vlog2.pop %v10062
        %v10085 = vmul.f32 %v10084, 0.6931472
        %v10086 = vlog2.pop %v10067
        %v10087 = vmul.f32 %v10086, 0.6931472
        %v10088 = vlog2.pop %v10072
        %v10089 = vmul.f32 %v10088, 0.6931472
        %v10090 = vlog2.pop %v10077
        %v10091 = vmul.f32 %v10090, 0.6931472
        %v10092 = vld [vmem:[%s6] sm:$0xff]
        %v10093 = vld [vmem:[%s6 + $0x8] sm:$0xff]
        %v10094 = vld [vmem:[%s6 + $0x10] sm:$0xf]
        %v10095 = vld [vmem:[%s6 + $0x18] sm:$0xff]
        %v10096 = vld [vmem:[%s6 + $0x20] sm:$0xff]
        %v10097 = vld [vmem:[%s6 + $0x28] sm:$0xf]
        %v10098 = vld [vmem:[%s6 + $0x30] sm:$0xff]
        %v10099 = vld [vmem:[%s6 + $0x38] sm:$0xff]
        %v10100 = vld [vmem:[%s6 + $0x40] sm:$0xf]
        %v10101 = vld [vmem:[%s6 + $0x48] sm:$0xff]
        %v10102 = vld [vmem:[%s6 + $0x50] sm:$0xff]
        %v10103 = vld [vmem:[%s6 + $0x58] sm:$0xf]
        %v10104 = vld [vmem:[%s6 + $0x60] sm:$0xff]
        %v10105 = vld [vmem:[%s6 + $0x68] sm:$0xff]
        %v10106 = vld [vmem:[%s6 + $0x70] sm:$0xf]
        %v10107 = vld [vmem:[%s6 + $0x78] sm:$0xff]
        %v10108 = vld [vmem:[%s6 + $0x80] sm:$0xff]
        %v10109 = vld [vmem:[%s6 + $0x88] sm:$0xf]
        %v10110 = vld [vmem:[%s6 + $0x90] sm:$0xff]
        %v10111 = vld [vmem:[%s6 + $0x98] sm:$0xff]
        %v10112 = vld [vmem:[%s6 + $0xa0] sm:$0xf]
        %v10113 = vld [vmem:[%s6 + $0xa8] sm:$0xff]
        %v10114 = vld [vmem:[%s6 + $0xb0] sm:$0xff]
        %v10115 = vld [vmem:[%s6 + $0xb8] sm:$0xf]
        %v10116 = vld [vmem:[%s6 + $0xc0] sm:$0xff]
        %v10117 = vld [vmem:[%s6 + $0xc8] sm:$0xff]
        %v10118 = vld [vmem:[%s6 + $0xd0] sm:$0xf]
        %v10119 = vld [vmem:[%s6 + $0xd8] sm:$0xff]
        %v10120 = vld [vmem:[%s6 + $0xe0] sm:$0xff]
        %v10121 = vld [vmem:[%s6 + $0xe8] sm:$0xf]
        %v10122 = vld [vmem:[%s6 + $0xf0] sm:$0xff]
        %v10123 = vld [vmem:[%s6 + $0xf8] sm:$0xff]
        %v10124 = vld [vmem:[%s6 + $0x100] sm:$0xf]
        %v10125 = vld [vmem:[%s6 + $0x108] sm:$0xff]
        %v10126 = vld [vmem:[%s6 + $0x110] sm:$0xff]
        %v10127 = vld [vmem:[%s6 + $0x118] sm:$0xf]
        %v10128 = vld [vmem:[%s6 + $0x120] sm:$0xff]
        %v10129 = vld [vmem:[%s6 + $0x128] sm:$0xff]
        %v10130 = vld [vmem:[%s6 + $0x130] sm:$0xf]
        %v10131 = vld [vmem:[%s6 + $0x138] sm:$0xff]
        %v10132 = vld [vmem:[%s6 + $0x140] sm:$0xff]
        %v10133 = vld [vmem:[%s6 + $0x148] sm:$0xf]
        %v10134 = vld [vmem:[%s6 + $0x150] sm:$0xff]
        %v10135 = vld [vmem:[%s6 + $0x158] sm:$0xff]
        %v10136 = vld [vmem:[%s6 + $0x160] sm:$0xf]
        %v10137 = vld [vmem:[%s6 + $0x168] sm:$0xff]
        %v10138 = vld [vmem:[%s6 + $0x170] sm:$0xff]
        %v10139 = vld [vmem:[%s6 + $0x178] sm:$0xf]
        %v10140 = vld [vmem:[%s6 + $0x180] sm:$0xff]
        %v10141 = vld [vmem:[%s6 + $0x188] sm:$0xff]
        %v10142 = vld [vmem:[%s6 + $0x190] sm:$0xf]
        %v10143 = vld [vmem:[%s6 + $0x198] sm:$0xff]
        %v10144 = vld [vmem:[%s6 + $0x1a0] sm:$0xff]
        %v10145 = vld [vmem:[%s6 + $0x1a8] sm:$0xf]
        %v10146 = vld [vmem:[%s6 + $0x1b0] sm:$0xff]
        %v10147 = vld [vmem:[%s6 + $0x1b8] sm:$0xff]
        %v10148 = vld [vmem:[%s6 + $0x1c0] sm:$0xf]
        %v10149 = vld [vmem:[%s6 + $0x1c8] sm:$0xff]
        %v10150 = vld [vmem:[%s6 + $0x1d0] sm:$0xff]
        %v10151 = vld [vmem:[%s6 + $0x1d8] sm:$0xf]
        %v10152 = vld [vmem:[%s6 + $0x1e0] sm:$0xff]
        %v10153 = vld [vmem:[%s6 + $0x1e8] sm:$0xff]
        %v10154 = vld [vmem:[%s6 + $0x1f0] sm:$0xf]
        %v10155 = vld [vmem:[%s6 + $0x1f8] sm:$0xff]
        %v10156 = vld [vmem:[%s6 + $0x200] sm:$0xff]
        %v10157 = vld [vmem:[%s6 + $0x208] sm:$0xf]
        %v10158 = vld [vmem:[%s6 + $0x210] sm:$0xff]
        %v10159 = vld [vmem:[%s6 + $0x218] sm:$0xff]
        %v10160 = vld [vmem:[%s6 + $0x220] sm:$0xf]
        %v10161 = vld [vmem:[%s6 + $0x228] sm:$0xff]
        %v10162 = vld [vmem:[%s6 + $0x230] sm:$0xff]
        %v10163 = vld [vmem:[%s6 + $0x238] sm:$0xf]
        %v10164 = vld [vmem:[%s6 + $0x240] sm:$0xff]
        %v10165 = vld [vmem:[%s6 + $0x248] sm:$0xff]
        %v10166 = vld [vmem:[%s6 + $0x250] sm:$0xf]
        %v10167 = vld [vmem:[%s6 + $0x258] sm:$0xff]
        %v10168 = vld [vmem:[%s6 + $0x260] sm:$0xff]
        %v10169 = vld [vmem:[%s6 + $0x268] sm:$0xf]
        %v10170 = vld [vmem:[%s6 + $0x270] sm:$0xff]
        %v10171 = vld [vmem:[%s6 + $0x278] sm:$0xff]
        %v10172 = vld [vmem:[%s6 + $0x280] sm:$0xf]
        %v10173 = vld [vmem:[%s6 + $0x288] sm:$0xff]
        %v10174 = vld [vmem:[%s6 + $0x290] sm:$0xff]
        %v10175 = vld [vmem:[%s6 + $0x298] sm:$0xf]
        %v10176 = vld [vmem:[%s6 + $0x2a0] sm:$0xff]
        %v10177 = vld [vmem:[%s6 + $0x2a8] sm:$0xff]
        %v10178 = vld [vmem:[%s6 + $0x2b0] sm:$0xf]
        %v10179 = vld [vmem:[%s6 + $0x2b8] sm:$0xff]
        %v10180 = vld [vmem:[%s6 + $0x2c0] sm:$0xff]
        %v10181 = vld [vmem:[%s6 + $0x2c8] sm:$0xf]
        %v10182 = vld [vmem:[%s6 + $0x2d0] sm:$0xff]
        %v10183 = vld [vmem:[%s6 + $0x2d8] sm:$0xff]
        %v10184 = vld [vmem:[%s6 + $0x2e0] sm:$0xf]
        %v10185 = vld [vmem:[%s6 + $0x2e8] sm:$0xff]
        %v10186 = vld [vmem:[%s6 + $0x2f0] sm:$0xff]
        %v10187 = vld [vmem:[%s6 + $0x2f8] sm:$0xf]
        %v10188 = vld [vmem:[%s6 + $0x300] sm:$0xff]
        %v10189 = vld [vmem:[%s6 + $0x308] sm:$0xff]
        %v10190 = vld [vmem:[%s6 + $0x310] sm:$0xf]
        %v10191 = vld [vmem:[%s6 + $0x318] sm:$0xff]
        %v10192 = vld [vmem:[%s6 + $0x320] sm:$0xff]
        %v10193 = vld [vmem:[%s6 + $0x328] sm:$0xf]
        %v10194 = vld [vmem:[%s6 + $0x330] sm:$0xff]
        %v10195 = vld [vmem:[%s6 + $0x338] sm:$0xff]
        %v10196 = vld [vmem:[%s6 + $0x340] sm:$0xf]
        %v10197 = vld [vmem:[%s6 + $0x348] sm:$0xff]
        %v10198 = vld [vmem:[%s6 + $0x350] sm:$0xff]
        %v10199 = vld [vmem:[%s6 + $0x358] sm:$0xf]
        %v10200 = vld [vmem:[%s6 + $0x360] sm:$0xff]
        %v10201 = vld [vmem:[%s6 + $0x368] sm:$0xff]
        %v10202 = vld [vmem:[%s6 + $0x370] sm:$0xf]
        %v10203 = vld [vmem:[%s6 + $0x378] sm:$0xff]
        %v10204 = vld [vmem:[%s6 + $0x380] sm:$0xff]
        %v10205 = vld [vmem:[%s6 + $0x388] sm:$0xf]
        %v10206 = vld [vmem:[%s6 + $0x390] sm:$0xff]
        %v10207 = vld [vmem:[%s6 + $0x398] sm:$0xff]
        %v10208 = vld [vmem:[%s6 + $0x3a0] sm:$0xf]
        %v10209 = vld [vmem:[%s6 + $0x3a8] sm:$0xff]
        %v10210 = vld [vmem:[%s6 + $0x3b0] sm:$0xff]
        %v10211 = vld [vmem:[%s6 + $0x3b8] sm:$0xf]
        %v10212 = vld [vmem:[%s6 + $0x3c0] sm:$0xff]
        %v10213 = vld [vmem:[%s6 + $0x3c8] sm:$0xff]
        %v10214 = vld [vmem:[%s6 + $0x3d0] sm:$0xf]
        %v10215 = vld [vmem:[%s6 + $0x3d8] sm:$0xff]
        %v10216 = vld [vmem:[%s6 + $0x3e0] sm:$0xff]
        %v10217 = vld [vmem:[%s6 + $0x3e8] sm:$0xf]
        %v10218 = vlaneseq
        %v10219 = vshrl.u32 %v10218, 7
        %v10220 = vsub.s32 0, %v10219
        %v10221 = vrot.slane %v10081, %v10220
        %10223 = vbcast.lane.b32.xlu0 %v10221, 256
        %v10224 = vpop.permute.xlu0 %10223
        %s10226 = sor.u32 256, 8
        %10227 = vbcast.lane.b32.xlu0 %v10221, %s10226
        %v10228 = vpop.permute.xlu0 %10227
        %s10230 = sor.u32 256, 16
        %10231 = vbcast.lane.b32.xlu0 %v10221, %s10230
        %v10232 = vpop.permute.xlu0 %10231
        %v10233 = vlaneseq
        %v10234 = vshrl.u32 %v10233, 7
        %v10235 = vsub.s32 1, %v10234
        %v10236 = vrot.slane %v10081, %v10235
        %10238 = vbcast.lane.b32.xlu0 %v10236, 256
        %v10239 = vpop.permute.xlu0 %10238
        %s10241 = sor.u32 256, 8
        %10242 = vbcast.lane.b32.xlu0 %v10236, %s10241
        %v10243 = vpop.permute.xlu0 %10242
        %s10245 = sor.u32 256, 16
        %10246 = vbcast.lane.b32.xlu0 %v10236, %s10245
        %v10247 = vpop.permute.xlu0 %10246
        %v10248 = vlaneseq
        %v10249 = vshrl.u32 %v10248, 7
        %v10250 = vsub.s32 2, %v10249
        %v10251 = vrot.slane %v10081, %v10250
        %10253 = vbcast.lane.b32.xlu0 %v10251, 256
        %v10254 = vpop.permute.xlu0 %10253
        %s10256 = sor.u32 256, 8
        %10257 = vbcast.lane.b32.xlu0 %v10251, %s10256
        %v10258 = vpop.permute.xlu0 %10257
        %s10260 = sor.u32 256, 16
        %10261 = vbcast.lane.b32.xlu0 %v10251, %s10260
        %v10262 = vpop.permute.xlu0 %10261
        %v10263 = vlaneseq
        %v10264 = vshrl.u32 %v10263, 7
        %v10265 = vsub.s32 3, %v10264
        %v10266 = vrot.slane %v10081, %v10265
        %10268 = vbcast.lane.b32.xlu0 %v10266, 256
        %v10269 = vpop.permute.xlu0 %10268
        %s10271 = sor.u32 256, 8
        %10272 = vbcast.lane.b32.xlu0 %v10266, %s10271
        %v10273 = vpop.permute.xlu0 %10272
        %s10275 = sor.u32 256, 16
        %10276 = vbcast.lane.b32.xlu0 %v10266, %s10275
        %v10277 = vpop.permute.xlu0 %10276
        %v10278 = vlaneseq
        %v10279 = vshrl.u32 %v10278, 7
        %v10280 = vsub.s32 4, %v10279
        %v10281 = vrot.slane %v10081, %v10280
        %10283 = vbcast.lane.b32.xlu0 %v10281, 256
        %v10284 = vpop.permute.xlu0 %10283
        %s10286 = sor.u32 256, 8
        %10287 = vbcast.lane.b32.xlu0 %v10281, %s10286
        %v10288 = vpop.permute.xlu0 %10287
        %s10290 = sor.u32 256, 16
        %10291 = vbcast.lane.b32.xlu0 %v10281, %s10290
        %v10292 = vpop.permute.xlu0 %10291
        %v10293 = vlaneseq
        %v10294 = vshrl.u32 %v10293, 7
        %v10295 = vsub.s32 5, %v10294
        %v10296 = vrot.slane %v10081, %v10295
        %10298 = vbcast.lane.b32.xlu0 %v10296, 256
        %v10299 = vpop.permute.xlu0 %10298
        %s10301 = sor.u32 256, 8
        %10302 = vbcast.lane.b32.xlu0 %v10296, %s10301
        %v10303 = vpop.permute.xlu0 %10302
        %s10305 = sor.u32 256, 16
        %10306 = vbcast.lane.b32.xlu0 %v10296, %s10305
        %v10307 = vpop.permute.xlu0 %10306
        %v10308 = vlaneseq
        %v10309 = vshrl.u32 %v10308, 7
        %v10310 = vsub.s32 6, %v10309
        %v10311 = vrot.slane %v10081, %v10310
        %10313 = vbcast.lane.b32.xlu0 %v10311, 256
        %v10314 = vpop.permute.xlu0 %10313
        %s10316 = sor.u32 256, 8
        %10317 = vbcast.lane.b32.xlu0 %v10311, %s10316
        %v10318 = vpop.permute.xlu0 %10317
        %s10320 = sor.u32 256, 16
        %10321 = vbcast.lane.b32.xlu0 %v10311, %s10320
        %v10322 = vpop.permute.xlu0 %10321
        %v10323 = vlaneseq
        %v10324 = vshrl.u32 %v10323, 7
        %v10325 = vsub.s32 7, %v10324
        %v10326 = vrot.slane %v10081, %v10325
        %10328 = vbcast.lane.b32.xlu0 %v10326, 256
        %v10329 = vpop.permute.xlu0 %10328
        %s10331 = sor.u32 256, 8
        %10332 = vbcast.lane.b32.xlu0 %v10326, %s10331
        %v10333 = vpop.permute.xlu0 %10332
        %s10335 = sor.u32 256, 16
        %10336 = vbcast.lane.b32.xlu0 %v10326, %s10335
        %v10337 = vpop.permute.xlu0 %10336
        %v10338 = vlaneseq
        %v10339 = vshrl.u32 %v10338, 7
        %v10340 = vsub.s32 0, %v10339
        %v10341 = vrot.slane %v10083, %v10340
        %10343 = vbcast.lane.b32.xlu0 %v10341, 256
        %v10344 = vpop.permute.xlu0 %10343
        %s10346 = sor.u32 256, 8
        %10347 = vbcast.lane.b32.xlu0 %v10341, %s10346
        %v10348 = vpop.permute.xlu0 %10347
        %s10350 = sor.u32 256, 16
        %10351 = vbcast.lane.b32.xlu0 %v10341, %s10350
        %v10352 = vpop.permute.xlu0 %10351
        %v10353 = vlaneseq
        %v10354 = vshrl.u32 %v10353, 7
        %v10355 = vsub.s32 1, %v10354
        %v10356 = vrot.slane %v10083, %v10355
        %10358 = vbcast.lane.b32.xlu0 %v10356, 256
        %v10359 = vpop.permute.xlu0 %10358
        %s10361 = sor.u32 256, 8
        %10362 = vbcast.lane.b32.xlu0 %v10356, %s10361
        %v10363 = vpop.permute.xlu0 %10362
        %s10365 = sor.u32 256, 16
        %10366 = vbcast.lane.b32.xlu0 %v10356, %s10365
        %v10367 = vpop.permute.xlu0 %10366
        %v10368 = vlaneseq
        %v10369 = vshrl.u32 %v10368, 7
        %v10370 = vsub.s32 2, %v10369
        %v10371 = vrot.slane %v10083, %v10370
        %10373 = vbcast.lane.b32.xlu0 %v10371, 256
        %v10374 = vpop.permute.xlu0 %10373
        %s10376 = sor.u32 256, 8
        %10377 = vbcast.lane.b32.xlu0 %v10371, %s10376
        %v10378 = vpop.permute.xlu0 %10377
        %s10380 = sor.u32 256, 16
        %10381 = vbcast.lane.b32.xlu0 %v10371, %s10380
        %v10382 = vpop.permute.xlu0 %10381
        %v10383 = vlaneseq
        %v10384 = vshrl.u32 %v10383, 7
        %v10385 = vsub.s32 3, %v10384
        %v10386 = vrot.slane %v10083, %v10385
        %10388 = vbcast.lane.b32.xlu0 %v10386, 256
        %v10389 = vpop.permute.xlu0 %10388
        %s10391 = sor.u32 256, 8
        %10392 = vbcast.lane.b32.xlu0 %v10386, %s10391
        %v10393 = vpop.permute.xlu0 %10392
        %s10395 = sor.u32 256, 16
        %10396 = vbcast.lane.b32.xlu0 %v10386, %s10395
        %v10397 = vpop.permute.xlu0 %10396
        %v10398 = vlaneseq
        %v10399 = vshrl.u32 %v10398, 7
        %v10400 = vsub.s32 4, %v10399
        %v10401 = vrot.slane %v10083, %v10400
        %10403 = vbcast.lane.b32.xlu0 %v10401, 256
        %v10404 = vpop.permute.xlu0 %10403
        %s10406 = sor.u32 256, 8
        %10407 = vbcast.lane.b32.xlu0 %v10401, %s10406
        %v10408 = vpop.permute.xlu0 %10407
        %s10410 = sor.u32 256, 16
        %10411 = vbcast.lane.b32.xlu0 %v10401, %s10410
        %v10412 = vpop.permute.xlu0 %10411
        %v10413 = vlaneseq
        %v10414 = vshrl.u32 %v10413, 7
        %v10415 = vsub.s32 5, %v10414
        %v10416 = vrot.slane %v10083, %v10415
        %10418 = vbcast.lane.b32.xlu0 %v10416, 256
        %v10419 = vpop.permute.xlu0 %10418
        %s10421 = sor.u32 256, 8
        %10422 = vbcast.lane.b32.xlu0 %v10416, %s10421
        %v10423 = vpop.permute.xlu0 %10422
        %s10425 = sor.u32 256, 16
        %10426 = vbcast.lane.b32.xlu0 %v10416, %s10425
        %v10427 = vpop.permute.xlu0 %10426
        %v10428 = vlaneseq
        %v10429 = vshrl.u32 %v10428, 7
        %v10430 = vsub.s32 6, %v10429
        %v10431 = vrot.slane %v10083, %v10430
        %10433 = vbcast.lane.b32.xlu0 %v10431, 256
        %v10434 = vpop.permute.xlu0 %10433
        %s10436 = sor.u32 256, 8
        %10437 = vbcast.lane.b32.xlu0 %v10431, %s10436
        %v10438 = vpop.permute.xlu0 %10437
        %s10440 = sor.u32 256, 16
        %10441 = vbcast.lane.b32.xlu0 %v10431, %s10440
        %v10442 = vpop.permute.xlu0 %10441
        %v10443 = vlaneseq
        %v10444 = vshrl.u32 %v10443, 7
        %v10445 = vsub.s32 7, %v10444
        %v10446 = vrot.slane %v10083, %v10445
        %10448 = vbcast.lane.b32.xlu0 %v10446, 256
        %v10449 = vpop.permute.xlu0 %10448
        %s10451 = sor.u32 256, 8
        %10452 = vbcast.lane.b32.xlu0 %v10446, %s10451
        %v10453 = vpop.permute.xlu0 %10452
        %s10455 = sor.u32 256, 16
        %10456 = vbcast.lane.b32.xlu0 %v10446, %s10455
        %v10457 = vpop.permute.xlu0 %10456
        %v10458 = vlaneseq
        %v10459 = vshrl.u32 %v10458, 7
        %v10460 = vsub.s32 0, %v10459
        %v10461 = vrot.slane %v10085, %v10460
        %10463 = vbcast.lane.b32.xlu0 %v10461, 256
        %v10464 = vpop.permute.xlu0 %10463
        %s10466 = sor.u32 256, 8
        %10467 = vbcast.lane.b32.xlu0 %v10461, %s10466
        %v10468 = vpop.permute.xlu0 %10467
        %s10470 = sor.u32 256, 16
        %10471 = vbcast.lane.b32.xlu0 %v10461, %s10470
        %v10472 = vpop.permute.xlu0 %10471
        %v10473 = vlaneseq
        %v10474 = vshrl.u32 %v10473, 7
        %v10475 = vsub.s32 1, %v10474
        %v10476 = vrot.slane %v10085, %v10475
        %10478 = vbcast.lane.b32.xlu0 %v10476, 256
        %v10479 = vpop.permute.xlu0 %10478
        %s10481 = sor.u32 256, 8
        %10482 = vbcast.lane.b32.xlu0 %v10476, %s10481
        %v10483 = vpop.permute.xlu0 %10482
        %s10485 = sor.u32 256, 16
        %10486 = vbcast.lane.b32.xlu0 %v10476, %s10485
        %v10487 = vpop.permute.xlu0 %10486
        %v10488 = vlaneseq
        %v10489 = vshrl.u32 %v10488, 7
        %v10490 = vsub.s32 2, %v10489
        %v10491 = vrot.slane %v10085, %v10490
        %10493 = vbcast.lane.b32.xlu0 %v10491, 256
        %v10494 = vpop.permute.xlu0 %10493
        %s10496 = sor.u32 256, 8
        %10497 = vbcast.lane.b32.xlu0 %v10491, %s10496
        %v10498 = vpop.permute.xlu0 %10497
        %s10500 = sor.u32 256, 16
        %10501 = vbcast.lane.b32.xlu0 %v10491, %s10500
        %v10502 = vpop.permute.xlu0 %10501
        %v10503 = vlaneseq
        %v10504 = vshrl.u32 %v10503, 7
        %v10505 = vsub.s32 3, %v10504
        %v10506 = vrot.slane %v10085, %v10505
        %10508 = vbcast.lane.b32.xlu0 %v10506, 256
        %v10509 = vpop.permute.xlu0 %10508
        %s10511 = sor.u32 256, 8
        %10512 = vbcast.lane.b32.xlu0 %v10506, %s10511
        %v10513 = vpop.permute.xlu0 %10512
        %s10515 = sor.u32 256, 16
        %10516 = vbcast.lane.b32.xlu0 %v10506, %s10515
        %v10517 = vpop.permute.xlu0 %10516
        %v10518 = vlaneseq
        %v10519 = vshrl.u32 %v10518, 7
        %v10520 = vsub.s32 4, %v10519
        %v10521 = vrot.slane %v10085, %v10520
        %10523 = vbcast.lane.b32.xlu0 %v10521, 256
        %v10524 = vpop.permute.xlu0 %10523
        %s10526 = sor.u32 256, 8
        %10527 = vbcast.lane.b32.xlu0 %v10521, %s10526
        %v10528 = vpop.permute.xlu0 %10527
        %s10530 = sor.u32 256, 16
        %10531 = vbcast.lane.b32.xlu0 %v10521, %s10530
        %v10532 = vpop.permute.xlu0 %10531
        %v10533 = vlaneseq
        %v10534 = vshrl.u32 %v10533, 7
        %v10535 = vsub.s32 5, %v10534
        %v10536 = vrot.slane %v10085, %v10535
        %10538 = vbcast.lane.b32.xlu0 %v10536, 256
        %v10539 = vpop.permute.xlu0 %10538
        %s10541 = sor.u32 256, 8
        %10542 = vbcast.lane.b32.xlu0 %v10536, %s10541
        %v10543 = vpop.permute.xlu0 %10542
        %s10545 = sor.u32 256, 16
        %10546 = vbcast.lane.b32.xlu0 %v10536, %s10545
        %v10547 = vpop.permute.xlu0 %10546
        %v10548 = vlaneseq
        %v10549 = vshrl.u32 %v10548, 7
        %v10550 = vsub.s32 6, %v10549
        %v10551 = vrot.slane %v10085, %v10550
        %10553 = vbcast.lane.b32.xlu0 %v10551, 256
        %v10554 = vpop.permute.xlu0 %10553
        %s10556 = sor.u32 256, 8
        %10557 = vbcast.lane.b32.xlu0 %v10551, %s10556
        %v10558 = vpop.permute.xlu0 %10557
        %s10560 = sor.u32 256, 16
        %10561 = vbcast.lane.b32.xlu0 %v10551, %s10560
        %v10562 = vpop.permute.xlu0 %10561
        %v10563 = vlaneseq
        %v10564 = vshrl.u32 %v10563, 7
        %v10565 = vsub.s32 7, %v10564
        %v10566 = vrot.slane %v10085, %v10565
        %10568 = vbcast.lane.b32.xlu0 %v10566, 256
        %v10569 = vpop.permute.xlu0 %10568
        %s10571 = sor.u32 256, 8
        %10572 = vbcast.lane.b32.xlu0 %v10566, %s10571
        %v10573 = vpop.permute.xlu0 %10572
        %s10575 = sor.u32 256, 16
        %10576 = vbcast.lane.b32.xlu0 %v10566, %s10575
        %v10577 = vpop.permute.xlu0 %10576
        %v10578 = vlaneseq
        %v10579 = vshrl.u32 %v10578, 7
        %v10580 = vsub.s32 0, %v10579
        %v10581 = vrot.slane %v10087, %v10580
        %10583 = vbcast.lane.b32.xlu0 %v10581, 256
        %v10584 = vpop.permute.xlu0 %10583
        %s10586 = sor.u32 256, 8
        %10587 = vbcast.lane.b32.xlu0 %v10581, %s10586
        %v10588 = vpop.permute.xlu0 %10587
        %s10590 = sor.u32 256, 16
        %10591 = vbcast.lane.b32.xlu0 %v10581, %s10590
        %v10592 = vpop.permute.xlu0 %10591
        %v10593 = vlaneseq
        %v10594 = vshrl.u32 %v10593, 7
        %v10595 = vsub.s32 1, %v10594
        %v10596 = vrot.slane %v10087, %v10595
        %10598 = vbcast.lane.b32.xlu0 %v10596, 256
        %v10599 = vpop.permute.xlu0 %10598
        %s10601 = sor.u32 256, 8
        %10602 = vbcast.lane.b32.xlu0 %v10596, %s10601
        %v10603 = vpop.permute.xlu0 %10602
        %s10605 = sor.u32 256, 16
        %10606 = vbcast.lane.b32.xlu0 %v10596, %s10605
        %v10607 = vpop.permute.xlu0 %10606
        %v10608 = vlaneseq
        %v10609 = vshrl.u32 %v10608, 7
        %v10610 = vsub.s32 2, %v10609
        %v10611 = vrot.slane %v10087, %v10610
        %10613 = vbcast.lane.b32.xlu0 %v10611, 256
        %v10614 = vpop.permute.xlu0 %10613
        %s10616 = sor.u32 256, 8
        %10617 = vbcast.lane.b32.xlu0 %v10611, %s10616
        %v10618 = vpop.permute.xlu0 %10617
        %s10620 = sor.u32 256, 16
        %10621 = vbcast.lane.b32.xlu0 %v10611, %s10620
        %v10622 = vpop.permute.xlu0 %10621
        %v10623 = vlaneseq
        %v10624 = vshrl.u32 %v10623, 7
        %v10625 = vsub.s32 3, %v10624
        %v10626 = vrot.slane %v10087, %v10625
        %10628 = vbcast.lane.b32.xlu0 %v10626, 256
        %v10629 = vpop.permute.xlu0 %10628
        %s10631 = sor.u32 256, 8
        %10632 = vbcast.lane.b32.xlu0 %v10626, %s10631
        %v10633 = vpop.permute.xlu0 %10632
        %s10635 = sor.u32 256, 16
        %10636 = vbcast.lane.b32.xlu0 %v10626, %s10635
        %v10637 = vpop.permute.xlu0 %10636
        %v10638 = vlaneseq
        %v10639 = vshrl.u32 %v10638, 7
        %v10640 = vsub.s32 4, %v10639
        %v10641 = vrot.slane %v10087, %v10640
        %10643 = vbcast.lane.b32.xlu0 %v10641, 256
        %v10644 = vpop.permute.xlu0 %10643
        %s10646 = sor.u32 256, 8
        %10647 = vbcast.lane.b32.xlu0 %v10641, %s10646
        %v10648 = vpop.permute.xlu0 %10647
        %s10650 = sor.u32 256, 16
        %10651 = vbcast.lane.b32.xlu0 %v10641, %s10650
        %v10652 = vpop.permute.xlu0 %10651
        %v10653 = vlaneseq
        %v10654 = vshrl.u32 %v10653, 7
        %v10655 = vsub.s32 5, %v10654
        %v10656 = vrot.slane %v10087, %v10655
        %10658 = vbcast.lane.b32.xlu0 %v10656, 256
        %v10659 = vpop.permute.xlu0 %10658
        %s10661 = sor.u32 256, 8
        %10662 = vbcast.lane.b32.xlu0 %v10656, %s10661
        %v10663 = vpop.permute.xlu0 %10662
        %s10665 = sor.u32 256, 16
        %10666 = vbcast.lane.b32.xlu0 %v10656, %s10665
        %v10667 = vpop.permute.xlu0 %10666
        %v10668 = vlaneseq
        %v10669 = vshrl.u32 %v10668, 7
        %v10670 = vsub.s32 6, %v10669
        %v10671 = vrot.slane %v10087, %v10670
        %10673 = vbcast.lane.b32.xlu0 %v10671, 256
        %v10674 = vpop.permute.xlu0 %10673
        %s10676 = sor.u32 256, 8
        %10677 = vbcast.lane.b32.xlu0 %v10671, %s10676
        %v10678 = vpop.permute.xlu0 %10677
        %s10680 = sor.u32 256, 16
        %10681 = vbcast.lane.b32.xlu0 %v10671, %s10680
        %v10682 = vpop.permute.xlu0 %10681
        %v10683 = vlaneseq
        %v10684 = vshrl.u32 %v10683, 7
        %v10685 = vsub.s32 7, %v10684
        %v10686 = vrot.slane %v10087, %v10685
        %10688 = vbcast.lane.b32.xlu0 %v10686, 256
        %v10689 = vpop.permute.xlu0 %10688
        %s10691 = sor.u32 256, 8
        %10692 = vbcast.lane.b32.xlu0 %v10686, %s10691
        %v10693 = vpop.permute.xlu0 %10692
        %s10695 = sor.u32 256, 16
        %10696 = vbcast.lane.b32.xlu0 %v10686, %s10695
        %v10697 = vpop.permute.xlu0 %10696
        %v10698 = vlaneseq
        %v10699 = vshrl.u32 %v10698, 7
        %v10700 = vsub.s32 0, %v10699
        %v10701 = vrot.slane %v10089, %v10700
        %10703 = vbcast.lane.b32.xlu0 %v10701, 256
        %v10704 = vpop.permute.xlu0 %10703
        %s10706 = sor.u32 256, 8
        %10707 = vbcast.lane.b32.xlu0 %v10701, %s10706
        %v10708 = vpop.permute.xlu0 %10707
        %s10710 = sor.u32 256, 16
        %10711 = vbcast.lane.b32.xlu0 %v10701, %s10710
        %v10712 = vpop.permute.xlu0 %10711
        %v10713 = vlaneseq
        %v10714 = vshrl.u32 %v10713, 7
        %v10715 = vsub.s32 1, %v10714
        %v10716 = vrot.slane %v10089, %v10715
        %10718 = vbcast.lane.b32.xlu0 %v10716, 256
        %v10719 = vpop.permute.xlu0 %10718
        %s10721 = sor.u32 256, 8
        %10722 = vbcast.lane.b32.xlu0 %v10716, %s10721
        %v10723 = vpop.permute.xlu0 %10722
        %s10725 = sor.u32 256, 16
        %10726 = vbcast.lane.b32.xlu0 %v10716, %s10725
        %v10727 = vpop.permute.xlu0 %10726
        %v10728 = vlaneseq
        %v10729 = vshrl.u32 %v10728, 7
        %v10730 = vsub.s32 2, %v10729
        %v10731 = vrot.slane %v10089, %v10730
        %10733 = vbcast.lane.b32.xlu0 %v10731, 256
        %v10734 = vpop.permute.xlu0 %10733
        %s10736 = sor.u32 256, 8
        %10737 = vbcast.lane.b32.xlu0 %v10731, %s10736
        %v10738 = vpop.permute.xlu0 %10737
        %s10740 = sor.u32 256, 16
        %10741 = vbcast.lane.b32.xlu0 %v10731, %s10740
        %v10742 = vpop.permute.xlu0 %10741
        %v10743 = vlaneseq
        %v10744 = vshrl.u32 %v10743, 7
        %v10745 = vsub.s32 3, %v10744
        %v10746 = vrot.slane %v10089, %v10745
        %10748 = vbcast.lane.b32.xlu0 %v10746, 256
        %v10749 = vpop.permute.xlu0 %10748
        %s10751 = sor.u32 256, 8
        %10752 = vbcast.lane.b32.xlu0 %v10746, %s10751
        %v10753 = vpop.permute.xlu0 %10752
        %s10755 = sor.u32 256, 16
        %10756 = vbcast.lane.b32.xlu0 %v10746, %s10755
        %v10757 = vpop.permute.xlu0 %10756
        %v10758 = vlaneseq
        %v10759 = vshrl.u32 %v10758, 7
        %v10760 = vsub.s32 4, %v10759
        %v10761 = vrot.slane %v10089, %v10760
        %10763 = vbcast.lane.b32.xlu0 %v10761, 256
        %v10764 = vpop.permute.xlu0 %10763
        %s10766 = sor.u32 256, 8
        %10767 = vbcast.lane.b32.xlu0 %v10761, %s10766
        %v10768 = vpop.permute.xlu0 %10767
        %s10770 = sor.u32 256, 16
        %10771 = vbcast.lane.b32.xlu0 %v10761, %s10770
        %v10772 = vpop.permute.xlu0 %10771
        %v10773 = vlaneseq
        %v10774 = vshrl.u32 %v10773, 7
        %v10775 = vsub.s32 5, %v10774
        %v10776 = vrot.slane %v10089, %v10775
        %10778 = vbcast.lane.b32.xlu0 %v10776, 256
        %v10779 = vpop.permute.xlu0 %10778
        %s10781 = sor.u32 256, 8
        %10782 = vbcast.lane.b32.xlu0 %v10776, %s10781
        %v10783 = vpop.permute.xlu0 %10782
        %s10785 = sor.u32 256, 16
        %10786 = vbcast.lane.b32.xlu0 %v10776, %s10785
        %v10787 = vpop.permute.xlu0 %10786
        %v10788 = vlaneseq
        %v10789 = vshrl.u32 %v10788, 7
        %v10790 = vsub.s32 6, %v10789
        %v10791 = vrot.slane %v10089, %v10790
        %10793 = vbcast.lane.b32.xlu0 %v10791, 256
        %v10794 = vpop.permute.xlu0 %10793
        %s10796 = sor.u32 256, 8
        %10797 = vbcast.lane.b32.xlu0 %v10791, %s10796
        %v10798 = vpop.permute.xlu0 %10797
        %s10800 = sor.u32 256, 16
        %10801 = vbcast.lane.b32.xlu0 %v10791, %s10800
        %v10802 = vpop.permute.xlu0 %10801
        %v10803 = vlaneseq
        %v10804 = vshrl.u32 %v10803, 7
        %v10805 = vsub.s32 7, %v10804
        %v10806 = vrot.slane %v10089, %v10805
        %10808 = vbcast.lane.b32.xlu0 %v10806, 256
        %v10809 = vpop.permute.xlu0 %10808
        %s10811 = sor.u32 256, 8
        %10812 = vbcast.lane.b32.xlu0 %v10806, %s10811
        %v10813 = vpop.permute.xlu0 %10812
        %s10815 = sor.u32 256, 16
        %10816 = vbcast.lane.b32.xlu0 %v10806, %s10815
        %v10817 = vpop.permute.xlu0 %10816
        %v10818 = vlaneseq
        %v10819 = vshrl.u32 %v10818, 7
        %v10820 = vsub.s32 0, %v10819
        %v10821 = vrot.slane %v10091, %v10820
        %10823 = vbcast.lane.b32.xlu0 %v10821, 256
        %v10824 = vpop.permute.xlu0 %10823
        %s10826 = sor.u32 256, 8
        %10827 = vbcast.lane.b32.xlu0 %v10821, %s10826
        %v10828 = vpop.permute.xlu0 %10827
        %s10830 = sor.u32 256, 16
        %10831 = vbcast.lane.b32.xlu0 %v10821, %s10830
        %v10832 = vpop.permute.xlu0 %10831
        %v10833 = vlaneseq
        %v10834 = vshrl.u32 %v10833, 7
        %v10835 = vsub.s32 1, %v10834
        %v10836 = vrot.slane %v10091, %v10835
        %10838 = vbcast.lane.b32.xlu0 %v10836, 256
        %v10839 = vpop.permute.xlu0 %10838
        %s10841 = sor.u32 256, 8
        %10842 = vbcast.lane.b32.xlu0 %v10836, %s10841
        %v10843 = vpop.permute.xlu0 %10842
        %s10845 = sor.u32 256, 16
        %10846 = vbcast.lane.b32.xlu0 %v10836, %s10845
        %v10847 = vpop.permute.xlu0 %10846
        %v10848 = vmul.f32 %v10092, %v10224
        %v10849 = vmul.f32 %v10093, %v10228
        %v10850 = vmul.f32 %v10094, %v10232
        %v10851 = vmul.f32 %v10095, %v10239
        %v10852 = vmul.f32 %v10096, %v10243
        %v10853 = vmul.f32 %v10097, %v10247
        %v10854 = vmul.f32 %v10098, %v10254
        %v10855 = vmul.f32 %v10099, %v10258
        %v10856 = vmul.f32 %v10100, %v10262
        %v10857 = vmul.f32 %v10101, %v10269
        %v10858 = vmul.f32 %v10102, %v10273
        %v10859 = vmul.f32 %v10103, %v10277
        %v10860 = vmul.f32 %v10104, %v10284
        %v10861 = vmul.f32 %v10105, %v10288
        %v10862 = vmul.f32 %v10106, %v10292
        %v10863 = vmul.f32 %v10107, %v10299
        %v10864 = vmul.f32 %v10108, %v10303
        %v10865 = vmul.f32 %v10109, %v10307
        %v10866 = vmul.f32 %v10110, %v10314
        %v10867 = vmul.f32 %v10111, %v10318
        %v10868 = vmul.f32 %v10112, %v10322
        %v10869 = vmul.f32 %v10113, %v10329
        %v10870 = vmul.f32 %v10114, %v10333
        %v10871 = vmul.f32 %v10115, %v10337
        %v10872 = vmul.f32 %v10116, %v10344
        %v10873 = vmul.f32 %v10117, %v10348
        %v10874 = vmul.f32 %v10118, %v10352
        %v10875 = vmul.f32 %v10119, %v10359
        %v10876 = vmul.f32 %v10120, %v10363
        %v10877 = vmul.f32 %v10121, %v10367
        %v10878 = vmul.f32 %v10122, %v10374
        %v10879 = vmul.f32 %v10123, %v10378
        %v10880 = vmul.f32 %v10124, %v10382
        %v10881 = vmul.f32 %v10125, %v10389
        %v10882 = vmul.f32 %v10126, %v10393
        %v10883 = vmul.f32 %v10127, %v10397
        %v10884 = vmul.f32 %v10128, %v10404
        %v10885 = vmul.f32 %v10129, %v10408
        %v10886 = vmul.f32 %v10130, %v10412
        %v10887 = vmul.f32 %v10131, %v10419
        %v10888 = vmul.f32 %v10132, %v10423
        %v10889 = vmul.f32 %v10133, %v10427
        %v10890 = vmul.f32 %v10134, %v10434
        %v10891 = vmul.f32 %v10135, %v10438
        %v10892 = vmul.f32 %v10136, %v10442
        %v10893 = vmul.f32 %v10137, %v10449
        %v10894 = vmul.f32 %v10138, %v10453
        %v10895 = vmul.f32 %v10139, %v10457
        %v10896 = vmul.f32 %v10140, %v10464
        %v10897 = vmul.f32 %v10141, %v10468
        %v10898 = vmul.f32 %v10142, %v10472
        %v10899 = vmul.f32 %v10143, %v10479
        %v10900 = vmul.f32 %v10144, %v10483
        %v10901 = vmul.f32 %v10145, %v10487
        %v10902 = vmul.f32 %v10146, %v10494
        %v10903 = vmul.f32 %v10147, %v10498
        %v10904 = vmul.f32 %v10148, %v10502
        %v10905 = vmul.f32 %v10149, %v10509
        %v10906 = vmul.f32 %v10150, %v10513
        %v10907 = vmul.f32 %v10151, %v10517
        %v10908 = vmul.f32 %v10152, %v10524
        %v10909 = vmul.f32 %v10153, %v10528
        %v10910 = vmul.f32 %v10154, %v10532
        %v10911 = vmul.f32 %v10155, %v10539
        %v10912 = vmul.f32 %v10156, %v10543
        %v10913 = vmul.f32 %v10157, %v10547
        %v10914 = vmul.f32 %v10158, %v10554
        %v10915 = vmul.f32 %v10159, %v10558
        %v10916 = vmul.f32 %v10160, %v10562
        %v10917 = vmul.f32 %v10161, %v10569
        %v10918 = vmul.f32 %v10162, %v10573
        %v10919 = vmul.f32 %v10163, %v10577
        %v10920 = vmul.f32 %v10164, %v10584
        %v10921 = vmul.f32 %v10165, %v10588
        %v10922 = vmul.f32 %v10166, %v10592
        %v10923 = vmul.f32 %v10167, %v10599
        %v10924 = vmul.f32 %v10168, %v10603
        %v10925 = vmul.f32 %v10169, %v10607
        %v10926 = vmul.f32 %v10170, %v10614
        %v10927 = vmul.f32 %v10171, %v10618
        %v10928 = vmul.f32 %v10172, %v10622
        %v10929 = vmul.f32 %v10173, %v10629
        %v10930 = vmul.f32 %v10174, %v10633
        %v10931 = vmul.f32 %v10175, %v10637
        %v10932 = vmul.f32 %v10176, %v10644
        %v10933 = vmul.f32 %v10177, %v10648
        %v10934 = vmul.f32 %v10178, %v10652
        %v10935 = vmul.f32 %v10179, %v10659
        %v10936 = vmul.f32 %v10180, %v10663
        %v10937 = vmul.f32 %v10181, %v10667
        %v10938 = vmul.f32 %v10182, %v10674
        %v10939 = vmul.f32 %v10183, %v10678
        %v10940 = vmul.f32 %v10184, %v10682
        %v10941 = vmul.f32 %v10185, %v10689
        %v10942 = vmul.f32 %v10186, %v10693
        %v10943 = vmul.f32 %v10187, %v10697
        %v10944 = vmul.f32 %v10188, %v10704
        %v10945 = vmul.f32 %v10189, %v10708
        %v10946 = vmul.f32 %v10190, %v10712
        %v10947 = vmul.f32 %v10191, %v10719
        %v10948 = vmul.f32 %v10192, %v10723
        %v10949 = vmul.f32 %v10193, %v10727
        %v10950 = vmul.f32 %v10194, %v10734
        %v10951 = vmul.f32 %v10195, %v10738
        %v10952 = vmul.f32 %v10196, %v10742
        %v10953 = vmul.f32 %v10197, %v10749
        %v10954 = vmul.f32 %v10198, %v10753
        %v10955 = vmul.f32 %v10199, %v10757
        %v10956 = vmul.f32 %v10200, %v10764
        %v10957 = vmul.f32 %v10201, %v10768
        %v10958 = vmul.f32 %v10202, %v10772
        %v10959 = vmul.f32 %v10203, %v10779
        %v10960 = vmul.f32 %v10204, %v10783
        %v10961 = vmul.f32 %v10205, %v10787
        %v10962 = vmul.f32 %v10206, %v10794
        %v10963 = vmul.f32 %v10207, %v10798
        %v10964 = vmul.f32 %v10208, %v10802
        %v10965 = vmul.f32 %v10209, %v10809
        %v10966 = vmul.f32 %v10210, %v10813
        %v10967 = vmul.f32 %v10211, %v10817
        %v10968 = vmul.f32 %v10212, %v10824
        %v10969 = vmul.f32 %v10213, %v10828
        %v10970 = vmul.f32 %v10214, %v10832
        %v10971 = vmul.f32 %v10215, %v10839
        %v10972 = vmul.f32 %v10216, %v10843
        %v10973 = vmul.f32 %v10217, %v10847
        %vm10974 = vcmask 31744
        %v10975 = vsel %vm10974, %v10848, 0.0
        %v10976 = vsel %vm10974, %v10851, 0.0
        %v10977 = vadd.f32 %v10975, %v10976
        %v10978 = vsel %vm10974, %v10854, 0.0
        %v10979 = vadd.f32 %v10977, %v10978
        %v10980 = vsel %vm10974, %v10857, 0.0
        %v10981 = vadd.f32 %v10979, %v10980
        %v10982 = vsel %vm10974, %v10860, 0.0
        %v10983 = vadd.f32 %v10981, %v10982
        %v10984 = vsel %vm10974, %v10863, 0.0
        %v10985 = vadd.f32 %v10983, %v10984
        %v10986 = vsel %vm10974, %v10866, 0.0
        %v10987 = vadd.f32 %v10985, %v10986
        %v10988 = vsel %vm10974, %v10869, 0.0
        %v10989 = vadd.f32 %v10987, %v10988
        %v10990 = vsel %vm10974, %v10872, 0.0
        %v10991 = vadd.f32 %v10989, %v10990
        %v10992 = vsel %vm10974, %v10875, 0.0
        %v10993 = vadd.f32 %v10991, %v10992
        %v10994 = vsel %vm10974, %v10878, 0.0
        %v10995 = vadd.f32 %v10993, %v10994
        %v10996 = vsel %vm10974, %v10881, 0.0
        %v10997 = vadd.f32 %v10995, %v10996
        %v10998 = vsel %vm10974, %v10884, 0.0
        %v10999 = vadd.f32 %v10997, %v10998
        %v11000 = vsel %vm10974, %v10887, 0.0
        %v11001 = vadd.f32 %v10999, %v11000
        %v11002 = vsel %vm10974, %v10890, 0.0
        %v11003 = vadd.f32 %v11001, %v11002
        %v11004 = vsel %vm10974, %v10893, 0.0
        %v11005 = vadd.f32 %v11003, %v11004
        %v11006 = vsel %vm10974, %v10896, 0.0
        %v11007 = vadd.f32 %v11005, %v11006
        %v11008 = vsel %vm10974, %v10899, 0.0
        %v11009 = vadd.f32 %v11007, %v11008
        %v11010 = vsel %vm10974, %v10902, 0.0
        %v11011 = vadd.f32 %v11009, %v11010
        %v11012 = vsel %vm10974, %v10905, 0.0
        %v11013 = vadd.f32 %v11011, %v11012
        %v11014 = vsel %vm10974, %v10908, 0.0
        %v11015 = vadd.f32 %v11013, %v11014
        %v11016 = vsel %vm10974, %v10911, 0.0
        %v11017 = vadd.f32 %v11015, %v11016
        %v11018 = vsel %vm10974, %v10914, 0.0
        %v11019 = vadd.f32 %v11017, %v11018
        %v11020 = vsel %vm10974, %v10917, 0.0
        %v11021 = vadd.f32 %v11019, %v11020
        %v11022 = vsel %vm10974, %v10920, 0.0
        %v11023 = vadd.f32 %v11021, %v11022
        %v11024 = vsel %vm10974, %v10923, 0.0
        %v11025 = vadd.f32 %v11023, %v11024
        %v11026 = vsel %vm10974, %v10926, 0.0
        %v11027 = vadd.f32 %v11025, %v11026
        %v11028 = vsel %vm10974, %v10929, 0.0
        %v11029 = vadd.f32 %v11027, %v11028
        %v11030 = vsel %vm10974, %v10932, 0.0
        %v11031 = vadd.f32 %v11029, %v11030
        %v11032 = vsel %vm10974, %v10935, 0.0
        %v11033 = vadd.f32 %v11031, %v11032
        %v11034 = vsel %vm10974, %v10938, 0.0
        %v11035 = vadd.f32 %v11033, %v11034
        %v11036 = vsel %vm10974, %v10941, 0.0
        %v11037 = vadd.f32 %v11035, %v11036
        %v11038 = vsel %vm10974, %v10944, 0.0
        %v11039 = vadd.f32 %v11037, %v11038
        %v11040 = vsel %vm10974, %v10947, 0.0
        %v11041 = vadd.f32 %v11039, %v11040
        %v11042 = vsel %vm10974, %v10950, 0.0
        %v11043 = vadd.f32 %v11041, %v11042
        %v11044 = vsel %vm10974, %v10953, 0.0
        %v11045 = vadd.f32 %v11043, %v11044
        %v11046 = vsel %vm10974, %v10956, 0.0
        %v11047 = vadd.f32 %v11045, %v11046
        %v11048 = vsel %vm10974, %v10959, 0.0
        %v11049 = vadd.f32 %v11047, %v11048
        %v11050 = vsel %vm10974, %v10962, 0.0
        %v11051 = vadd.f32 %v11049, %v11050
        %v11052 = vsel %vm10974, %v10965, 0.0
        %v11053 = vadd.f32 %v11051, %v11052
        %v11054 = vsel %vm10974, %v10968, 0.0
        %v11055 = vadd.f32 %v11053, %v11054
        %v11056 = vsel %vm10974, %v10971, 0.0
        %v11057 = vadd.f32 %v11055, %v11056
        %v11058 = vsel %vm10974, %v10849, 0.0
        %v11059 = vsel %vm10974, %v10852, 0.0
        %v11060 = vadd.f32 %v11058, %v11059
        %v11061 = vsel %vm10974, %v10855, 0.0
        %v11062 = vadd.f32 %v11060, %v11061
        %v11063 = vsel %vm10974, %v10858, 0.0
        %v11064 = vadd.f32 %v11062, %v11063
        %v11065 = vsel %vm10974, %v10861, 0.0
        %v11066 = vadd.f32 %v11064, %v11065
        %v11067 = vsel %vm10974, %v10864, 0.0
        %v11068 = vadd.f32 %v11066, %v11067
        %v11069 = vsel %vm10974, %v10867, 0.0
        %v11070 = vadd.f32 %v11068, %v11069
        %v11071 = vsel %vm10974, %v10870, 0.0
        %v11072 = vadd.f32 %v11070, %v11071
        %v11073 = vsel %vm10974, %v10873, 0.0
        %v11074 = vadd.f32 %v11072, %v11073
        %v11075 = vsel %vm10974, %v10876, 0.0
        %v11076 = vadd.f32 %v11074, %v11075
        %v11077 = vsel %vm10974, %v10879, 0.0
        %v11078 = vadd.f32 %v11076, %v11077
        %v11079 = vsel %vm10974, %v10882, 0.0
        %v11080 = vadd.f32 %v11078, %v11079
        %v11081 = vsel %vm10974, %v10885, 0.0
        %v11082 = vadd.f32 %v11080, %v11081
        %v11083 = vsel %vm10974, %v10888, 0.0
        %v11084 = vadd.f32 %v11082, %v11083
        %v11085 = vsel %vm10974, %v10891, 0.0
        %v11086 = vadd.f32 %v11084, %v11085
        %v11087 = vsel %vm10974, %v10894, 0.0
        %v11088 = vadd.f32 %v11086, %v11087
        %v11089 = vsel %vm10974, %v10897, 0.0
        %v11090 = vadd.f32 %v11088, %v11089
        %v11091 = vsel %vm10974, %v10900, 0.0
        %v11092 = vadd.f32 %v11090, %v11091
        %v11093 = vsel %vm10974, %v10903, 0.0
        %v11094 = vadd.f32 %v11092, %v11093
        %v11095 = vsel %vm10974, %v10906, 0.0
        %v11096 = vadd.f32 %v11094, %v11095
        %v11097 = vsel %vm10974, %v10909, 0.0
        %v11098 = vadd.f32 %v11096, %v11097
        %v11099 = vsel %vm10974, %v10912, 0.0
        %v11100 = vadd.f32 %v11098, %v11099
        %v11101 = vsel %vm10974, %v10915, 0.0
        %v11102 = vadd.f32 %v11100, %v11101
        %v11103 = vsel %vm10974, %v10918, 0.0
        %v11104 = vadd.f32 %v11102, %v11103
        %v11105 = vsel %vm10974, %v10921, 0.0
        %v11106 = vadd.f32 %v11104, %v11105
        %v11107 = vsel %vm10974, %v10924, 0.0
        %v11108 = vadd.f32 %v11106, %v11107
        %v11109 = vsel %vm10974, %v10927, 0.0
        %v11110 = vadd.f32 %v11108, %v11109
        %v11111 = vsel %vm10974, %v10930, 0.0
        %v11112 = vadd.f32 %v11110, %v11111
        %v11113 = vsel %vm10974, %v10933, 0.0
        %v11114 = vadd.f32 %v11112, %v11113
        %v11115 = vsel %vm10974, %v10936, 0.0
        %v11116 = vadd.f32 %v11114, %v11115
        %v11117 = vsel %vm10974, %v10939, 0.0
        %v11118 = vadd.f32 %v11116, %v11117
        %v11119 = vsel %vm10974, %v10942, 0.0
        %v11120 = vadd.f32 %v11118, %v11119
        %v11121 = vsel %vm10974, %v10945, 0.0
        %v11122 = vadd.f32 %v11120, %v11121
        %v11123 = vsel %vm10974, %v10948, 0.0
        %v11124 = vadd.f32 %v11122, %v11123
        %v11125 = vsel %vm10974, %v10951, 0.0
        %v11126 = vadd.f32 %v11124, %v11125
        %v11127 = vsel %vm10974, %v10954, 0.0
        %v11128 = vadd.f32 %v11126, %v11127
        %v11129 = vsel %vm10974, %v10957, 0.0
        %v11130 = vadd.f32 %v11128, %v11129
        %v11131 = vsel %vm10974, %v10960, 0.0
        %v11132 = vadd.f32 %v11130, %v11131
        %v11133 = vsel %vm10974, %v10963, 0.0
        %v11134 = vadd.f32 %v11132, %v11133
        %v11135 = vsel %vm10974, %v10966, 0.0
        %v11136 = vadd.f32 %v11134, %v11135
        %v11137 = vsel %vm10974, %v10969, 0.0
        %v11138 = vadd.f32 %v11136, %v11137
        %v11139 = vsel %vm10974, %v10972, 0.0
        %v11140 = vadd.f32 %v11138, %v11139
        %vm11141 = vcmask 27648
        %v11142 = vsel %vm11141, %v10850, 0.0
        %v11143 = vsel %vm11141, %v10853, 0.0
        %v11144 = vadd.f32 %v11142, %v11143
        %v11145 = vsel %vm11141, %v10856, 0.0
        %v11146 = vadd.f32 %v11144, %v11145
        %v11147 = vsel %vm11141, %v10859, 0.0
        %v11148 = vadd.f32 %v11146, %v11147
        %v11149 = vsel %vm11141, %v10862, 0.0
        %v11150 = vadd.f32 %v11148, %v11149
        %v11151 = vsel %vm11141, %v10865, 0.0
        %v11152 = vadd.f32 %v11150, %v11151
        %v11153 = vsel %vm11141, %v10868, 0.0
        %v11154 = vadd.f32 %v11152, %v11153
        %v11155 = vsel %vm11141, %v10871, 0.0
        %v11156 = vadd.f32 %v11154, %v11155
        %v11157 = vsel %vm11141, %v10874, 0.0
        %v11158 = vadd.f32 %v11156, %v11157
        %v11159 = vsel %vm11141, %v10877, 0.0
        %v11160 = vadd.f32 %v11158, %v11159
        %v11161 = vsel %vm11141, %v10880, 0.0
        %v11162 = vadd.f32 %v11160, %v11161
        %v11163 = vsel %vm11141, %v10883, 0.0
        %v11164 = vadd.f32 %v11162, %v11163
        %v11165 = vsel %vm11141, %v10886, 0.0
        %v11166 = vadd.f32 %v11164, %v11165
        %v11167 = vsel %vm11141, %v10889, 0.0
        %v11168 = vadd.f32 %v11166, %v11167
        %v11169 = vsel %vm11141, %v10892, 0.0
        %v11170 = vadd.f32 %v11168, %v11169
        %v11171 = vsel %vm11141, %v10895, 0.0
        %v11172 = vadd.f32 %v11170, %v11171
        %v11173 = vsel %vm11141, %v10898, 0.0
        %v11174 = vadd.f32 %v11172, %v11173
        %v11175 = vsel %vm11141, %v10901, 0.0
        %v11176 = vadd.f32 %v11174, %v11175
        %v11177 = vsel %vm11141, %v10904, 0.0
        %v11178 = vadd.f32 %v11176, %v11177
        %v11179 = vsel %vm11141, %v10907, 0.0
        %v11180 = vadd.f32 %v11178, %v11179
        %v11181 = vsel %vm11141, %v10910, 0.0
        %v11182 = vadd.f32 %v11180, %v11181
        %v11183 = vsel %vm11141, %v10913, 0.0
        %v11184 = vadd.f32 %v11182, %v11183
        %v11185 = vsel %vm11141, %v10916, 0.0
        %v11186 = vadd.f32 %v11184, %v11185
        %v11187 = vsel %vm11141, %v10919, 0.0
        %v11188 = vadd.f32 %v11186, %v11187
        %v11189 = vsel %vm11141, %v10922, 0.0
        %v11190 = vadd.f32 %v11188, %v11189
        %v11191 = vsel %vm11141, %v10925, 0.0
        %v11192 = vadd.f32 %v11190, %v11191
        %v11193 = vsel %vm11141, %v10928, 0.0
        %v11194 = vadd.f32 %v11192, %v11193
        %v11195 = vsel %vm11141, %v10931, 0.0
        %v11196 = vadd.f32 %v11194, %v11195
        %v11197 = vsel %vm11141, %v10934, 0.0
        %v11198 = vadd.f32 %v11196, %v11197
        %v11199 = vsel %vm11141, %v10937, 0.0
        %v11200 = vadd.f32 %v11198, %v11199
        %v11201 = vsel %vm11141, %v10940, 0.0
        %v11202 = vadd.f32 %v11200, %v11201
        %v11203 = vsel %vm11141, %v10943, 0.0
        %v11204 = vadd.f32 %v11202, %v11203
        %v11205 = vsel %vm11141, %v10946, 0.0
        %v11206 = vadd.f32 %v11204, %v11205
        %v11207 = vsel %vm11141, %v10949, 0.0
        %v11208 = vadd.f32 %v11206, %v11207
        %v11209 = vsel %vm11141, %v10952, 0.0
        %v11210 = vadd.f32 %v11208, %v11209
        %v11211 = vsel %vm11141, %v10955, 0.0
        %v11212 = vadd.f32 %v11210, %v11211
        %v11213 = vsel %vm11141, %v10958, 0.0
        %v11214 = vadd.f32 %v11212, %v11213
        %v11215 = vsel %vm11141, %v10961, 0.0
        %v11216 = vadd.f32 %v11214, %v11215
        %v11217 = vsel %vm11141, %v10964, 0.0
        %v11218 = vadd.f32 %v11216, %v11217
        %v11219 = vsel %vm11141, %v10967, 0.0
        %v11220 = vadd.f32 %v11218, %v11219
        %v11221 = vsel %vm11141, %v10970, 0.0
        %v11222 = vadd.f32 %v11220, %v11221
        %v11223 = vsel %vm11141, %v10973, 0.0
        %v11224 = vadd.f32 %v11222, %v11223
        %v11225 = vsel %vm10974, %v11057, 0.0
        %v11226 = vsel %vm10974, %v11140, 0.0
        %v11227 = vadd.f32 %v11225, %v11226
        %v11228 = vsel %vm11141, %v11224, 0.0
        %v11229 = vadd.f32 %v11227, %v11228
        %v11230 = vrot.slane %v11229, 4
        %v11231 = vadd.f32 %v11229, %v11230
        %v11232 = vrot.slane %v11231, 2
        %v11233 = vadd.f32 %v11231, %v11232
        %v11234 = vrot.slane %v11233, 1
        %v11235 = vadd.f32 %v11233, %v11234
        %v11236 = vld [vmem:[%s7] sm:$0x1]
        %v11237 = vadd.f32 %v11235, %v11236
        %vm11238 = vcmask 24576
        %11239 = vst.msk [vmem:[%s297] sm:$0x1] %vm11238, %v11237
        %s11240 = sand.u32 %s203, 1
        %s11241 = scalar_lea.sflag [#allocation3], %s11240
        %s11242 = sand.u32 %s203, 1
        %s11243 = scalar_lea.vmem [#allocation2], %s11242
        // Predicated region
        $region53: #{sccnet_forward.1} parent=51 // pred_check
          %p11244 = pneg %p213
        $region54: #{sccnet_forward.1} parent=51 // pred_check_branch
          %11246 = sbr.rel (%p11244) target = $region56
        $region55: #{sccnet_forward.1} parent=51 // pred_region
          %s11248 = ssub.s32 16, 16
          %11249 = vsyncadd %s11241, %s11248
          %s11250 = smul.addr %s22, 16
          %s11251 = scalar_lea.hbm %s8, %s11250
          %s11253 = sshll.u32 %s11243, 4
          %s11254 = int_to_ptr.vmem [resolvable:$true] %s11253
          %11256 = dma.vmem_to_hbm [thread:$0]  %s11254, 16, %s11251, %s11241
        $region56: #{sccnet_forward.1} parent=51 // pred_fallthru
          _
      $region52: #{sccnet_forward.1} parent=5 // pred_fallthru
        _
      %p11257 = scmp.le.s32.totalorder 2, %s17
      // Predicated region
      $region57: #{sccnet_forward.1} parent=5 // pred_check
        %p11258 = pneg %p11257
      $region58: #{sccnet_forward.1} parent=5 // pred_check_branch
        %11260 = sbr.rel (%p11258) target = $region60
      $region59: #{sccnet_forward.1} parent=5 // pred_region
        %s11261 = ssub.s32 %s17, 2
        // Predicated region
        $region61: #{sccnet_forward.1} parent=59 // pred_check
          %p11262 = pneg %p219
        $region62: #{sccnet_forward.1} parent=59 // pred_check_branch
          %11264 = sbr.rel (%p11262) target = $region64
        $region63: #{sccnet_forward.1} parent=59 // pred_region
          %s11265 = sand.u32 %s204, 1
          %s11266 = scalar_lea.sflag [#allocation3], %s11265
          %s11267 = sand.u32 %s204, 1
          %s11268 = scalar_lea.vmem [#allocation2], %s11267
          %11269 = dma.done %s11266, 16
        $region64: #{sccnet_forward.1} parent=59 // pred_fallthru
          _
      $region60: #{sccnet_forward.1} parent=5 // pred_fallthru
        _
    $region6: #{sccnet_forward.1} parent=1 // loop_footer
      %s21 = sadd.s32 1, %s17
    $region7: #{sccnet_forward.1} parent=1 // loop_footer_branch
      %16 = sbr.rel target = $region3
    $region8: #{sccnet_forward.1} parent=1 // loop_exit
      _
    %11270 = vsyncpa [#allocation3], 1
    %s11271 = scalar_lea.sflag [#allocation3], 1
    %11272 = vsyncpa %s11271, 1

</llo_original>
